<compile_context>
chip_gen: v5e
topology: v5e:2x2
jax: 0.10.0
libtpu: 0.0.40
codegen_flags: <defaults>
</compile_context>

<pallas_src>
import jax
import jax.numpy as jnp
from jax import lax
from jax.experimental import pallas as pl
from jax.experimental.pallas import tpu as pltpu


def _round_up(x, m):
    return ((x + m - 1) // m) * m


def _vmem_limit_bytes():
    """Per-generation VMEM budget: ~3/4 of physical (96 MiB on v5e/v6e,
    48 MiB on v7x). Conservative fallback if the query is unavailable."""
    try:
        cap = pltpu.get_tpu_info().vmem_capacity_bytes
        return int(cap * 3 // 4)
    except Exception:
        return 48 * 1024 * 1024


def _make_fused_kernel(H, W, Cin, Cact, Cout, Cpad, n_conv):
    """Build the fused multi-stage kernel (all shape params are static)."""
    HW = H * W
    K = 9 * Cact

    def kernel(x_ref, w_ref, b_ref, s_ref, t_ref, o_ref, xpad_ref, col_ref):
        # x_ref   : (H, W, Cin)            bf16  input image (one batch element)
        # w_ref   : (n_conv, 9*Cact, Cpad) bf16  conv taps, K index = tap*Cact + ci
        # b_ref   : (n_conv, 1, Cpad)      f32   conv bias (zero-padded lanes)
        # s_ref   : (n_conv, 1, Cpad)      f32   BN scale = gamma/sqrt(var+eps)
        # t_ref   : (n_conv, 1, Cpad)      f32   BN shift = beta - mean*scale
        # o_ref   : (H*W, Cpad)            bf16  lane-dense output slab
        # xpad_ref: (H+2, W+2, Cact)       bf16  zero-halo padded activation (scratch)
        # col_ref : (H, W, 9*Cact)         bf16  im2col operand (scratch)

        # Zero the padded scratch ONCE.  The scratch persists across grid
        # steps, the halo ring is never written afterwards, and any stale
        # interior lane >= Cin (stage 0) / >= Cout (later stages) is a finite
        # previous activation multiplied by a zero-padded weight lane -> 0.
        # Sound because the grid axis is "arbitrary" (sequential on one core).
        @pl.when(pl.program_id(0) == 0)
        def _init():
            xpad_ref[...] = jnp.zeros_like(xpad_ref)

        # Place this image in the interior of the zero-halo scratch.
        xpad_ref[1:H + 1, 1:W + 1, :Cin] = x_ref[...]

        for i in range(n_conv):  # static unroll over stages
            # Lane-dense im2col: 9 shifted (H, W, Cact) windows, each a full
            # multiple of 128 lanes -> unmasked full-lane copies only.
            for ky in range(3):
                for kx in range(3):
                    tap = ky * 3 + kx
                    col_ref[:, :, tap * Cact:(tap + 1) * Cact] = (
                        xpad_ref[ky:ky + H, kx:kx + W, :])

            lhs = col_ref[...].reshape(HW, K)                  # merge leading dims
            acc = jnp.dot(lhs, w_ref[i],                       # one MXU call, f32 acc
                          preferred_element_type=jnp.float32)  # (HW, Cpad)
            acc = acc + b_ref[i]                               # conv bias
            acc = jnp.where(acc > 0, acc, 0.01 * acc)          # LeakyReLU(0.01)
            acc = acc * s_ref[i] + t_ref[i]                    # eval-mode BN affine
            # Dropout2d(0.25) in eval mode: identity.

            if i + 1 < n_conv:
                # Lane-dense bf16 writeback into the interior for the next
                # conv (Cpad is a multiple of 128; halo stays zero; padded
                # output lanes are exactly 0 by construction).
                xpad_ref[1:H + 1, 1:W + 1, :Cpad] = (
                    acc.astype(xpad_ref.dtype).reshape(H, W, Cpad))
            else:
                # Lane-dense, unmasked full-width bf16 store of the result.
                o_ref[...] = acc.astype(o_ref.dtype)

    return kernel


def conv_block_forward(x_nchw, params, n_conv, eps=1e-5):
    """Pallas implementation of conv_block.forward (eval mode). NCHW in/out."""
    N, Cin, H, W = x_nchw.shape
    Cout = params["conv0_w"].shape[-1]
    Cact = _round_up(max(Cin, Cout), 128)   # lane-dense activation channel width
    Cpad = _round_up(Cout, 128)             # lane-dense matmul-N / output width

    # NCHW -> NHWC; activations travel as bf16.
    x = jnp.transpose(x_nchw, (0, 2, 3, 1)).astype(jnp.bfloat16)

    # Stack per-stage parameters:
    #   weights -> (n_conv, 9*Cact, Cpad) bf16, K index = (ky*3+kx)*Cact + ci
    #   bias / BN scale / BN shift -> (n_conv, 1, Cpad) f32 (zero-padded lanes)
    w_list, b_list, s_list, t_list = [], [], [], []
    for i in range(n_conv):
        w = params[f"conv{i}_w"]                       # (3, 3, cin_i, Cout) HWIO
        cin_i = w.shape[2]
        w = jnp.pad(w, ((0, 0), (0, 0), (0, Cact - cin_i), (0, Cpad - Cout)))
        w_list.append(w.reshape(9 * Cact, Cpad))

        scale = params[f"bn{i}_gamma"] / jnp.sqrt(params[f"bn{i}_var"] + eps)
        shift = params[f"bn{i}_beta"] - params[f"bn{i}_mean"] * scale
        b_list.append(jnp.pad(params[f"conv{i}_b"], (0, Cpad - Cout)).reshape(1, Cpad))
        s_list.append(jnp.pad(scale, (0, Cpad - Cout)).reshape(1, Cpad))
        t_list.append(jnp.pad(shift, (0, Cpad - Cout)).reshape(1, Cpad))

    w_stack = jnp.stack(w_list).astype(jnp.bfloat16)
    b_stack = jnp.stack(b_list).astype(jnp.float32)
    s_stack = jnp.stack(s_list).astype(jnp.float32)
    t_stack = jnp.stack(t_list).astype(jnp.float32)

    kernel = _make_fused_kernel(H, W, Cin, Cact, Cout, Cpad, n_conv)

    out = pl.pallas_call(
        kernel,
        out_shape=jax.ShapeDtypeStruct((N, H * W, Cpad), jnp.bfloat16),
        grid=(N,),
        in_specs=[
            pl.BlockSpec((None, H, W, Cin), lambda n: (n, 0, 0, 0)),
            pl.BlockSpec((n_conv, 9 * Cact, Cpad), lambda n: (0, 0, 0)),
            pl.BlockSpec((n_conv, 1, Cpad), lambda n: (0, 0, 0)),
            pl.BlockSpec((n_conv, 1, Cpad), lambda n: (0, 0, 0)),
            pl.BlockSpec((n_conv, 1, Cpad), lambda n: (0, 0, 0)),
        ],
        out_specs=pl.BlockSpec((None, H * W, Cpad), lambda n: (n, 0, 0)),
        scratch_shapes=[
            pltpu.VMEM((H + 2, W + 2, Cact), jnp.bfloat16),   # padded activation
            pltpu.VMEM((H, W, 9 * Cact), jnp.bfloat16),       # im2col operand
        ],
        compiler_params=pltpu.CompilerParams(
            # "arbitrary": the zero-once scratch init relies on a sequential
            # grid walk (scratch is per-core, pid==0 must be seen by the core).
            dimension_semantics=("arbitrary",),
            vmem_limit_bytes=_vmem_limit_bytes(),
        ),
    )(x, w_stack, b_stack, s_stack, t_stack)

    # Un-pad the lane-dense slab and go back to PyTorch NCHW / f32.
    out = out[:, :, :Cout].astype(jnp.float32).reshape(N, H, W, Cout)
    return jnp.transpose(out, (0, 3, 1, 2))


def init_params(key, in_channels, out_channels, n_conv):
    """Deterministic synthetic parameters (shapes match nn.Conv2d / BatchNorm2d)."""
    params = {}
    cin = in_channels
    for i in range(n_conv):
        key, kw, kb, kg, kbe, km, kv = jax.random.split(key, 7)
        fan_in = cin * 9
        params[f"conv{i}_w"] = (
            jax.random.normal(kw, (3, 3, cin, out_channels), jnp.float32)
            / jnp.sqrt(float(fan_in))
        )
        params[f"conv{i}_b"] = 0.1 * jax.random.normal(kb, (out_channels,), jnp.float32)
        params[f"bn{i}_gamma"] = 1.0 + 0.1 * jax.random.normal(kg, (out_channels,), jnp.float32)
        params[f"bn{i}_beta"] = 0.1 * jax.random.normal(kbe, (out_channels,), jnp.float32)
        params[f"bn{i}_mean"] = 0.1 * jax.random.normal(km, (out_channels,), jnp.float32)
        params[f"bn{i}_var"] = jax.random.uniform(
            kv, (out_channels,), jnp.float32, minval=0.5, maxval=1.5
        )
        cin = out_channels
    return params


def conv_block_reference(x_nchw, params, n_conv, eps=1e-5):
    """Pure-JAX reference mirroring the kernel's precision choices
    (bf16 conv operands / inter-stage activations / final store, f32 math)."""
    x = jnp.transpose(x_nchw, (0, 2, 3, 1))
    x = x.astype(jnp.bfloat16).astype(jnp.float32)
    for i in range(n_conv):
        w = params[f"conv{i}_w"].astype(jnp.bfloat16).astype(jnp.float32)
        y = lax.conv_general_dilated(
            x, w, window_strides=(1, 1), padding="SAME",
            dimension_numbers=("NHWC", "HWIO", "NHWC"),
        ) + params[f"conv{i}_b"]
        y = jnp.where(y > 0, y, 0.01 * y)
        scale = params[f"bn{i}_gamma"] / jnp.sqrt(params[f"bn{i}_var"] + eps)
        shift = params[f"bn{i}_beta"] - params[f"bn{i}_mean"] * scale
        y = y * scale + shift
        x = y.astype(jnp.bfloat16).astype(jnp.float32)   # bf16 inter-stage / output
    return jnp.transpose(x, (0, 3, 1, 2))


if __name__ == "__main__":
    N, Cin, H, W = 2, 4, 16, 16
    Cout, n_conv = 8, 2

    key = jax.random.PRNGKey(0)
    kx, kp = jax.random.split(key)
    x = jax.random.normal(kx, (N, Cin, H, W), jnp.float32)   # PyTorch NCHW input
    params = init_params(kp, Cin, Cout, n_conv)

    forward = jax.jit(conv_block_forward, static_argnames=("n_conv",))
    out = jax.block_until_ready(forward(x, params, n_conv=n_conv))

    ref = jax.block_until_ready(conv_block_reference(x, params, n_conv))
    assert out.shape == (N, Cout, H, W), out.shape
    max_err = float(jnp.max(jnp.abs(out - ref)))
    # Tolerance reflects the intentional bf16 operand / output path.
    assert jnp.allclose(out, ref, atol=2e-2, rtol=2e-2), max_err

    print("KERNEL_OK")
</pallas_src>

<mosaic_0001>
module attributes {stable_mosaic.version = 11 : i64} {
  func.func @kernel(%arg0: i32, %arg1: memref<1x16x16x4xbf16, #tpu.memory_space<vmem>>, %arg2: memref<2x1152x128xbf16, #tpu.memory_space<vmem>>, %arg3: memref<2x1x128xf32, #tpu.memory_space<vmem>>, %arg4: memref<2x1x128xf32, #tpu.memory_space<vmem>>, %arg5: memref<2x1x128xf32, #tpu.memory_space<vmem>>, %arg6: memref<1x256x128xbf16, #tpu.memory_space<vmem>>, %arg7: memref<18x18x128xbf16, #tpu.memory_space<vmem>>, %arg8: memref<16x16x1152xbf16, #tpu.memory_space<vmem>>) attributes {dimension_semantics = [#tpu.dimension_semantics<arbitrary>], iteration_bounds = array<i64: 2>, scalar_prefetch = 0 : i64, scratch_operands = 2 : i64, tpu.core_type = #tpu.core_type<tc>, window_params = [{transform_indices = @transform_0, window_bounds = array<i64: 1, 16, 16, 4>}, {pipeline_mode = #tpu.pipeline_mode<synchronous>, transform_indices = @transform_1, window_bounds = array<i64: 2, 1152, 128>}, {pipeline_mode = #tpu.pipeline_mode<synchronous>, transform_indices = @transform_2, window_bounds = array<i64: 2, 1, 128>}, {pipeline_mode = #tpu.pipeline_mode<synchronous>, transform_indices = @transform_3, window_bounds = array<i64: 2, 1, 128>}, {pipeline_mode = #tpu.pipeline_mode<synchronous>, transform_indices = @transform_4, window_bounds = array<i64: 2, 1, 128>}, {transform_indices = @transform_5, window_bounds = array<i64: 1, 256, 128>}]} {
    %c0_i32 = arith.constant 0 : i32
    %0 = arith.cmpi eq, %arg0, %c0_i32 : i32
    %1 = arith.extui %0 : i1 to i32
    %c0_i32_0 = arith.constant 0 : i32
    %2 = arith.cmpi ne, %1, %c0_i32_0 : i32
    scf.if %2 {
      %cst_146 = arith.constant 0.000000e+00 : bf16
      %93 = vector.broadcast %cst_146 : bf16 to vector<18x18x128xbf16>
      %c0_147 = arith.constant 0 : index
      %c0_148 = arith.constant 0 : index
      %c0_149 = arith.constant 0 : index
      %94 = vector.load %arg7[%c0_147, %c0_148, %c0_149] : memref<18x18x128xbf16, #tpu.memory_space<vmem>>, vector<18x18x128xbf16>
      tpu.vector_store %arg7[%c0_147, %c0_148, %c0_149], %93 {strides = array<i32>} : memref<18x18x128xbf16, #tpu.memory_space<vmem>>, vector<18x18x128xbf16>,
    } else {
    }
    %c0 = arith.constant 0 : index
    %c0_1 = arith.constant 0 : index
    %c0_2 = arith.constant 0 : index
    %c0_3 = arith.constant 0 : index
    %3 = vector.load %arg1[%c0, %c0_1, %c0_2, %c0_3] : memref<1x16x16x4xbf16, #tpu.memory_space<vmem>>, vector<1x16x16x4xbf16>
    %4 = vector.shape_cast %3 : vector<1x16x16x4xbf16> to vector<16x16x4xbf16>
    %c1 = arith.constant 1 : index
    %c1_4 = arith.constant 1 : index
    %c0_5 = arith.constant 0 : index
    %5 = vector.load %arg7[%c1, %c1_4, %c0_5] : memref<18x18x128xbf16, #tpu.memory_space<vmem>>, vector<16x16x4xbf16>
    tpu.vector_store %arg7[%c1, %c1_4, %c0_5], %4 {strides = array<i32>} : memref<18x18x128xbf16, #tpu.memory_space<vmem>>, vector<16x16x4xbf16>,
    %c0_6 = arith.constant 0 : index
    %c0_7 = arith.constant 0 : index
    %c0_8 = arith.constant 0 : index
    %6 = vector.load %arg7[%c0_6, %c0_7, %c0_8] : memref<18x18x128xbf16, #tpu.memory_space<vmem>>, vector<16x16x128xbf16>
    %c0_9 = arith.constant 0 : index
    %c0_10 = arith.constant 0 : index
    %c0_11 = arith.constant 0 : index
    %7 = vector.load %arg8[%c0_9, %c0_10, %c0_11] : memref<16x16x1152xbf16, #tpu.memory_space<vmem>>, vector<16x16x128xbf16>
    tpu.vector_store %arg8[%c0_9, %c0_10, %c0_11], %6 {strides = array<i32>} : memref<16x16x1152xbf16, #tpu.memory_space<vmem>>, vector<16x16x128xbf16>,
    %c0_12 = arith.constant 0 : index
    %c1_13 = arith.constant 1 : index
    %c0_14 = arith.constant 0 : index
    %8 = vector.load %arg7[%c0_12, %c1_13, %c0_14] : memref<18x18x128xbf16, #tpu.memory_space<vmem>>, vector<16x16x128xbf16>
    %c0_15 = arith.constant 0 : index
    %c0_16 = arith.constant 0 : index
    %c128 = arith.constant 128 : index
    %9 = vector.load %arg8[%c0_15, %c0_16, %c128] : memref<16x16x1152xbf16, #tpu.memory_space<vmem>>, vector<16x16x128xbf16>
    tpu.vector_store %arg8[%c0_15, %c0_16, %c128], %8 {strides = array<i32>} : memref<16x16x1152xbf16, #tpu.memory_space<vmem>>, vector<16x16x128xbf16>,
    %c0_17 = arith.constant 0 : index
    %c2 = arith.constant 2 : index
    %c0_18 = arith.constant 0 : index
    %10 = vector.load %arg7[%c0_17, %c2, %c0_18] : memref<18x18x128xbf16, #tpu.memory_space<vmem>>, vector<16x16x128xbf16>
    %c0_19 = arith.constant 0 : index
    %c0_20 = arith.constant 0 : index
    %c256 = arith.constant 256 : index
    %11 = vector.load %arg8[%c0_19, %c0_20, %c256] : memref<16x16x1152xbf16, #tpu.memory_space<vmem>>, vector<16x16x128xbf16>
    tpu.vector_store %arg8[%c0_19, %c0_20, %c256], %10 {strides = array<i32>} : memref<16x16x1152xbf16, #tpu.memory_space<vmem>>, vector<16x16x128xbf16>,
    %c1_21 = arith.constant 1 : index
    %c0_22 = arith.constant 0 : index
    %c0_23 = arith.constant 0 : index
    %12 = vector.load %arg7[%c1_21, %c0_22, %c0_23] : memref<18x18x128xbf16, #tpu.memory_space<vmem>>, vector<16x16x128xbf16>
    %c0_24 = arith.constant 0 : index
    %c0_25 = arith.constant 0 : index
    %c384 = arith.constant 384 : index
    %13 = vector.load %arg8[%c0_24, %c0_25, %c384] : memref<16x16x1152xbf16, #tpu.memory_space<vmem>>, vector<16x16x128xbf16>
    tpu.vector_store %arg8[%c0_24, %c0_25, %c384], %12 {strides = array<i32>} : memref<16x16x1152xbf16, #tpu.memory_space<vmem>>, vector<16x16x128xbf16>,
    %c1_26 = arith.constant 1 : index
    %c1_27 = arith.constant 1 : index
    %c0_28 = arith.constant 0 : index
    %14 = vector.load %arg7[%c1_26, %c1_27, %c0_28] : memref<18x18x128xbf16, #tpu.memory_space<vmem>>, vector<16x16x128xbf16>
    %c0_29 = arith.constant 0 : index
    %c0_30 = arith.constant 0 : index
    %c512 = arith.constant 512 : index
    %15 = vector.load %arg8[%c0_29, %c0_30, %c512] : memref<16x16x1152xbf16, #tpu.memory_space<vmem>>, vector<16x16x128xbf16>
    tpu.vector_store %arg8[%c0_29, %c0_30, %c512], %14 {strides = array<i32>} : memref<16x16x1152xbf16, #tpu.memory_space<vmem>>, vector<16x16x128xbf16>,
    %c1_31 = arith.constant 1 : index
    %c2_32 = arith.constant 2 : index
    %c0_33 = arith.constant 0 : index
    %16 = vector.load %arg7[%c1_31, %c2_32, %c0_33] : memref<18x18x128xbf16, #tpu.memory_space<vmem>>, vector<16x16x128xbf16>
    %c0_34 = arith.constant 0 : index
    %c0_35 = arith.constant 0 : index
    %c640 = arith.constant 640 : index
    %17 = vector.load %arg8[%c0_34, %c0_35, %c640] : memref<16x16x1152xbf16, #tpu.memory_space<vmem>>, vector<16x16x128xbf16>
    tpu.vector_store %arg8[%c0_34, %c0_35, %c640], %16 {strides = array<i32>} : memref<16x16x1152xbf16, #tpu.memory_space<vmem>>, vector<16x16x128xbf16>,
    %c2_36 = arith.constant 2 : index
    %c0_37 = arith.constant 0 : index
    %c0_38 = arith.constant 0 : index
    %18 = vector.load %arg7[%c2_36, %c0_37, %c0_38] : memref<18x18x128xbf16, #tpu.memory_space<vmem>>, vector<16x16x128xbf16>
    %c0_39 = arith.constant 0 : index
    %c0_40 = arith.constant 0 : index
    %c768 = arith.constant 768 : index
    %19 = vector.load %arg8[%c0_39, %c0_40, %c768] : memref<16x16x1152xbf16, #tpu.memory_space<vmem>>, vector<16x16x128xbf16>
    tpu.vector_store %arg8[%c0_39, %c0_40, %c768], %18 {strides = array<i32>} : memref<16x16x1152xbf16, #tpu.memory_space<vmem>>, vector<16x16x128xbf16>,
    %c2_41 = arith.constant 2 : index
    %c1_42 = arith.constant 1 : index
    %c0_43 = arith.constant 0 : index
    %20 = vector.load %arg7[%c2_41, %c1_42, %c0_43] : memref<18x18x128xbf16, #tpu.memory_space<vmem>>, vector<16x16x128xbf16>
    %c0_44 = arith.constant 0 : index
    %c0_45 = arith.constant 0 : index
    %c896 = arith.constant 896 : index
    %21 = vector.load %arg8[%c0_44, %c0_45, %c896] : memref<16x16x1152xbf16, #tpu.memory_space<vmem>>, vector<16x16x128xbf16>
    tpu.vector_store %arg8[%c0_44, %c0_45, %c896], %20 {strides = array<i32>} : memref<16x16x1152xbf16, #tpu.memory_space<vmem>>, vector<16x16x128xbf16>,
    %c2_46 = arith.constant 2 : index
    %c2_47 = arith.constant 2 : index
    %c0_48 = arith.constant 0 : index
    %22 = vector.load %arg7[%c2_46, %c2_47, %c0_48] : memref<18x18x128xbf16, #tpu.memory_space<vmem>>, vector<16x16x128xbf16>
    %c0_49 = arith.constant 0 : index
    %c0_50 = arith.constant 0 : index
    %c1024 = arith.constant 1024 : index
    %23 = vector.load %arg8[%c0_49, %c0_50, %c1024] : memref<16x16x1152xbf16, #tpu.memory_space<vmem>>, vector<16x16x128xbf16>
    tpu.vector_store %arg8[%c0_49, %c0_50, %c1024], %22 {strides = array<i32>} : memref<16x16x1152xbf16, #tpu.memory_space<vmem>>, vector<16x16x128xbf16>,
    %c0_51 = arith.constant 0 : index
    %c0_52 = arith.constant 0 : index
    %c0_53 = arith.constant 0 : index
    %24 = vector.load %arg8[%c0_51, %c0_52, %c0_53] : memref<16x16x1152xbf16, #tpu.memory_space<vmem>>, vector<16x16x1152xbf16>
    %25 = vector.shape_cast %24 : vector<16x16x1152xbf16> to vector<256x1152xbf16>
    %c0_54 = arith.constant 0 : index
    %c0_55 = arith.constant 0 : index
    %c0_56 = arith.constant 0 : index
    %26 = vector.load %arg2[%c0_54, %c0_55, %c0_56] : memref<2x1152x128xbf16, #tpu.memory_space<vmem>>, vector<1x1152x128xbf16>
    %27 = vector.shape_cast %26 : vector<1x1152x128xbf16> to vector<1152x128xbf16>
    %cst = arith.constant dense<0.000000e+00> : vector<256x128xf32>
    %28 = tpu.matmul %25, %27, %cst {dimension_numbers = #tpu.dot_dimension_numbers<[1], [0], [0], [1], [0, 0, 1, 1], [], []>} : vector<256x1152xbf16>, vector<1152x128xbf16>, vector<256x128xf32> -> vector<256x128xf32>
    %c0_57 = arith.constant 0 : index
    %c0_58 = arith.constant 0 : index
    %c0_59 = arith.constant 0 : index
    %29 = vector.load %arg3[%c0_57, %c0_58, %c0_59] : memref<2x1x128xf32, #tpu.memory_space<vmem>>, vector<1x1x128xf32>
    %30 = vector.shape_cast %29 : vector<1x1x128xf32> to vector<1x128xf32>
    %31 = vector.broadcast %30 : vector<1x128xf32> to vector<256x128xf32>
    %32 = arith.addf %28, %31 : vector<256x128xf32>
    %cst_60 = arith.constant 0.000000e+00 : f32
    %33 = vector.broadcast %cst_60 : f32 to vector<256x128xf32>
    %34 = arith.cmpf ogt, %32, %33 : vector<256x128xf32>
    %cst_61 = arith.constant 0.00999999977 : f32
    %35 = vector.broadcast %cst_61 : f32 to vector<256x128xf32>
    %36 = arith.mulf %35, %32 : vector<256x128xf32>
    %37 = arith.select %34, %32, %36 : vector<256x128xi1>, vector<256x128xf32>
    %c0_62 = arith.constant 0 : index
    %c0_63 = arith.constant 0 : index
    %c0_64 = arith.constant 0 : index
    %38 = vector.load %arg4[%c0_62, %c0_63, %c0_64] : memref<2x1x128xf32, #tpu.memory_space<vmem>>, vector<1x1x128xf32>
    %39 = vector.shape_cast %38 : vector<1x1x128xf32> to vector<1x128xf32>
    %40 = vector.broadcast %39 : vector<1x128xf32> to vector<256x128xf32>
    %41 = arith.mulf %37, %40 : vector<256x128xf32>
    %c0_65 = arith.constant 0 : index
    %c0_66 = arith.constant 0 : index
    %c0_67 = arith.constant 0 : index
    %42 = vector.load %arg5[%c0_65, %c0_66, %c0_67] : memref<2x1x128xf32, #tpu.memory_space<vmem>>, vector<1x1x128xf32>
    %43 = vector.shape_cast %42 : vector<1x1x128xf32> to vector<1x128xf32>
    %44 = vector.broadcast %43 : vector<1x128xf32> to vector<256x128xf32>
    %45 = arith.addf %41, %44 : vector<256x128xf32>
    %46 = arith.truncf %45 : vector<256x128xf32> to vector<256x128xbf16>
    %47 = vector.shape_cast %46 : vector<256x128xbf16> to vector<16x16x128xbf16>
    %c1_68 = arith.constant 1 : index
    %c1_69 = arith.constant 1 : index
    %c0_70 = arith.constant 0 : index
    %48 = vector.load %arg7[%c1_68, %c1_69, %c0_70] : memref<18x18x128xbf16, #tpu.memory_space<vmem>>, vector<16x16x128xbf16>
    tpu.vector_store %arg7[%c1_68, %c1_69, %c0_70], %47 {strides = array<i32>} : memref<18x18x128xbf16, #tpu.memory_space<vmem>>, vector<16x16x128xbf16>,
    %c0_71 = arith.constant 0 : index
    %c0_72 = arith.constant 0 : index
    %c0_73 = arith.constant 0 : index
    %49 = vector.load %arg7[%c0_71, %c0_72, %c0_73] : memref<18x18x128xbf16, #tpu.memory_space<vmem>>, vector<16x16x128xbf16>
    %c0_74 = arith.constant 0 : index
    %c0_75 = arith.constant 0 : index
    %c0_76 = arith.constant 0 : index
    %50 = vector.load %arg8[%c0_74, %c0_75, %c0_76] : memref<16x16x1152xbf16, #tpu.memory_space<vmem>>, vector<16x16x128xbf16>
    tpu.vector_store %arg8[%c0_74, %c0_75, %c0_76], %49 {strides = array<i32>} : memref<16x16x1152xbf16, #tpu.memory_space<vmem>>, vector<16x16x128xbf16>,
    %c0_77 = arith.constant 0 : index
    %c1_78 = arith.constant 1 : index
    %c0_79 = arith.constant 0 : index
    %51 = vector.load %arg7[%c0_77, %c1_78, %c0_79] : memref<18x18x128xbf16, #tpu.memory_space<vmem>>, vector<16x16x128xbf16>
    %c0_80 = arith.constant 0 : index
    %c0_81 = arith.constant 0 : index
    %c128_82 = arith.constant 128 : index
    %52 = vector.load %arg8[%c0_80, %c0_81, %c128_82] : memref<16x16x1152xbf16, #tpu.memory_space<vmem>>, vector<16x16x128xbf16>
    tpu.vector_store %arg8[%c0_80, %c0_81, %c128_82], %51 {strides = array<i32>} : memref<16x16x1152xbf16, #tpu.memory_space<vmem>>, vector<16x16x128xbf16>,
    %c0_83 = arith.constant 0 : index
    %c2_84 = arith.constant 2 : index
    %c0_85 = arith.constant 0 : index
    %53 = vector.load %arg7[%c0_83, %c2_84, %c0_85] : memref<18x18x128xbf16, #tpu.memory_space<vmem>>, vector<16x16x128xbf16>
    %c0_86 = arith.constant 0 : index
    %c0_87 = arith.constant 0 : index
    %c256_88 = arith.constant 256 : index
    %54 = vector.load %arg8[%c0_86, %c0_87, %c256_88] : memref<16x16x1152xbf16, #tpu.memory_space<vmem>>, vector<16x16x128xbf16>
    tpu.vector_store %arg8[%c0_86, %c0_87, %c256_88], %53 {strides = array<i32>} : memref<16x16x1152xbf16, #tpu.memory_space<vmem>>, vector<16x16x128xbf16>,
    %c1_89 = arith.constant 1 : index
    %c0_90 = arith.constant 0 : index
    %c0_91 = arith.constant 0 : index
    %55 = vector.load %arg7[%c1_89, %c0_90, %c0_91] : memref<18x18x128xbf16, #tpu.memory_space<vmem>>, vector<16x16x128xbf16>
    %c0_92 = arith.constant 0 : index
    %c0_93 = arith.constant 0 : index
    %c384_94 = arith.constant 384 : index
    %56 = vector.load %arg8[%c0_92, %c0_93, %c384_94] : memref<16x16x1152xbf16, #tpu.memory_space<vmem>>, vector<16x16x128xbf16>
    tpu.vector_store %arg8[%c0_92, %c0_93, %c384_94], %55 {strides = array<i32>} : memref<16x16x1152xbf16, #tpu.memory_space<vmem>>, vector<16x16x128xbf16>,
    %c1_95 = arith.constant 1 : index
    %c1_96 = arith.constant 1 : index
    %c0_97 = arith.constant 0 : index
    %57 = vector.load %arg7[%c1_95, %c1_96, %c0_97] : memref<18x18x128xbf16, #tpu.memory_space<vmem>>, vector<16x16x128xbf16>
    %c0_98 = arith.constant 0 : index
    %c0_99 = arith.constant 0 : index
    %c512_100 = arith.constant 512 : index
    %58 = vector.load %arg8[%c0_98, %c0_99, %c512_100] : memref<16x16x1152xbf16, #tpu.memory_space<vmem>>, vector<16x16x128xbf16>
    tpu.vector_store %arg8[%c0_98, %c0_99, %c512_100], %57 {strides = array<i32>} : memref<16x16x1152xbf16, #tpu.memory_space<vmem>>, vector<16x16x128xbf16>,
    %c1_101 = arith.constant 1 : index
    %c2_102 = arith.constant 2 : index
    %c0_103 = arith.constant 0 : index
    %59 = vector.load %arg7[%c1_101, %c2_102, %c0_103] : memref<18x18x128xbf16, #tpu.memory_space<vmem>>, vector<16x16x128xbf16>
    %c0_104 = arith.constant 0 : index
    %c0_105 = arith.constant 0 : index
    %c640_106 = arith.constant 640 : index
    %60 = vector.load %arg8[%c0_104, %c0_105, %c640_106] : memref<16x16x1152xbf16, #tpu.memory_space<vmem>>, vector<16x16x128xbf16>
    tpu.vector_store %arg8[%c0_104, %c0_105, %c640_106], %59 {strides = array<i32>} : memref<16x16x1152xbf16, #tpu.memory_space<vmem>>, vector<16x16x128xbf16>,
    %c2_107 = arith.constant 2 : index
    %c0_108 = arith.constant 0 : index
    %c0_109 = arith.constant 0 : index
    %61 = vector.load %arg7[%c2_107, %c0_108, %c0_109] : memref<18x18x128xbf16, #tpu.memory_space<vmem>>, vector<16x16x128xbf16>
    %c0_110 = arith.constant 0 : index
    %c0_111 = arith.constant 0 : index
    %c768_112 = arith.constant 768 : index
    %62 = vector.load %arg8[%c0_110, %c0_111, %c768_112] : memref<16x16x1152xbf16, #tpu.memory_space<vmem>>, vector<16x16x128xbf16>
    tpu.vector_store %arg8[%c0_110, %c0_111, %c768_112], %61 {strides = array<i32>} : memref<16x16x1152xbf16, #tpu.memory_space<vmem>>, vector<16x16x128xbf16>,
    %c2_113 = arith.constant 2 : index
    %c1_114 = arith.constant 1 : index
    %c0_115 = arith.constant 0 : index
    %63 = vector.load %arg7[%c2_113, %c1_114, %c0_115] : memref<18x18x128xbf16, #tpu.memory_space<vmem>>, vector<16x16x128xbf16>
    %c0_116 = arith.constant 0 : index
    %c0_117 = arith.constant 0 : index
    %c896_118 = arith.constant 896 : index
    %64 = vector.load %arg8[%c0_116, %c0_117, %c896_118] : memref<16x16x1152xbf16, #tpu.memory_space<vmem>>, vector<16x16x128xbf16>
    tpu.vector_store %arg8[%c0_116, %c0_117, %c896_118], %63 {strides = array<i32>} : memref<16x16x1152xbf16, #tpu.memory_space<vmem>>, vector<16x16x128xbf16>,
    %c2_119 = arith.constant 2 : index
    %c2_120 = arith.constant 2 : index
    %c0_121 = arith.constant 0 : index
    %65 = vector.load %arg7[%c2_119, %c2_120, %c0_121] : memref<18x18x128xbf16, #tpu.memory_space<vmem>>, vector<16x16x128xbf16>
    %c0_122 = arith.constant 0 : index
    %c0_123 = arith.constant 0 : index
    %c1024_124 = arith.constant 1024 : index
    %66 = vector.load %arg8[%c0_122, %c0_123, %c1024_124] : memref<16x16x1152xbf16, #tpu.memory_space<vmem>>, vector<16x16x128xbf16>
    tpu.vector_store %arg8[%c0_122, %c0_123, %c1024_124], %65 {strides = array<i32>} : memref<16x16x1152xbf16, #tpu.memory_space<vmem>>, vector<16x16x128xbf16>,
    %c0_125 = arith.constant 0 : index
    %c0_126 = arith.constant 0 : index
    %c0_127 = arith.constant 0 : index
    %67 = vector.load %arg8[%c0_125, %c0_126, %c0_127] : memref<16x16x1152xbf16, #tpu.memory_space<vmem>>, vector<16x16x1152xbf16>
    %68 = vector.shape_cast %67 : vector<16x16x1152xbf16> to vector<256x1152xbf16>
    %c1_128 = arith.constant 1 : index
    %c0_129 = arith.constant 0 : index
    %c0_130 = arith.constant 0 : index
    %69 = vector.load %arg2[%c1_128, %c0_129, %c0_130] : memref<2x1152x128xbf16, #tpu.memory_space<vmem>>, vector<1x1152x128xbf16>
    %70 = vector.shape_cast %69 : vector<1x1152x128xbf16> to vector<1152x128xbf16>
    %cst_131 = arith.constant dense<0.000000e+00> : vector<256x128xf32>
    %71 = tpu.matmul %68, %70, %cst_131 {dimension_numbers = #tpu.dot_dimension_numbers<[1], [0], [0], [1], [0, 0, 1, 1], [], []>} : vector<256x1152xbf16>, vector<1152x128xbf16>, vector<256x128xf32> -> vector<256x128xf32>
    %c1_132 = arith.constant 1 : index
    %c0_133 = arith.constant 0 : index
    %c0_134 = arith.constant 0 : index
    %72 = vector.load %arg3[%c1_132, %c0_133, %c0_134] : memref<2x1x128xf32, #tpu.memory_space<vmem>>, vector<1x1x128xf32>
    %73 = vector.shape_cast %72 : vector<1x1x128xf32> to vector<1x128xf32>
    %74 = vector.broadcast %73 : vector<1x128xf32> to vector<256x128xf32>
    %75 = arith.addf %71, %74 : vector<256x128xf32>
    %cst_135 = arith.constant 0.000000e+00 : f32
    %76 = vector.broadcast %cst_135 : f32 to vector<256x128xf32>
    %77 = arith.cmpf ogt, %75, %76 : vector<256x128xf32>
    %cst_136 = arith.constant 0.00999999977 : f32
    %78 = vector.broadcast %cst_136 : f32 to vector<256x128xf32>
    %79 = arith.mulf %78, %75 : vector<256x128xf32>
    %80 = arith.select %77, %75, %79 : vector<256x128xi1>, vector<256x128xf32>
    %c1_137 = arith.constant 1 : index
    %c0_138 = arith.constant 0 : index
    %c0_139 = arith.constant 0 : index
    %81 = vector.load %arg4[%c1_137, %c0_138, %c0_139] : memref<2x1x128xf32, #tpu.memory_space<vmem>>, vector<1x1x128xf32>
    %82 = vector.shape_cast %81 : vector<1x1x128xf32> to vector<1x128xf32>
    %83 = vector.broadcast %82 : vector<1x128xf32> to vector<256x128xf32>
    %84 = arith.mulf %80, %83 : vector<256x128xf32>
    %c1_140 = arith.constant 1 : index
    %c0_141 = arith.constant 0 : index
    %c0_142 = arith.constant 0 : index
    %85 = vector.load %arg5[%c1_140, %c0_141, %c0_142] : memref<2x1x128xf32, #tpu.memory_space<vmem>>, vector<1x1x128xf32>
    %86 = vector.shape_cast %85 : vector<1x1x128xf32> to vector<1x128xf32>
    %87 = vector.broadcast %86 : vector<1x128xf32> to vector<256x128xf32>
    %88 = arith.addf %84, %87 : vector<256x128xf32>
    %89 = arith.truncf %88 : vector<256x128xf32> to vector<256x128xbf16>
    %c0_143 = arith.constant 0 : index
    %c0_144 = arith.constant 0 : index
    %c0_145 = arith.constant 0 : index
    %90 = vector.load %arg6[%c0_143, %c0_144, %c0_145] : memref<1x256x128xbf16, #tpu.memory_space<vmem>>, vector<1x256x128xbf16>
    %91 = vector.shape_cast %90 : vector<1x256x128xbf16> to vector<256x128xbf16>
    %92 = vector.shape_cast %89 : vector<256x128xbf16> to vector<1x256x128xbf16>
    tpu.vector_store %arg6[%c0_143, %c0_144, %c0_145], %92 {strides = array<i32>} : memref<1x256x128xbf16, #tpu.memory_space<vmem>>, vector<1x256x128xbf16>,
    return
  }
  func.func @transform_0(%arg0: i32) -> (i32, i32, i32, i32) {
    %c0_i32 = arith.constant 0 : i32
    %c0_i32_0 = arith.constant 0 : i32
    %c0_i32_1 = arith.constant 0 : i32
    %c0_i32_2 = arith.constant 0 : i32
    return %arg0, %c0_i32, %c0_i32_0, %c0_i32_1 : i32, i32, i32, i32
  }
  func.func @transform_1(%arg0: i32) -> (i32, i32, i32) {
    %c0_i32 = arith.constant 0 : i32
    %c0_i32_0 = arith.constant 0 : i32
    %c0_i32_1 = arith.constant 0 : i32
    %c0_i32_2 = arith.constant 0 : i32
    return %c0_i32, %c0_i32_0, %c0_i32_1 : i32, i32, i32
  }
  func.func @transform_2(%arg0: i32) -> (i32, i32, i32) {
    %c0_i32 = arith.constant 0 : i32
    %c0_i32_0 = arith.constant 0 : i32
    %c0_i32_1 = arith.constant 0 : i32
    %c0_i32_2 = arith.constant 0 : i32
    return %c0_i32, %c0_i32_0, %c0_i32_1 : i32, i32, i32
  }
  func.func @transform_3(%arg0: i32) -> (i32, i32, i32) {
    %c0_i32 = arith.constant 0 : i32
    %c0_i32_0 = arith.constant 0 : i32
    %c0_i32_1 = arith.constant 0 : i32
    %c0_i32_2 = arith.constant 0 : i32
    return %c0_i32, %c0_i32_0, %c0_i32_1 : i32, i32, i32
  }
  func.func @transform_4(%arg0: i32) -> (i32, i32, i32) {
    %c0_i32 = arith.constant 0 : i32
    %c0_i32_0 = arith.constant 0 : i32
    %c0_i32_1 = arith.constant 0 : i32
    %c0_i32_2 = arith.constant 0 : i32
    return %c0_i32, %c0_i32_0, %c0_i32_1 : i32, i32, i32
  }
  func.func @transform_5(%arg0: i32) -> (i32, i32, i32) {
    %c0_i32 = arith.constant 0 : i32
    %c0_i32_0 = arith.constant 0 : i32
    %c0_i32_1 = arith.constant 0 : i32
    return %arg0, %c0_i32, %c0_i32_0 : i32, i32, i32
  }
}

</mosaic_0001>

<llo_original>
// kernel: conv_block_forward.1
$region0: #{conv_block_forward.1}
  #allocation0 [shape = 'u32[]', space=smem, size = 0x4, offset = 0x4, fixed_abs, tag = 'smem constant byte address 0x4 - core index']
  #allocation1 [shape = 'u32[72,128]{1,0:T(1,128)}', space=vmem, size = 0x9000, scoped, tag = 'internal scratch']
  #allocation2 [shape = 'bf16[18,18,128]{2,1,0:T(8,128)(2,1)}', space=vmem, size = 0x1b000, scoped, tag = 'scratch operand']
  #allocation3 [shape = 'bf16[16,16,1152]{2,1,0:T(8,128)(2,1)}', space=vmem, size = 0x90000, scoped, tag = 'scratch operand']
  %s0 = inlined_call_operand.vmem [shape: bf16[2,16,16,4], index: 0, kind: input, shape index: {}]
  %s1 = inlined_call_operand.vmem [shape: bf16[2,1152,128], index: 1, kind: input, shape index: {}]
  %s2 = inlined_call_operand.vmem [shape: f32[2,1,128], index: 2, kind: input, shape index: {}]
  %s3 = inlined_call_operand.vmem [shape: f32[2,1,128], index: 3, kind: input, shape index: {}]
  %s4 = inlined_call_operand.vmem [shape: f32[2,1,128], index: 4, kind: input, shape index: {}]
  %s5 = inlined_call_operand.vmem [shape: bf16[2,256,128], index: 5, kind: output, shape index: {}]
  %s6 = sld [smem:[#allocation0]]
  $region57: #{conv_block_forward.1} parent=0
    _
  %s8 = ssub.s32 1, %s6
  %s9 = scalar_select 0, %s8, %s6
  loop: start=0, step=1, limit=4
  $region2: #{conv_block_forward.1} parent=0 // loop_pre_header
    _
  $region3: #{conv_block_forward.1} parent=0 // loop_header
    %s11 = sphi 0, %s15
    %p12 = scmp.ge.s32.totalorder %s11, 4
    %s21 = sphi 0, %s23
    %s24 = sphi 0, %s21
    %s25 = sphi 0, %s24
    %s41 = sphi 0, %s25
    %s45 = sphi 0, %s45
    %s47 = sphi 0, %s45
    %s48 = sphi 0, %s47
    %s62 = sphi 0, %s48
    %s66 = sphi 0, %s66
    %s68 = sphi 0, %s66
    %s69 = sphi 0, %s68
    %s83 = sphi 0, %s69
    %s87 = sphi 0, %s87
    %s89 = sphi 0, %s87
    %s90 = sphi 0, %s89
    %s104 = sphi 0, %s90
    %s108 = sphi 0, %s108
    %s110 = sphi 0, %s108
    %s111 = sphi 0, %s110
    %s125 = sphi 0, %s111
    %s131 = sphi 0, %s133
    %s134 = sphi 0, %s131
    %s135 = sphi 0, %s134
    %s151 = sphi 0, %s135
  $region4: #{conv_block_forward.1} parent=0 // loop_header_branch
    %14 = sbr.rel (%p12) target = $region8
  $region5: #{conv_block_forward.1} parent=0 // loop_body
    %s16 = ssub.s32 %s11, 1
    %s17 = ssub.s32 %s11, 2
    %s18 = sadd.s32 %s11, 1
    %s19 = ssub.s32 %s11, %s18
    %p20 = scmp.eq.s32.totalorder %s19, 0
    %s22 = sadd.s32 %s21, 1
    %s23 = scalar_select %p20, %s21, %s22
    %p26 = pneg %p20
    %p27 = scmp.eq.s32.totalorder %s11, 1
    %p28 = por %p26, %p27
    %p29 = scmp.ne.s32.totalorder %s21, %s24
    %p30 = scmp.eq.s32.totalorder %s11, 0
    %p31 = por %p29, %p30
    %p32 = scmp.ne.s32.totalorder %s21, %s24
    %p33 = scmp.eq.s32.totalorder %s16, 1
    %p34 = por %p32, %p33
    %p35 = scmp.ne.s32.totalorder %s24, %s25
    %p36 = scmp.eq.s32.totalorder %s16, 0
    %p37 = por %p35, %p36
    %p38 = scmp.ne.s32.totalorder %s24, %s25
    %p39 = scmp.eq.s32.totalorder %s17, 1
    %p40 = por %p38, %p39
    %p42 = scmp.ne.s32.totalorder %s25, %s41
    %p43 = scmp.eq.s32.totalorder %s17, 0
    %p44 = por %p42, %p43
    %s46 = sadd.s32 %s45, 1
    %p49 = scmp.eq.s32.totalorder %s11, 1
    %p50 = scmp.ne.s32.totalorder %s45, %s47
    %p51 = scmp.eq.s32.totalorder %s11, 0
    %p52 = por %p50, %p51
    %p53 = scmp.ne.s32.totalorder %s45, %s47
    %p54 = scmp.eq.s32.totalorder %s16, 1
    %p55 = por %p53, %p54
    %p56 = scmp.ne.s32.totalorder %s47, %s48
    %p57 = scmp.eq.s32.totalorder %s16, 0
    %p58 = por %p56, %p57
    %p59 = scmp.ne.s32.totalorder %s47, %s48
    %p60 = scmp.eq.s32.totalorder %s17, 1
    %p61 = por %p59, %p60
    %p63 = scmp.ne.s32.totalorder %s48, %s62
    %p64 = scmp.eq.s32.totalorder %s17, 0
    %p65 = por %p63, %p64
    %s67 = sadd.s32 %s66, 1
    %p70 = scmp.eq.s32.totalorder %s11, 1
    %p71 = scmp.ne.s32.totalorder %s66, %s68
    %p72 = scmp.eq.s32.totalorder %s11, 0
    %p73 = por %p71, %p72
    %p74 = scmp.ne.s32.totalorder %s66, %s68
    %p75 = scmp.eq.s32.totalorder %s16, 1
    %p76 = por %p74, %p75
    %p77 = scmp.ne.s32.totalorder %s68, %s69
    %p78 = scmp.eq.s32.totalorder %s16, 0
    %p79 = por %p77, %p78
    %p80 = scmp.ne.s32.totalorder %s68, %s69
    %p81 = scmp.eq.s32.totalorder %s17, 1
    %p82 = por %p80, %p81
    %p84 = scmp.ne.s32.totalorder %s69, %s83
    %p85 = scmp.eq.s32.totalorder %s17, 0
    %p86 = por %p84, %p85
    %s88 = sadd.s32 %s87, 1
    %p91 = scmp.eq.s32.totalorder %s11, 1
    %p92 = scmp.ne.s32.totalorder %s87, %s89
    %p93 = scmp.eq.s32.totalorder %s11, 0
    %p94 = por %p92, %p93
    %p95 = scmp.ne.s32.totalorder %s87, %s89
    %p96 = scmp.eq.s32.totalorder %s16, 1
    %p97 = por %p95, %p96
    %p98 = scmp.ne.s32.totalorder %s89, %s90
    %p99 = scmp.eq.s32.totalorder %s16, 0
    %p100 = por %p98, %p99
    %p101 = scmp.ne.s32.totalorder %s89, %s90
    %p102 = scmp.eq.s32.totalorder %s17, 1
    %p103 = por %p101, %p102
    %p105 = scmp.ne.s32.totalorder %s90, %s104
    %p106 = scmp.eq.s32.totalorder %s17, 0
    %p107 = por %p105, %p106
    %s109 = sadd.s32 %s108, 1
    %p112 = scmp.eq.s32.totalorder %s11, 1
    %p113 = scmp.ne.s32.totalorder %s108, %s110
    %p114 = scmp.eq.s32.totalorder %s11, 0
    %p115 = por %p113, %p114
    %p116 = scmp.ne.s32.totalorder %s108, %s110
    %p117 = scmp.eq.s32.totalorder %s16, 1
    %p118 = por %p116, %p117
    %p119 = scmp.ne.s32.totalorder %s110, %s111
    %p120 = scmp.eq.s32.totalorder %s16, 0
    %p121 = por %p119, %p120
    %p122 = scmp.ne.s32.totalorder %s110, %s111
    %p123 = scmp.eq.s32.totalorder %s17, 1
    %p124 = por %p122, %p123
    %p126 = scmp.ne.s32.totalorder %s111, %s125
    %p127 = scmp.eq.s32.totalorder %s17, 0
    %p128 = por %p126, %p127
    %s129 = ssub.s32 %s11, %s18
    %p130 = scmp.eq.s32.totalorder %s129, 0
    %s132 = sadd.s32 %s131, 1
    %s133 = scalar_select %p130, %s131, %s132
    %p136 = pneg %p130
    %p137 = scmp.eq.s32.totalorder %s11, 1
    %p138 = por %p136, %p137
    %p139 = scmp.ne.s32.totalorder %s131, %s134
    %p140 = scmp.eq.s32.totalorder %s11, 0
    %p141 = por %p139, %p140
    %p142 = scmp.ne.s32.totalorder %s131, %s134
    %p143 = scmp.eq.s32.totalorder %s16, 1
    %p144 = por %p142, %p143
    %p145 = scmp.ne.s32.totalorder %s134, %s135
    %p146 = scmp.eq.s32.totalorder %s16, 0
    %p147 = por %p145, %p146
    %p148 = scmp.ne.s32.totalorder %s134, %s135
    %p149 = scmp.eq.s32.totalorder %s17, 1
    %p150 = por %p148, %p149
    %p152 = scmp.ne.s32.totalorder %s135, %s151
    %p153 = scmp.eq.s32.totalorder %s17, 0
    %p154 = por %p152, %p153
    %p155 = scmp.le.s32.totalorder 1, %s11
    %p156 = scmp.lt.s32.totalorder %s11, 3
    %p157 = pnand %p155, %p156
    %p158 = pneg %p157
    // Predicated region
    $region9: #{conv_block_forward.1} parent=5 // pred_check
      _
    $region10: #{conv_block_forward.1} parent=5 // pred_check_branch
      %160 = sbr.rel (%p157) target = $region12
    $region11: #{conv_block_forward.1} parent=5 // pred_region
      %s161 = ssub.s32 %s11, 1
      // Predicated region
      $region13: #{conv_block_forward.1} parent=11 // pred_check
        %p162 = pneg %p58
      $region14: #{conv_block_forward.1} parent=11 // pred_check_branch
        %164 = sbr.rel (%p162) target = $region16
      $region15: #{conv_block_forward.1} parent=11 // pred_region
        _
      $region16: #{conv_block_forward.1} parent=11 // pred_fallthru
        _
      // Predicated region
      $region17: #{conv_block_forward.1} parent=11 // pred_check
        %p165 = pneg %p79
      $region18: #{conv_block_forward.1} parent=11 // pred_check_branch
        %167 = sbr.rel (%p165) target = $region20
      $region19: #{conv_block_forward.1} parent=11 // pred_region
        _
      $region20: #{conv_block_forward.1} parent=11 // pred_fallthru
        _
      // Predicated region
      $region21: #{conv_block_forward.1} parent=11 // pred_check
        %p168 = pneg %p100
      $region22: #{conv_block_forward.1} parent=11 // pred_check_branch
        %170 = sbr.rel (%p168) target = $region24
      $region23: #{conv_block_forward.1} parent=11 // pred_region
        _
      $region24: #{conv_block_forward.1} parent=11 // pred_fallthru
        _
      // Predicated region
      $region25: #{conv_block_forward.1} parent=11 // pred_check
        %p171 = pneg %p121
      $region26: #{conv_block_forward.1} parent=11 // pred_check_branch
        %173 = sbr.rel (%p171) target = $region28
      $region27: #{conv_block_forward.1} parent=11 // pred_region
        _
      $region28: #{conv_block_forward.1} parent=11 // pred_fallthru
        _
    $region12: #{conv_block_forward.1} parent=5 // pred_fallthru
      _
    %p174 = scmp.lt.s32.totalorder %s11, 2
    // Predicated region
    $region29: #{conv_block_forward.1} parent=5 // pred_check
      %p175 = pneg %p174
    $region30: #{conv_block_forward.1} parent=5 // pred_check_branch
      %177 = sbr.rel (%p175) target = $region32
    $region31: #{conv_block_forward.1} parent=5 // pred_region
      // Predicated region
      $region33: #{conv_block_forward.1} parent=31 // pred_check
        %p178 = pneg %p31
      $region34: #{conv_block_forward.1} parent=31 // pred_check_branch
        %180 = sbr.rel (%p178) target = $region36
      $region35: #{conv_block_forward.1} parent=31 // pred_region
        %p181 = scmp.lt.s32.totalorder %s11, 1
        %s182 = scalar_select %p181, %s11, 1
        %s183 = smul.addr %s182, 32
        %s184 = smul.addr %s183, 4
        %s185 = scalar_lea.vmem %s0, %s184
      $region36: #{conv_block_forward.1} parent=31 // pred_fallthru
        _
    $region32: #{conv_block_forward.1} parent=5 // pred_fallthru
      _
    %p186 = scmp.le.s32.totalorder 1, %s11
    %p187 = scmp.lt.s32.totalorder %s11, 3
    %p188 = pnand %p186, %p187
    %p189 = pneg %p188
    // Predicated region
    $region37: #{conv_block_forward.1} parent=5 // pred_check
      _
    $region38: #{conv_block_forward.1} parent=5 // pred_check_branch
      %191 = sbr.rel (%p188) target = $region40
    $region39: #{conv_block_forward.1} parent=5 // pred_region
      %s192 = ssub.s32 %s11, 1
      %p193 = scmp.lt.s32.totalorder %s16, 1
      %s194 = scalar_select %p193, %s16, 1
      %s195 = smul.addr %s194, 32
      %s196 = smul.addr %s195, 4
      %s197 = scalar_lea.vmem %s0, %s196
      %p198 = pneg %p37
      %p199 = pneg %p34
      %p200 = pneg %p58
      %p201 = pneg %p55
      %p202 = pneg %p79
      %p203 = pneg %p76
      %p204 = pneg %p100
      %p205 = pneg %p97
      %p206 = pneg %p121
      %p207 = pneg %p118
      %p208 = pneg %p147
      %p209 = pneg %p144
      %p210 = scmp.lt.s32.totalorder %s16, 1
      %s211 = scalar_select %p210, %s16, 1
      %s212 = smul.addr %s211, 32
      %s213 = smul.addr %s212, 4
      %s214 = scalar_lea.vmem %s5, %s213
      %p215 = scmp.lt.s32.totalorder %s16, 1
      %s216 = scalar_select %p215, %s16, 1
      %s217 = smul.addr %s216, 32
      %s218 = smul.addr %s217, 4
      %s219 = scalar_lea.vmem %s0, %s218
      %p220 = scmp.lt.s32.totalorder %s16, 1
      %s221 = scalar_select %p220, %s16, 1
      %s222 = smul.addr %s221, 32
      %s223 = smul.addr %s222, 4
      %s224 = scalar_lea.vmem %s5, %s223
      %p226 = scmp.eq.s32.totalorder %s16, 0
      // Predicated region
      $region41: #{conv_block_forward.1} parent=39 // pred_check
        %p227 = pneg %p226
      $region42: #{conv_block_forward.1} parent=39 // pred_check_branch
        %229 = sbr.rel (%p227) target = $region44
      $region43: #{conv_block_forward.1} parent=39 // pred_region
        %230 = vst [vmem:[#allocation2] sm:$0xf] 0
        %231 = vst [vmem:[#allocation2 + $0x4] sm:$0xf] 0
        %232 = vst [vmem:[#allocation2 + $0x8] sm:$0x1] 0
        %233 = vst [vmem:[#allocation2 + $0xc] sm:$0xf] 0
        %234 = vst [vmem:[#allocation2 + $0x10] sm:$0xf] 0
        %235 = vst [vmem:[#allocation2 + $0x14] sm:$0x1] 0
        %236 = vst [vmem:[#allocation2 + $0x18] sm:$0xf] 0
        %237 = vst [vmem:[#allocation2 + $0x1c] sm:$0xf] 0
        %238 = vst [vmem:[#allocation2 + $0x20] sm:$0x1] 0
        %239 = vst [vmem:[#allocation2 + $0x24] sm:$0xf] 0
        %240 = vst [vmem:[#allocation2 + $0x28] sm:$0xf] 0
        %241 = vst [vmem:[#allocation2 + $0x2c] sm:$0x1] 0
        %242 = vst [vmem:[#allocation2 + $0x30] sm:$0xf] 0
        %243 = vst [vmem:[#allocation2 + $0x34] sm:$0xf] 0
        %244 = vst [vmem:[#allocation2 + $0x38] sm:$0x1] 0
        %245 = vst [vmem:[#allocation2 + $0x3c] sm:$0xf] 0
        %246 = vst [vmem:[#allocation2 + $0x40] sm:$0xf] 0
        %247 = vst [vmem:[#allocation2 + $0x44] sm:$0x1] 0
        %248 = vst [vmem:[#allocation2 + $0x48] sm:$0xf] 0
        %249 = vst [vmem:[#allocation2 + $0x4c] sm:$0xf] 0
        %250 = vst [vmem:[#allocation2 + $0x50] sm:$0x1] 0
        %251 = vst [vmem:[#allocation2 + $0x54] sm:$0xf] 0
        %252 = vst [vmem:[#allocation2 + $0x58] sm:$0xf] 0
        %253 = vst [vmem:[#allocation2 + $0x5c] sm:$0x1] 0
        %254 = vst [vmem:[#allocation2 + $0x60] sm:$0xf] 0
        %255 = vst [vmem:[#allocation2 + $0x64] sm:$0xf] 0
        %256 = vst [vmem:[#allocation2 + $0x68] sm:$0x1] 0
        %257 = vst [vmem:[#allocation2 + $0x6c] sm:$0xf] 0
        %258 = vst [vmem:[#allocation2 + $0x70] sm:$0xf] 0
        %259 = vst [vmem:[#allocation2 + $0x74] sm:$0x1] 0
        %260 = vst [vmem:[#allocation2 + $0x78] sm:$0xf] 0
        %261 = vst [vmem:[#allocation2 + $0x7c] sm:$0xf] 0
        %262 = vst [vmem:[#allocation2 + $0x80] sm:$0x1] 0
        %263 = vst [vmem:[#allocation2 + $0x84] sm:$0xf] 0
        %264 = vst [vmem:[#allocation2 + $0x88] sm:$0xf] 0
        %265 = vst [vmem:[#allocation2 + $0x8c] sm:$0x1] 0
        %266 = vst [vmem:[#allocation2 + $0x90] sm:$0xf] 0
        %267 = vst [vmem:[#allocation2 + $0x94] sm:$0xf] 0
        %268 = vst [vmem:[#allocation2 + $0x98] sm:$0x1] 0
        %269 = vst [vmem:[#allocation2 + $0x9c] sm:$0xf] 0
        %270 = vst [vmem:[#allocation2 + $0xa0] sm:$0xf] 0
        %271 = vst [vmem:[#allocation2 + $0xa4] sm:$0x1] 0
        %272 = vst [vmem:[#allocation2 + $0xa8] sm:$0xf] 0
        %273 = vst [vmem:[#allocation2 + $0xac] sm:$0xf] 0
        %274 = vst [vmem:[#allocation2 + $0xb0] sm:$0x1] 0
        %275 = vst [vmem:[#allocation2 + $0xb4] sm:$0xf] 0
        %276 = vst [vmem:[#allocation2 + $0xb8] sm:$0xf] 0
        %277 = vst [vmem:[#allocation2 + $0xbc] sm:$0x1] 0
        %278 = vst [vmem:[#allocation2 + $0xc0] sm:$0xf] 0
        %279 = vst [vmem:[#allocation2 + $0xc4] sm:$0xf] 0
        %280 = vst [vmem:[#allocation2 + $0xc8] sm:$0x1] 0
        %281 = vst [vmem:[#allocation2 + $0xcc] sm:$0xf] 0
        %282 = vst [vmem:[#allocation2 + $0xd0] sm:$0xf] 0
        %283 = vst [vmem:[#allocation2 + $0xd4] sm:$0x1] 0
      $region44: #{conv_block_forward.1} parent=39 // pred_fallthru
        _
      %v284 = vld [vmem:[%s219] sm:$0xf]
      %v285 = vld [vmem:[%s219 + $0x4] sm:$0xf]
      %v286 = vld [vmem:[%s219 + $0x8] sm:$0xf]
      %v287 = vld [vmem:[%s219 + $0xc] sm:$0xf]
      %v288 = vld [vmem:[%s219 + $0x10] sm:$0xf]
      %v289 = vld [vmem:[%s219 + $0x14] sm:$0xf]
      %v290 = vld [vmem:[%s219 + $0x18] sm:$0xf]
      %v291 = vld [vmem:[%s219 + $0x1c] sm:$0xf]
      %v292 = vld [vmem:[%s219 + $0x20] sm:$0xf]
      %v293 = vld [vmem:[%s219 + $0x24] sm:$0xf]
      %v294 = vld [vmem:[%s219 + $0x28] sm:$0xf]
      %v295 = vld [vmem:[%s219 + $0x2c] sm:$0xf]
      %v296 = vld [vmem:[%s219 + $0x30] sm:$0xf]
      %v297 = vld [vmem:[%s219 + $0x34] sm:$0xf]
      %v298 = vld [vmem:[%s219 + $0x38] sm:$0xf]
      %v299 = vld [vmem:[%s219 + $0x3c] sm:$0xf]
      %v300 = vld [vmem:[%s219 + $0x40] sm:$0xf]
      %v301 = vld [vmem:[%s219 + $0x44] sm:$0xf]
      %v302 = vld [vmem:[%s219 + $0x48] sm:$0xf]
      %v303 = vld [vmem:[%s219 + $0x4c] sm:$0xf]
      %v304 = vld [vmem:[%s219 + $0x50] sm:$0xf]
      %v305 = vld [vmem:[%s219 + $0x54] sm:$0xf]
      %v306 = vld [vmem:[%s219 + $0x58] sm:$0xf]
      %v307 = vld [vmem:[%s219 + $0x5c] sm:$0xf]
      %v308 = vld [vmem:[%s219 + $0x60] sm:$0xf]
      %v309 = vld [vmem:[%s219 + $0x64] sm:$0xf]
      %v310 = vld [vmem:[%s219 + $0x68] sm:$0xf]
      %v311 = vld [vmem:[%s219 + $0x6c] sm:$0xf]
      %v312 = vld [vmem:[%s219 + $0x70] sm:$0xf]
      %v313 = vld [vmem:[%s219 + $0x74] sm:$0xf]
      %v314 = vld [vmem:[%s219 + $0x78] sm:$0xf]
      %v315 = vld [vmem:[%s219 + $0x7c] sm:$0xf]
      %vm316 = vsmask.f32 256
      %vm317 = vsmask.f32 4368
      %vm318 = vmor %vm316, %vm317
      %v320 = vshrl.u32 %v284, 16
      %v322 = vrot.slane %v320, 7
      %v323 = vshll.u32 %v284, 16
      %v325 = vor.u32 %v322, %v323
      %v326 = vrot.slane %v322, 4
      %v328 = vshrl.u32 %v285, 16
      %v330 = vrot.slane %v328, 7
      %v331 = vshll.u32 %v285, 16
      %v333 = vor.u32 %v330, %v331
      %v334 = vsel %vm318, %v326, %v333
      %v335 = vrot.slane %v330, 4
      %v337 = vshrl.u32 %v286, 16
      %v339 = vrot.slane %v337, 7
      %v340 = vshll.u32 %v286, 16
      %v342 = vor.u32 %v339, %v340
      %v343 = vrot.slane %v339, 4
      %v345 = vshrl.u32 %v287, 16
      %v347 = vrot.slane %v345, 7
      %v348 = vshll.u32 %v287, 16
      %v350 = vor.u32 %v347, %v348
      %v351 = vsel %vm318, %v343, %v350
      %v352 = vrot.slane %v347, 4
      %v354 = vshrl.u32 %v288, 16
      %v356 = vrot.slane %v354, 7
      %v357 = vshll.u32 %v288, 16
      %v359 = vor.u32 %v356, %v357
      %v360 = vrot.slane %v356, 4
      %v362 = vshrl.u32 %v289, 16
      %v364 = vrot.slane %v362, 7
      %v365 = vshll.u32 %v289, 16
      %v367 = vor.u32 %v364, %v365
      %v368 = vsel %vm318, %v360, %v367
      %v369 = vrot.slane %v364, 4
      %v371 = vshrl.u32 %v290, 16
      %v373 = vrot.slane %v371, 7
      %v374 = vshll.u32 %v290, 16
      %v376 = vor.u32 %v373, %v374
      %v377 = vrot.slane %v373, 4
      %v379 = vshrl.u32 %v291, 16
      %v381 = vrot.slane %v379, 7
      %v382 = vshll.u32 %v291, 16
      %v384 = vor.u32 %v381, %v382
      %v385 = vsel %vm318, %v377, %v384
      %v386 = vrot.slane %v381, 4
      %v388 = vshrl.u32 %v292, 16
      %v390 = vrot.slane %v388, 7
      %v391 = vshll.u32 %v292, 16
      %v393 = vor.u32 %v390, %v391
      %v394 = vrot.slane %v390, 4
      %v396 = vshrl.u32 %v293, 16
      %v398 = vrot.slane %v396, 7
      %v399 = vshll.u32 %v293, 16
      %v401 = vor.u32 %v398, %v399
      %v402 = vsel %vm318, %v394, %v401
      %v403 = vrot.slane %v398, 4
      %v405 = vshrl.u32 %v294, 16
      %v407 = vrot.slane %v405, 7
      %v408 = vshll.u32 %v294, 16
      %v410 = vor.u32 %v407, %v408
      %v411 = vrot.slane %v407, 4
      %v413 = vshrl.u32 %v295, 16
      %v415 = vrot.slane %v413, 7
      %v416 = vshll.u32 %v295, 16
      %v418 = vor.u32 %v415, %v416
      %v419 = vsel %vm318, %v411, %v418
      %v420 = vrot.slane %v415, 4
      %v422 = vshrl.u32 %v296, 16
      %v424 = vrot.slane %v422, 7
      %v425 = vshll.u32 %v296, 16
      %v427 = vor.u32 %v424, %v425
      %v428 = vrot.slane %v424, 4
      %v430 = vshrl.u32 %v297, 16
      %v432 = vrot.slane %v430, 7
      %v433 = vshll.u32 %v297, 16
      %v435 = vor.u32 %v432, %v433
      %v436 = vsel %vm318, %v428, %v435
      %v437 = vrot.slane %v432, 4
      %v439 = vshrl.u32 %v298, 16
      %v441 = vrot.slane %v439, 7
      %v442 = vshll.u32 %v298, 16
      %v444 = vor.u32 %v441, %v442
      %v445 = vrot.slane %v441, 4
      %v447 = vshrl.u32 %v299, 16
      %v449 = vrot.slane %v447, 7
      %v450 = vshll.u32 %v299, 16
      %v452 = vor.u32 %v449, %v450
      %v453 = vsel %vm318, %v445, %v452
      %v454 = vrot.slane %v449, 4
      %v456 = vshrl.u32 %v300, 16
      %v458 = vrot.slane %v456, 7
      %v459 = vshll.u32 %v300, 16
      %v461 = vor.u32 %v458, %v459
      %v462 = vrot.slane %v458, 4
      %v464 = vshrl.u32 %v301, 16
      %v466 = vrot.slane %v464, 7
      %v467 = vshll.u32 %v301, 16
      %v469 = vor.u32 %v466, %v467
      %v470 = vsel %vm318, %v462, %v469
      %v471 = vrot.slane %v466, 4
      %v473 = vshrl.u32 %v302, 16
      %v475 = vrot.slane %v473, 7
      %v476 = vshll.u32 %v302, 16
      %v478 = vor.u32 %v475, %v476
      %v479 = vrot.slane %v475, 4
      %v481 = vshrl.u32 %v303, 16
      %v483 = vrot.slane %v481, 7
      %v484 = vshll.u32 %v303, 16
      %v486 = vor.u32 %v483, %v484
      %v487 = vsel %vm318, %v479, %v486
      %v488 = vrot.slane %v483, 4
      %v490 = vshrl.u32 %v304, 16
      %v492 = vrot.slane %v490, 7
      %v493 = vshll.u32 %v304, 16
      %v495 = vor.u32 %v492, %v493
      %v496 = vrot.slane %v492, 4
      %v498 = vshrl.u32 %v305, 16
      %v500 = vrot.slane %v498, 7
      %v501 = vshll.u32 %v305, 16
      %v503 = vor.u32 %v500, %v501
      %v504 = vsel %vm318, %v496, %v503
      %v505 = vrot.slane %v500, 4
      %v507 = vshrl.u32 %v306, 16
      %v509 = vrot.slane %v507, 7
      %v510 = vshll.u32 %v306, 16
      %v512 = vor.u32 %v509, %v510
      %v513 = vrot.slane %v509, 4
      %v515 = vshrl.u32 %v307, 16
      %v517 = vrot.slane %v515, 7
      %v518 = vshll.u32 %v307, 16
      %v520 = vor.u32 %v517, %v518
      %v521 = vsel %vm318, %v513, %v520
      %v522 = vrot.slane %v517, 4
      %v524 = vshrl.u32 %v308, 16
      %v526 = vrot.slane %v524, 7
      %v527 = vshll.u32 %v308, 16
      %v529 = vor.u32 %v526, %v527
      %v530 = vrot.slane %v526, 4
      %v532 = vshrl.u32 %v309, 16
      %v534 = vrot.slane %v532, 7
      %v535 = vshll.u32 %v309, 16
      %v537 = vor.u32 %v534, %v535
      %v538 = vsel %vm318, %v530, %v537
      %v539 = vrot.slane %v534, 4
      %v541 = vshrl.u32 %v310, 16
      %v543 = vrot.slane %v541, 7
      %v544 = vshll.u32 %v310, 16
      %v546 = vor.u32 %v543, %v544
      %v547 = vrot.slane %v543, 4
      %v549 = vshrl.u32 %v311, 16
      %v551 = vrot.slane %v549, 7
      %v552 = vshll.u32 %v311, 16
      %v554 = vor.u32 %v551, %v552
      %v555 = vsel %vm318, %v547, %v554
      %v556 = vrot.slane %v551, 4
      %v558 = vshrl.u32 %v312, 16
      %v560 = vrot.slane %v558, 7
      %v561 = vshll.u32 %v312, 16
      %v563 = vor.u32 %v560, %v561
      %v564 = vrot.slane %v560, 4
      %v566 = vshrl.u32 %v313, 16
      %v568 = vrot.slane %v566, 7
      %v569 = vshll.u32 %v313, 16
      %v571 = vor.u32 %v568, %v569
      %v572 = vsel %vm318, %v564, %v571
      %v573 = vrot.slane %v568, 4
      %v575 = vshrl.u32 %v314, 16
      %v577 = vrot.slane %v575, 7
      %v578 = vshll.u32 %v314, 16
      %v580 = vor.u32 %v577, %v578
      %v581 = vrot.slane %v577, 4
      %v583 = vshrl.u32 %v315, 16
      %v585 = vrot.slane %v583, 7
      %v586 = vshll.u32 %v315, 16
      %v588 = vor.u32 %v585, %v586
      %v589 = vsel %vm318, %v581, %v588
      %v590 = vrot.slane %v585, 4
      %s639 = scalar_lea.vmem [#allocation2], 12
      %vm640 = vcmask 27648
      %vm641 = vsmask.f32 7938
      %vm642 = vmand %vm640, %vm641
      %v643 = vld [vmem:[%s639] sm:$0xf]
      %v644 = vsel %vm642, %v325, %v643
      %645 = vst [vmem:[%s639] sm:$0xf] %v644
      %vm646 = vcmask 27648
      %647 = vst.msk [vmem:[%s639 + $0x4] sm:$0xf] %vm646, %v334
      %vm648 = vcmask 24576
      %vm649 = vmand %vm648, %vm316
      %v650 = vld [vmem:[%s639 + $0x8] sm:$0x1]
      %v651 = vsel %vm649, %v335, %v650
      %652 = vst [vmem:[%s639 + $0x8] sm:$0x1] %v651
      %v653 = vld [vmem:[%s639 + $0xc] sm:$0xf]
      %v654 = vsel %vm642, %v342, %v653
      %655 = vst [vmem:[%s639 + $0xc] sm:$0xf] %v654
      %656 = vst.msk [vmem:[%s639 + $0x10] sm:$0xf] %vm646, %v351
      %v657 = vld [vmem:[%s639 + $0x14] sm:$0x1]
      %v658 = vsel %vm649, %v352, %v657
      %659 = vst [vmem:[%s639 + $0x14] sm:$0x1] %v658
      %v660 = vld [vmem:[%s639 + $0x18] sm:$0xf]
      %v661 = vsel %vm642, %v359, %v660
      %662 = vst [vmem:[%s639 + $0x18] sm:$0xf] %v661
      %663 = vst.msk [vmem:[%s639 + $0x1c] sm:$0xf] %vm646, %v368
      %v664 = vld [vmem:[%s639 + $0x20] sm:$0x1]
      %v665 = vsel %vm649, %v369, %v664
      %666 = vst [vmem:[%s639 + $0x20] sm:$0x1] %v665
      %v667 = vld [vmem:[%s639 + $0x24] sm:$0xf]
      %v668 = vsel %vm642, %v376, %v667
      %669 = vst [vmem:[%s639 + $0x24] sm:$0xf] %v668
      %670 = vst.msk [vmem:[%s639 + $0x28] sm:$0xf] %vm646, %v385
      %v671 = vld [vmem:[%s639 + $0x2c] sm:$0x1]
      %v672 = vsel %vm649, %v386, %v671
      %673 = vst [vmem:[%s639 + $0x2c] sm:$0x1] %v672
      %v674 = vld [vmem:[%s639 + $0x30] sm:$0xf]
      %v675 = vsel %vm642, %v393, %v674
      %676 = vst [vmem:[%s639 + $0x30] sm:$0xf] %v675
      %677 = vst.msk [vmem:[%s639 + $0x34] sm:$0xf] %vm646, %v402
      %v678 = vld [vmem:[%s639 + $0x38] sm:$0x1]
      %v679 = vsel %vm649, %v403, %v678
      %680 = vst [vmem:[%s639 + $0x38] sm:$0x1] %v679
      %v681 = vld [vmem:[%s639 + $0x3c] sm:$0xf]
      %v682 = vsel %vm642, %v410, %v681
      %683 = vst [vmem:[%s639 + $0x3c] sm:$0xf] %v682
      %684 = vst.msk [vmem:[%s639 + $0x40] sm:$0xf] %vm646, %v419
      %v685 = vld [vmem:[%s639 + $0x44] sm:$0x1]
      %v686 = vsel %vm649, %v420, %v685
      %687 = vst [vmem:[%s639 + $0x44] sm:$0x1] %v686
      %v688 = vld [vmem:[%s639 + $0x48] sm:$0xf]
      %v689 = vsel %vm642, %v427, %v688
      %690 = vst [vmem:[%s639 + $0x48] sm:$0xf] %v689
      %691 = vst.msk [vmem:[%s639 + $0x4c] sm:$0xf] %vm646, %v436
      %v692 = vld [vmem:[%s639 + $0x50] sm:$0x1]
      %v693 = vsel %vm649, %v437, %v692
      %694 = vst [vmem:[%s639 + $0x50] sm:$0x1] %v693
      %v695 = vld [vmem:[%s639 + $0x54] sm:$0xf]
      %v696 = vsel %vm642, %v444, %v695
      %697 = vst [vmem:[%s639 + $0x54] sm:$0xf] %v696
      %698 = vst.msk [vmem:[%s639 + $0x58] sm:$0xf] %vm646, %v453
      %v699 = vld [vmem:[%s639 + $0x5c] sm:$0x1]
      %v700 = vsel %vm649, %v454, %v699
      %701 = vst [vmem:[%s639 + $0x5c] sm:$0x1] %v700
      %v702 = vld [vmem:[%s639 + $0x60] sm:$0xf]
      %v703 = vsel %vm642, %v461, %v702
      %704 = vst [vmem:[%s639 + $0x60] sm:$0xf] %v703
      %705 = vst.msk [vmem:[%s639 + $0x64] sm:$0xf] %vm646, %v470
      %v706 = vld [vmem:[%s639 + $0x68] sm:$0x1]
      %v707 = vsel %vm649, %v471, %v706
      %708 = vst [vmem:[%s639 + $0x68] sm:$0x1] %v707
      %v709 = vld [vmem:[%s639 + $0x6c] sm:$0xf]
      %v710 = vsel %vm642, %v478, %v709
      %711 = vst [vmem:[%s639 + $0x6c] sm:$0xf] %v710
      %712 = vst.msk [vmem:[%s639 + $0x70] sm:$0xf] %vm646, %v487
      %v713 = vld [vmem:[%s639 + $0x74] sm:$0x1]
      %v714 = vsel %vm649, %v488, %v713
      %715 = vst [vmem:[%s639 + $0x74] sm:$0x1] %v714
      %v716 = vld [vmem:[%s639 + $0x78] sm:$0xf]
      %v717 = vsel %vm642, %v495, %v716
      %718 = vst [vmem:[%s639 + $0x78] sm:$0xf] %v717
      %719 = vst.msk [vmem:[%s639 + $0x7c] sm:$0xf] %vm646, %v504
      %v720 = vld [vmem:[%s639 + $0x80] sm:$0x1]
      %v721 = vsel %vm649, %v505, %v720
      %722 = vst [vmem:[%s639 + $0x80] sm:$0x1] %v721
      %v723 = vld [vmem:[%s639 + $0x84] sm:$0xf]
      %v724 = vsel %vm642, %v512, %v723
      %725 = vst [vmem:[%s639 + $0x84] sm:$0xf] %v724
      %726 = vst.msk [vmem:[%s639 + $0x88] sm:$0xf] %vm646, %v521
      %v727 = vld [vmem:[%s639 + $0x8c] sm:$0x1]
      %v728 = vsel %vm649, %v522, %v727
      %729 = vst [vmem:[%s639 + $0x8c] sm:$0x1] %v728
      %v730 = vld [vmem:[%s639 + $0x90] sm:$0xf]
      %v731 = vsel %vm642, %v529, %v730
      %732 = vst [vmem:[%s639 + $0x90] sm:$0xf] %v731
      %733 = vst.msk [vmem:[%s639 + $0x94] sm:$0xf] %vm646, %v538
      %v734 = vld [vmem:[%s639 + $0x98] sm:$0x1]
      %v735 = vsel %vm649, %v539, %v734
      %736 = vst [vmem:[%s639 + $0x98] sm:$0x1] %v735
      %v737 = vld [vmem:[%s639 + $0x9c] sm:$0xf]
      %v738 = vsel %vm642, %v546, %v737
      %739 = vst [vmem:[%s639 + $0x9c] sm:$0xf] %v738
      %740 = vst.msk [vmem:[%s639 + $0xa0] sm:$0xf] %vm646, %v555
      %v741 = vld [vmem:[%s639 + $0xa4] sm:$0x1]
      %v742 = vsel %vm649, %v556, %v741
      %743 = vst [vmem:[%s639 + $0xa4] sm:$0x1] %v742
      %v744 = vld [vmem:[%s639 + $0xa8] sm:$0xf]
      %v745 = vsel %vm642, %v563, %v744
      %746 = vst [vmem:[%s639 + $0xa8] sm:$0xf] %v745
      %747 = vst.msk [vmem:[%s639 + $0xac] sm:$0xf] %vm646, %v572
      %v748 = vld [vmem:[%s639 + $0xb0] sm:$0x1]
      %v749 = vsel %vm649, %v573, %v748
      %750 = vst [vmem:[%s639 + $0xb0] sm:$0x1] %v749
      %v751 = vld [vmem:[%s639 + $0xb4] sm:$0xf]
      %v752 = vsel %vm642, %v580, %v751
      %753 = vst [vmem:[%s639 + $0xb4] sm:$0xf] %v752
      %754 = vst.msk [vmem:[%s639 + $0xb8] sm:$0xf] %vm646, %v589
      %v755 = vld [vmem:[%s639 + $0xbc] sm:$0x1]
      %v756 = vsel %vm649, %v590, %v755
      %757 = vst [vmem:[%s639 + $0xbc] sm:$0x1] %v756
      %v758 = vld [vmem:[#allocation2] sm:$0xf]
      %v759 = vld [vmem:[#allocation2 + $0x4] sm:$0xf]
      %v760 = vld [vmem:[#allocation2 + $0xc] sm:$0xf]
      %v761 = vld [vmem:[#allocation2 + $0x10] sm:$0xf]
      %v762 = vld [vmem:[#allocation2 + $0x18] sm:$0xf]
      %v763 = vld [vmem:[#allocation2 + $0x1c] sm:$0xf]
      %v764 = vld [vmem:[#allocation2 + $0x24] sm:$0xf]
      %v765 = vld [vmem:[#allocation2 + $0x28] sm:$0xf]
      %v766 = vld [vmem:[#allocation2 + $0x30] sm:$0xf]
      %v767 = vld [vmem:[#allocation2 + $0x34] sm:$0xf]
      %v768 = vld [vmem:[#allocation2 + $0x3c] sm:$0xf]
      %v769 = vld [vmem:[#allocation2 + $0x40] sm:$0xf]
      %v770 = vld [vmem:[#allocation2 + $0x48] sm:$0xf]
      %v771 = vld [vmem:[#allocation2 + $0x4c] sm:$0xf]
      %v772 = vld [vmem:[#allocation2 + $0x54] sm:$0xf]
      %v773 = vld [vmem:[#allocation2 + $0x58] sm:$0xf]
      %v774 = vld [vmem:[#allocation2 + $0x60] sm:$0xf]
      %v775 = vld [vmem:[#allocation2 + $0x64] sm:$0xf]
      %v776 = vld [vmem:[#allocation2 + $0x6c] sm:$0xf]
      %v777 = vld [vmem:[#allocation2 + $0x70] sm:$0xf]
      %v778 = vld [vmem:[#allocation2 + $0x78] sm:$0xf]
      %v779 = vld [vmem:[#allocation2 + $0x7c] sm:$0xf]
      %v780 = vld [vmem:[#allocation2 + $0x84] sm:$0xf]
      %v781 = vld [vmem:[#allocation2 + $0x88] sm:$0xf]
      %v782 = vld [vmem:[#allocation2 + $0x90] sm:$0xf]
      %v783 = vld [vmem:[#allocation2 + $0x94] sm:$0xf]
      %v784 = vld [vmem:[#allocation2 + $0x9c] sm:$0xf]
      %v785 = vld [vmem:[#allocation2 + $0xa0] sm:$0xf]
      %v786 = vld [vmem:[#allocation2 + $0xa8] sm:$0xf]
      %v787 = vld [vmem:[#allocation2 + $0xac] sm:$0xf]
      %v788 = vld [vmem:[#allocation2 + $0xb4] sm:$0xf]
      %v789 = vld [vmem:[#allocation2 + $0xb8] sm:$0xf]
      %790 = vst [vmem:[#allocation3] sm:$0xf] %v758
      %791 = vst [vmem:[#allocation3 + $0x24] sm:$0xf] %v759
      %792 = vst [vmem:[#allocation3 + $0x48] sm:$0xf] %v760
      %793 = vst [vmem:[#allocation3 + $0x6c] sm:$0xf] %v761
      %794 = vst [vmem:[#allocation3 + $0x90] sm:$0xf] %v762
      %795 = vst [vmem:[#allocation3 + $0xb4] sm:$0xf] %v763
      %796 = vst [vmem:[#allocation3 + $0xd8] sm:$0xf] %v764
      %797 = vst [vmem:[#allocation3 + $0xfc] sm:$0xf] %v765
      %798 = vst [vmem:[#allocation3 + $0x120] sm:$0xf] %v766
      %799 = vst [vmem:[#allocation3 + $0x144] sm:$0xf] %v767
      %800 = vst [vmem:[#allocation3 + $0x168] sm:$0xf] %v768
      %801 = vst [vmem:[#allocation3 + $0x18c] sm:$0xf] %v769
      %802 = vst [vmem:[#allocation3 + $0x1b0] sm:$0xf] %v770
      %803 = vst [vmem:[#allocation3 + $0x1d4] sm:$0xf] %v771
      %804 = vst [vmem:[#allocation3 + $0x1f8] sm:$0xf] %v772
      %805 = vst [vmem:[#allocation3 + $0x21c] sm:$0xf] %v773
      %806 = vst [vmem:[#allocation3 + $0x240] sm:$0xf] %v774
      %807 = vst [vmem:[#allocation3 + $0x264] sm:$0xf] %v775
      %808 = vst [vmem:[#allocation3 + $0x288] sm:$0xf] %v776
      %809 = vst [vmem:[#allocation3 + $0x2ac] sm:$0xf] %v777
      %810 = vst [vmem:[#allocation3 + $0x2d0] sm:$0xf] %v778
      %811 = vst [vmem:[#allocation3 + $0x2f4] sm:$0xf] %v779
      %812 = vst [vmem:[#allocation3 + $0x318] sm:$0xf] %v780
      %813 = vst [vmem:[#allocation3 + $0x33c] sm:$0xf] %v781
      %814 = vst [vmem:[#allocation3 + $0x360] sm:$0xf] %v782
      %815 = vst [vmem:[#allocation3 + $0x384] sm:$0xf] %v783
      %816 = vst [vmem:[#allocation3 + $0x3a8] sm:$0xf] %v784
      %817 = vst [vmem:[#allocation3 + $0x3cc] sm:$0xf] %v785
      %818 = vst [vmem:[#allocation3 + $0x3f0] sm:$0xf] %v786
      %819 = vst [vmem:[#allocation3 + $0x414] sm:$0xf] %v787
      %820 = vst [vmem:[#allocation3 + $0x438] sm:$0xf] %v788
      %821 = vst [vmem:[#allocation3 + $0x45c] sm:$0xf] %v789
      %v822 = vld [vmem:[#allocation2] sm:$0xf]
      %v823 = vld [vmem:[#allocation2 + $0x4] sm:$0xf]
      %v824 = vld [vmem:[#allocation2 + $0x8] sm:$0x1]
      %v825 = vld [vmem:[#allocation2 + $0xc] sm:$0xf]
      %v826 = vld [vmem:[#allocation2 + $0x10] sm:$0xf]
      %v827 = vld [vmem:[#allocation2 + $0x14] sm:$0x1]
      %v828 = vld [vmem:[#allocation2 + $0x18] sm:$0xf]
      %v829 = vld [vmem:[#allocation2 + $0x1c] sm:$0xf]
      %v830 = vld [vmem:[#allocation2 + $0x20] sm:$0x1]
      %v831 = vld [vmem:[#allocation2 + $0x24] sm:$0xf]
      %v832 = vld [vmem:[#allocation2 + $0x28] sm:$0xf]
      %v833 = vld [vmem:[#allocation2 + $0x2c] sm:$0x1]
      %v834 = vld [vmem:[#allocation2 + $0x30] sm:$0xf]
      %v835 = vld [vmem:[#allocation2 + $0x34] sm:$0xf]
      %v836 = vld [vmem:[#allocation2 + $0x38] sm:$0x1]
      %v837 = vld [vmem:[#allocation2 + $0x3c] sm:$0xf]
      %v838 = vld [vmem:[#allocation2 + $0x40] sm:$0xf]
      %v839 = vld [vmem:[#allocation2 + $0x44] sm:$0x1]
      %v840 = vld [vmem:[#allocation2 + $0x48] sm:$0xf]
      %v841 = vld [vmem:[#allocation2 + $0x4c] sm:$0xf]
      %v842 = vld [vmem:[#allocation2 + $0x50] sm:$0x1]
      %v843 = vld [vmem:[#allocation2 + $0x54] sm:$0xf]
      %v844 = vld [vmem:[#allocation2 + $0x58] sm:$0xf]
      %v845 = vld [vmem:[#allocation2 + $0x5c] sm:$0x1]
      %v846 = vld [vmem:[#allocation2 + $0x60] sm:$0xf]
      %v847 = vld [vmem:[#allocation2 + $0x64] sm:$0xf]
      %v848 = vld [vmem:[#allocation2 + $0x68] sm:$0x1]
      %v849 = vld [vmem:[#allocation2 + $0x6c] sm:$0xf]
      %v850 = vld [vmem:[#allocation2 + $0x70] sm:$0xf]
      %v851 = vld [vmem:[#allocation2 + $0x74] sm:$0x1]
      %v852 = vld [vmem:[#allocation2 + $0x78] sm:$0xf]
      %v853 = vld [vmem:[#allocation2 + $0x7c] sm:$0xf]
      %v854 = vld [vmem:[#allocation2 + $0x80] sm:$0x1]
      %v855 = vld [vmem:[#allocation2 + $0x84] sm:$0xf]
      %v856 = vld [vmem:[#allocation2 + $0x88] sm:$0xf]
      %v857 = vld [vmem:[#allocation2 + $0x8c] sm:$0x1]
      %v858 = vld [vmem:[#allocation2 + $0x90] sm:$0xf]
      %v859 = vld [vmem:[#allocation2 + $0x94] sm:$0xf]
      %v860 = vld [vmem:[#allocation2 + $0x98] sm:$0x1]
      %v861 = vld [vmem:[#allocation2 + $0x9c] sm:$0xf]
      %v862 = vld [vmem:[#allocation2 + $0xa0] sm:$0xf]
      %v863 = vld [vmem:[#allocation2 + $0xa4] sm:$0x1]
      %v864 = vld [vmem:[#allocation2 + $0xa8] sm:$0xf]
      %v865 = vld [vmem:[#allocation2 + $0xac] sm:$0xf]
      %v866 = vld [vmem:[#allocation2 + $0xb0] sm:$0x1]
      %v867 = vld [vmem:[#allocation2 + $0xb4] sm:$0xf]
      %v868 = vld [vmem:[#allocation2 + $0xb8] sm:$0xf]
      %v869 = vld [vmem:[#allocation2 + $0xbc] sm:$0x1]
      %vm870 = vsmask.f32 3328
      %vm871 = vsmask.f32 7440
      %vm872 = vmor %vm870, %vm871
      %v874 = vshrl.u32 %v822, 16
      %v876 = vrot.slane %v874, 4
      %v877 = vshll.u32 %v822, 16
      %v879 = vrot.slane %v877, 5
      %v880 = vor.u32 %v876, %v879
      %v881 = vrot.slane %v880, 4
      %v883 = vshll.u32 %v823, 16
      %v885 = vrot.slane %v883, 5
      %v886 = vsel %vm872, %v881, %v885
      %v887 = vshrl.u32 %v823, 16
      %v889 = vrot.slane %v887, 4
      %v890 = vor.u32 %v889, %v885
      %v891 = vrot.slane %v890, 4
      %v893 = vshll.u32 %v824, 16
      %v895 = vrot.slane %v893, 5
      %v896 = vsel %vm872, %v891, %v895
      %v898 = vshrl.u32 %v825, 16
      %v900 = vrot.slane %v898, 4
      %v901 = vshll.u32 %v825, 16
      %v903 = vrot.slane %v901, 5
      %v904 = vor.u32 %v900, %v903
      %v905 = vrot.slane %v904, 4
      %v907 = vshll.u32 %v826, 16
      %v909 = vrot.slane %v907, 5
      %v910 = vsel %vm872, %v905, %v909
      %v911 = vshrl.u32 %v826, 16
      %v913 = vrot.slane %v911, 4
      %v914 = vor.u32 %v913, %v909
      %v915 = vrot.slane %v914, 4
      %v917 = vshll.u32 %v827, 16
      %v919 = vrot.slane %v917, 5
      %v920 = vsel %vm872, %v915, %v919
      %v922 = vshrl.u32 %v828, 16
      %v924 = vrot.slane %v922, 4
      %v925 = vshll.u32 %v828, 16
      %v927 = vrot.slane %v925, 5
      %v928 = vor.u32 %v924, %v927
      %v929 = vrot.slane %v928, 4
      %v931 = vshll.u32 %v829, 16
      %v933 = vrot.slane %v931, 5
      %v934 = vsel %vm872, %v929, %v933
      %v935 = vshrl.u32 %v829, 16
      %v937 = vrot.slane %v935, 4
      %v938 = vor.u32 %v937, %v933
      %v939 = vrot.slane %v938, 4
      %v941 = vshll.u32 %v830, 16
      %v943 = vrot.slane %v941, 5
      %v944 = vsel %vm872, %v939, %v943
      %v946 = vshrl.u32 %v831, 16
      %v948 = vrot.slane %v946, 4
      %v949 = vshll.u32 %v831, 16
      %v951 = vrot.slane %v949, 5
      %v952 = vor.u32 %v948, %v951
      %v953 = vrot.slane %v952, 4
      %v955 = vshll.u32 %v832, 16
      %v957 = vrot.slane %v955, 5
      %v958 = vsel %vm872, %v953, %v957
      %v959 = vshrl.u32 %v832, 16
      %v961 = vrot.slane %v959, 4
      %v962 = vor.u32 %v961, %v957
      %v963 = vrot.slane %v962, 4
      %v965 = vshll.u32 %v833, 16
      %v967 = vrot.slane %v965, 5
      %v968 = vsel %vm872, %v963, %v967
      %v970 = vshrl.u32 %v834, 16
      %v972 = vrot.slane %v970, 4
      %v973 = vshll.u32 %v834, 16
      %v975 = vrot.slane %v973, 5
      %v976 = vor.u32 %v972, %v975
      %v977 = vrot.slane %v976, 4
      %v979 = vshll.u32 %v835, 16
      %v981 = vrot.slane %v979, 5
      %v982 = vsel %vm872, %v977, %v981
      %v983 = vshrl.u32 %v835, 16
      %v985 = vrot.slane %v983, 4
      %v986 = vor.u32 %v985, %v981
      %v987 = vrot.slane %v986, 4
      %v989 = vshll.u32 %v836, 16
      %v991 = vrot.slane %v989, 5
      %v992 = vsel %vm872, %v987, %v991
      %v994 = vshrl.u32 %v837, 16
      %v996 = vrot.slane %v994, 4
      %v997 = vshll.u32 %v837, 16
      %v999 = vrot.slane %v997, 5
      %v1000 = vor.u32 %v996, %v999
      %v1001 = vrot.slane %v1000, 4
      %v1003 = vshll.u32 %v838, 16
      %v1005 = vrot.slane %v1003, 5
      %v1006 = vsel %vm872, %v1001, %v1005
      %v1007 = vshrl.u32 %v838, 16
      %v1009 = vrot.slane %v1007, 4
      %v1010 = vor.u32 %v1009, %v1005
      %v1011 = vrot.slane %v1010, 4
      %v1013 = vshll.u32 %v839, 16
      %v1015 = vrot.slane %v1013, 5
      %v1016 = vsel %vm872, %v1011, %v1015
      %v1018 = vshrl.u32 %v840, 16
      %v1020 = vrot.slane %v1018, 4
      %v1021 = vshll.u32 %v840, 16
      %v1023 = vrot.slane %v1021, 5
      %v1024 = vor.u32 %v1020, %v1023
      %v1025 = vrot.slane %v1024, 4
      %v1027 = vshll.u32 %v841, 16
      %v1029 = vrot.slane %v1027, 5
      %v1030 = vsel %vm872, %v1025, %v1029
      %v1031 = vshrl.u32 %v841, 16
      %v1033 = vrot.slane %v1031, 4
      %v1034 = vor.u32 %v1033, %v1029
      %v1035 = vrot.slane %v1034, 4
      %v1037 = vshll.u32 %v842, 16
      %v1039 = vrot.slane %v1037, 5
      %v1040 = vsel %vm872, %v1035, %v1039
      %v1042 = vshrl.u32 %v843, 16
      %v1044 = vrot.slane %v1042, 4
      %v1045 = vshll.u32 %v843, 16
      %v1047 = vrot.slane %v1045, 5
      %v1048 = vor.u32 %v1044, %v1047
      %v1049 = vrot.slane %v1048, 4
      %v1051 = vshll.u32 %v844, 16
      %v1053 = vrot.slane %v1051, 5
      %v1054 = vsel %vm872, %v1049, %v1053
      %v1055 = vshrl.u32 %v844, 16
      %v1057 = vrot.slane %v1055, 4
      %v1058 = vor.u32 %v1057, %v1053
      %v1059 = vrot.slane %v1058, 4
      %v1061 = vshll.u32 %v845, 16
      %v1063 = vrot.slane %v1061, 5
      %v1064 = vsel %vm872, %v1059, %v1063
      %v1066 = vshrl.u32 %v846, 16
      %v1068 = vrot.slane %v1066, 4
      %v1069 = vshll.u32 %v846, 16
      %v1071 = vrot.slane %v1069, 5
      %v1072 = vor.u32 %v1068, %v1071
      %v1073 = vrot.slane %v1072, 4
      %v1075 = vshll.u32 %v847, 16
      %v1077 = vrot.slane %v1075, 5
      %v1078 = vsel %vm872, %v1073, %v1077
      %v1079 = vshrl.u32 %v847, 16
      %v1081 = vrot.slane %v1079, 4
      %v1082 = vor.u32 %v1081, %v1077
      %v1083 = vrot.slane %v1082, 4
      %v1085 = vshll.u32 %v848, 16
      %v1087 = vrot.slane %v1085, 5
      %v1088 = vsel %vm872, %v1083, %v1087
      %v1090 = vshrl.u32 %v849, 16
      %v1092 = vrot.slane %v1090, 4
      %v1093 = vshll.u32 %v849, 16
      %v1095 = vrot.slane %v1093, 5
      %v1096 = vor.u32 %v1092, %v1095
      %v1097 = vrot.slane %v1096, 4
      %v1099 = vshll.u32 %v850, 16
      %v1101 = vrot.slane %v1099, 5
      %v1102 = vsel %vm872, %v1097, %v1101
      %v1103 = vshrl.u32 %v850, 16
      %v1105 = vrot.slane %v1103, 4
      %v1106 = vor.u32 %v1105, %v1101
      %v1107 = vrot.slane %v1106, 4
      %v1109 = vshll.u32 %v851, 16
      %v1111 = vrot.slane %v1109, 5
      %v1112 = vsel %vm872, %v1107, %v1111
      %v1114 = vshrl.u32 %v852, 16
      %v1116 = vrot.slane %v1114, 4
      %v1117 = vshll.u32 %v852, 16
      %v1119 = vrot.slane %v1117, 5
      %v1120 = vor.u32 %v1116, %v1119
      %v1121 = vrot.slane %v1120, 4
      %v1123 = vshll.u32 %v853, 16
      %v1125 = vrot.slane %v1123, 5
      %v1126 = vsel %vm872, %v1121, %v1125
      %v1127 = vshrl.u32 %v853, 16
      %v1129 = vrot.slane %v1127, 4
      %v1130 = vor.u32 %v1129, %v1125
      %v1131 = vrot.slane %v1130, 4
      %v1133 = vshll.u32 %v854, 16
      %v1135 = vrot.slane %v1133, 5
      %v1136 = vsel %vm872, %v1131, %v1135
      %v1138 = vshrl.u32 %v855, 16
      %v1140 = vrot.slane %v1138, 4
      %v1141 = vshll.u32 %v855, 16
      %v1143 = vrot.slane %v1141, 5
      %v1144 = vor.u32 %v1140, %v1143
      %v1145 = vrot.slane %v1144, 4
      %v1147 = vshll.u32 %v856, 16
      %v1149 = vrot.slane %v1147, 5
      %v1150 = vsel %vm872, %v1145, %v1149
      %v1151 = vshrl.u32 %v856, 16
      %v1153 = vrot.slane %v1151, 4
      %v1154 = vor.u32 %v1153, %v1149
      %v1155 = vrot.slane %v1154, 4
      %v1157 = vshll.u32 %v857, 16
      %v1159 = vrot.slane %v1157, 5
      %v1160 = vsel %vm872, %v1155, %v1159
      %v1162 = vshrl.u32 %v858, 16
      %v1164 = vrot.slane %v1162, 4
      %v1165 = vshll.u32 %v858, 16
      %v1167 = vrot.slane %v1165, 5
      %v1168 = vor.u32 %v1164, %v1167
      %v1169 = vrot.slane %v1168, 4
      %v1171 = vshll.u32 %v859, 16
      %v1173 = vrot.slane %v1171, 5
      %v1174 = vsel %vm872, %v1169, %v1173
      %v1175 = vshrl.u32 %v859, 16
      %v1177 = vrot.slane %v1175, 4
      %v1178 = vor.u32 %v1177, %v1173
      %v1179 = vrot.slane %v1178, 4
      %v1181 = vshll.u32 %v860, 16
      %v1183 = vrot.slane %v1181, 5
      %v1184 = vsel %vm872, %v1179, %v1183
      %v1186 = vshrl.u32 %v861, 16
      %v1188 = vrot.slane %v1186, 4
      %v1189 = vshll.u32 %v861, 16
      %v1191 = vrot.slane %v1189, 5
      %v1192 = vor.u32 %v1188, %v1191
      %v1193 = vrot.slane %v1192, 4
      %v1195 = vshll.u32 %v862, 16
      %v1197 = vrot.slane %v1195, 5
      %v1198 = vsel %vm872, %v1193, %v1197
      %v1199 = vshrl.u32 %v862, 16
      %v1201 = vrot.slane %v1199, 4
      %v1202 = vor.u32 %v1201, %v1197
      %v1203 = vrot.slane %v1202, 4
      %v1205 = vshll.u32 %v863, 16
      %v1207 = vrot.slane %v1205, 5
      %v1208 = vsel %vm872, %v1203, %v1207
      %v1210 = vshrl.u32 %v864, 16
      %v1212 = vrot.slane %v1210, 4
      %v1213 = vshll.u32 %v864, 16
      %v1215 = vrot.slane %v1213, 5
      %v1216 = vor.u32 %v1212, %v1215
      %v1217 = vrot.slane %v1216, 4
      %v1219 = vshll.u32 %v865, 16
      %v1221 = vrot.slane %v1219, 5
      %v1222 = vsel %vm872, %v1217, %v1221
      %v1223 = vshrl.u32 %v865, 16
      %v1225 = vrot.slane %v1223, 4
      %v1226 = vor.u32 %v1225, %v1221
      %v1227 = vrot.slane %v1226, 4
      %v1229 = vshll.u32 %v866, 16
      %v1231 = vrot.slane %v1229, 5
      %v1232 = vsel %vm872, %v1227, %v1231
      %v1234 = vshrl.u32 %v867, 16
      %v1236 = vrot.slane %v1234, 4
      %v1237 = vshll.u32 %v867, 16
      %v1239 = vrot.slane %v1237, 5
      %v1240 = vor.u32 %v1236, %v1239
      %v1241 = vrot.slane %v1240, 4
      %v1243 = vshll.u32 %v868, 16
      %v1245 = vrot.slane %v1243, 5
      %v1246 = vsel %vm872, %v1241, %v1245
      %v1247 = vshrl.u32 %v868, 16
      %v1249 = vrot.slane %v1247, 4
      %v1250 = vor.u32 %v1249, %v1245
      %v1251 = vrot.slane %v1250, 4
      %v1253 = vshll.u32 %v869, 16
      %v1255 = vrot.slane %v1253, 5
      %v1256 = vsel %vm872, %v1251, %v1255
      %1289 = vst [vmem:[#allocation3 + $0x4] sm:$0xf] %v886
      %1290 = vst [vmem:[#allocation3 + $0x28] sm:$0xf] %v896
      %1291 = vst [vmem:[#allocation3 + $0x4c] sm:$0xf] %v910
      %1292 = vst [vmem:[#allocation3 + $0x70] sm:$0xf] %v920
      %1293 = vst [vmem:[#allocation3 + $0x94] sm:$0xf] %v934
      %1294 = vst [vmem:[#allocation3 + $0xb8] sm:$0xf] %v944
      %1295 = vst [vmem:[#allocation3 + $0xdc] sm:$0xf] %v958
      %1296 = vst [vmem:[#allocation3 + $0x100] sm:$0xf] %v968
      %1297 = vst [vmem:[#allocation3 + $0x124] sm:$0xf] %v982
      %1298 = vst [vmem:[#allocation3 + $0x148] sm:$0xf] %v992
      %1299 = vst [vmem:[#allocation3 + $0x16c] sm:$0xf] %v1006
      %1300 = vst [vmem:[#allocation3 + $0x190] sm:$0xf] %v1016
      %1301 = vst [vmem:[#allocation3 + $0x1b4] sm:$0xf] %v1030
      %1302 = vst [vmem:[#allocation3 + $0x1d8] sm:$0xf] %v1040
      %1303 = vst [vmem:[#allocation3 + $0x1fc] sm:$0xf] %v1054
      %1304 = vst [vmem:[#allocation3 + $0x220] sm:$0xf] %v1064
      %1305 = vst [vmem:[#allocation3 + $0x244] sm:$0xf] %v1078
      %1306 = vst [vmem:[#allocation3 + $0x268] sm:$0xf] %v1088
      %1307 = vst [vmem:[#allocation3 + $0x28c] sm:$0xf] %v1102
      %1308 = vst [vmem:[#allocation3 + $0x2b0] sm:$0xf] %v1112
      %1309 = vst [vmem:[#allocation3 + $0x2d4] sm:$0xf] %v1126
      %1310 = vst [vmem:[#allocation3 + $0x2f8] sm:$0xf] %v1136
      %1311 = vst [vmem:[#allocation3 + $0x31c] sm:$0xf] %v1150
      %1312 = vst [vmem:[#allocation3 + $0x340] sm:$0xf] %v1160
      %1313 = vst [vmem:[#allocation3 + $0x364] sm:$0xf] %v1174
      %1314 = vst [vmem:[#allocation3 + $0x388] sm:$0xf] %v1184
      %1315 = vst [vmem:[#allocation3 + $0x3ac] sm:$0xf] %v1198
      %1316 = vst [vmem:[#allocation3 + $0x3d0] sm:$0xf] %v1208
      %1317 = vst [vmem:[#allocation3 + $0x3f4] sm:$0xf] %v1222
      %1318 = vst [vmem:[#allocation3 + $0x418] sm:$0xf] %v1232
      %1319 = vst [vmem:[#allocation3 + $0x43c] sm:$0xf] %v1246
      %1320 = vst [vmem:[#allocation3 + $0x460] sm:$0xf] %v1256
      %v1321 = vld [vmem:[#allocation2] sm:$0xe]
      %v1322 = vld [vmem:[#allocation2 + $0x4] sm:$0xf]
      %v1323 = vld [vmem:[#allocation2 + $0x8] sm:$0x1]
      %v1324 = vld [vmem:[#allocation2 + $0xc] sm:$0xe]
      %v1325 = vld [vmem:[#allocation2 + $0x10] sm:$0xf]
      %v1326 = vld [vmem:[#allocation2 + $0x14] sm:$0x1]
      %v1327 = vld [vmem:[#allocation2 + $0x18] sm:$0xe]
      %v1328 = vld [vmem:[#allocation2 + $0x1c] sm:$0xf]
      %v1329 = vld [vmem:[#allocation2 + $0x20] sm:$0x1]
      %v1330 = vld [vmem:[#allocation2 + $0x24] sm:$0xe]
      %v1331 = vld [vmem:[#allocation2 + $0x28] sm:$0xf]
      %v1332 = vld [vmem:[#allocation2 + $0x2c] sm:$0x1]
      %v1333 = vld [vmem:[#allocation2 + $0x30] sm:$0xe]
      %v1334 = vld [vmem:[#allocation2 + $0x34] sm:$0xf]
      %v1335 = vld [vmem:[#allocation2 + $0x38] sm:$0x1]
      %v1336 = vld [vmem:[#allocation2 + $0x3c] sm:$0xe]
      %v1337 = vld [vmem:[#allocation2 + $0x40] sm:$0xf]
      %v1338 = vld [vmem:[#allocation2 + $0x44] sm:$0x1]
      %v1339 = vld [vmem:[#allocation2 + $0x48] sm:$0xe]
      %v1340 = vld [vmem:[#allocation2 + $0x4c] sm:$0xf]
      %v1341 = vld [vmem:[#allocation2 + $0x50] sm:$0x1]
      %v1342 = vld [vmem:[#allocation2 + $0x54] sm:$0xe]
      %v1343 = vld [vmem:[#allocation2 + $0x58] sm:$0xf]
      %v1344 = vld [vmem:[#allocation2 + $0x5c] sm:$0x1]
      %v1345 = vld [vmem:[#allocation2 + $0x60] sm:$0xe]
      %v1346 = vld [vmem:[#allocation2 + $0x64] sm:$0xf]
      %v1347 = vld [vmem:[#allocation2 + $0x68] sm:$0x1]
      %v1348 = vld [vmem:[#allocation2 + $0x6c] sm:$0xe]
      %v1349 = vld [vmem:[#allocation2 + $0x70] sm:$0xf]
      %v1350 = vld [vmem:[#allocation2 + $0x74] sm:$0x1]
      %v1351 = vld [vmem:[#allocation2 + $0x78] sm:$0xe]
      %v1352 = vld [vmem:[#allocation2 + $0x7c] sm:$0xf]
      %v1353 = vld [vmem:[#allocation2 + $0x80] sm:$0x1]
      %v1354 = vld [vmem:[#allocation2 + $0x84] sm:$0xe]
      %v1355 = vld [vmem:[#allocation2 + $0x88] sm:$0xf]
      %v1356 = vld [vmem:[#allocation2 + $0x8c] sm:$0x1]
      %v1357 = vld [vmem:[#allocation2 + $0x90] sm:$0xe]
      %v1358 = vld [vmem:[#allocation2 + $0x94] sm:$0xf]
      %v1359 = vld [vmem:[#allocation2 + $0x98] sm:$0x1]
      %v1360 = vld [vmem:[#allocation2 + $0x9c] sm:$0xe]
      %v1361 = vld [vmem:[#allocation2 + $0xa0] sm:$0xf]
      %v1362 = vld [vmem:[#allocation2 + $0xa4] sm:$0x1]
      %v1363 = vld [vmem:[#allocation2 + $0xa8] sm:$0xe]
      %v1364 = vld [vmem:[#allocation2 + $0xac] sm:$0xf]
      %v1365 = vld [vmem:[#allocation2 + $0xb0] sm:$0x1]
      %v1366 = vld [vmem:[#allocation2 + $0xb4] sm:$0xe]
      %v1367 = vld [vmem:[#allocation2 + $0xb8] sm:$0xf]
      %v1368 = vld [vmem:[#allocation2 + $0xbc] sm:$0x1]
      %vm1417 = vcmask 1042432
      %vm1418 = vcmask 1046532
      %vm1419 = vmor %vm1417, %vm1418
      %v1420 = vrot.slane %v1321, 5
      %v1421 = vrot.slane %v1420, 4
      %v1422 = vrot.slane %v1322, 5
      %v1423 = vsel %vm1419, %v1421, %v1422
      %v1424 = vrot.slane %v1422, 4
      %v1425 = vrot.slane %v1323, 5
      %v1426 = vsel %vm1419, %v1424, %v1425
      %v1427 = vrot.slane %v1324, 5
      %v1428 = vrot.slane %v1427, 4
      %v1429 = vrot.slane %v1325, 5
      %v1430 = vsel %vm1419, %v1428, %v1429
      %v1431 = vrot.slane %v1429, 4
      %v1432 = vrot.slane %v1326, 5
      %v1433 = vsel %vm1419, %v1431, %v1432
      %v1434 = vrot.slane %v1327, 5
      %v1435 = vrot.slane %v1434, 4
      %v1436 = vrot.slane %v1328, 5
      %v1437 = vsel %vm1419, %v1435, %v1436
      %v1438 = vrot.slane %v1436, 4
      %v1439 = vrot.slane %v1329, 5
      %v1440 = vsel %vm1419, %v1438, %v1439
      %v1441 = vrot.slane %v1330, 5
      %v1442 = vrot.slane %v1441, 4
      %v1443 = vrot.slane %v1331, 5
      %v1444 = vsel %vm1419, %v1442, %v1443
      %v1445 = vrot.slane %v1443, 4
      %v1446 = vrot.slane %v1332, 5
      %v1447 = vsel %vm1419, %v1445, %v1446
      %v1448 = vrot.slane %v1333, 5
      %v1449 = vrot.slane %v1448, 4
      %v1450 = vrot.slane %v1334, 5
      %v1451 = vsel %vm1419, %v1449, %v1450
      %v1452 = vrot.slane %v1450, 4
      %v1453 = vrot.slane %v1335, 5
      %v1454 = vsel %vm1419, %v1452, %v1453
      %v1455 = vrot.slane %v1336, 5
      %v1456 = vrot.slane %v1455, 4
      %v1457 = vrot.slane %v1337, 5
      %v1458 = vsel %vm1419, %v1456, %v1457
      %v1459 = vrot.slane %v1457, 4
      %v1460 = vrot.slane %v1338, 5
      %v1461 = vsel %vm1419, %v1459, %v1460
      %v1462 = vrot.slane %v1339, 5
      %v1463 = vrot.slane %v1462, 4
      %v1464 = vrot.slane %v1340, 5
      %v1465 = vsel %vm1419, %v1463, %v1464
      %v1466 = vrot.slane %v1464, 4
      %v1467 = vrot.slane %v1341, 5
      %v1468 = vsel %vm1419, %v1466, %v1467
      %v1469 = vrot.slane %v1342, 5
      %v1470 = vrot.slane %v1469, 4
      %v1471 = vrot.slane %v1343, 5
      %v1472 = vsel %vm1419, %v1470, %v1471
      %v1473 = vrot.slane %v1471, 4
      %v1474 = vrot.slane %v1344, 5
      %v1475 = vsel %vm1419, %v1473, %v1474
      %v1476 = vrot.slane %v1345, 5
      %v1477 = vrot.slane %v1476, 4
      %v1478 = vrot.slane %v1346, 5
      %v1479 = vsel %vm1419, %v1477, %v1478
      %v1480 = vrot.slane %v1478, 4
      %v1481 = vrot.slane %v1347, 5
      %v1482 = vsel %vm1419, %v1480, %v1481
      %v1483 = vrot.slane %v1348, 5
      %v1484 = vrot.slane %v1483, 4
      %v1485 = vrot.slane %v1349, 5
      %v1486 = vsel %vm1419, %v1484, %v1485
      %v1487 = vrot.slane %v1485, 4
      %v1488 = vrot.slane %v1350, 5
      %v1489 = vsel %vm1419, %v1487, %v1488
      %v1490 = vrot.slane %v1351, 5
      %v1491 = vrot.slane %v1490, 4
      %v1492 = vrot.slane %v1352, 5
      %v1493 = vsel %vm1419, %v1491, %v1492
      %v1494 = vrot.slane %v1492, 4
      %v1495 = vrot.slane %v1353, 5
      %v1496 = vsel %vm1419, %v1494, %v1495
      %v1497 = vrot.slane %v1354, 5
      %v1498 = vrot.slane %v1497, 4
      %v1499 = vrot.slane %v1355, 5
      %v1500 = vsel %vm1419, %v1498, %v1499
      %v1501 = vrot.slane %v1499, 4
      %v1502 = vrot.slane %v1356, 5
      %v1503 = vsel %vm1419, %v1501, %v1502
      %v1504 = vrot.slane %v1357, 5
      %v1505 = vrot.slane %v1504, 4
      %v1506 = vrot.slane %v1358, 5
      %v1507 = vsel %vm1419, %v1505, %v1506
      %v1508 = vrot.slane %v1506, 4
      %v1509 = vrot.slane %v1359, 5
      %v1510 = vsel %vm1419, %v1508, %v1509
      %v1511 = vrot.slane %v1360, 5
      %v1512 = vrot.slane %v1511, 4
      %v1513 = vrot.slane %v1361, 5
      %v1514 = vsel %vm1419, %v1512, %v1513
      %v1515 = vrot.slane %v1513, 4
      %v1516 = vrot.slane %v1362, 5
      %v1517 = vsel %vm1419, %v1515, %v1516
      %v1518 = vrot.slane %v1363, 5
      %v1519 = vrot.slane %v1518, 4
      %v1520 = vrot.slane %v1364, 5
      %v1521 = vsel %vm1419, %v1519, %v1520
      %v1522 = vrot.slane %v1520, 4
      %v1523 = vrot.slane %v1365, 5
      %v1524 = vsel %vm1419, %v1522, %v1523
      %v1525 = vrot.slane %v1366, 5
      %v1526 = vrot.slane %v1525, 4
      %v1527 = vrot.slane %v1367, 5
      %v1528 = vsel %vm1419, %v1526, %v1527
      %v1529 = vrot.slane %v1527, 4
      %v1530 = vrot.slane %v1368, 5
      %v1531 = vsel %vm1419, %v1529, %v1530
      %1564 = vst [vmem:[#allocation3 + $0x8] sm:$0xf] %v1423
      %1565 = vst [vmem:[#allocation3 + $0x2c] sm:$0xf] %v1426
      %1566 = vst [vmem:[#allocation3 + $0x50] sm:$0xf] %v1430
      %1567 = vst [vmem:[#allocation3 + $0x74] sm:$0xf] %v1433
      %1568 = vst [vmem:[#allocation3 + $0x98] sm:$0xf] %v1437
      %1569 = vst [vmem:[#allocation3 + $0xbc] sm:$0xf] %v1440
      %1570 = vst [vmem:[#allocation3 + $0xe0] sm:$0xf] %v1444
      %1571 = vst [vmem:[#allocation3 + $0x104] sm:$0xf] %v1447
      %1572 = vst [vmem:[#allocation3 + $0x128] sm:$0xf] %v1451
      %1573 = vst [vmem:[#allocation3 + $0x14c] sm:$0xf] %v1454
      %1574 = vst [vmem:[#allocation3 + $0x170] sm:$0xf] %v1458
      %1575 = vst [vmem:[#allocation3 + $0x194] sm:$0xf] %v1461
      %1576 = vst [vmem:[#allocation3 + $0x1b8] sm:$0xf] %v1465
      %1577 = vst [vmem:[#allocation3 + $0x1dc] sm:$0xf] %v1468
      %1578 = vst [vmem:[#allocation3 + $0x200] sm:$0xf] %v1472
      %1579 = vst [vmem:[#allocation3 + $0x224] sm:$0xf] %v1475
      %1580 = vst [vmem:[#allocation3 + $0x248] sm:$0xf] %v1479
      %1581 = vst [vmem:[#allocation3 + $0x26c] sm:$0xf] %v1482
      %1582 = vst [vmem:[#allocation3 + $0x290] sm:$0xf] %v1486
      %1583 = vst [vmem:[#allocation3 + $0x2b4] sm:$0xf] %v1489
      %1584 = vst [vmem:[#allocation3 + $0x2d8] sm:$0xf] %v1493
      %1585 = vst [vmem:[#allocation3 + $0x2fc] sm:$0xf] %v1496
      %1586 = vst [vmem:[#allocation3 + $0x320] sm:$0xf] %v1500
      %1587 = vst [vmem:[#allocation3 + $0x344] sm:$0xf] %v1503
      %1588 = vst [vmem:[#allocation3 + $0x368] sm:$0xf] %v1507
      %1589 = vst [vmem:[#allocation3 + $0x38c] sm:$0xf] %v1510
      %1590 = vst [vmem:[#allocation3 + $0x3b0] sm:$0xf] %v1514
      %1591 = vst [vmem:[#allocation3 + $0x3d4] sm:$0xf] %v1517
      %1592 = vst [vmem:[#allocation3 + $0x3f8] sm:$0xf] %v1521
      %1593 = vst [vmem:[#allocation3 + $0x41c] sm:$0xf] %v1524
      %1594 = vst [vmem:[#allocation3 + $0x440] sm:$0xf] %v1528
      %1595 = vst [vmem:[#allocation3 + $0x464] sm:$0xf] %v1531
      %v1596 = vld [vmem:[%s639] sm:$0xf]
      %v1597 = vld [vmem:[%s639 + $0x4] sm:$0xf]
      %v1598 = vld [vmem:[%s639 + $0xc] sm:$0xf]
      %v1599 = vld [vmem:[%s639 + $0x10] sm:$0xf]
      %v1600 = vld [vmem:[%s639 + $0x18] sm:$0xf]
      %v1601 = vld [vmem:[%s639 + $0x1c] sm:$0xf]
      %v1602 = vld [vmem:[%s639 + $0x24] sm:$0xf]
      %v1603 = vld [vmem:[%s639 + $0x28] sm:$0xf]
      %v1604 = vld [vmem:[%s639 + $0x30] sm:$0xf]
      %v1605 = vld [vmem:[%s639 + $0x34] sm:$0xf]
      %v1606 = vld [vmem:[%s639 + $0x3c] sm:$0xf]
      %v1607 = vld [vmem:[%s639 + $0x40] sm:$0xf]
      %v1608 = vld [vmem:[%s639 + $0x48] sm:$0xf]
      %v1609 = vld [vmem:[%s639 + $0x4c] sm:$0xf]
      %v1610 = vld [vmem:[%s639 + $0x54] sm:$0xf]
      %v1611 = vld [vmem:[%s639 + $0x58] sm:$0xf]
      %v1612 = vld [vmem:[%s639 + $0x60] sm:$0xf]
      %v1613 = vld [vmem:[%s639 + $0x64] sm:$0xf]
      %v1614 = vld [vmem:[%s639 + $0x6c] sm:$0xf]
      %v1615 = vld [vmem:[%s639 + $0x70] sm:$0xf]
      %v1616 = vld [vmem:[%s639 + $0x78] sm:$0xf]
      %v1617 = vld [vmem:[%s639 + $0x7c] sm:$0xf]
      %v1618 = vld [vmem:[%s639 + $0x84] sm:$0xf]
      %v1619 = vld [vmem:[%s639 + $0x88] sm:$0xf]
      %v1620 = vld [vmem:[%s639 + $0x90] sm:$0xf]
      %v1621 = vld [vmem:[%s639 + $0x94] sm:$0xf]
      %v1622 = vld [vmem:[%s639 + $0x9c] sm:$0xf]
      %v1623 = vld [vmem:[%s639 + $0xa0] sm:$0xf]
      %v1624 = vld [vmem:[%s639 + $0xa8] sm:$0xf]
      %v1625 = vld [vmem:[%s639 + $0xac] sm:$0xf]
      %v1626 = vld [vmem:[%s639 + $0xb4] sm:$0xf]
      %v1627 = vld [vmem:[%s639 + $0xb8] sm:$0xf]
      %1628 = vst [vmem:[#allocation3 + $0xc] sm:$0xf] %v1596
      %1629 = vst [vmem:[#allocation3 + $0x30] sm:$0xf] %v1597
      %1630 = vst [vmem:[#allocation3 + $0x54] sm:$0xf] %v1598
      %1631 = vst [vmem:[#allocation3 + $0x78] sm:$0xf] %v1599
      %1632 = vst [vmem:[#allocation3 + $0x9c] sm:$0xf] %v1600
      %1633 = vst [vmem:[#allocation3 + $0xc0] sm:$0xf] %v1601
      %1634 = vst [vmem:[#allocation3 + $0xe4] sm:$0xf] %v1602
      %1635 = vst [vmem:[#allocation3 + $0x108] sm:$0xf] %v1603
      %1636 = vst [vmem:[#allocation3 + $0x12c] sm:$0xf] %v1604
      %1637 = vst [vmem:[#allocation3 + $0x150] sm:$0xf] %v1605
      %1638 = vst [vmem:[#allocation3 + $0x174] sm:$0xf] %v1606
      %1639 = vst [vmem:[#allocation3 + $0x198] sm:$0xf] %v1607
      %1640 = vst [vmem:[#allocation3 + $0x1bc] sm:$0xf] %v1608
      %1641 = vst [vmem:[#allocation3 + $0x1e0] sm:$0xf] %v1609
      %1642 = vst [vmem:[#allocation3 + $0x204] sm:$0xf] %v1610
      %1643 = vst [vmem:[#allocation3 + $0x228] sm:$0xf] %v1611
      %1644 = vst [vmem:[#allocation3 + $0x24c] sm:$0xf] %v1612
      %1645 = vst [vmem:[#allocation3 + $0x270] sm:$0xf] %v1613
      %1646 = vst [vmem:[#allocation3 + $0x294] sm:$0xf] %v1614
      %1647 = vst [vmem:[#allocation3 + $0x2b8] sm:$0xf] %v1615
      %1648 = vst [vmem:[#allocation3 + $0x2dc] sm:$0xf] %v1616
      %1649 = vst [vmem:[#allocation3 + $0x300] sm:$0xf] %v1617
      %1650 = vst [vmem:[#allocation3 + $0x324] sm:$0xf] %v1618
      %1651 = vst [vmem:[#allocation3 + $0x348] sm:$0xf] %v1619
      %1652 = vst [vmem:[#allocation3 + $0x36c] sm:$0xf] %v1620
      %1653 = vst [vmem:[#allocation3 + $0x390] sm:$0xf] %v1621
      %1654 = vst [vmem:[#allocation3 + $0x3b4] sm:$0xf] %v1622
      %1655 = vst [vmem:[#allocation3 + $0x3d8] sm:$0xf] %v1623
      %1656 = vst [vmem:[#allocation3 + $0x3fc] sm:$0xf] %v1624
      %1657 = vst [vmem:[#allocation3 + $0x420] sm:$0xf] %v1625
      %1658 = vst [vmem:[#allocation3 + $0x444] sm:$0xf] %v1626
      %1659 = vst [vmem:[#allocation3 + $0x468] sm:$0xf] %v1627
      %v1660 = vld [vmem:[%s639] sm:$0xf]
      %v1661 = vld [vmem:[%s639 + $0x4] sm:$0xf]
      %v1662 = vld [vmem:[%s639 + $0x8] sm:$0x1]
      %v1663 = vld [vmem:[%s639 + $0xc] sm:$0xf]
      %v1664 = vld [vmem:[%s639 + $0x10] sm:$0xf]
      %v1665 = vld [vmem:[%s639 + $0x14] sm:$0x1]
      %v1666 = vld [vmem:[%s639 + $0x18] sm:$0xf]
      %v1667 = vld [vmem:[%s639 + $0x1c] sm:$0xf]
      %v1668 = vld [vmem:[%s639 + $0x20] sm:$0x1]
      %v1669 = vld [vmem:[%s639 + $0x24] sm:$0xf]
      %v1670 = vld [vmem:[%s639 + $0x28] sm:$0xf]
      %v1671 = vld [vmem:[%s639 + $0x2c] sm:$0x1]
      %v1672 = vld [vmem:[%s639 + $0x30] sm:$0xf]
      %v1673 = vld [vmem:[%s639 + $0x34] sm:$0xf]
      %v1674 = vld [vmem:[%s639 + $0x38] sm:$0x1]
      %v1675 = vld [vmem:[%s639 + $0x3c] sm:$0xf]
      %v1676 = vld [vmem:[%s639 + $0x40] sm:$0xf]
      %v1677 = vld [vmem:[%s639 + $0x44] sm:$0x1]
      %v1678 = vld [vmem:[%s639 + $0x48] sm:$0xf]
      %v1679 = vld [vmem:[%s639 + $0x4c] sm:$0xf]
      %v1680 = vld [vmem:[%s639 + $0x50] sm:$0x1]
      %v1681 = vld [vmem:[%s639 + $0x54] sm:$0xf]
      %v1682 = vld [vmem:[%s639 + $0x58] sm:$0xf]
      %v1683 = vld [vmem:[%s639 + $0x5c] sm:$0x1]
      %v1684 = vld [vmem:[%s639 + $0x60] sm:$0xf]
      %v1685 = vld [vmem:[%s639 + $0x64] sm:$0xf]
      %v1686 = vld [vmem:[%s639 + $0x68] sm:$0x1]
      %v1687 = vld [vmem:[%s639 + $0x6c] sm:$0xf]
      %v1688 = vld [vmem:[%s639 + $0x70] sm:$0xf]
      %v1689 = vld [vmem:[%s639 + $0x74] sm:$0x1]
      %v1690 = vld [vmem:[%s639 + $0x78] sm:$0xf]
      %v1691 = vld [vmem:[%s639 + $0x7c] sm:$0xf]
      %v1692 = vld [vmem:[%s639 + $0x80] sm:$0x1]
      %v1693 = vld [vmem:[%s639 + $0x84] sm:$0xf]
      %v1694 = vld [vmem:[%s639 + $0x88] sm:$0xf]
      %v1695 = vld [vmem:[%s639 + $0x8c] sm:$0x1]
      %v1696 = vld [vmem:[%s639 + $0x90] sm:$0xf]
      %v1697 = vld [vmem:[%s639 + $0x94] sm:$0xf]
      %v1698 = vld [vmem:[%s639 + $0x98] sm:$0x1]
      %v1699 = vld [vmem:[%s639 + $0x9c] sm:$0xf]
      %v1700 = vld [vmem:[%s639 + $0xa0] sm:$0xf]
      %v1701 = vld [vmem:[%s639 + $0xa4] sm:$0x1]
      %v1702 = vld [vmem:[%s639 + $0xa8] sm:$0xf]
      %v1703 = vld [vmem:[%s639 + $0xac] sm:$0xf]
      %v1704 = vld [vmem:[%s639 + $0xb0] sm:$0x1]
      %v1705 = vld [vmem:[%s639 + $0xb4] sm:$0xf]
      %v1706 = vld [vmem:[%s639 + $0xb8] sm:$0xf]
      %v1707 = vld [vmem:[%s639 + $0xbc] sm:$0x1]
      %v1709 = vshrl.u32 %v1660, 16
      %v1711 = vrot.slane %v1709, 4
      %v1712 = vshll.u32 %v1660, 16
      %v1714 = vrot.slane %v1712, 5
      %v1715 = vor.u32 %v1711, %v1714
      %v1716 = vrot.slane %v1715, 4
      %v1718 = vshll.u32 %v1661, 16
      %v1720 = vrot.slane %v1718, 5
      %v1721 = vsel %vm872, %v1716, %v1720
      %v1722 = vshrl.u32 %v1661, 16
      %v1724 = vrot.slane %v1722, 4
      %v1725 = vor.u32 %v1724, %v1720
      %v1726 = vrot.slane %v1725, 4
      %v1728 = vshll.u32 %v1662, 16
      %v1730 = vrot.slane %v1728, 5
      %v1731 = vsel %vm872, %v1726, %v1730
      %v1733 = vshrl.u32 %v1663, 16
      %v1735 = vrot.slane %v1733, 4
      %v1736 = vshll.u32 %v1663, 16
      %v1738 = vrot.slane %v1736, 5
      %v1739 = vor.u32 %v1735, %v1738
      %v1740 = vrot.slane %v1739, 4
      %v1742 = vshll.u32 %v1664, 16
      %v1744 = vrot.slane %v1742, 5
      %v1745 = vsel %vm872, %v1740, %v1744
      %v1746 = vshrl.u32 %v1664, 16
      %v1748 = vrot.slane %v1746, 4
      %v1749 = vor.u32 %v1748, %v1744
      %v1750 = vrot.slane %v1749, 4
      %v1752 = vshll.u32 %v1665, 16
      %v1754 = vrot.slane %v1752, 5
      %v1755 = vsel %vm872, %v1750, %v1754
      %v1757 = vshrl.u32 %v1666, 16
      %v1759 = vrot.slane %v1757, 4
      %v1760 = vshll.u32 %v1666, 16
      %v1762 = vrot.slane %v1760, 5
      %v1763 = vor.u32 %v1759, %v1762
      %v1764 = vrot.slane %v1763, 4
      %v1766 = vshll.u32 %v1667, 16
      %v1768 = vrot.slane %v1766, 5
      %v1769 = vsel %vm872, %v1764, %v1768
      %v1770 = vshrl.u32 %v1667, 16
      %v1772 = vrot.slane %v1770, 4
      %v1773 = vor.u32 %v1772, %v1768
      %v1774 = vrot.slane %v1773, 4
      %v1776 = vshll.u32 %v1668, 16
      %v1778 = vrot.slane %v1776, 5
      %v1779 = vsel %vm872, %v1774, %v1778
      %v1781 = vshrl.u32 %v1669, 16
      %v1783 = vrot.slane %v1781, 4
      %v1784 = vshll.u32 %v1669, 16
      %v1786 = vrot.slane %v1784, 5
      %v1787 = vor.u32 %v1783, %v1786
      %v1788 = vrot.slane %v1787, 4
      %v1790 = vshll.u32 %v1670, 16
      %v1792 = vrot.slane %v1790, 5
      %v1793 = vsel %vm872, %v1788, %v1792
      %v1794 = vshrl.u32 %v1670, 16
      %v1796 = vrot.slane %v1794, 4
      %v1797 = vor.u32 %v1796, %v1792
      %v1798 = vrot.slane %v1797, 4
      %v1800 = vshll.u32 %v1671, 16
      %v1802 = vrot.slane %v1800, 5
      %v1803 = vsel %vm872, %v1798, %v1802
      %v1805 = vshrl.u32 %v1672, 16
      %v1807 = vrot.slane %v1805, 4
      %v1808 = vshll.u32 %v1672, 16
      %v1810 = vrot.slane %v1808, 5
      %v1811 = vor.u32 %v1807, %v1810
      %v1812 = vrot.slane %v1811, 4
      %v1814 = vshll.u32 %v1673, 16
      %v1816 = vrot.slane %v1814, 5
      %v1817 = vsel %vm872, %v1812, %v1816
      %v1818 = vshrl.u32 %v1673, 16
      %v1820 = vrot.slane %v1818, 4
      %v1821 = vor.u32 %v1820, %v1816
      %v1822 = vrot.slane %v1821, 4
      %v1824 = vshll.u32 %v1674, 16
      %v1826 = vrot.slane %v1824, 5
      %v1827 = vsel %vm872, %v1822, %v1826
      %v1829 = vshrl.u32 %v1675, 16
      %v1831 = vrot.slane %v1829, 4
      %v1832 = vshll.u32 %v1675, 16
      %v1834 = vrot.slane %v1832, 5
      %v1835 = vor.u32 %v1831, %v1834
      %v1836 = vrot.slane %v1835, 4
      %v1838 = vshll.u32 %v1676, 16
      %v1840 = vrot.slane %v1838, 5
      %v1841 = vsel %vm872, %v1836, %v1840
      %v1842 = vshrl.u32 %v1676, 16
      %v1844 = vrot.slane %v1842, 4
      %v1845 = vor.u32 %v1844, %v1840
      %v1846 = vrot.slane %v1845, 4
      %v1848 = vshll.u32 %v1677, 16
      %v1850 = vrot.slane %v1848, 5
      %v1851 = vsel %vm872, %v1846, %v1850
      %v1853 = vshrl.u32 %v1678, 16
      %v1855 = vrot.slane %v1853, 4
      %v1856 = vshll.u32 %v1678, 16
      %v1858 = vrot.slane %v1856, 5
      %v1859 = vor.u32 %v1855, %v1858
      %v1860 = vrot.slane %v1859, 4
      %v1862 = vshll.u32 %v1679, 16
      %v1864 = vrot.slane %v1862, 5
      %v1865 = vsel %vm872, %v1860, %v1864
      %v1866 = vshrl.u32 %v1679, 16
      %v1868 = vrot.slane %v1866, 4
      %v1869 = vor.u32 %v1868, %v1864
      %v1870 = vrot.slane %v1869, 4
      %v1872 = vshll.u32 %v1680, 16
      %v1874 = vrot.slane %v1872, 5
      %v1875 = vsel %vm872, %v1870, %v1874
      %v1877 = vshrl.u32 %v1681, 16
      %v1879 = vrot.slane %v1877, 4
      %v1880 = vshll.u32 %v1681, 16
      %v1882 = vrot.slane %v1880, 5
      %v1883 = vor.u32 %v1879, %v1882
      %v1884 = vrot.slane %v1883, 4
      %v1886 = vshll.u32 %v1682, 16
      %v1888 = vrot.slane %v1886, 5
      %v1889 = vsel %vm872, %v1884, %v1888
      %v1890 = vshrl.u32 %v1682, 16
      %v1892 = vrot.slane %v1890, 4
      %v1893 = vor.u32 %v1892, %v1888
      %v1894 = vrot.slane %v1893, 4
      %v1896 = vshll.u32 %v1683, 16
      %v1898 = vrot.slane %v1896, 5
      %v1899 = vsel %vm872, %v1894, %v1898
      %v1901 = vshrl.u32 %v1684, 16
      %v1903 = vrot.slane %v1901, 4
      %v1904 = vshll.u32 %v1684, 16
      %v1906 = vrot.slane %v1904, 5
      %v1907 = vor.u32 %v1903, %v1906
      %v1908 = vrot.slane %v1907, 4
      %v1910 = vshll.u32 %v1685, 16
      %v1912 = vrot.slane %v1910, 5
      %v1913 = vsel %vm872, %v1908, %v1912
      %v1914 = vshrl.u32 %v1685, 16
      %v1916 = vrot.slane %v1914, 4
      %v1917 = vor.u32 %v1916, %v1912
      %v1918 = vrot.slane %v1917, 4
      %v1920 = vshll.u32 %v1686, 16
      %v1922 = vrot.slane %v1920, 5
      %v1923 = vsel %vm872, %v1918, %v1922
      %v1925 = vshrl.u32 %v1687, 16
      %v1927 = vrot.slane %v1925, 4
      %v1928 = vshll.u32 %v1687, 16
      %v1930 = vrot.slane %v1928, 5
      %v1931 = vor.u32 %v1927, %v1930
      %v1932 = vrot.slane %v1931, 4
      %v1934 = vshll.u32 %v1688, 16
      %v1936 = vrot.slane %v1934, 5
      %v1937 = vsel %vm872, %v1932, %v1936
      %v1938 = vshrl.u32 %v1688, 16
      %v1940 = vrot.slane %v1938, 4
      %v1941 = vor.u32 %v1940, %v1936
      %v1942 = vrot.slane %v1941, 4
      %v1944 = vshll.u32 %v1689, 16
      %v1946 = vrot.slane %v1944, 5
      %v1947 = vsel %vm872, %v1942, %v1946
      %v1949 = vshrl.u32 %v1690, 16
      %v1951 = vrot.slane %v1949, 4
      %v1952 = vshll.u32 %v1690, 16
      %v1954 = vrot.slane %v1952, 5
      %v1955 = vor.u32 %v1951, %v1954
      %v1956 = vrot.slane %v1955, 4
      %v1958 = vshll.u32 %v1691, 16
      %v1960 = vrot.slane %v1958, 5
      %v1961 = vsel %vm872, %v1956, %v1960
      %v1962 = vshrl.u32 %v1691, 16
      %v1964 = vrot.slane %v1962, 4
      %v1965 = vor.u32 %v1964, %v1960
      %v1966 = vrot.slane %v1965, 4
      %v1968 = vshll.u32 %v1692, 16
      %v1970 = vrot.slane %v1968, 5
      %v1971 = vsel %vm872, %v1966, %v1970
      %v1973 = vshrl.u32 %v1693, 16
      %v1975 = vrot.slane %v1973, 4
      %v1976 = vshll.u32 %v1693, 16
      %v1978 = vrot.slane %v1976, 5
      %v1979 = vor.u32 %v1975, %v1978
      %v1980 = vrot.slane %v1979, 4
      %v1982 = vshll.u32 %v1694, 16
      %v1984 = vrot.slane %v1982, 5
      %v1985 = vsel %vm872, %v1980, %v1984
      %v1986 = vshrl.u32 %v1694, 16
      %v1988 = vrot.slane %v1986, 4
      %v1989 = vor.u32 %v1988, %v1984
      %v1990 = vrot.slane %v1989, 4
      %v1992 = vshll.u32 %v1695, 16
      %v1994 = vrot.slane %v1992, 5
      %v1995 = vsel %vm872, %v1990, %v1994
      %v1997 = vshrl.u32 %v1696, 16
      %v1999 = vrot.slane %v1997, 4
      %v2000 = vshll.u32 %v1696, 16
      %v2002 = vrot.slane %v2000, 5
      %v2003 = vor.u32 %v1999, %v2002
      %v2004 = vrot.slane %v2003, 4
      %v2006 = vshll.u32 %v1697, 16
      %v2008 = vrot.slane %v2006, 5
      %v2009 = vsel %vm872, %v2004, %v2008
      %v2010 = vshrl.u32 %v1697, 16
      %v2012 = vrot.slane %v2010, 4
      %v2013 = vor.u32 %v2012, %v2008
      %v2014 = vrot.slane %v2013, 4
      %v2016 = vshll.u32 %v1698, 16
      %v2018 = vrot.slane %v2016, 5
      %v2019 = vsel %vm872, %v2014, %v2018
      %v2021 = vshrl.u32 %v1699, 16
      %v2023 = vrot.slane %v2021, 4
      %v2024 = vshll.u32 %v1699, 16
      %v2026 = vrot.slane %v2024, 5
      %v2027 = vor.u32 %v2023, %v2026
      %v2028 = vrot.slane %v2027, 4
      %v2030 = vshll.u32 %v1700, 16
      %v2032 = vrot.slane %v2030, 5
      %v2033 = vsel %vm872, %v2028, %v2032
      %v2034 = vshrl.u32 %v1700, 16
      %v2036 = vrot.slane %v2034, 4
      %v2037 = vor.u32 %v2036, %v2032
      %v2038 = vrot.slane %v2037, 4
      %v2040 = vshll.u32 %v1701, 16
      %v2042 = vrot.slane %v2040, 5
      %v2043 = vsel %vm872, %v2038, %v2042
      %v2045 = vshrl.u32 %v1702, 16
      %v2047 = vrot.slane %v2045, 4
      %v2048 = vshll.u32 %v1702, 16
      %v2050 = vrot.slane %v2048, 5
      %v2051 = vor.u32 %v2047, %v2050
      %v2052 = vrot.slane %v2051, 4
      %v2054 = vshll.u32 %v1703, 16
      %v2056 = vrot.slane %v2054, 5
      %v2057 = vsel %vm872, %v2052, %v2056
      %v2058 = vshrl.u32 %v1703, 16
      %v2060 = vrot.slane %v2058, 4
      %v2061 = vor.u32 %v2060, %v2056
      %v2062 = vrot.slane %v2061, 4
      %v2064 = vshll.u32 %v1704, 16
      %v2066 = vrot.slane %v2064, 5
      %v2067 = vsel %vm872, %v2062, %v2066
      %v2069 = vshrl.u32 %v1705, 16
      %v2071 = vrot.slane %v2069, 4
      %v2072 = vshll.u32 %v1705, 16
      %v2074 = vrot.slane %v2072, 5
      %v2075 = vor.u32 %v2071, %v2074
      %v2076 = vrot.slane %v2075, 4
      %v2078 = vshll.u32 %v1706, 16
      %v2080 = vrot.slane %v2078, 5
      %v2081 = vsel %vm872, %v2076, %v2080
      %v2082 = vshrl.u32 %v1706, 16
      %v2084 = vrot.slane %v2082, 4
      %v2085 = vor.u32 %v2084, %v2080
      %v2086 = vrot.slane %v2085, 4
      %v2088 = vshll.u32 %v1707, 16
      %v2090 = vrot.slane %v2088, 5
      %v2091 = vsel %vm872, %v2086, %v2090
      %2124 = vst [vmem:[#allocation3 + $0x10] sm:$0xf] %v1721
      %2125 = vst [vmem:[#allocation3 + $0x34] sm:$0xf] %v1731
      %2126 = vst [vmem:[#allocation3 + $0x58] sm:$0xf] %v1745
      %2127 = vst [vmem:[#allocation3 + $0x7c] sm:$0xf] %v1755
      %2128 = vst [vmem:[#allocation3 + $0xa0] sm:$0xf] %v1769
      %2129 = vst [vmem:[#allocation3 + $0xc4] sm:$0xf] %v1779
      %2130 = vst [vmem:[#allocation3 + $0xe8] sm:$0xf] %v1793
      %2131 = vst [vmem:[#allocation3 + $0x10c] sm:$0xf] %v1803
      %2132 = vst [vmem:[#allocation3 + $0x130] sm:$0xf] %v1817
      %2133 = vst [vmem:[#allocation3 + $0x154] sm:$0xf] %v1827
      %2134 = vst [vmem:[#allocation3 + $0x178] sm:$0xf] %v1841
      %2135 = vst [vmem:[#allocation3 + $0x19c] sm:$0xf] %v1851
      %2136 = vst [vmem:[#allocation3 + $0x1c0] sm:$0xf] %v1865
      %2137 = vst [vmem:[#allocation3 + $0x1e4] sm:$0xf] %v1875
      %2138 = vst [vmem:[#allocation3 + $0x208] sm:$0xf] %v1889
      %2139 = vst [vmem:[#allocation3 + $0x22c] sm:$0xf] %v1899
      %2140 = vst [vmem:[#allocation3 + $0x250] sm:$0xf] %v1913
      %2141 = vst [vmem:[#allocation3 + $0x274] sm:$0xf] %v1923
      %2142 = vst [vmem:[#allocation3 + $0x298] sm:$0xf] %v1937
      %2143 = vst [vmem:[#allocation3 + $0x2bc] sm:$0xf] %v1947
      %2144 = vst [vmem:[#allocation3 + $0x2e0] sm:$0xf] %v1961
      %2145 = vst [vmem:[#allocation3 + $0x304] sm:$0xf] %v1971
      %2146 = vst [vmem:[#allocation3 + $0x328] sm:$0xf] %v1985
      %2147 = vst [vmem:[#allocation3 + $0x34c] sm:$0xf] %v1995
      %2148 = vst [vmem:[#allocation3 + $0x370] sm:$0xf] %v2009
      %2149 = vst [vmem:[#allocation3 + $0x394] sm:$0xf] %v2019
      %2150 = vst [vmem:[#allocation3 + $0x3b8] sm:$0xf] %v2033
      %2151 = vst [vmem:[#allocation3 + $0x3dc] sm:$0xf] %v2043
      %2152 = vst [vmem:[#allocation3 + $0x400] sm:$0xf] %v2057
      %2153 = vst [vmem:[#allocation3 + $0x424] sm:$0xf] %v2067
      %2154 = vst [vmem:[#allocation3 + $0x448] sm:$0xf] %v2081
      %2155 = vst [vmem:[#allocation3 + $0x46c] sm:$0xf] %v2091
      %v2156 = vld [vmem:[%s639] sm:$0xe]
      %v2157 = vld [vmem:[%s639 + $0x4] sm:$0xf]
      %v2158 = vld [vmem:[%s639 + $0x8] sm:$0x1]
      %v2159 = vld [vmem:[%s639 + $0xc] sm:$0xe]
      %v2160 = vld [vmem:[%s639 + $0x10] sm:$0xf]
      %v2161 = vld [vmem:[%s639 + $0x14] sm:$0x1]
      %v2162 = vld [vmem:[%s639 + $0x18] sm:$0xe]
      %v2163 = vld [vmem:[%s639 + $0x1c] sm:$0xf]
      %v2164 = vld [vmem:[%s639 + $0x20] sm:$0x1]
      %v2165 = vld [vmem:[%s639 + $0x24] sm:$0xe]
      %v2166 = vld [vmem:[%s639 + $0x28] sm:$0xf]
      %v2167 = vld [vmem:[%s639 + $0x2c] sm:$0x1]
      %v2168 = vld [vmem:[%s639 + $0x30] sm:$0xe]
      %v2169 = vld [vmem:[%s639 + $0x34] sm:$0xf]
      %v2170 = vld [vmem:[%s639 + $0x38] sm:$0x1]
      %v2171 = vld [vmem:[%s639 + $0x3c] sm:$0xe]
      %v2172 = vld [vmem:[%s639 + $0x40] sm:$0xf]
      %v2173 = vld [vmem:[%s639 + $0x44] sm:$0x1]
      %v2174 = vld [vmem:[%s639 + $0x48] sm:$0xe]
      %v2175 = vld [vmem:[%s639 + $0x4c] sm:$0xf]
      %v2176 = vld [vmem:[%s639 + $0x50] sm:$0x1]
      %v2177 = vld [vmem:[%s639 + $0x54] sm:$0xe]
      %v2178 = vld [vmem:[%s639 + $0x58] sm:$0xf]
      %v2179 = vld [vmem:[%s639 + $0x5c] sm:$0x1]
      %v2180 = vld [vmem:[%s639 + $0x60] sm:$0xe]
      %v2181 = vld [vmem:[%s639 + $0x64] sm:$0xf]
      %v2182 = vld [vmem:[%s639 + $0x68] sm:$0x1]
      %v2183 = vld [vmem:[%s639 + $0x6c] sm:$0xe]
      %v2184 = vld [vmem:[%s639 + $0x70] sm:$0xf]
      %v2185 = vld [vmem:[%s639 + $0x74] sm:$0x1]
      %v2186 = vld [vmem:[%s639 + $0x78] sm:$0xe]
      %v2187 = vld [vmem:[%s639 + $0x7c] sm:$0xf]
      %v2188 = vld [vmem:[%s639 + $0x80] sm:$0x1]
      %v2189 = vld [vmem:[%s639 + $0x84] sm:$0xe]
      %v2190 = vld [vmem:[%s639 + $0x88] sm:$0xf]
      %v2191 = vld [vmem:[%s639 + $0x8c] sm:$0x1]
      %v2192 = vld [vmem:[%s639 + $0x90] sm:$0xe]
      %v2193 = vld [vmem:[%s639 + $0x94] sm:$0xf]
      %v2194 = vld [vmem:[%s639 + $0x98] sm:$0x1]
      %v2195 = vld [vmem:[%s639 + $0x9c] sm:$0xe]
      %v2196 = vld [vmem:[%s639 + $0xa0] sm:$0xf]
      %v2197 = vld [vmem:[%s639 + $0xa4] sm:$0x1]
      %v2198 = vld [vmem:[%s639 + $0xa8] sm:$0xe]
      %v2199 = vld [vmem:[%s639 + $0xac] sm:$0xf]
      %v2200 = vld [vmem:[%s639 + $0xb0] sm:$0x1]
      %v2201 = vld [vmem:[%s639 + $0xb4] sm:$0xe]
      %v2202 = vld [vmem:[%s639 + $0xb8] sm:$0xf]
      %v2203 = vld [vmem:[%s639 + $0xbc] sm:$0x1]
      %v2252 = vrot.slane %v2156, 5
      %v2253 = vrot.slane %v2252, 4
      %v2254 = vrot.slane %v2157, 5
      %v2255 = vsel %vm1419, %v2253, %v2254
      %v2256 = vrot.slane %v2254, 4
      %v2257 = vrot.slane %v2158, 5
      %v2258 = vsel %vm1419, %v2256, %v2257
      %v2259 = vrot.slane %v2159, 5
      %v2260 = vrot.slane %v2259, 4
      %v2261 = vrot.slane %v2160, 5
      %v2262 = vsel %vm1419, %v2260, %v2261
      %v2263 = vrot.slane %v2261, 4
      %v2264 = vrot.slane %v2161, 5
      %v2265 = vsel %vm1419, %v2263, %v2264
      %v2266 = vrot.slane %v2162, 5
      %v2267 = vrot.slane %v2266, 4
      %v2268 = vrot.slane %v2163, 5
      %v2269 = vsel %vm1419, %v2267, %v2268
      %v2270 = vrot.slane %v2268, 4
      %v2271 = vrot.slane %v2164, 5
      %v2272 = vsel %vm1419, %v2270, %v2271
      %v2273 = vrot.slane %v2165, 5
      %v2274 = vrot.slane %v2273, 4
      %v2275 = vrot.slane %v2166, 5
      %v2276 = vsel %vm1419, %v2274, %v2275
      %v2277 = vrot.slane %v2275, 4
      %v2278 = vrot.slane %v2167, 5
      %v2279 = vsel %vm1419, %v2277, %v2278
      %v2280 = vrot.slane %v2168, 5
      %v2281 = vrot.slane %v2280, 4
      %v2282 = vrot.slane %v2169, 5
      %v2283 = vsel %vm1419, %v2281, %v2282
      %v2284 = vrot.slane %v2282, 4
      %v2285 = vrot.slane %v2170, 5
      %v2286 = vsel %vm1419, %v2284, %v2285
      %v2287 = vrot.slane %v2171, 5
      %v2288 = vrot.slane %v2287, 4
      %v2289 = vrot.slane %v2172, 5
      %v2290 = vsel %vm1419, %v2288, %v2289
      %v2291 = vrot.slane %v2289, 4
      %v2292 = vrot.slane %v2173, 5
      %v2293 = vsel %vm1419, %v2291, %v2292
      %v2294 = vrot.slane %v2174, 5
      %v2295 = vrot.slane %v2294, 4
      %v2296 = vrot.slane %v2175, 5
      %v2297 = vsel %vm1419, %v2295, %v2296
      %v2298 = vrot.slane %v2296, 4
      %v2299 = vrot.slane %v2176, 5
      %v2300 = vsel %vm1419, %v2298, %v2299
      %v2301 = vrot.slane %v2177, 5
      %v2302 = vrot.slane %v2301, 4
      %v2303 = vrot.slane %v2178, 5
      %v2304 = vsel %vm1419, %v2302, %v2303
      %v2305 = vrot.slane %v2303, 4
      %v2306 = vrot.slane %v2179, 5
      %v2307 = vsel %vm1419, %v2305, %v2306
      %v2308 = vrot.slane %v2180, 5
      %v2309 = vrot.slane %v2308, 4
      %v2310 = vrot.slane %v2181, 5
      %v2311 = vsel %vm1419, %v2309, %v2310
      %v2312 = vrot.slane %v2310, 4
      %v2313 = vrot.slane %v2182, 5
      %v2314 = vsel %vm1419, %v2312, %v2313
      %v2315 = vrot.slane %v2183, 5
      %v2316 = vrot.slane %v2315, 4
      %v2317 = vrot.slane %v2184, 5
      %v2318 = vsel %vm1419, %v2316, %v2317
      %v2319 = vrot.slane %v2317, 4
      %v2320 = vrot.slane %v2185, 5
      %v2321 = vsel %vm1419, %v2319, %v2320
      %v2322 = vrot.slane %v2186, 5
      %v2323 = vrot.slane %v2322, 4
      %v2324 = vrot.slane %v2187, 5
      %v2325 = vsel %vm1419, %v2323, %v2324
      %v2326 = vrot.slane %v2324, 4
      %v2327 = vrot.slane %v2188, 5
      %v2328 = vsel %vm1419, %v2326, %v2327
      %v2329 = vrot.slane %v2189, 5
      %v2330 = vrot.slane %v2329, 4
      %v2331 = vrot.slane %v2190, 5
      %v2332 = vsel %vm1419, %v2330, %v2331
      %v2333 = vrot.slane %v2331, 4
      %v2334 = vrot.slane %v2191, 5
      %v2335 = vsel %vm1419, %v2333, %v2334
      %v2336 = vrot.slane %v2192, 5
      %v2337 = vrot.slane %v2336, 4
      %v2338 = vrot.slane %v2193, 5
      %v2339 = vsel %vm1419, %v2337, %v2338
      %v2340 = vrot.slane %v2338, 4
      %v2341 = vrot.slane %v2194, 5
      %v2342 = vsel %vm1419, %v2340, %v2341
      %v2343 = vrot.slane %v2195, 5
      %v2344 = vrot.slane %v2343, 4
      %v2345 = vrot.slane %v2196, 5
      %v2346 = vsel %vm1419, %v2344, %v2345
      %v2347 = vrot.slane %v2345, 4
      %v2348 = vrot.slane %v2197, 5
      %v2349 = vsel %vm1419, %v2347, %v2348
      %v2350 = vrot.slane %v2198, 5
      %v2351 = vrot.slane %v2350, 4
      %v2352 = vrot.slane %v2199, 5
      %v2353 = vsel %vm1419, %v2351, %v2352
      %v2354 = vrot.slane %v2352, 4
      %v2355 = vrot.slane %v2200, 5
      %v2356 = vsel %vm1419, %v2354, %v2355
      %v2357 = vrot.slane %v2201, 5
      %v2358 = vrot.slane %v2357, 4
      %v2359 = vrot.slane %v2202, 5
      %v2360 = vsel %vm1419, %v2358, %v2359
      %v2361 = vrot.slane %v2359, 4
      %v2362 = vrot.slane %v2203, 5
      %v2363 = vsel %vm1419, %v2361, %v2362
      %2396 = vst [vmem:[#allocation3 + $0x14] sm:$0xf] %v2255
      %2397 = vst [vmem:[#allocation3 + $0x38] sm:$0xf] %v2258
      %2398 = vst [vmem:[#allocation3 + $0x5c] sm:$0xf] %v2262
      %2399 = vst [vmem:[#allocation3 + $0x80] sm:$0xf] %v2265
      %2400 = vst [vmem:[#allocation3 + $0xa4] sm:$0xf] %v2269
      %2401 = vst [vmem:[#allocation3 + $0xc8] sm:$0xf] %v2272
      %2402 = vst [vmem:[#allocation3 + $0xec] sm:$0xf] %v2276
      %2403 = vst [vmem:[#allocation3 + $0x110] sm:$0xf] %v2279
      %2404 = vst [vmem:[#allocation3 + $0x134] sm:$0xf] %v2283
      %2405 = vst [vmem:[#allocation3 + $0x158] sm:$0xf] %v2286
      %2406 = vst [vmem:[#allocation3 + $0x17c] sm:$0xf] %v2290
      %2407 = vst [vmem:[#allocation3 + $0x1a0] sm:$0xf] %v2293
      %2408 = vst [vmem:[#allocation3 + $0x1c4] sm:$0xf] %v2297
      %2409 = vst [vmem:[#allocation3 + $0x1e8] sm:$0xf] %v2300
      %2410 = vst [vmem:[#allocation3 + $0x20c] sm:$0xf] %v2304
      %2411 = vst [vmem:[#allocation3 + $0x230] sm:$0xf] %v2307
      %2412 = vst [vmem:[#allocation3 + $0x254] sm:$0xf] %v2311
      %2413 = vst [vmem:[#allocation3 + $0x278] sm:$0xf] %v2314
      %2414 = vst [vmem:[#allocation3 + $0x29c] sm:$0xf] %v2318
      %2415 = vst [vmem:[#allocation3 + $0x2c0] sm:$0xf] %v2321
      %2416 = vst [vmem:[#allocation3 + $0x2e4] sm:$0xf] %v2325
      %2417 = vst [vmem:[#allocation3 + $0x308] sm:$0xf] %v2328
      %2418 = vst [vmem:[#allocation3 + $0x32c] sm:$0xf] %v2332
      %2419 = vst [vmem:[#allocation3 + $0x350] sm:$0xf] %v2335
      %2420 = vst [vmem:[#allocation3 + $0x374] sm:$0xf] %v2339
      %2421 = vst [vmem:[#allocation3 + $0x398] sm:$0xf] %v2342
      %2422 = vst [vmem:[#allocation3 + $0x3bc] sm:$0xf] %v2346
      %2423 = vst [vmem:[#allocation3 + $0x3e0] sm:$0xf] %v2349
      %2424 = vst [vmem:[#allocation3 + $0x404] sm:$0xf] %v2353
      %2425 = vst [vmem:[#allocation3 + $0x428] sm:$0xf] %v2356
      %2426 = vst [vmem:[#allocation3 + $0x44c] sm:$0xf] %v2360
      %2427 = vst [vmem:[#allocation3 + $0x470] sm:$0xf] %v2363
      %s2428 = scalar_lea.vmem [#allocation2], 24
      %v2429 = vld [vmem:[%s2428] sm:$0xf]
      %v2430 = vld [vmem:[%s2428 + $0x4] sm:$0xf]
      %v2431 = vld [vmem:[%s2428 + $0xc] sm:$0xf]
      %v2432 = vld [vmem:[%s2428 + $0x10] sm:$0xf]
      %v2433 = vld [vmem:[%s2428 + $0x18] sm:$0xf]
      %v2434 = vld [vmem:[%s2428 + $0x1c] sm:$0xf]
      %v2435 = vld [vmem:[%s2428 + $0x24] sm:$0xf]
      %v2436 = vld [vmem:[%s2428 + $0x28] sm:$0xf]
      %v2437 = vld [vmem:[%s2428 + $0x30] sm:$0xf]
      %v2438 = vld [vmem:[%s2428 + $0x34] sm:$0xf]
      %v2439 = vld [vmem:[%s2428 + $0x3c] sm:$0xf]
      %v2440 = vld [vmem:[%s2428 + $0x40] sm:$0xf]
      %v2441 = vld [vmem:[%s2428 + $0x48] sm:$0xf]
      %v2442 = vld [vmem:[%s2428 + $0x4c] sm:$0xf]
      %v2443 = vld [vmem:[%s2428 + $0x54] sm:$0xf]
      %v2444 = vld [vmem:[%s2428 + $0x58] sm:$0xf]
      %v2445 = vld [vmem:[%s2428 + $0x60] sm:$0xf]
      %v2446 = vld [vmem:[%s2428 + $0x64] sm:$0xf]
      %v2447 = vld [vmem:[%s2428 + $0x6c] sm:$0xf]
      %v2448 = vld [vmem:[%s2428 + $0x70] sm:$0xf]
      %v2449 = vld [vmem:[%s2428 + $0x78] sm:$0xf]
      %v2450 = vld [vmem:[%s2428 + $0x7c] sm:$0xf]
      %v2451 = vld [vmem:[%s2428 + $0x84] sm:$0xf]
      %v2452 = vld [vmem:[%s2428 + $0x88] sm:$0xf]
      %v2453 = vld [vmem:[%s2428 + $0x90] sm:$0xf]
      %v2454 = vld [vmem:[%s2428 + $0x94] sm:$0xf]
      %v2455 = vld [vmem:[%s2428 + $0x9c] sm:$0xf]
      %v2456 = vld [vmem:[%s2428 + $0xa0] sm:$0xf]
      %v2457 = vld [vmem:[%s2428 + $0xa8] sm:$0xf]
      %v2458 = vld [vmem:[%s2428 + $0xac] sm:$0xf]
      %v2459 = vld [vmem:[%s2428 + $0xb4] sm:$0xf]
      %v2460 = vld [vmem:[%s2428 + $0xb8] sm:$0xf]
      %2461 = vst [vmem:[#allocation3 + $0x18] sm:$0xf] %v2429
      %2462 = vst [vmem:[#allocation3 + $0x3c] sm:$0xf] %v2430
      %2463 = vst [vmem:[#allocation3 + $0x60] sm:$0xf] %v2431
      %2464 = vst [vmem:[#allocation3 + $0x84] sm:$0xf] %v2432
      %2465 = vst [vmem:[#allocation3 + $0xa8] sm:$0xf] %v2433
      %2466 = vst [vmem:[#allocation3 + $0xcc] sm:$0xf] %v2434
      %2467 = vst [vmem:[#allocation3 + $0xf0] sm:$0xf] %v2435
      %2468 = vst [vmem:[#allocation3 + $0x114] sm:$0xf] %v2436
      %2469 = vst [vmem:[#allocation3 + $0x138] sm:$0xf] %v2437
      %2470 = vst [vmem:[#allocation3 + $0x15c] sm:$0xf] %v2438
      %2471 = vst [vmem:[#allocation3 + $0x180] sm:$0xf] %v2439
      %2472 = vst [vmem:[#allocation3 + $0x1a4] sm:$0xf] %v2440
      %2473 = vst [vmem:[#allocation3 + $0x1c8] sm:$0xf] %v2441
      %2474 = vst [vmem:[#allocation3 + $0x1ec] sm:$0xf] %v2442
      %2475 = vst [vmem:[#allocation3 + $0x210] sm:$0xf] %v2443
      %2476 = vst [vmem:[#allocation3 + $0x234] sm:$0xf] %v2444
      %2477 = vst [vmem:[#allocation3 + $0x258] sm:$0xf] %v2445
      %2478 = vst [vmem:[#allocation3 + $0x27c] sm:$0xf] %v2446
      %2479 = vst [vmem:[#allocation3 + $0x2a0] sm:$0xf] %v2447
      %2480 = vst [vmem:[#allocation3 + $0x2c4] sm:$0xf] %v2448
      %2481 = vst [vmem:[#allocation3 + $0x2e8] sm:$0xf] %v2449
      %2482 = vst [vmem:[#allocation3 + $0x30c] sm:$0xf] %v2450
      %2483 = vst [vmem:[#allocation3 + $0x330] sm:$0xf] %v2451
      %2484 = vst [vmem:[#allocation3 + $0x354] sm:$0xf] %v2452
      %2485 = vst [vmem:[#allocation3 + $0x378] sm:$0xf] %v2453
      %2486 = vst [vmem:[#allocation3 + $0x39c] sm:$0xf] %v2454
      %2487 = vst [vmem:[#allocation3 + $0x3c0] sm:$0xf] %v2455
      %2488 = vst [vmem:[#allocation3 + $0x3e4] sm:$0xf] %v2456
      %2489 = vst [vmem:[#allocation3 + $0x408] sm:$0xf] %v2457
      %2490 = vst [vmem:[#allocation3 + $0x42c] sm:$0xf] %v2458
      %2491 = vst [vmem:[#allocation3 + $0x450] sm:$0xf] %v2459
      %2492 = vst [vmem:[#allocation3 + $0x474] sm:$0xf] %v2460
      %v2493 = vld [vmem:[%s2428] sm:$0xf]
      %v2494 = vld [vmem:[%s2428 + $0x4] sm:$0xf]
      %v2495 = vld [vmem:[%s2428 + $0x8] sm:$0x1]
      %v2496 = vld [vmem:[%s2428 + $0xc] sm:$0xf]
      %v2497 = vld [vmem:[%s2428 + $0x10] sm:$0xf]
      %v2498 = vld [vmem:[%s2428 + $0x14] sm:$0x1]
      %v2499 = vld [vmem:[%s2428 + $0x18] sm:$0xf]
      %v2500 = vld [vmem:[%s2428 + $0x1c] sm:$0xf]
      %v2501 = vld [vmem:[%s2428 + $0x20] sm:$0x1]
      %v2502 = vld [vmem:[%s2428 + $0x24] sm:$0xf]
      %v2503 = vld [vmem:[%s2428 + $0x28] sm:$0xf]
      %v2504 = vld [vmem:[%s2428 + $0x2c] sm:$0x1]
      %v2505 = vld [vmem:[%s2428 + $0x30] sm:$0xf]
      %v2506 = vld [vmem:[%s2428 + $0x34] sm:$0xf]
      %v2507 = vld [vmem:[%s2428 + $0x38] sm:$0x1]
      %v2508 = vld [vmem:[%s2428 + $0x3c] sm:$0xf]
      %v2509 = vld [vmem:[%s2428 + $0x40] sm:$0xf]
      %v2510 = vld [vmem:[%s2428 + $0x44] sm:$0x1]
      %v2511 = vld [vmem:[%s2428 + $0x48] sm:$0xf]
      %v2512 = vld [vmem:[%s2428 + $0x4c] sm:$0xf]
      %v2513 = vld [vmem:[%s2428 + $0x50] sm:$0x1]
      %v2514 = vld [vmem:[%s2428 + $0x54] sm:$0xf]
      %v2515 = vld [vmem:[%s2428 + $0x58] sm:$0xf]
      %v2516 = vld [vmem:[%s2428 + $0x5c] sm:$0x1]
      %v2517 = vld [vmem:[%s2428 + $0x60] sm:$0xf]
      %v2518 = vld [vmem:[%s2428 + $0x64] sm:$0xf]
      %v2519 = vld [vmem:[%s2428 + $0x68] sm:$0x1]
      %v2520 = vld [vmem:[%s2428 + $0x6c] sm:$0xf]
      %v2521 = vld [vmem:[%s2428 + $0x70] sm:$0xf]
      %v2522 = vld [vmem:[%s2428 + $0x74] sm:$0x1]
      %v2523 = vld [vmem:[%s2428 + $0x78] sm:$0xf]
      %v2524 = vld [vmem:[%s2428 + $0x7c] sm:$0xf]
      %v2525 = vld [vmem:[%s2428 + $0x80] sm:$0x1]
      %v2526 = vld [vmem:[%s2428 + $0x84] sm:$0xf]
      %v2527 = vld [vmem:[%s2428 + $0x88] sm:$0xf]
      %v2528 = vld [vmem:[%s2428 + $0x8c] sm:$0x1]
      %v2529 = vld [vmem:[%s2428 + $0x90] sm:$0xf]
      %v2530 = vld [vmem:[%s2428 + $0x94] sm:$0xf]
      %v2531 = vld [vmem:[%s2428 + $0x98] sm:$0x1]
      %v2532 = vld [vmem:[%s2428 + $0x9c] sm:$0xf]
      %v2533 = vld [vmem:[%s2428 + $0xa0] sm:$0xf]
      %v2534 = vld [vmem:[%s2428 + $0xa4] sm:$0x1]
      %v2535 = vld [vmem:[%s2428 + $0xa8] sm:$0xf]
      %v2536 = vld [vmem:[%s2428 + $0xac] sm:$0xf]
      %v2537 = vld [vmem:[%s2428 + $0xb0] sm:$0x1]
      %v2538 = vld [vmem:[%s2428 + $0xb4] sm:$0xf]
      %v2539 = vld [vmem:[%s2428 + $0xb8] sm:$0xf]
      %v2540 = vld [vmem:[%s2428 + $0xbc] sm:$0x1]
      %v2542 = vshrl.u32 %v2493, 16
      %v2544 = vrot.slane %v2542, 4
      %v2545 = vshll.u32 %v2493, 16
      %v2547 = vrot.slane %v2545, 5
      %v2548 = vor.u32 %v2544, %v2547
      %v2549 = vrot.slane %v2548, 4
      %v2551 = vshll.u32 %v2494, 16
      %v2553 = vrot.slane %v2551, 5
      %v2554 = vsel %vm872, %v2549, %v2553
      %v2555 = vshrl.u32 %v2494, 16
      %v2557 = vrot.slane %v2555, 4
      %v2558 = vor.u32 %v2557, %v2553
      %v2559 = vrot.slane %v2558, 4
      %v2561 = vshll.u32 %v2495, 16
      %v2563 = vrot.slane %v2561, 5
      %v2564 = vsel %vm872, %v2559, %v2563
      %v2566 = vshrl.u32 %v2496, 16
      %v2568 = vrot.slane %v2566, 4
      %v2569 = vshll.u32 %v2496, 16
      %v2571 = vrot.slane %v2569, 5
      %v2572 = vor.u32 %v2568, %v2571
      %v2573 = vrot.slane %v2572, 4
      %v2575 = vshll.u32 %v2497, 16
      %v2577 = vrot.slane %v2575, 5
      %v2578 = vsel %vm872, %v2573, %v2577
      %v2579 = vshrl.u32 %v2497, 16
      %v2581 = vrot.slane %v2579, 4
      %v2582 = vor.u32 %v2581, %v2577
      %v2583 = vrot.slane %v2582, 4
      %v2585 = vshll.u32 %v2498, 16
      %v2587 = vrot.slane %v2585, 5
      %v2588 = vsel %vm872, %v2583, %v2587
      %v2590 = vshrl.u32 %v2499, 16
      %v2592 = vrot.slane %v2590, 4
      %v2593 = vshll.u32 %v2499, 16
      %v2595 = vrot.slane %v2593, 5
      %v2596 = vor.u32 %v2592, %v2595
      %v2597 = vrot.slane %v2596, 4
      %v2599 = vshll.u32 %v2500, 16
      %v2601 = vrot.slane %v2599, 5
      %v2602 = vsel %vm872, %v2597, %v2601
      %v2603 = vshrl.u32 %v2500, 16
      %v2605 = vrot.slane %v2603, 4
      %v2606 = vor.u32 %v2605, %v2601
      %v2607 = vrot.slane %v2606, 4
      %v2609 = vshll.u32 %v2501, 16
      %v2611 = vrot.slane %v2609, 5
      %v2612 = vsel %vm872, %v2607, %v2611
      %v2614 = vshrl.u32 %v2502, 16
      %v2616 = vrot.slane %v2614, 4
      %v2617 = vshll.u32 %v2502, 16
      %v2619 = vrot.slane %v2617, 5
      %v2620 = vor.u32 %v2616, %v2619
      %v2621 = vrot.slane %v2620, 4
      %v2623 = vshll.u32 %v2503, 16
      %v2625 = vrot.slane %v2623, 5
      %v2626 = vsel %vm872, %v2621, %v2625
      %v2627 = vshrl.u32 %v2503, 16
      %v2629 = vrot.slane %v2627, 4
      %v2630 = vor.u32 %v2629, %v2625
      %v2631 = vrot.slane %v2630, 4
      %v2633 = vshll.u32 %v2504, 16
      %v2635 = vrot.slane %v2633, 5
      %v2636 = vsel %vm872, %v2631, %v2635
      %v2638 = vshrl.u32 %v2505, 16
      %v2640 = vrot.slane %v2638, 4
      %v2641 = vshll.u32 %v2505, 16
      %v2643 = vrot.slane %v2641, 5
      %v2644 = vor.u32 %v2640, %v2643
      %v2645 = vrot.slane %v2644, 4
      %v2647 = vshll.u32 %v2506, 16
      %v2649 = vrot.slane %v2647, 5
      %v2650 = vsel %vm872, %v2645, %v2649
      %v2651 = vshrl.u32 %v2506, 16
      %v2653 = vrot.slane %v2651, 4
      %v2654 = vor.u32 %v2653, %v2649
      %v2655 = vrot.slane %v2654, 4
      %v2657 = vshll.u32 %v2507, 16
      %v2659 = vrot.slane %v2657, 5
      %v2660 = vsel %vm872, %v2655, %v2659
      %v2662 = vshrl.u32 %v2508, 16
      %v2664 = vrot.slane %v2662, 4
      %v2665 = vshll.u32 %v2508, 16
      %v2667 = vrot.slane %v2665, 5
      %v2668 = vor.u32 %v2664, %v2667
      %v2669 = vrot.slane %v2668, 4
      %v2671 = vshll.u32 %v2509, 16
      %v2673 = vrot.slane %v2671, 5
      %v2674 = vsel %vm872, %v2669, %v2673
      %v2675 = vshrl.u32 %v2509, 16
      %v2677 = vrot.slane %v2675, 4
      %v2678 = vor.u32 %v2677, %v2673
      %v2679 = vrot.slane %v2678, 4
      %v2681 = vshll.u32 %v2510, 16
      %v2683 = vrot.slane %v2681, 5
      %v2684 = vsel %vm872, %v2679, %v2683
      %v2686 = vshrl.u32 %v2511, 16
      %v2688 = vrot.slane %v2686, 4
      %v2689 = vshll.u32 %v2511, 16
      %v2691 = vrot.slane %v2689, 5
      %v2692 = vor.u32 %v2688, %v2691
      %v2693 = vrot.slane %v2692, 4
      %v2695 = vshll.u32 %v2512, 16
      %v2697 = vrot.slane %v2695, 5
      %v2698 = vsel %vm872, %v2693, %v2697
      %v2699 = vshrl.u32 %v2512, 16
      %v2701 = vrot.slane %v2699, 4
      %v2702 = vor.u32 %v2701, %v2697
      %v2703 = vrot.slane %v2702, 4
      %v2705 = vshll.u32 %v2513, 16
      %v2707 = vrot.slane %v2705, 5
      %v2708 = vsel %vm872, %v2703, %v2707
      %v2710 = vshrl.u32 %v2514, 16
      %v2712 = vrot.slane %v2710, 4
      %v2713 = vshll.u32 %v2514, 16
      %v2715 = vrot.slane %v2713, 5
      %v2716 = vor.u32 %v2712, %v2715
      %v2717 = vrot.slane %v2716, 4
      %v2719 = vshll.u32 %v2515, 16
      %v2721 = vrot.slane %v2719, 5
      %v2722 = vsel %vm872, %v2717, %v2721
      %v2723 = vshrl.u32 %v2515, 16
      %v2725 = vrot.slane %v2723, 4
      %v2726 = vor.u32 %v2725, %v2721
      %v2727 = vrot.slane %v2726, 4
      %v2729 = vshll.u32 %v2516, 16
      %v2731 = vrot.slane %v2729, 5
      %v2732 = vsel %vm872, %v2727, %v2731
      %v2734 = vshrl.u32 %v2517, 16
      %v2736 = vrot.slane %v2734, 4
      %v2737 = vshll.u32 %v2517, 16
      %v2739 = vrot.slane %v2737, 5
      %v2740 = vor.u32 %v2736, %v2739
      %v2741 = vrot.slane %v2740, 4
      %v2743 = vshll.u32 %v2518, 16
      %v2745 = vrot.slane %v2743, 5
      %v2746 = vsel %vm872, %v2741, %v2745
      %v2747 = vshrl.u32 %v2518, 16
      %v2749 = vrot.slane %v2747, 4
      %v2750 = vor.u32 %v2749, %v2745
      %v2751 = vrot.slane %v2750, 4
      %v2753 = vshll.u32 %v2519, 16
      %v2755 = vrot.slane %v2753, 5
      %v2756 = vsel %vm872, %v2751, %v2755
      %v2758 = vshrl.u32 %v2520, 16
      %v2760 = vrot.slane %v2758, 4
      %v2761 = vshll.u32 %v2520, 16
      %v2763 = vrot.slane %v2761, 5
      %v2764 = vor.u32 %v2760, %v2763
      %v2765 = vrot.slane %v2764, 4
      %v2767 = vshll.u32 %v2521, 16
      %v2769 = vrot.slane %v2767, 5
      %v2770 = vsel %vm872, %v2765, %v2769
      %v2771 = vshrl.u32 %v2521, 16
      %v2773 = vrot.slane %v2771, 4
      %v2774 = vor.u32 %v2773, %v2769
      %v2775 = vrot.slane %v2774, 4
      %v2777 = vshll.u32 %v2522, 16
      %v2779 = vrot.slane %v2777, 5
      %v2780 = vsel %vm872, %v2775, %v2779
      %v2782 = vshrl.u32 %v2523, 16
      %v2784 = vrot.slane %v2782, 4
      %v2785 = vshll.u32 %v2523, 16
      %v2787 = vrot.slane %v2785, 5
      %v2788 = vor.u32 %v2784, %v2787
      %v2789 = vrot.slane %v2788, 4
      %v2791 = vshll.u32 %v2524, 16
      %v2793 = vrot.slane %v2791, 5
      %v2794 = vsel %vm872, %v2789, %v2793
      %v2795 = vshrl.u32 %v2524, 16
      %v2797 = vrot.slane %v2795, 4
      %v2798 = vor.u32 %v2797, %v2793
      %v2799 = vrot.slane %v2798, 4
      %v2801 = vshll.u32 %v2525, 16
      %v2803 = vrot.slane %v2801, 5
      %v2804 = vsel %vm872, %v2799, %v2803
      %v2806 = vshrl.u32 %v2526, 16
      %v2808 = vrot.slane %v2806, 4
      %v2809 = vshll.u32 %v2526, 16
      %v2811 = vrot.slane %v2809, 5
      %v2812 = vor.u32 %v2808, %v2811
      %v2813 = vrot.slane %v2812, 4
      %v2815 = vshll.u32 %v2527, 16
      %v2817 = vrot.slane %v2815, 5
      %v2818 = vsel %vm872, %v2813, %v2817
      %v2819 = vshrl.u32 %v2527, 16
      %v2821 = vrot.slane %v2819, 4
      %v2822 = vor.u32 %v2821, %v2817
      %v2823 = vrot.slane %v2822, 4
      %v2825 = vshll.u32 %v2528, 16
      %v2827 = vrot.slane %v2825, 5
      %v2828 = vsel %vm872, %v2823, %v2827
      %v2830 = vshrl.u32 %v2529, 16
      %v2832 = vrot.slane %v2830, 4
      %v2833 = vshll.u32 %v2529, 16
      %v2835 = vrot.slane %v2833, 5
      %v2836 = vor.u32 %v2832, %v2835
      %v2837 = vrot.slane %v2836, 4
      %v2839 = vshll.u32 %v2530, 16
      %v2841 = vrot.slane %v2839, 5
      %v2842 = vsel %vm872, %v2837, %v2841
      %v2843 = vshrl.u32 %v2530, 16
      %v2845 = vrot.slane %v2843, 4
      %v2846 = vor.u32 %v2845, %v2841
      %v2847 = vrot.slane %v2846, 4
      %v2849 = vshll.u32 %v2531, 16
      %v2851 = vrot.slane %v2849, 5
      %v2852 = vsel %vm872, %v2847, %v2851
      %v2854 = vshrl.u32 %v2532, 16
      %v2856 = vrot.slane %v2854, 4
      %v2857 = vshll.u32 %v2532, 16
      %v2859 = vrot.slane %v2857, 5
      %v2860 = vor.u32 %v2856, %v2859
      %v2861 = vrot.slane %v2860, 4
      %v2863 = vshll.u32 %v2533, 16
      %v2865 = vrot.slane %v2863, 5
      %v2866 = vsel %vm872, %v2861, %v2865
      %v2867 = vshrl.u32 %v2533, 16
      %v2869 = vrot.slane %v2867, 4
      %v2870 = vor.u32 %v2869, %v2865
      %v2871 = vrot.slane %v2870, 4
      %v2873 = vshll.u32 %v2534, 16
      %v2875 = vrot.slane %v2873, 5
      %v2876 = vsel %vm872, %v2871, %v2875
      %v2878 = vshrl.u32 %v2535, 16
      %v2880 = vrot.slane %v2878, 4
      %v2881 = vshll.u32 %v2535, 16
      %v2883 = vrot.slane %v2881, 5
      %v2884 = vor.u32 %v2880, %v2883
      %v2885 = vrot.slane %v2884, 4
      %v2887 = vshll.u32 %v2536, 16
      %v2889 = vrot.slane %v2887, 5
      %v2890 = vsel %vm872, %v2885, %v2889
      %v2891 = vshrl.u32 %v2536, 16
      %v2893 = vrot.slane %v2891, 4
      %v2894 = vor.u32 %v2893, %v2889
      %v2895 = vrot.slane %v2894, 4
      %v2897 = vshll.u32 %v2537, 16
      %v2899 = vrot.slane %v2897, 5
      %v2900 = vsel %vm872, %v2895, %v2899
      %v2902 = vshrl.u32 %v2538, 16
      %v2904 = vrot.slane %v2902, 4
      %v2905 = vshll.u32 %v2538, 16
      %v2907 = vrot.slane %v2905, 5
      %v2908 = vor.u32 %v2904, %v2907
      %v2909 = vrot.slane %v2908, 4
      %v2911 = vshll.u32 %v2539, 16
      %v2913 = vrot.slane %v2911, 5
      %v2914 = vsel %vm872, %v2909, %v2913
      %v2915 = vshrl.u32 %v2539, 16
      %v2917 = vrot.slane %v2915, 4
      %v2918 = vor.u32 %v2917, %v2913
      %v2919 = vrot.slane %v2918, 4
      %v2921 = vshll.u32 %v2540, 16
      %v2923 = vrot.slane %v2921, 5
      %v2924 = vsel %vm872, %v2919, %v2923
      %2957 = vst [vmem:[#allocation3 + $0x1c] sm:$0xf] %v2554
      %2958 = vst [vmem:[#allocation3 + $0x40] sm:$0xf] %v2564
      %2959 = vst [vmem:[#allocation3 + $0x64] sm:$0xf] %v2578
      %2960 = vst [vmem:[#allocation3 + $0x88] sm:$0xf] %v2588
      %2961 = vst [vmem:[#allocation3 + $0xac] sm:$0xf] %v2602
      %2962 = vst [vmem:[#allocation3 + $0xd0] sm:$0xf] %v2612
      %2963 = vst [vmem:[#allocation3 + $0xf4] sm:$0xf] %v2626
      %2964 = vst [vmem:[#allocation3 + $0x118] sm:$0xf] %v2636
      %2965 = vst [vmem:[#allocation3 + $0x13c] sm:$0xf] %v2650
      %2966 = vst [vmem:[#allocation3 + $0x160] sm:$0xf] %v2660
      %2967 = vst [vmem:[#allocation3 + $0x184] sm:$0xf] %v2674
      %2968 = vst [vmem:[#allocation3 + $0x1a8] sm:$0xf] %v2684
      %2969 = vst [vmem:[#allocation3 + $0x1cc] sm:$0xf] %v2698
      %2970 = vst [vmem:[#allocation3 + $0x1f0] sm:$0xf] %v2708
      %2971 = vst [vmem:[#allocation3 + $0x214] sm:$0xf] %v2722
      %2972 = vst [vmem:[#allocation3 + $0x238] sm:$0xf] %v2732
      %2973 = vst [vmem:[#allocation3 + $0x25c] sm:$0xf] %v2746
      %2974 = vst [vmem:[#allocation3 + $0x280] sm:$0xf] %v2756
      %2975 = vst [vmem:[#allocation3 + $0x2a4] sm:$0xf] %v2770
      %2976 = vst [vmem:[#allocation3 + $0x2c8] sm:$0xf] %v2780
      %2977 = vst [vmem:[#allocation3 + $0x2ec] sm:$0xf] %v2794
      %2978 = vst [vmem:[#allocation3 + $0x310] sm:$0xf] %v2804
      %2979 = vst [vmem:[#allocation3 + $0x334] sm:$0xf] %v2818
      %2980 = vst [vmem:[#allocation3 + $0x358] sm:$0xf] %v2828
      %2981 = vst [vmem:[#allocation3 + $0x37c] sm:$0xf] %v2842
      %2982 = vst [vmem:[#allocation3 + $0x3a0] sm:$0xf] %v2852
      %2983 = vst [vmem:[#allocation3 + $0x3c4] sm:$0xf] %v2866
      %2984 = vst [vmem:[#allocation3 + $0x3e8] sm:$0xf] %v2876
      %2985 = vst [vmem:[#allocation3 + $0x40c] sm:$0xf] %v2890
      %2986 = vst [vmem:[#allocation3 + $0x430] sm:$0xf] %v2900
      %2987 = vst [vmem:[#allocation3 + $0x454] sm:$0xf] %v2914
      %2988 = vst [vmem:[#allocation3 + $0x478] sm:$0xf] %v2924
      %v2989 = vld [vmem:[%s2428] sm:$0xe]
      %v2990 = vld [vmem:[%s2428 + $0x4] sm:$0xf]
      %v2991 = vld [vmem:[%s2428 + $0x8] sm:$0x1]
      %v2992 = vld [vmem:[%s2428 + $0xc] sm:$0xe]
      %v2993 = vld [vmem:[%s2428 + $0x10] sm:$0xf]
      %v2994 = vld [vmem:[%s2428 + $0x14] sm:$0x1]
      %v2995 = vld [vmem:[%s2428 + $0x18] sm:$0xe]
      %v2996 = vld [vmem:[%s2428 + $0x1c] sm:$0xf]
      %v2997 = vld [vmem:[%s2428 + $0x20] sm:$0x1]
      %v2998 = vld [vmem:[%s2428 + $0x24] sm:$0xe]
      %v2999 = vld [vmem:[%s2428 + $0x28] sm:$0xf]
      %v3000 = vld [vmem:[%s2428 + $0x2c] sm:$0x1]
      %v3001 = vld [vmem:[%s2428 + $0x30] sm:$0xe]
      %v3002 = vld [vmem:[%s2428 + $0x34] sm:$0xf]
      %v3003 = vld [vmem:[%s2428 + $0x38] sm:$0x1]
      %v3004 = vld [vmem:[%s2428 + $0x3c] sm:$0xe]
      %v3005 = vld [vmem:[%s2428 + $0x40] sm:$0xf]
      %v3006 = vld [vmem:[%s2428 + $0x44] sm:$0x1]
      %v3007 = vld [vmem:[%s2428 + $0x48] sm:$0xe]
      %v3008 = vld [vmem:[%s2428 + $0x4c] sm:$0xf]
      %v3009 = vld [vmem:[%s2428 + $0x50] sm:$0x1]
      %v3010 = vld [vmem:[%s2428 + $0x54] sm:$0xe]
      %v3011 = vld [vmem:[%s2428 + $0x58] sm:$0xf]
      %v3012 = vld [vmem:[%s2428 + $0x5c] sm:$0x1]
      %v3013 = vld [vmem:[%s2428 + $0x60] sm:$0xe]
      %v3014 = vld [vmem:[%s2428 + $0x64] sm:$0xf]
      %v3015 = vld [vmem:[%s2428 + $0x68] sm:$0x1]
      %v3016 = vld [vmem:[%s2428 + $0x6c] sm:$0xe]
      %v3017 = vld [vmem:[%s2428 + $0x70] sm:$0xf]
      %v3018 = vld [vmem:[%s2428 + $0x74] sm:$0x1]
      %v3019 = vld [vmem:[%s2428 + $0x78] sm:$0xe]
      %v3020 = vld [vmem:[%s2428 + $0x7c] sm:$0xf]
      %v3021 = vld [vmem:[%s2428 + $0x80] sm:$0x1]
      %v3022 = vld [vmem:[%s2428 + $0x84] sm:$0xe]
      %v3023 = vld [vmem:[%s2428 + $0x88] sm:$0xf]
      %v3024 = vld [vmem:[%s2428 + $0x8c] sm:$0x1]
      %v3025 = vld [vmem:[%s2428 + $0x90] sm:$0xe]
      %v3026 = vld [vmem:[%s2428 + $0x94] sm:$0xf]
      %v3027 = vld [vmem:[%s2428 + $0x98] sm:$0x1]
      %v3028 = vld [vmem:[%s2428 + $0x9c] sm:$0xe]
      %v3029 = vld [vmem:[%s2428 + $0xa0] sm:$0xf]
      %v3030 = vld [vmem:[%s2428 + $0xa4] sm:$0x1]
      %v3031 = vld [vmem:[%s2428 + $0xa8] sm:$0xe]
      %v3032 = vld [vmem:[%s2428 + $0xac] sm:$0xf]
      %v3033 = vld [vmem:[%s2428 + $0xb0] sm:$0x1]
      %v3034 = vld [vmem:[%s2428 + $0xb4] sm:$0xe]
      %v3035 = vld [vmem:[%s2428 + $0xb8] sm:$0xf]
      %v3036 = vld [vmem:[%s2428 + $0xbc] sm:$0x1]
      %v3085 = vrot.slane %v2989, 5
      %v3086 = vrot.slane %v3085, 4
      %v3087 = vrot.slane %v2990, 5
      %v3088 = vsel %vm1419, %v3086, %v3087
      %v3089 = vrot.slane %v3087, 4
      %v3090 = vrot.slane %v2991, 5
      %v3091 = vsel %vm1419, %v3089, %v3090
      %v3092 = vrot.slane %v2992, 5
      %v3093 = vrot.slane %v3092, 4
      %v3094 = vrot.slane %v2993, 5
      %v3095 = vsel %vm1419, %v3093, %v3094
      %v3096 = vrot.slane %v3094, 4
      %v3097 = vrot.slane %v2994, 5
      %v3098 = vsel %vm1419, %v3096, %v3097
      %v3099 = vrot.slane %v2995, 5
      %v3100 = vrot.slane %v3099, 4
      %v3101 = vrot.slane %v2996, 5
      %v3102 = vsel %vm1419, %v3100, %v3101
      %v3103 = vrot.slane %v3101, 4
      %v3104 = vrot.slane %v2997, 5
      %v3105 = vsel %vm1419, %v3103, %v3104
      %v3106 = vrot.slane %v2998, 5
      %v3107 = vrot.slane %v3106, 4
      %v3108 = vrot.slane %v2999, 5
      %v3109 = vsel %vm1419, %v3107, %v3108
      %v3110 = vrot.slane %v3108, 4
      %v3111 = vrot.slane %v3000, 5
      %v3112 = vsel %vm1419, %v3110, %v3111
      %v3113 = vrot.slane %v3001, 5
      %v3114 = vrot.slane %v3113, 4
      %v3115 = vrot.slane %v3002, 5
      %v3116 = vsel %vm1419, %v3114, %v3115
      %v3117 = vrot.slane %v3115, 4
      %v3118 = vrot.slane %v3003, 5
      %v3119 = vsel %vm1419, %v3117, %v3118
      %v3120 = vrot.slane %v3004, 5
      %v3121 = vrot.slane %v3120, 4
      %v3122 = vrot.slane %v3005, 5
      %v3123 = vsel %vm1419, %v3121, %v3122
      %v3124 = vrot.slane %v3122, 4
      %v3125 = vrot.slane %v3006, 5
      %v3126 = vsel %vm1419, %v3124, %v3125
      %v3127 = vrot.slane %v3007, 5
      %v3128 = vrot.slane %v3127, 4
      %v3129 = vrot.slane %v3008, 5
      %v3130 = vsel %vm1419, %v3128, %v3129
      %v3131 = vrot.slane %v3129, 4
      %v3132 = vrot.slane %v3009, 5
      %v3133 = vsel %vm1419, %v3131, %v3132
      %v3134 = vrot.slane %v3010, 5
      %v3135 = vrot.slane %v3134, 4
      %v3136 = vrot.slane %v3011, 5
      %v3137 = vsel %vm1419, %v3135, %v3136
      %v3138 = vrot.slane %v3136, 4
      %v3139 = vrot.slane %v3012, 5
      %v3140 = vsel %vm1419, %v3138, %v3139
      %v3141 = vrot.slane %v3013, 5
      %v3142 = vrot.slane %v3141, 4
      %v3143 = vrot.slane %v3014, 5
      %v3144 = vsel %vm1419, %v3142, %v3143
      %v3145 = vrot.slane %v3143, 4
      %v3146 = vrot.slane %v3015, 5
      %v3147 = vsel %vm1419, %v3145, %v3146
      %v3148 = vrot.slane %v3016, 5
      %v3149 = vrot.slane %v3148, 4
      %v3150 = vrot.slane %v3017, 5
      %v3151 = vsel %vm1419, %v3149, %v3150
      %v3152 = vrot.slane %v3150, 4
      %v3153 = vrot.slane %v3018, 5
      %v3154 = vsel %vm1419, %v3152, %v3153
      %v3155 = vrot.slane %v3019, 5
      %v3156 = vrot.slane %v3155, 4
      %v3157 = vrot.slane %v3020, 5
      %v3158 = vsel %vm1419, %v3156, %v3157
      %v3159 = vrot.slane %v3157, 4
      %v3160 = vrot.slane %v3021, 5
      %v3161 = vsel %vm1419, %v3159, %v3160
      %v3162 = vrot.slane %v3022, 5
      %v3163 = vrot.slane %v3162, 4
      %v3164 = vrot.slane %v3023, 5
      %v3165 = vsel %vm1419, %v3163, %v3164
      %v3166 = vrot.slane %v3164, 4
      %v3167 = vrot.slane %v3024, 5
      %v3168 = vsel %vm1419, %v3166, %v3167
      %v3169 = vrot.slane %v3025, 5
      %v3170 = vrot.slane %v3169, 4
      %v3171 = vrot.slane %v3026, 5
      %v3172 = vsel %vm1419, %v3170, %v3171
      %v3173 = vrot.slane %v3171, 4
      %v3174 = vrot.slane %v3027, 5
      %v3175 = vsel %vm1419, %v3173, %v3174
      %v3176 = vrot.slane %v3028, 5
      %v3177 = vrot.slane %v3176, 4
      %v3178 = vrot.slane %v3029, 5
      %v3179 = vsel %vm1419, %v3177, %v3178
      %v3180 = vrot.slane %v3178, 4
      %v3181 = vrot.slane %v3030, 5
      %v3182 = vsel %vm1419, %v3180, %v3181
      %v3183 = vrot.slane %v3031, 5
      %v3184 = vrot.slane %v3183, 4
      %v3185 = vrot.slane %v3032, 5
      %v3186 = vsel %vm1419, %v3184, %v3185
      %v3187 = vrot.slane %v3185, 4
      %v3188 = vrot.slane %v3033, 5
      %v3189 = vsel %vm1419, %v3187, %v3188
      %v3190 = vrot.slane %v3034, 5
      %v3191 = vrot.slane %v3190, 4
      %v3192 = vrot.slane %v3035, 5
      %v3193 = vsel %vm1419, %v3191, %v3192
      %v3194 = vrot.slane %v3192, 4
      %v3195 = vrot.slane %v3036, 5
      %v3196 = vsel %vm1419, %v3194, %v3195
      %3229 = vst [vmem:[#allocation3 + $0x20] sm:$0xf] %v3088
      %3230 = vst [vmem:[#allocation3 + $0x44] sm:$0xf] %v3091
      %3231 = vst [vmem:[#allocation3 + $0x68] sm:$0xf] %v3095
      %3232 = vst [vmem:[#allocation3 + $0x8c] sm:$0xf] %v3098
      %3233 = vst [vmem:[#allocation3 + $0xb0] sm:$0xf] %v3102
      %3234 = vst [vmem:[#allocation3 + $0xd4] sm:$0xf] %v3105
      %3235 = vst [vmem:[#allocation3 + $0xf8] sm:$0xf] %v3109
      %3236 = vst [vmem:[#allocation3 + $0x11c] sm:$0xf] %v3112
      %3237 = vst [vmem:[#allocation3 + $0x140] sm:$0xf] %v3116
      %3238 = vst [vmem:[#allocation3 + $0x164] sm:$0xf] %v3119
      %3239 = vst [vmem:[#allocation3 + $0x188] sm:$0xf] %v3123
      %3240 = vst [vmem:[#allocation3 + $0x1ac] sm:$0xf] %v3126
      %3241 = vst [vmem:[#allocation3 + $0x1d0] sm:$0xf] %v3130
      %3242 = vst [vmem:[#allocation3 + $0x1f4] sm:$0xf] %v3133
      %3243 = vst [vmem:[#allocation3 + $0x218] sm:$0xf] %v3137
      %3244 = vst [vmem:[#allocation3 + $0x23c] sm:$0xf] %v3140
      %3245 = vst [vmem:[#allocation3 + $0x260] sm:$0xf] %v3144
      %3246 = vst [vmem:[#allocation3 + $0x284] sm:$0xf] %v3147
      %3247 = vst [vmem:[#allocation3 + $0x2a8] sm:$0xf] %v3151
      %3248 = vst [vmem:[#allocation3 + $0x2cc] sm:$0xf] %v3154
      %3249 = vst [vmem:[#allocation3 + $0x2f0] sm:$0xf] %v3158
      %3250 = vst [vmem:[#allocation3 + $0x314] sm:$0xf] %v3161
      %3251 = vst [vmem:[#allocation3 + $0x338] sm:$0xf] %v3165
      %3252 = vst [vmem:[#allocation3 + $0x35c] sm:$0xf] %v3168
      %3253 = vst [vmem:[#allocation3 + $0x380] sm:$0xf] %v3172
      %3254 = vst [vmem:[#allocation3 + $0x3a4] sm:$0xf] %v3175
      %3255 = vst [vmem:[#allocation3 + $0x3c8] sm:$0xf] %v3179
      %3256 = vst [vmem:[#allocation3 + $0x3ec] sm:$0xf] %v3182
      %3257 = vst [vmem:[#allocation3 + $0x410] sm:$0xf] %v3186
      %3258 = vst [vmem:[#allocation3 + $0x434] sm:$0xf] %v3189
      %3259 = vst [vmem:[#allocation3 + $0x458] sm:$0xf] %v3193
      %3260 = vst [vmem:[#allocation3 + $0x47c] sm:$0xf] %v3196
      %v3261 = vld [vmem:[#allocation3] sm:$0xff]
      %v3262 = vld [vmem:[#allocation3 + $0x8] sm:$0xff]
      %v3263 = vld [vmem:[#allocation3 + $0x10] sm:$0xff]
      %v3264 = vld [vmem:[#allocation3 + $0x18] sm:$0xff]
      %v3265 = vld [vmem:[#allocation3 + $0x20] sm:$0xf]
      %v3266 = vld [vmem:[#allocation3 + $0x24] sm:$0xff]
      %v3267 = vld [vmem:[#allocation3 + $0x2c] sm:$0xff]
      %v3268 = vld [vmem:[#allocation3 + $0x34] sm:$0xff]
      %v3269 = vld [vmem:[#allocation3 + $0x3c] sm:$0xff]
      %v3270 = vld [vmem:[#allocation3 + $0x44] sm:$0xf]
      %v3271 = vld [vmem:[#allocation3 + $0x48] sm:$0xff]
      %v3272 = vld [vmem:[#allocation3 + $0x50] sm:$0xff]
      %v3273 = vld [vmem:[#allocation3 + $0x58] sm:$0xff]
      %v3274 = vld [vmem:[#allocation3 + $0x60] sm:$0xff]
      %v3275 = vld [vmem:[#allocation3 + $0x68] sm:$0xf]
      %v3276 = vld [vmem:[#allocation3 + $0x6c] sm:$0xff]
      %v3277 = vld [vmem:[#allocation3 + $0x74] sm:$0xff]
      %v3278 = vld [vmem:[#allocation3 + $0x7c] sm:$0xff]
      %v3279 = vld [vmem:[#allocation3 + $0x84] sm:$0xff]
      %v3280 = vld [vmem:[#allocation3 + $0x8c] sm:$0xf]
      %v3281 = vld [vmem:[#allocation3 + $0x90] sm:$0xff]
      %v3282 = vld [vmem:[#allocation3 + $0x98] sm:$0xff]
      %v3283 = vld [vmem:[#allocation3 + $0xa0] sm:$0xff]
      %v3284 = vld [vmem:[#allocation3 + $0xa8] sm:$0xff]
      %v3285 = vld [vmem:[#allocation3 + $0xb0] sm:$0xf]
      %v3286 = vld [vmem:[#allocation3 + $0xb4] sm:$0xff]
      %v3287 = vld [vmem:[#allocation3 + $0xbc] sm:$0xff]
      %v3288 = vld [vmem:[#allocation3 + $0xc4] sm:$0xff]
      %v3289 = vld [vmem:[#allocation3 + $0xcc] sm:$0xff]
      %v3290 = vld [vmem:[#allocation3 + $0xd4] sm:$0xf]
      %v3291 = vld [vmem:[#allocation3 + $0xd8] sm:$0xff]
      %v3292 = vld [vmem:[#allocation3 + $0xe0] sm:$0xff]
      %v3293 = vld [vmem:[#allocation3 + $0xe8] sm:$0xff]
      %v3294 = vld [vmem:[#allocation3 + $0xf0] sm:$0xff]
      %v3295 = vld [vmem:[#allocation3 + $0xf8] sm:$0xf]
      %v3296 = vld [vmem:[#allocation3 + $0xfc] sm:$0xff]
      %v3297 = vld [vmem:[#allocation3 + $0x104] sm:$0xff]
      %v3298 = vld [vmem:[#allocation3 + $0x10c] sm:$0xff]
      %v3299 = vld [vmem:[#allocation3 + $0x114] sm:$0xff]
      %v3300 = vld [vmem:[#allocation3 + $0x11c] sm:$0xf]
      %v3301 = vld [vmem:[#allocation3 + $0x120] sm:$0xff]
      %v3302 = vld [vmem:[#allocation3 + $0x128] sm:$0xff]
      %v3303 = vld [vmem:[#allocation3 + $0x130] sm:$0xff]
      %v3304 = vld [vmem:[#allocation3 + $0x138] sm:$0xff]
      %v3305 = vld [vmem:[#allocation3 + $0x140] sm:$0xf]
      %v3306 = vld [vmem:[#allocation3 + $0x144] sm:$0xff]
      %v3307 = vld [vmem:[#allocation3 + $0x14c] sm:$0xff]
      %v3308 = vld [vmem:[#allocation3 + $0x154] sm:$0xff]
      %v3309 = vld [vmem:[#allocation3 + $0x15c] sm:$0xff]
      %v3310 = vld [vmem:[#allocation3 + $0x164] sm:$0xf]
      %v3311 = vld [vmem:[#allocation3 + $0x168] sm:$0xff]
      %v3312 = vld [vmem:[#allocation3 + $0x170] sm:$0xff]
      %v3313 = vld [vmem:[#allocation3 + $0x178] sm:$0xff]
      %v3314 = vld [vmem:[#allocation3 + $0x180] sm:$0xff]
      %v3315 = vld [vmem:[#allocation3 + $0x188] sm:$0xf]
      %v3316 = vld [vmem:[#allocation3 + $0x18c] sm:$0xff]
      %v3317 = vld [vmem:[#allocation3 + $0x194] sm:$0xff]
      %v3318 = vld [vmem:[#allocation3 + $0x19c] sm:$0xff]
      %v3319 = vld [vmem:[#allocation3 + $0x1a4] sm:$0xff]
      %v3320 = vld [vmem:[#allocation3 + $0x1ac] sm:$0xf]
      %v3321 = vld [vmem:[#allocation3 + $0x1b0] sm:$0xff]
      %v3322 = vld [vmem:[#allocation3 + $0x1b8] sm:$0xff]
      %v3323 = vld [vmem:[#allocation3 + $0x1c0] sm:$0xff]
      %v3324 = vld [vmem:[#allocation3 + $0x1c8] sm:$0xff]
      %v3325 = vld [vmem:[#allocation3 + $0x1d0] sm:$0xf]
      %v3326 = vld [vmem:[#allocation3 + $0x1d4] sm:$0xff]
      %v3327 = vld [vmem:[#allocation3 + $0x1dc] sm:$0xff]
      %v3328 = vld [vmem:[#allocation3 + $0x1e4] sm:$0xff]
      %v3329 = vld [vmem:[#allocation3 + $0x1ec] sm:$0xff]
      %v3330 = vld [vmem:[#allocation3 + $0x1f4] sm:$0xf]
      %v3331 = vld [vmem:[#allocation3 + $0x1f8] sm:$0xff]
      %v3332 = vld [vmem:[#allocation3 + $0x200] sm:$0xff]
      %v3333 = vld [vmem:[#allocation3 + $0x208] sm:$0xff]
      %v3334 = vld [vmem:[#allocation3 + $0x210] sm:$0xff]
      %v3335 = vld [vmem:[#allocation3 + $0x218] sm:$0xf]
      %v3336 = vld [vmem:[#allocation3 + $0x21c] sm:$0xff]
      %v3337 = vld [vmem:[#allocation3 + $0x224] sm:$0xff]
      %v3338 = vld [vmem:[#allocation3 + $0x22c] sm:$0xff]
      %v3339 = vld [vmem:[#allocation3 + $0x234] sm:$0xff]
      %v3340 = vld [vmem:[#allocation3 + $0x23c] sm:$0xf]
      %v3341 = vld [vmem:[#allocation3 + $0x240] sm:$0xff]
      %v3342 = vld [vmem:[#allocation3 + $0x248] sm:$0xff]
      %v3343 = vld [vmem:[#allocation3 + $0x250] sm:$0xff]
      %v3344 = vld [vmem:[#allocation3 + $0x258] sm:$0xff]
      %v3345 = vld [vmem:[#allocation3 + $0x260] sm:$0xf]
      %v3346 = vld [vmem:[#allocation3 + $0x264] sm:$0xff]
      %v3347 = vld [vmem:[#allocation3 + $0x26c] sm:$0xff]
      %v3348 = vld [vmem:[#allocation3 + $0x274] sm:$0xff]
      %v3349 = vld [vmem:[#allocation3 + $0x27c] sm:$0xff]
      %v3350 = vld [vmem:[#allocation3 + $0x284] sm:$0xf]
      %v3351 = vld [vmem:[#allocation3 + $0x288] sm:$0xff]
      %v3352 = vld [vmem:[#allocation3 + $0x290] sm:$0xff]
      %v3353 = vld [vmem:[#allocation3 + $0x298] sm:$0xff]
      %v3354 = vld [vmem:[#allocation3 + $0x2a0] sm:$0xff]
      %v3355 = vld [vmem:[#allocation3 + $0x2a8] sm:$0xf]
      %v3356 = vld [vmem:[#allocation3 + $0x2ac] sm:$0xff]
      %v3357 = vld [vmem:[#allocation3 + $0x2b4] sm:$0xff]
      %v3358 = vld [vmem:[#allocation3 + $0x2bc] sm:$0xff]
      %v3359 = vld [vmem:[#allocation3 + $0x2c4] sm:$0xff]
      %v3360 = vld [vmem:[#allocation3 + $0x2cc] sm:$0xf]
      %v3361 = vld [vmem:[#allocation3 + $0x2d0] sm:$0xff]
      %v3362 = vld [vmem:[#allocation3 + $0x2d8] sm:$0xff]
      %v3363 = vld [vmem:[#allocation3 + $0x2e0] sm:$0xff]
      %v3364 = vld [vmem:[#allocation3 + $0x2e8] sm:$0xff]
      %v3365 = vld [vmem:[#allocation3 + $0x2f0] sm:$0xf]
      %v3366 = vld [vmem:[#allocation3 + $0x2f4] sm:$0xff]
      %v3367 = vld [vmem:[#allocation3 + $0x2fc] sm:$0xff]
      %v3368 = vld [vmem:[#allocation3 + $0x304] sm:$0xff]
      %v3369 = vld [vmem:[#allocation3 + $0x30c] sm:$0xff]
      %v3370 = vld [vmem:[#allocation3 + $0x314] sm:$0xf]
      %v3371 = vld [vmem:[#allocation3 + $0x318] sm:$0xff]
      %v3372 = vld [vmem:[#allocation3 + $0x320] sm:$0xff]
      %v3373 = vld [vmem:[#allocation3 + $0x328] sm:$0xff]
      %v3374 = vld [vmem:[#allocation3 + $0x330] sm:$0xff]
      %v3375 = vld [vmem:[#allocation3 + $0x338] sm:$0xf]
      %v3376 = vld [vmem:[#allocation3 + $0x33c] sm:$0xff]
      %v3377 = vld [vmem:[#allocation3 + $0x344] sm:$0xff]
      %v3378 = vld [vmem:[#allocation3 + $0x34c] sm:$0xff]
      %v3379 = vld [vmem:[#allocation3 + $0x354] sm:$0xff]
      %v3380 = vld [vmem:[#allocation3 + $0x35c] sm:$0xf]
      %v3381 = vld [vmem:[#allocation3 + $0x360] sm:$0xff]
      %v3382 = vld [vmem:[#allocation3 + $0x368] sm:$0xff]
      %v3383 = vld [vmem:[#allocation3 + $0x370] sm:$0xff]
      %v3384 = vld [vmem:[#allocation3 + $0x378] sm:$0xff]
      %v3385 = vld [vmem:[#allocation3 + $0x380] sm:$0xf]
      %v3386 = vld [vmem:[#allocation3 + $0x384] sm:$0xff]
      %v3387 = vld [vmem:[#allocation3 + $0x38c] sm:$0xff]
      %v3388 = vld [vmem:[#allocation3 + $0x394] sm:$0xff]
      %v3389 = vld [vmem:[#allocation3 + $0x39c] sm:$0xff]
      %v3390 = vld [vmem:[#allocation3 + $0x3a4] sm:$0xf]
      %v3391 = vld [vmem:[#allocation3 + $0x3a8] sm:$0xff]
      %v3392 = vld [vmem:[#allocation3 + $0x3b0] sm:$0xff]
      %v3393 = vld [vmem:[#allocation3 + $0x3b8] sm:$0xff]
      %v3394 = vld [vmem:[#allocation3 + $0x3c0] sm:$0xff]
      %v3395 = vld [vmem:[#allocation3 + $0x3c8] sm:$0xf]
      %v3396 = vld [vmem:[#allocation3 + $0x3cc] sm:$0xff]
      %v3397 = vld [vmem:[#allocation3 + $0x3d4] sm:$0xff]
      %v3398 = vld [vmem:[#allocation3 + $0x3dc] sm:$0xff]
      %v3399 = vld [vmem:[#allocation3 + $0x3e4] sm:$0xff]
      %v3400 = vld [vmem:[#allocation3 + $0x3ec] sm:$0xf]
      %v3401 = vld [vmem:[#allocation3 + $0x3f0] sm:$0xff]
      %v3402 = vld [vmem:[#allocation3 + $0x3f8] sm:$0xff]
      %v3403 = vld [vmem:[#allocation3 + $0x400] sm:$0xff]
      %v3404 = vld [vmem:[#allocation3 + $0x408] sm:$0xff]
      %v3405 = vld [vmem:[#allocation3 + $0x410] sm:$0xf]
      %v3406 = vld [vmem:[#allocation3 + $0x414] sm:$0xff]
      %v3407 = vld [vmem:[#allocation3 + $0x41c] sm:$0xff]
      %v3408 = vld [vmem:[#allocation3 + $0x424] sm:$0xff]
      %v3409 = vld [vmem:[#allocation3 + $0x42c] sm:$0xff]
      %v3410 = vld [vmem:[#allocation3 + $0x434] sm:$0xf]
      %v3411 = vld [vmem:[#allocation3 + $0x438] sm:$0xff]
      %v3412 = vld [vmem:[#allocation3 + $0x440] sm:$0xff]
      %v3413 = vld [vmem:[#allocation3 + $0x448] sm:$0xff]
      %v3414 = vld [vmem:[#allocation3 + $0x450] sm:$0xff]
      %v3415 = vld [vmem:[#allocation3 + $0x458] sm:$0xf]
      %v3416 = vld [vmem:[#allocation3 + $0x45c] sm:$0xff]
      %v3417 = vld [vmem:[#allocation3 + $0x464] sm:$0xff]
      %v3418 = vld [vmem:[#allocation3 + $0x46c] sm:$0xff]
      %v3419 = vld [vmem:[#allocation3 + $0x474] sm:$0xff]
      %v3420 = vld [vmem:[#allocation3 + $0x47c] sm:$0xf]
      %v3421 = vld [vmem:[%s1] sm:$0xf]
      %v3422 = vld [vmem:[%s1 + $0x4] sm:$0xf]
      %v3423 = vld [vmem:[%s1 + $0x8] sm:$0xf]
      %v3424 = vld [vmem:[%s1 + $0xc] sm:$0xf]
      %v3425 = vld [vmem:[%s1 + $0x10] sm:$0xf]
      %v3426 = vld [vmem:[%s1 + $0x14] sm:$0xf]
      %v3427 = vld [vmem:[%s1 + $0x18] sm:$0xf]
      %v3428 = vld [vmem:[%s1 + $0x1c] sm:$0xf]
      %v3429 = vld [vmem:[%s1 + $0x20] sm:$0xf]
      %v3430 = vld [vmem:[%s1 + $0x24] sm:$0xf]
      %v3431 = vld [vmem:[%s1 + $0x28] sm:$0xf]
      %v3432 = vld [vmem:[%s1 + $0x2c] sm:$0xf]
      %v3433 = vld [vmem:[%s1 + $0x30] sm:$0xf]
      %v3434 = vld [vmem:[%s1 + $0x34] sm:$0xf]
      %v3435 = vld [vmem:[%s1 + $0x38] sm:$0xf]
      %v3436 = vld [vmem:[%s1 + $0x3c] sm:$0xf]
      %v3437 = vld [vmem:[%s1 + $0x40] sm:$0xf]
      %v3438 = vld [vmem:[%s1 + $0x44] sm:$0xf]
      %v3439 = vld [vmem:[%s1 + $0x48] sm:$0xf]
      %v3440 = vld [vmem:[%s1 + $0x4c] sm:$0xf]
      %v3441 = vld [vmem:[%s1 + $0x50] sm:$0xf]
      %v3442 = vld [vmem:[%s1 + $0x54] sm:$0xf]
      %v3443 = vld [vmem:[%s1 + $0x58] sm:$0xf]
      %v3444 = vld [vmem:[%s1 + $0x5c] sm:$0xf]
      %v3445 = vld [vmem:[%s1 + $0x60] sm:$0xf]
      %v3446 = vld [vmem:[%s1 + $0x64] sm:$0xf]
      %v3447 = vld [vmem:[%s1 + $0x68] sm:$0xf]
      %v3448 = vld [vmem:[%s1 + $0x6c] sm:$0xf]
      %v3449 = vld [vmem:[%s1 + $0x70] sm:$0xf]
      %v3450 = vld [vmem:[%s1 + $0x74] sm:$0xf]
      %v3451 = vld [vmem:[%s1 + $0x78] sm:$0xf]
      %v3452 = vld [vmem:[%s1 + $0x7c] sm:$0xf]
      %v3453 = vld [vmem:[%s1 + $0x80] sm:$0xf]
      %v3454 = vld [vmem:[%s1 + $0x84] sm:$0xf]
      %v3455 = vld [vmem:[%s1 + $0x88] sm:$0xf]
      %v3456 = vld [vmem:[%s1 + $0x8c] sm:$0xf]
      %v3457 = vld [vmem:[%s1 + $0x90] sm:$0xf]
      %v3458 = vld [vmem:[%s1 + $0x94] sm:$0xf]
      %v3459 = vld [vmem:[%s1 + $0x98] sm:$0xf]
      %v3460 = vld [vmem:[%s1 + $0x9c] sm:$0xf]
      %v3461 = vld [vmem:[%s1 + $0xa0] sm:$0xf]
      %v3462 = vld [vmem:[%s1 + $0xa4] sm:$0xf]
      %v3463 = vld [vmem:[%s1 + $0xa8] sm:$0xf]
      %v3464 = vld [vmem:[%s1 + $0xac] sm:$0xf]
      %v3465 = vld [vmem:[%s1 + $0xb0] sm:$0xf]
      %v3466 = vld [vmem:[%s1 + $0xb4] sm:$0xf]
      %v3467 = vld [vmem:[%s1 + $0xb8] sm:$0xf]
      %v3468 = vld [vmem:[%s1 + $0xbc] sm:$0xf]
      %v3469 = vld [vmem:[%s1 + $0xc0] sm:$0xf]
      %v3470 = vld [vmem:[%s1 + $0xc4] sm:$0xf]
      %v3471 = vld [vmem:[%s1 + $0xc8] sm:$0xf]
      %v3472 = vld [vmem:[%s1 + $0xcc] sm:$0xf]
      %v3473 = vld [vmem:[%s1 + $0xd0] sm:$0xf]
      %v3474 = vld [vmem:[%s1 + $0xd4] sm:$0xf]
      %v3475 = vld [vmem:[%s1 + $0xd8] sm:$0xf]
      %v3476 = vld [vmem:[%s1 + $0xdc] sm:$0xf]
      %v3477 = vld [vmem:[%s1 + $0xe0] sm:$0xf]
      %v3478 = vld [vmem:[%s1 + $0xe4] sm:$0xf]
      %v3479 = vld [vmem:[%s1 + $0xe8] sm:$0xf]
      %v3480 = vld [vmem:[%s1 + $0xec] sm:$0xf]
      %v3481 = vld [vmem:[%s1 + $0xf0] sm:$0xf]
      %v3482 = vld [vmem:[%s1 + $0xf4] sm:$0xf]
      %v3483 = vld [vmem:[%s1 + $0xf8] sm:$0xf]
      %v3484 = vld [vmem:[%s1 + $0xfc] sm:$0xf]
      %v3485 = vld [vmem:[%s1 + $0x100] sm:$0xf]
      %v3486 = vld [vmem:[%s1 + $0x104] sm:$0xf]
      %v3487 = vld [vmem:[%s1 + $0x108] sm:$0xf]
      %v3488 = vld [vmem:[%s1 + $0x10c] sm:$0xf]
      %v3489 = vld [vmem:[%s1 + $0x110] sm:$0xf]
      %v3490 = vld [vmem:[%s1 + $0x114] sm:$0xf]
      %v3491 = vld [vmem:[%s1 + $0x118] sm:$0xf]
      %v3492 = vld [vmem:[%s1 + $0x11c] sm:$0xf]
      %v3493 = vld [vmem:[%s1 + $0x120] sm:$0xf]
      %v3494 = vld [vmem:[%s1 + $0x124] sm:$0xf]
      %v3495 = vld [vmem:[%s1 + $0x128] sm:$0xf]
      %v3496 = vld [vmem:[%s1 + $0x12c] sm:$0xf]
      %v3497 = vld [vmem:[%s1 + $0x130] sm:$0xf]
      %v3498 = vld [vmem:[%s1 + $0x134] sm:$0xf]
      %v3499 = vld [vmem:[%s1 + $0x138] sm:$0xf]
      %v3500 = vld [vmem:[%s1 + $0x13c] sm:$0xf]
      %v3501 = vld [vmem:[%s1 + $0x140] sm:$0xf]
      %v3502 = vld [vmem:[%s1 + $0x144] sm:$0xf]
      %v3503 = vld [vmem:[%s1 + $0x148] sm:$0xf]
      %v3504 = vld [vmem:[%s1 + $0x14c] sm:$0xf]
      %v3505 = vld [vmem:[%s1 + $0x150] sm:$0xf]
      %v3506 = vld [vmem:[%s1 + $0x154] sm:$0xf]
      %v3507 = vld [vmem:[%s1 + $0x158] sm:$0xf]
      %v3508 = vld [vmem:[%s1 + $0x15c] sm:$0xf]
      %v3509 = vld [vmem:[%s1 + $0x160] sm:$0xf]
      %v3510 = vld [vmem:[%s1 + $0x164] sm:$0xf]
      %v3511 = vld [vmem:[%s1 + $0x168] sm:$0xf]
      %v3512 = vld [vmem:[%s1 + $0x16c] sm:$0xf]
      %v3513 = vld [vmem:[%s1 + $0x170] sm:$0xf]
      %v3514 = vld [vmem:[%s1 + $0x174] sm:$0xf]
      %v3515 = vld [vmem:[%s1 + $0x178] sm:$0xf]
      %v3516 = vld [vmem:[%s1 + $0x17c] sm:$0xf]
      %v3517 = vld [vmem:[%s1 + $0x180] sm:$0xf]
      %v3518 = vld [vmem:[%s1 + $0x184] sm:$0xf]
      %v3519 = vld [vmem:[%s1 + $0x188] sm:$0xf]
      %v3520 = vld [vmem:[%s1 + $0x18c] sm:$0xf]
      %v3521 = vld [vmem:[%s1 + $0x190] sm:$0xf]
      %v3522 = vld [vmem:[%s1 + $0x194] sm:$0xf]
      %v3523 = vld [vmem:[%s1 + $0x198] sm:$0xf]
      %v3524 = vld [vmem:[%s1 + $0x19c] sm:$0xf]
      %v3525 = vld [vmem:[%s1 + $0x1a0] sm:$0xf]
      %v3526 = vld [vmem:[%s1 + $0x1a4] sm:$0xf]
      %v3527 = vld [vmem:[%s1 + $0x1a8] sm:$0xf]
      %v3528 = vld [vmem:[%s1 + $0x1ac] sm:$0xf]
      %v3529 = vld [vmem:[%s1 + $0x1b0] sm:$0xf]
      %v3530 = vld [vmem:[%s1 + $0x1b4] sm:$0xf]
      %v3531 = vld [vmem:[%s1 + $0x1b8] sm:$0xf]
      %v3532 = vld [vmem:[%s1 + $0x1bc] sm:$0xf]
      %v3533 = vld [vmem:[%s1 + $0x1c0] sm:$0xf]
      %v3534 = vld [vmem:[%s1 + $0x1c4] sm:$0xf]
      %v3535 = vld [vmem:[%s1 + $0x1c8] sm:$0xf]
      %v3536 = vld [vmem:[%s1 + $0x1cc] sm:$0xf]
      %v3537 = vld [vmem:[%s1 + $0x1d0] sm:$0xf]
      %v3538 = vld [vmem:[%s1 + $0x1d4] sm:$0xf]
      %v3539 = vld [vmem:[%s1 + $0x1d8] sm:$0xf]
      %v3540 = vld [vmem:[%s1 + $0x1dc] sm:$0xf]
      %v3541 = vld [vmem:[%s1 + $0x1e0] sm:$0xf]
      %v3542 = vld [vmem:[%s1 + $0x1e4] sm:$0xf]
      %v3543 = vld [vmem:[%s1 + $0x1e8] sm:$0xf]
      %v3544 = vld [vmem:[%s1 + $0x1ec] sm:$0xf]
      %v3545 = vld [vmem:[%s1 + $0x1f0] sm:$0xf]
      %v3546 = vld [vmem:[%s1 + $0x1f4] sm:$0xf]
      %v3547 = vld [vmem:[%s1 + $0x1f8] sm:$0xf]
      %v3548 = vld [vmem:[%s1 + $0x1fc] sm:$0xf]
      %v3549 = vld [vmem:[%s1 + $0x200] sm:$0xf]
      %v3550 = vld [vmem:[%s1 + $0x204] sm:$0xf]
      %v3551 = vld [vmem:[%s1 + $0x208] sm:$0xf]
      %v3552 = vld [vmem:[%s1 + $0x20c] sm:$0xf]
      %v3553 = vld [vmem:[%s1 + $0x210] sm:$0xf]
      %v3554 = vld [vmem:[%s1 + $0x214] sm:$0xf]
      %v3555 = vld [vmem:[%s1 + $0x218] sm:$0xf]
      %v3556 = vld [vmem:[%s1 + $0x21c] sm:$0xf]
      %v3557 = vld [vmem:[%s1 + $0x220] sm:$0xf]
      %v3558 = vld [vmem:[%s1 + $0x224] sm:$0xf]
      %v3559 = vld [vmem:[%s1 + $0x228] sm:$0xf]
      %v3560 = vld [vmem:[%s1 + $0x22c] sm:$0xf]
      %v3561 = vld [vmem:[%s1 + $0x230] sm:$0xf]
      %v3562 = vld [vmem:[%s1 + $0x234] sm:$0xf]
      %v3563 = vld [vmem:[%s1 + $0x238] sm:$0xf]
      %v3564 = vld [vmem:[%s1 + $0x23c] sm:$0xf]
      %v3565 = vld [vmem:[%s2] sm:$0x1]
      %v3567 = vperm.slane %v3565, 0
      %v3729 = vunpack.c.l.b16 %v3261
      %v3730 = vunpack.c.h.b16 %v3261
      %v3731 = vunpack.c.l.b16 %v3262
      %v3732 = vunpack.c.h.b16 %v3262
      %v3733 = vunpack.c.l.b16 %v3263
      %v3734 = vunpack.c.h.b16 %v3263
      %v3735 = vunpack.c.l.b16 %v3264
      %v3736 = vunpack.c.h.b16 %v3264
      %v3737 = vunpack.c.l.b16 %v3265
      %v3738 = vunpack.c.l.b16 %v3266
      %v3739 = vunpack.c.h.b16 %v3266
      %v3740 = vunpack.c.l.b16 %v3267
      %v3741 = vunpack.c.h.b16 %v3267
      %v3742 = vunpack.c.l.b16 %v3268
      %v3743 = vunpack.c.h.b16 %v3268
      %v3744 = vunpack.c.l.b16 %v3269
      %v3745 = vunpack.c.h.b16 %v3269
      %v3746 = vunpack.c.l.b16 %v3270
      %v3747 = vunpack.c.l.b16 %v3271
      %v3748 = vunpack.c.h.b16 %v3271
      %v3749 = vunpack.c.l.b16 %v3272
      %v3750 = vunpack.c.h.b16 %v3272
      %v3751 = vunpack.c.l.b16 %v3273
      %v3752 = vunpack.c.h.b16 %v3273
      %v3753 = vunpack.c.l.b16 %v3274
      %v3754 = vunpack.c.h.b16 %v3274
      %v3755 = vunpack.c.l.b16 %v3275
      %v3756 = vunpack.c.l.b16 %v3276
      %v3757 = vunpack.c.h.b16 %v3276
      %v3758 = vunpack.c.l.b16 %v3277
      %v3759 = vunpack.c.h.b16 %v3277
      %v3760 = vunpack.c.l.b16 %v3278
      %v3761 = vunpack.c.h.b16 %v3278
      %v3762 = vunpack.c.l.b16 %v3279
      %v3763 = vunpack.c.h.b16 %v3279
      %v3764 = vunpack.c.l.b16 %v3280
      %v3765 = vunpack.c.l.b16 %v3281
      %v3766 = vunpack.c.h.b16 %v3281
      %v3767 = vunpack.c.l.b16 %v3282
      %v3768 = vunpack.c.h.b16 %v3282
      %v3769 = vunpack.c.l.b16 %v3283
      %v3770 = vunpack.c.h.b16 %v3283
      %v3771 = vunpack.c.l.b16 %v3284
      %v3772 = vunpack.c.h.b16 %v3284
      %v3773 = vunpack.c.l.b16 %v3285
      %v3774 = vunpack.c.l.b16 %v3286
      %v3775 = vunpack.c.h.b16 %v3286
      %v3776 = vunpack.c.l.b16 %v3287
      %v3777 = vunpack.c.h.b16 %v3287
      %v3778 = vunpack.c.l.b16 %v3288
      %v3779 = vunpack.c.h.b16 %v3288
      %v3780 = vunpack.c.l.b16 %v3289
      %v3781 = vunpack.c.h.b16 %v3289
      %v3782 = vunpack.c.l.b16 %v3290
      %v3783 = vunpack.c.l.b16 %v3291
      %v3784 = vunpack.c.h.b16 %v3291
      %v3785 = vunpack.c.l.b16 %v3292
      %v3786 = vunpack.c.h.b16 %v3292
      %v3787 = vunpack.c.l.b16 %v3293
      %v3788 = vunpack.c.h.b16 %v3293
      %v3789 = vunpack.c.l.b16 %v3294
      %v3790 = vunpack.c.h.b16 %v3294
      %v3791 = vunpack.c.l.b16 %v3295
      %v3792 = vunpack.c.l.b16 %v3296
      %v3793 = vunpack.c.h.b16 %v3296
      %v3794 = vunpack.c.l.b16 %v3297
      %v3795 = vunpack.c.h.b16 %v3297
      %v3796 = vunpack.c.l.b16 %v3298
      %v3797 = vunpack.c.h.b16 %v3298
      %v3798 = vunpack.c.l.b16 %v3299
      %v3799 = vunpack.c.h.b16 %v3299
      %v3800 = vunpack.c.l.b16 %v3300
      %v3801 = vunpack.c.l.b16 %v3301
      %v3802 = vunpack.c.h.b16 %v3301
      %v3803 = vunpack.c.l.b16 %v3302
      %v3804 = vunpack.c.h.b16 %v3302
      %v3805 = vunpack.c.l.b16 %v3303
      %v3806 = vunpack.c.h.b16 %v3303
      %v3807 = vunpack.c.l.b16 %v3304
      %v3808 = vunpack.c.h.b16 %v3304
      %v3809 = vunpack.c.l.b16 %v3305
      %v3810 = vunpack.c.l.b16 %v3306
      %v3811 = vunpack.c.h.b16 %v3306
      %v3812 = vunpack.c.l.b16 %v3307
      %v3813 = vunpack.c.h.b16 %v3307
      %v3814 = vunpack.c.l.b16 %v3308
      %v3815 = vunpack.c.h.b16 %v3308
      %v3816 = vunpack.c.l.b16 %v3309
      %v3817 = vunpack.c.h.b16 %v3309
      %v3818 = vunpack.c.l.b16 %v3310
      %v3819 = vunpack.c.l.b16 %v3311
      %v3820 = vunpack.c.h.b16 %v3311
      %v3821 = vunpack.c.l.b16 %v3312
      %v3822 = vunpack.c.h.b16 %v3312
      %v3823 = vunpack.c.l.b16 %v3313
      %v3824 = vunpack.c.h.b16 %v3313
      %v3825 = vunpack.c.l.b16 %v3314
      %v3826 = vunpack.c.h.b16 %v3314
      %v3827 = vunpack.c.l.b16 %v3315
      %v3828 = vunpack.c.l.b16 %v3316
      %v3829 = vunpack.c.h.b16 %v3316
      %v3830 = vunpack.c.l.b16 %v3317
      %v3831 = vunpack.c.h.b16 %v3317
      %v3832 = vunpack.c.l.b16 %v3318
      %v3833 = vunpack.c.h.b16 %v3318
      %v3834 = vunpack.c.l.b16 %v3319
      %v3835 = vunpack.c.h.b16 %v3319
      %v3836 = vunpack.c.l.b16 %v3320
      %v3837 = vunpack.c.l.b16 %v3321
      %v3838 = vunpack.c.h.b16 %v3321
      %v3839 = vunpack.c.l.b16 %v3322
      %v3840 = vunpack.c.h.b16 %v3322
      %v3841 = vunpack.c.l.b16 %v3323
      %v3842 = vunpack.c.h.b16 %v3323
      %v3843 = vunpack.c.l.b16 %v3324
      %v3844 = vunpack.c.h.b16 %v3324
      %v3845 = vunpack.c.l.b16 %v3325
      %v3846 = vunpack.c.l.b16 %v3326
      %v3847 = vunpack.c.h.b16 %v3326
      %v3848 = vunpack.c.l.b16 %v3327
      %v3849 = vunpack.c.h.b16 %v3327
      %v3850 = vunpack.c.l.b16 %v3328
      %v3851 = vunpack.c.h.b16 %v3328
      %v3852 = vunpack.c.l.b16 %v3329
      %v3853 = vunpack.c.h.b16 %v3329
      %v3854 = vunpack.c.l.b16 %v3330
      %v3855 = vunpack.c.l.b16 %v3331
      %v3856 = vunpack.c.h.b16 %v3331
      %v3857 = vunpack.c.l.b16 %v3332
      %v3858 = vunpack.c.h.b16 %v3332
      %v3859 = vunpack.c.l.b16 %v3333
      %v3860 = vunpack.c.h.b16 %v3333
      %v3861 = vunpack.c.l.b16 %v3334
      %v3862 = vunpack.c.h.b16 %v3334
      %v3863 = vunpack.c.l.b16 %v3335
      %v3864 = vunpack.c.l.b16 %v3336
      %v3865 = vunpack.c.h.b16 %v3336
      %v3866 = vunpack.c.l.b16 %v3337
      %v3867 = vunpack.c.h.b16 %v3337
      %v3868 = vunpack.c.l.b16 %v3338
      %v3869 = vunpack.c.h.b16 %v3338
      %v3870 = vunpack.c.l.b16 %v3339
      %v3871 = vunpack.c.h.b16 %v3339
      %v3872 = vunpack.c.l.b16 %v3340
      %v3873 = vunpack.c.l.b16 %v3341
      %v3874 = vunpack.c.h.b16 %v3341
      %v3875 = vunpack.c.l.b16 %v3342
      %v3876 = vunpack.c.h.b16 %v3342
      %v3877 = vunpack.c.l.b16 %v3343
      %v3878 = vunpack.c.h.b16 %v3343
      %v3879 = vunpack.c.l.b16 %v3344
      %v3880 = vunpack.c.h.b16 %v3344
      %v3881 = vunpack.c.l.b16 %v3345
      %v3882 = vunpack.c.l.b16 %v3346
      %v3883 = vunpack.c.h.b16 %v3346
      %v3884 = vunpack.c.l.b16 %v3347
      %v3885 = vunpack.c.h.b16 %v3347
      %v3886 = vunpack.c.l.b16 %v3348
      %v3887 = vunpack.c.h.b16 %v3348
      %v3888 = vunpack.c.l.b16 %v3349
      %v3889 = vunpack.c.h.b16 %v3349
      %v3890 = vunpack.c.l.b16 %v3350
      %v3891 = vunpack.c.l.b16 %v3351
      %v3892 = vunpack.c.h.b16 %v3351
      %v3893 = vunpack.c.l.b16 %v3352
      %v3894 = vunpack.c.h.b16 %v3352
      %v3895 = vunpack.c.l.b16 %v3353
      %v3896 = vunpack.c.h.b16 %v3353
      %v3897 = vunpack.c.l.b16 %v3354
      %v3898 = vunpack.c.h.b16 %v3354
      %v3899 = vunpack.c.l.b16 %v3355
      %v3900 = vunpack.c.l.b16 %v3356
      %v3901 = vunpack.c.h.b16 %v3356
      %v3902 = vunpack.c.l.b16 %v3357
      %v3903 = vunpack.c.h.b16 %v3357
      %v3904 = vunpack.c.l.b16 %v3358
      %v3905 = vunpack.c.h.b16 %v3358
      %v3906 = vunpack.c.l.b16 %v3359
      %v3907 = vunpack.c.h.b16 %v3359
      %v3908 = vunpack.c.l.b16 %v3360
      %v3909 = vunpack.c.l.b16 %v3361
      %v3910 = vunpack.c.h.b16 %v3361
      %v3911 = vunpack.c.l.b16 %v3362
      %v3912 = vunpack.c.h.b16 %v3362
      %v3913 = vunpack.c.l.b16 %v3363
      %v3914 = vunpack.c.h.b16 %v3363
      %v3915 = vunpack.c.l.b16 %v3364
      %v3916 = vunpack.c.h.b16 %v3364
      %v3917 = vunpack.c.l.b16 %v3365
      %v3918 = vunpack.c.l.b16 %v3366
      %v3919 = vunpack.c.h.b16 %v3366
      %v3920 = vunpack.c.l.b16 %v3367
      %v3921 = vunpack.c.h.b16 %v3367
      %v3922 = vunpack.c.l.b16 %v3368
      %v3923 = vunpack.c.h.b16 %v3368
      %v3924 = vunpack.c.l.b16 %v3369
      %v3925 = vunpack.c.h.b16 %v3369
      %v3926 = vunpack.c.l.b16 %v3370
      %v3927 = vunpack.c.l.b16 %v3371
      %v3928 = vunpack.c.h.b16 %v3371
      %v3929 = vunpack.c.l.b16 %v3372
      %v3930 = vunpack.c.h.b16 %v3372
      %v3931 = vunpack.c.l.b16 %v3373
      %v3932 = vunpack.c.h.b16 %v3373
      %v3933 = vunpack.c.l.b16 %v3374
      %v3934 = vunpack.c.h.b16 %v3374
      %v3935 = vunpack.c.l.b16 %v3375
      %v3936 = vunpack.c.l.b16 %v3376
      %v3937 = vunpack.c.h.b16 %v3376
      %v3938 = vunpack.c.l.b16 %v3377
      %v3939 = vunpack.c.h.b16 %v3377
      %v3940 = vunpack.c.l.b16 %v3378
      %v3941 = vunpack.c.h.b16 %v3378
      %v3942 = vunpack.c.l.b16 %v3379
      %v3943 = vunpack.c.h.b16 %v3379
      %v3944 = vunpack.c.l.b16 %v3380
      %v3945 = vunpack.c.l.b16 %v3381
      %v3946 = vunpack.c.h.b16 %v3381
      %v3947 = vunpack.c.l.b16 %v3382
      %v3948 = vunpack.c.h.b16 %v3382
      %v3949 = vunpack.c.l.b16 %v3383
      %v3950 = vunpack.c.h.b16 %v3383
      %v3951 = vunpack.c.l.b16 %v3384
      %v3952 = vunpack.c.h.b16 %v3384
      %v3953 = vunpack.c.l.b16 %v3385
      %v3954 = vunpack.c.l.b16 %v3386
      %v3955 = vunpack.c.h.b16 %v3386
      %v3956 = vunpack.c.l.b16 %v3387
      %v3957 = vunpack.c.h.b16 %v3387
      %v3958 = vunpack.c.l.b16 %v3388
      %v3959 = vunpack.c.h.b16 %v3388
      %v3960 = vunpack.c.l.b16 %v3389
      %v3961 = vunpack.c.h.b16 %v3389
      %v3962 = vunpack.c.l.b16 %v3390
      %v3963 = vunpack.c.l.b16 %v3391
      %v3964 = vunpack.c.h.b16 %v3391
      %v3965 = vunpack.c.l.b16 %v3392
      %v3966 = vunpack.c.h.b16 %v3392
      %v3967 = vunpack.c.l.b16 %v3393
      %v3968 = vunpack.c.h.b16 %v3393
      %v3969 = vunpack.c.l.b16 %v3394
      %v3970 = vunpack.c.h.b16 %v3394
      %v3971 = vunpack.c.l.b16 %v3395
      %v3972 = vunpack.c.l.b16 %v3396
      %v3973 = vunpack.c.h.b16 %v3396
      %v3974 = vunpack.c.l.b16 %v3397
      %v3975 = vunpack.c.h.b16 %v3397
      %v3976 = vunpack.c.l.b16 %v3398
      %v3977 = vunpack.c.h.b16 %v3398
      %v3978 = vunpack.c.l.b16 %v3399
      %v3979 = vunpack.c.h.b16 %v3399
      %v3980 = vunpack.c.l.b16 %v3400
      %v3981 = vunpack.c.l.b16 %v3401
      %v3982 = vunpack.c.h.b16 %v3401
      %v3983 = vunpack.c.l.b16 %v3402
      %v3984 = vunpack.c.h.b16 %v3402
      %v3985 = vunpack.c.l.b16 %v3403
      %v3986 = vunpack.c.h.b16 %v3403
      %v3987 = vunpack.c.l.b16 %v3404
      %v3988 = vunpack.c.h.b16 %v3404
      %v3989 = vunpack.c.l.b16 %v3405
      %v3990 = vunpack.c.l.b16 %v3406
      %v3991 = vunpack.c.h.b16 %v3406
      %v3992 = vunpack.c.l.b16 %v3407
      %v3993 = vunpack.c.h.b16 %v3407
      %v3994 = vunpack.c.l.b16 %v3408
      %v3995 = vunpack.c.h.b16 %v3408
      %v3996 = vunpack.c.l.b16 %v3409
      %v3997 = vunpack.c.h.b16 %v3409
      %v3998 = vunpack.c.l.b16 %v3410
      %v3999 = vunpack.c.l.b16 %v3411
      %v4000 = vunpack.c.h.b16 %v3411
      %v4001 = vunpack.c.l.b16 %v3412
      %v4002 = vunpack.c.h.b16 %v3412
      %v4003 = vunpack.c.l.b16 %v3413
      %v4004 = vunpack.c.h.b16 %v3413
      %v4005 = vunpack.c.l.b16 %v3414
      %v4006 = vunpack.c.h.b16 %v3414
      %v4007 = vunpack.c.l.b16 %v3415
      %v4008 = vunpack.c.l.b16 %v3416
      %v4009 = vunpack.c.h.b16 %v3416
      %v4010 = vunpack.c.l.b16 %v3417
      %v4011 = vunpack.c.h.b16 %v3417
      %v4012 = vunpack.c.l.b16 %v3418
      %v4013 = vunpack.c.h.b16 %v3418
      %v4014 = vunpack.c.l.b16 %v3419
      %v4015 = vunpack.c.h.b16 %v3419
      %v4016 = vunpack.c.l.b16 %v3420
      %v4017 = vpack.c.b16 %v3738, %v3729
      %v4018 = vpack.c.b16 %v3739, %v3730
      %v4019 = vpack.c.b16 %v3740, %v3731
      %v4020 = vpack.c.b16 %v3741, %v3732
      %v4021 = vpack.c.b16 %v3742, %v3733
      %v4022 = vpack.c.b16 %v3743, %v3734
      %v4023 = vpack.c.b16 %v3744, %v3735
      %v4024 = vpack.c.b16 %v3745, %v3736
      %v4025 = vpack.c.b16 %v3746, %v3737
      %v4026 = vpack.c.b16 %v3756, %v3747
      %v4027 = vpack.c.b16 %v3757, %v3748
      %v4028 = vpack.c.b16 %v3758, %v3749
      %v4029 = vpack.c.b16 %v3759, %v3750
      %v4030 = vpack.c.b16 %v3760, %v3751
      %v4031 = vpack.c.b16 %v3761, %v3752
      %v4032 = vpack.c.b16 %v3762, %v3753
      %v4033 = vpack.c.b16 %v3763, %v3754
      %v4034 = vpack.c.b16 %v3764, %v3755
      %v4035 = vpack.c.b16 %v3774, %v3765
      %v4036 = vpack.c.b16 %v3775, %v3766
      %v4037 = vpack.c.b16 %v3776, %v3767
      %v4038 = vpack.c.b16 %v3777, %v3768
      %v4039 = vpack.c.b16 %v3778, %v3769
      %v4040 = vpack.c.b16 %v3779, %v3770
      %v4041 = vpack.c.b16 %v3780, %v3771
      %v4042 = vpack.c.b16 %v3781, %v3772
      %v4043 = vpack.c.b16 %v3782, %v3773
      %v4044 = vpack.c.b16 %v3792, %v3783
      %v4045 = vpack.c.b16 %v3793, %v3784
      %v4046 = vpack.c.b16 %v3794, %v3785
      %v4047 = vpack.c.b16 %v3795, %v3786
      %v4048 = vpack.c.b16 %v3796, %v3787
      %v4049 = vpack.c.b16 %v3797, %v3788
      %v4050 = vpack.c.b16 %v3798, %v3789
      %v4051 = vpack.c.b16 %v3799, %v3790
      %v4052 = vpack.c.b16 %v3800, %v3791
      %v4053 = vpack.c.b16 %v3810, %v3801
      %v4054 = vpack.c.b16 %v3811, %v3802
      %v4055 = vpack.c.b16 %v3812, %v3803
      %v4056 = vpack.c.b16 %v3813, %v3804
      %v4057 = vpack.c.b16 %v3814, %v3805
      %v4058 = vpack.c.b16 %v3815, %v3806
      %v4059 = vpack.c.b16 %v3816, %v3807
      %v4060 = vpack.c.b16 %v3817, %v3808
      %v4061 = vpack.c.b16 %v3818, %v3809
      %v4062 = vpack.c.b16 %v3828, %v3819
      %v4063 = vpack.c.b16 %v3829, %v3820
      %v4064 = vpack.c.b16 %v3830, %v3821
      %v4065 = vpack.c.b16 %v3831, %v3822
      %v4066 = vpack.c.b16 %v3832, %v3823
      %v4067 = vpack.c.b16 %v3833, %v3824
      %v4068 = vpack.c.b16 %v3834, %v3825
      %v4069 = vpack.c.b16 %v3835, %v3826
      %v4070 = vpack.c.b16 %v3836, %v3827
      %v4071 = vpack.c.b16 %v3846, %v3837
      %v4072 = vpack.c.b16 %v3847, %v3838
      %v4073 = vpack.c.b16 %v3848, %v3839
      %v4074 = vpack.c.b16 %v3849, %v3840
      %v4075 = vpack.c.b16 %v3850, %v3841
      %v4076 = vpack.c.b16 %v3851, %v3842
      %v4077 = vpack.c.b16 %v3852, %v3843
      %v4078 = vpack.c.b16 %v3853, %v3844
      %v4079 = vpack.c.b16 %v3854, %v3845
      %v4080 = vpack.c.b16 %v3864, %v3855
      %v4081 = vpack.c.b16 %v3865, %v3856
      %v4082 = vpack.c.b16 %v3866, %v3857
      %v4083 = vpack.c.b16 %v3867, %v3858
      %v4084 = vpack.c.b16 %v3868, %v3859
      %v4085 = vpack.c.b16 %v3869, %v3860
      %v4086 = vpack.c.b16 %v3870, %v3861
      %v4087 = vpack.c.b16 %v3871, %v3862
      %v4088 = vpack.c.b16 %v3872, %v3863
      %v4089 = vpack.c.b16 %v3882, %v3873
      %v4090 = vpack.c.b16 %v3883, %v3874
      %v4091 = vpack.c.b16 %v3884, %v3875
      %v4092 = vpack.c.b16 %v3885, %v3876
      %v4093 = vpack.c.b16 %v3886, %v3877
      %v4094 = vpack.c.b16 %v3887, %v3878
      %v4095 = vpack.c.b16 %v3888, %v3879
      %v4096 = vpack.c.b16 %v3889, %v3880
      %v4097 = vpack.c.b16 %v3890, %v3881
      %v4098 = vpack.c.b16 %v3900, %v3891
      %v4099 = vpack.c.b16 %v3901, %v3892
      %v4100 = vpack.c.b16 %v3902, %v3893
      %v4101 = vpack.c.b16 %v3903, %v3894
      %v4102 = vpack.c.b16 %v3904, %v3895
      %v4103 = vpack.c.b16 %v3905, %v3896
      %v4104 = vpack.c.b16 %v3906, %v3897
      %v4105 = vpack.c.b16 %v3907, %v3898
      %v4106 = vpack.c.b16 %v3908, %v3899
      %v4107 = vpack.c.b16 %v3918, %v3909
      %v4108 = vpack.c.b16 %v3919, %v3910
      %v4109 = vpack.c.b16 %v3920, %v3911
      %v4110 = vpack.c.b16 %v3921, %v3912
      %v4111 = vpack.c.b16 %v3922, %v3913
      %v4112 = vpack.c.b16 %v3923, %v3914
      %v4113 = vpack.c.b16 %v3924, %v3915
      %v4114 = vpack.c.b16 %v3925, %v3916
      %v4115 = vpack.c.b16 %v3926, %v3917
      %v4116 = vpack.c.b16 %v3936, %v3927
      %v4117 = vpack.c.b16 %v3937, %v3928
      %v4118 = vpack.c.b16 %v3938, %v3929
      %v4119 = vpack.c.b16 %v3939, %v3930
      %v4120 = vpack.c.b16 %v3940, %v3931
      %v4121 = vpack.c.b16 %v3941, %v3932
      %v4122 = vpack.c.b16 %v3942, %v3933
      %v4123 = vpack.c.b16 %v3943, %v3934
      %v4124 = vpack.c.b16 %v3944, %v3935
      %v4125 = vpack.c.b16 %v3954, %v3945
      %v4126 = vpack.c.b16 %v3955, %v3946
      %v4127 = vpack.c.b16 %v3956, %v3947
      %v4128 = vpack.c.b16 %v3957, %v3948
      %v4129 = vpack.c.b16 %v3958, %v3949
      %v4130 = vpack.c.b16 %v3959, %v3950
      %v4131 = vpack.c.b16 %v3960, %v3951
      %v4132 = vpack.c.b16 %v3961, %v3952
      %v4133 = vpack.c.b16 %v3962, %v3953
      %v4134 = vpack.c.b16 %v3972, %v3963
      %v4135 = vpack.c.b16 %v3973, %v3964
      %v4136 = vpack.c.b16 %v3974, %v3965
      %v4137 = vpack.c.b16 %v3975, %v3966
      %v4138 = vpack.c.b16 %v3976, %v3967
      %v4139 = vpack.c.b16 %v3977, %v3968
      %v4140 = vpack.c.b16 %v3978, %v3969
      %v4141 = vpack.c.b16 %v3979, %v3970
      %v4142 = vpack.c.b16 %v3980, %v3971
      %v4143 = vpack.c.b16 %v3990, %v3981
      %v4144 = vpack.c.b16 %v3991, %v3982
      %v4145 = vpack.c.b16 %v3992, %v3983
      %v4146 = vpack.c.b16 %v3993, %v3984
      %v4147 = vpack.c.b16 %v3994, %v3985
      %v4148 = vpack.c.b16 %v3995, %v3986
      %v4149 = vpack.c.b16 %v3996, %v3987
      %v4150 = vpack.c.b16 %v3997, %v3988
      %v4151 = vpack.c.b16 %v3998, %v3989
      %v4152 = vpack.c.b16 %v4008, %v3999
      %v4153 = vpack.c.b16 %v4009, %v4000
      %v4154 = vpack.c.b16 %v4010, %v4001
      %v4155 = vpack.c.b16 %v4011, %v4002
      %v4156 = vpack.c.b16 %v4012, %v4003
      %v4157 = vpack.c.b16 %v4013, %v4004
      %v4158 = vpack.c.b16 %v4014, %v4005
      %v4159 = vpack.c.b16 %v4015, %v4006
      %v4160 = vpack.c.b16 %v4016, %v4007
      %v4449 = vunpack.c.l.b16 %v3421
      %v4450 = vunpack.c.l.b16 %v3422
      %v4451 = vunpack.c.l.b16 %v3423
      %v4452 = vunpack.c.l.b16 %v3424
      %v4453 = vunpack.c.l.b16 %v3425
      %v4454 = vunpack.c.l.b16 %v3426
      %v4455 = vunpack.c.l.b16 %v3427
      %v4456 = vunpack.c.l.b16 %v3428
      %v4457 = vunpack.c.l.b16 %v3429
      %v4458 = vunpack.c.l.b16 %v3430
      %v4459 = vunpack.c.l.b16 %v3431
      %v4460 = vunpack.c.l.b16 %v3432
      %v4461 = vunpack.c.l.b16 %v3433
      %v4462 = vunpack.c.l.b16 %v3434
      %v4463 = vunpack.c.l.b16 %v3435
      %v4464 = vunpack.c.l.b16 %v3436
      %v4465 = vunpack.c.l.b16 %v3437
      %v4466 = vunpack.c.l.b16 %v3438
      %v4467 = vunpack.c.l.b16 %v3439
      %v4468 = vunpack.c.l.b16 %v3440
      %v4469 = vunpack.c.l.b16 %v3441
      %v4470 = vunpack.c.l.b16 %v3442
      %v4471 = vunpack.c.l.b16 %v3443
      %v4472 = vunpack.c.l.b16 %v3444
      %v4473 = vunpack.c.l.b16 %v3445
      %v4474 = vunpack.c.l.b16 %v3446
      %v4475 = vunpack.c.l.b16 %v3447
      %v4476 = vunpack.c.l.b16 %v3448
      %v4477 = vunpack.c.l.b16 %v3449
      %v4478 = vunpack.c.l.b16 %v3450
      %v4479 = vunpack.c.l.b16 %v3451
      %v4480 = vunpack.c.l.b16 %v3452
      %v4481 = vunpack.c.l.b16 %v3453
      %v4482 = vunpack.c.l.b16 %v3454
      %v4483 = vunpack.c.l.b16 %v3455
      %v4484 = vunpack.c.l.b16 %v3456
      %v4485 = vunpack.c.l.b16 %v3457
      %v4486 = vunpack.c.l.b16 %v3458
      %v4487 = vunpack.c.l.b16 %v3459
      %v4488 = vunpack.c.l.b16 %v3460
      %v4489 = vunpack.c.l.b16 %v3461
      %v4490 = vunpack.c.l.b16 %v3462
      %v4491 = vunpack.c.l.b16 %v3463
      %v4492 = vunpack.c.l.b16 %v3464
      %v4493 = vunpack.c.l.b16 %v3465
      %v4494 = vunpack.c.l.b16 %v3466
      %v4495 = vunpack.c.l.b16 %v3467
      %v4496 = vunpack.c.l.b16 %v3468
      %v4497 = vunpack.c.l.b16 %v3469
      %v4498 = vunpack.c.l.b16 %v3470
      %v4499 = vunpack.c.l.b16 %v3471
      %v4500 = vunpack.c.l.b16 %v3472
      %v4501 = vunpack.c.l.b16 %v3473
      %v4502 = vunpack.c.l.b16 %v3474
      %v4503 = vunpack.c.l.b16 %v3475
      %v4504 = vunpack.c.l.b16 %v3476
      %v4505 = vunpack.c.l.b16 %v3477
      %v4506 = vunpack.c.l.b16 %v3478
      %v4507 = vunpack.c.l.b16 %v3479
      %v4508 = vunpack.c.l.b16 %v3480
      %v4509 = vunpack.c.l.b16 %v3481
      %v4510 = vunpack.c.l.b16 %v3482
      %v4511 = vunpack.c.l.b16 %v3483
      %v4512 = vunpack.c.l.b16 %v3484
      %v4513 = vunpack.c.l.b16 %v3485
      %v4514 = vunpack.c.l.b16 %v3486
      %v4515 = vunpack.c.l.b16 %v3487
      %v4516 = vunpack.c.l.b16 %v3488
      %v4517 = vunpack.c.l.b16 %v3489
      %v4518 = vunpack.c.l.b16 %v3490
      %v4519 = vunpack.c.l.b16 %v3491
      %v4520 = vunpack.c.l.b16 %v3492
      %v4521 = vunpack.c.l.b16 %v3493
      %v4522 = vunpack.c.l.b16 %v3494
      %v4523 = vunpack.c.l.b16 %v3495
      %v4524 = vunpack.c.l.b16 %v3496
      %v4525 = vunpack.c.l.b16 %v3497
      %v4526 = vunpack.c.l.b16 %v3498
      %v4527 = vunpack.c.l.b16 %v3499
      %v4528 = vunpack.c.l.b16 %v3500
      %v4529 = vunpack.c.l.b16 %v3501
      %v4530 = vunpack.c.l.b16 %v3502
      %v4531 = vunpack.c.l.b16 %v3503
      %v4532 = vunpack.c.l.b16 %v3504
      %v4533 = vunpack.c.l.b16 %v3505
      %v4534 = vunpack.c.l.b16 %v3506
      %v4535 = vunpack.c.l.b16 %v3507
      %v4536 = vunpack.c.l.b16 %v3508
      %v4537 = vunpack.c.l.b16 %v3509
      %v4538 = vunpack.c.l.b16 %v3510
      %v4539 = vunpack.c.l.b16 %v3511
      %v4540 = vunpack.c.l.b16 %v3512
      %v4541 = vunpack.c.l.b16 %v3513
      %v4542 = vunpack.c.l.b16 %v3514
      %v4543 = vunpack.c.l.b16 %v3515
      %v4544 = vunpack.c.l.b16 %v3516
      %v4545 = vunpack.c.l.b16 %v3517
      %v4546 = vunpack.c.l.b16 %v3518
      %v4547 = vunpack.c.l.b16 %v3519
      %v4548 = vunpack.c.l.b16 %v3520
      %v4549 = vunpack.c.l.b16 %v3521
      %v4550 = vunpack.c.l.b16 %v3522
      %v4551 = vunpack.c.l.b16 %v3523
      %v4552 = vunpack.c.l.b16 %v3524
      %v4553 = vunpack.c.l.b16 %v3525
      %v4554 = vunpack.c.l.b16 %v3526
      %v4555 = vunpack.c.l.b16 %v3527
      %v4556 = vunpack.c.l.b16 %v3528
      %v4557 = vunpack.c.l.b16 %v3529
      %v4558 = vunpack.c.l.b16 %v3530
      %v4559 = vunpack.c.l.b16 %v3531
      %v4560 = vunpack.c.l.b16 %v3532
      %v4561 = vunpack.c.l.b16 %v3533
      %v4562 = vunpack.c.l.b16 %v3534
      %v4563 = vunpack.c.l.b16 %v3535
      %v4564 = vunpack.c.l.b16 %v3536
      %v4565 = vunpack.c.l.b16 %v3537
      %v4566 = vunpack.c.l.b16 %v3538
      %v4567 = vunpack.c.l.b16 %v3539
      %v4568 = vunpack.c.l.b16 %v3540
      %v4569 = vunpack.c.l.b16 %v3541
      %v4570 = vunpack.c.l.b16 %v3542
      %v4571 = vunpack.c.l.b16 %v3543
      %v4572 = vunpack.c.l.b16 %v3544
      %v4573 = vunpack.c.l.b16 %v3545
      %v4574 = vunpack.c.l.b16 %v3546
      %v4575 = vunpack.c.l.b16 %v3547
      %v4576 = vunpack.c.l.b16 %v3548
      %v4577 = vunpack.c.l.b16 %v3549
      %v4578 = vunpack.c.l.b16 %v3550
      %v4579 = vunpack.c.l.b16 %v3551
      %v4580 = vunpack.c.l.b16 %v3552
      %v4581 = vunpack.c.l.b16 %v3553
      %v4582 = vunpack.c.l.b16 %v3554
      %v4583 = vunpack.c.l.b16 %v3555
      %v4584 = vunpack.c.l.b16 %v3556
      %v4585 = vunpack.c.l.b16 %v3557
      %v4586 = vunpack.c.l.b16 %v3558
      %v4587 = vunpack.c.l.b16 %v3559
      %v4588 = vunpack.c.l.b16 %v3560
      %v4589 = vunpack.c.l.b16 %v3561
      %v4590 = vunpack.c.l.b16 %v3562
      %v4591 = vunpack.c.l.b16 %v3563
      %v4592 = vunpack.c.l.b16 %v3564
      %v4593 = vpack.c.b16 %v4450, %v4449
      %v4594 = vpack.c.b16 %v4452, %v4451
      %v4595 = vpack.c.b16 %v4454, %v4453
      %v4596 = vpack.c.b16 %v4456, %v4455
      %v4597 = vpack.c.b16 %v4458, %v4457
      %v4598 = vpack.c.b16 %v4460, %v4459
      %v4599 = vpack.c.b16 %v4462, %v4461
      %v4600 = vpack.c.b16 %v4464, %v4463
      %v4601 = vpack.c.b16 %v4466, %v4465
      %v4602 = vpack.c.b16 %v4468, %v4467
      %v4603 = vpack.c.b16 %v4470, %v4469
      %v4604 = vpack.c.b16 %v4472, %v4471
      %v4605 = vpack.c.b16 %v4474, %v4473
      %v4606 = vpack.c.b16 %v4476, %v4475
      %v4607 = vpack.c.b16 %v4478, %v4477
      %v4608 = vpack.c.b16 %v4480, %v4479
      %v4609 = vpack.c.b16 %v4482, %v4481
      %v4610 = vpack.c.b16 %v4484, %v4483
      %v4611 = vpack.c.b16 %v4486, %v4485
      %v4612 = vpack.c.b16 %v4488, %v4487
      %v4613 = vpack.c.b16 %v4490, %v4489
      %v4614 = vpack.c.b16 %v4492, %v4491
      %v4615 = vpack.c.b16 %v4494, %v4493
      %v4616 = vpack.c.b16 %v4496, %v4495
      %v4617 = vpack.c.b16 %v4498, %v4497
      %v4618 = vpack.c.b16 %v4500, %v4499
      %v4619 = vpack.c.b16 %v4502, %v4501
      %v4620 = vpack.c.b16 %v4504, %v4503
      %v4621 = vpack.c.b16 %v4506, %v4505
      %v4622 = vpack.c.b16 %v4508, %v4507
      %v4623 = vpack.c.b16 %v4510, %v4509
      %v4624 = vpack.c.b16 %v4512, %v4511
      %v4625 = vpack.c.b16 %v4514, %v4513
      %v4626 = vpack.c.b16 %v4516, %v4515
      %v4627 = vpack.c.b16 %v4518, %v4517
      %v4628 = vpack.c.b16 %v4520, %v4519
      %v4629 = vpack.c.b16 %v4522, %v4521
      %v4630 = vpack.c.b16 %v4524, %v4523
      %v4631 = vpack.c.b16 %v4526, %v4525
      %v4632 = vpack.c.b16 %v4528, %v4527
      %v4633 = vpack.c.b16 %v4530, %v4529
      %v4634 = vpack.c.b16 %v4532, %v4531
      %v4635 = vpack.c.b16 %v4534, %v4533
      %v4636 = vpack.c.b16 %v4536, %v4535
      %v4637 = vpack.c.b16 %v4538, %v4537
      %v4638 = vpack.c.b16 %v4540, %v4539
      %v4639 = vpack.c.b16 %v4542, %v4541
      %v4640 = vpack.c.b16 %v4544, %v4543
      %v4641 = vpack.c.b16 %v4546, %v4545
      %v4642 = vpack.c.b16 %v4548, %v4547
      %v4643 = vpack.c.b16 %v4550, %v4549
      %v4644 = vpack.c.b16 %v4552, %v4551
      %v4645 = vpack.c.b16 %v4554, %v4553
      %v4646 = vpack.c.b16 %v4556, %v4555
      %v4647 = vpack.c.b16 %v4558, %v4557
      %v4648 = vpack.c.b16 %v4560, %v4559
      %v4649 = vpack.c.b16 %v4562, %v4561
      %v4650 = vpack.c.b16 %v4564, %v4563
      %v4651 = vpack.c.b16 %v4566, %v4565
      %v4652 = vpack.c.b16 %v4568, %v4567
      %v4653 = vpack.c.b16 %v4570, %v4569
      %v4654 = vpack.c.b16 %v4572, %v4571
      %v4655 = vpack.c.b16 %v4574, %v4573
      %v4656 = vpack.c.b16 %v4576, %v4575
      %v4657 = vpack.c.b16 %v4578, %v4577
      %v4658 = vpack.c.b16 %v4580, %v4579
      %v4659 = vpack.c.b16 %v4582, %v4581
      %v4660 = vpack.c.b16 %v4584, %v4583
      %v4661 = vpack.c.b16 %v4586, %v4585
      %v4662 = vpack.c.b16 %v4588, %v4587
      %v4663 = vpack.c.b16 %v4590, %v4589
      %v4664 = vpack.c.b16 %v4592, %v4591
      %4737 = vmatpush.bf16.msra.mxu0 %v4600
      %4738 = vmatpush.bf16.msra.mxu0 %v4599
      %4739 = vmatpush.bf16.msra.mxu0 %v4598
      %4740 = vmatpush.bf16.msra.mxu0 %v4597
      %4741 = vmatpush.bf16.msra.mxu0 %v4596
      %4742 = vmatpush.bf16.msra.mxu0 %v4595
      %4743 = vmatpush.bf16.msra.mxu0 %v4594
      %4744 = vmatpush.bf16.msra.mxu0 %v4593
      %4745 = vmatmul.bf16.gmra.mxu0 %v4017
      %v4746 = vpop.f32.mrf.mxu0
      %v4747 = vadd.f32 %v3567, %v4746
      %v4748 = vpop.f32.mrf.mxu0
      %v4749 = vadd.f32 %v3567, %v4748
      %4750 = vmatmul.bf16.gmra.mxu0 %v4026
      %v4751 = vpop.f32.mrf.mxu0
      %v4752 = vadd.f32 %v3567, %v4751
      %v4753 = vpop.f32.mrf.mxu0
      %v4754 = vadd.f32 %v3567, %v4753
      %4755 = vmatmul.bf16.gmra.mxu0 %v4035
      %v4756 = vpop.f32.mrf.mxu0
      %v4757 = vadd.f32 %v3567, %v4756
      %v4758 = vpop.f32.mrf.mxu0
      %v4759 = vadd.f32 %v3567, %v4758
      %4760 = vmatmul.bf16.gmra.mxu0 %v4044
      %v4761 = vpop.f32.mrf.mxu0
      %v4762 = vadd.f32 %v3567, %v4761
      %v4763 = vpop.f32.mrf.mxu0
      %v4764 = vadd.f32 %v3567, %v4763
      %4765 = vmatmul.bf16.gmra.mxu0 %v4053
      %v4766 = vpop.f32.mrf.mxu0
      %v4767 = vadd.f32 %v3567, %v4766
      %v4768 = vpop.f32.mrf.mxu0
      %v4769 = vadd.f32 %v3567, %v4768
      %4770 = vmatmul.bf16.gmra.mxu0 %v4062
      %v4771 = vpop.f32.mrf.mxu0
      %v4772 = vadd.f32 %v3567, %v4771
      %v4773 = vpop.f32.mrf.mxu0
      %v4774 = vadd.f32 %v3567, %v4773
      %4775 = vmatmul.bf16.gmra.mxu0 %v4071
      %v4776 = vpop.f32.mrf.mxu0
      %v4777 = vadd.f32 %v3567, %v4776
      %v4778 = vpop.f32.mrf.mxu0
      %v4779 = vadd.f32 %v3567, %v4778
      %4780 = vmatmul.bf16.gmra.mxu0 %v4080
      %v4781 = vpop.f32.mrf.mxu0
      %v4782 = vadd.f32 %v3567, %v4781
      %v4783 = vpop.f32.mrf.mxu0
      %v4784 = vadd.f32 %v3567, %v4783
      %4785 = vmatmul.bf16.gmra.mxu0 %v4089
      %v4786 = vpop.f32.mrf.mxu0
      %v4787 = vadd.f32 %v3567, %v4786
      %v4788 = vpop.f32.mrf.mxu0
      %v4789 = vadd.f32 %v3567, %v4788
      %4790 = vmatmul.bf16.gmra.mxu0 %v4098
      %v4791 = vpop.f32.mrf.mxu0
      %v4792 = vadd.f32 %v3567, %v4791
      %v4793 = vpop.f32.mrf.mxu0
      %v4794 = vadd.f32 %v3567, %v4793
      %4795 = vmatmul.bf16.gmra.mxu0 %v4107
      %v4796 = vpop.f32.mrf.mxu0
      %v4797 = vadd.f32 %v3567, %v4796
      %v4798 = vpop.f32.mrf.mxu0
      %v4799 = vadd.f32 %v3567, %v4798
      %4800 = vmatmul.bf16.gmra.mxu0 %v4116
      %v4801 = vpop.f32.mrf.mxu0
      %v4802 = vadd.f32 %v3567, %v4801
      %v4803 = vpop.f32.mrf.mxu0
      %v4804 = vadd.f32 %v3567, %v4803
      %4805 = vmatmul.bf16.gmra.mxu0 %v4125
      %v4806 = vpop.f32.mrf.mxu0
      %v4807 = vadd.f32 %v3567, %v4806
      %v4808 = vpop.f32.mrf.mxu0
      %v4809 = vadd.f32 %v3567, %v4808
      %4810 = vmatmul.bf16.gmra.mxu0 %v4134
      %v4811 = vpop.f32.mrf.mxu0
      %v4812 = vadd.f32 %v3567, %v4811
      %v4813 = vpop.f32.mrf.mxu0
      %v4814 = vadd.f32 %v3567, %v4813
      %4815 = vmatmul.bf16.gmra.mxu0 %v4143
      %v4816 = vpop.f32.mrf.mxu0
      %v4817 = vadd.f32 %v3567, %v4816
      %v4818 = vpop.f32.mrf.mxu0
      %v4819 = vadd.f32 %v3567, %v4818
      %4820 = vmatmul.bf16.gmra.mxu0 %v4152
      %v4821 = vpop.f32.mrf.mxu0
      %v4822 = vadd.f32 %v3567, %v4821
      %v4823 = vpop.f32.mrf.mxu0
      %v4824 = vadd.f32 %v3567, %v4823
      %4825 = vdwg.mxu0
      %4826 = vmatpush.bf16.msra.mxu0 %v4608
      %4827 = vmatpush.bf16.msra.mxu0 %v4607
      %4828 = vmatpush.bf16.msra.mxu0 %v4606
      %4829 = vmatpush.bf16.msra.mxu0 %v4605
      %4830 = vmatpush.bf16.msra.mxu0 %v4604
      %4831 = vmatpush.bf16.msra.mxu0 %v4603
      %4832 = vmatpush.bf16.msra.mxu0 %v4602
      %4833 = vmatpush.bf16.msra.mxu0 %v4601
      %4834 = vmatmul.bf16.gmra.mxu0 %v4018
      %v4835 = vpop.f32.mrf.mxu0
      %v4836 = vadd.f32 %v4747, %v4835
      %v4837 = vpop.f32.mrf.mxu0
      %v4838 = vadd.f32 %v4749, %v4837
      %4839 = vmatmul.bf16.gmra.mxu0 %v4027
      %v4840 = vpop.f32.mrf.mxu0
      %v4841 = vadd.f32 %v4752, %v4840
      %v4842 = vpop.f32.mrf.mxu0
      %v4843 = vadd.f32 %v4754, %v4842
      %4844 = vmatmul.bf16.gmra.mxu0 %v4036
      %v4845 = vpop.f32.mrf.mxu0
      %v4846 = vadd.f32 %v4757, %v4845
      %v4847 = vpop.f32.mrf.mxu0
      %v4848 = vadd.f32 %v4759, %v4847
      %4849 = vmatmul.bf16.gmra.mxu0 %v4045
      %v4850 = vpop.f32.mrf.mxu0
      %v4851 = vadd.f32 %v4762, %v4850
      %v4852 = vpop.f32.mrf.mxu0
      %v4853 = vadd.f32 %v4764, %v4852
      %4854 = vmatmul.bf16.gmra.mxu0 %v4054
      %v4855 = vpop.f32.mrf.mxu0
      %v4856 = vadd.f32 %v4767, %v4855
      %v4857 = vpop.f32.mrf.mxu0
      %v4858 = vadd.f32 %v4769, %v4857
      %4859 = vmatmul.bf16.gmra.mxu0 %v4063
      %v4860 = vpop.f32.mrf.mxu0
      %v4861 = vadd.f32 %v4772, %v4860
      %v4862 = vpop.f32.mrf.mxu0
      %v4863 = vadd.f32 %v4774, %v4862
      %4864 = vmatmul.bf16.gmra.mxu0 %v4072
      %v4865 = vpop.f32.mrf.mxu0
      %v4866 = vadd.f32 %v4777, %v4865
      %v4867 = vpop.f32.mrf.mxu0
      %v4868 = vadd.f32 %v4779, %v4867
      %4869 = vmatmul.bf16.gmra.mxu0 %v4081
      %v4870 = vpop.f32.mrf.mxu0
      %v4871 = vadd.f32 %v4782, %v4870
      %v4872 = vpop.f32.mrf.mxu0
      %v4873 = vadd.f32 %v4784, %v4872
      %4874 = vmatmul.bf16.gmra.mxu0 %v4090
      %v4875 = vpop.f32.mrf.mxu0
      %v4876 = vadd.f32 %v4787, %v4875
      %v4877 = vpop.f32.mrf.mxu0
      %v4878 = vadd.f32 %v4789, %v4877
      %4879 = vmatmul.bf16.gmra.mxu0 %v4099
      %v4880 = vpop.f32.mrf.mxu0
      %v4881 = vadd.f32 %v4792, %v4880
      %v4882 = vpop.f32.mrf.mxu0
      %v4883 = vadd.f32 %v4794, %v4882
      %4884 = vmatmul.bf16.gmra.mxu0 %v4108
      %v4885 = vpop.f32.mrf.mxu0
      %v4886 = vadd.f32 %v4797, %v4885
      %v4887 = vpop.f32.mrf.mxu0
      %v4888 = vadd.f32 %v4799, %v4887
      %4889 = vmatmul.bf16.gmra.mxu0 %v4117
      %v4890 = vpop.f32.mrf.mxu0
      %v4891 = vadd.f32 %v4802, %v4890
      %v4892 = vpop.f32.mrf.mxu0
      %v4893 = vadd.f32 %v4804, %v4892
      %4894 = vmatmul.bf16.gmra.mxu0 %v4126
      %v4895 = vpop.f32.mrf.mxu0
      %v4896 = vadd.f32 %v4807, %v4895
      %v4897 = vpop.f32.mrf.mxu0
      %v4898 = vadd.f32 %v4809, %v4897
      %4899 = vmatmul.bf16.gmra.mxu0 %v4135
      %v4900 = vpop.f32.mrf.mxu0
      %v4901 = vadd.f32 %v4812, %v4900
      %v4902 = vpop.f32.mrf.mxu0
      %v4903 = vadd.f32 %v4814, %v4902
      %4904 = vmatmul.bf16.gmra.mxu0 %v4144
      %v4905 = vpop.f32.mrf.mxu0
      %v4906 = vadd.f32 %v4817, %v4905
      %v4907 = vpop.f32.mrf.mxu0
      %v4908 = vadd.f32 %v4819, %v4907
      %4909 = vmatmul.bf16.gmra.mxu0 %v4153
      %v4910 = vpop.f32.mrf.mxu0
      %v4911 = vadd.f32 %v4822, %v4910
      %v4912 = vpop.f32.mrf.mxu0
      %v4913 = vadd.f32 %v4824, %v4912
      %4914 = vdwg.mxu0
      %4915 = vmatpush.bf16.msra.mxu0 %v4616
      %4916 = vmatpush.bf16.msra.mxu0 %v4615
      %4917 = vmatpush.bf16.msra.mxu0 %v4614
      %4918 = vmatpush.bf16.msra.mxu0 %v4613
      %4919 = vmatpush.bf16.msra.mxu0 %v4612
      %4920 = vmatpush.bf16.msra.mxu0 %v4611
      %4921 = vmatpush.bf16.msra.mxu0 %v4610
      %4922 = vmatpush.bf16.msra.mxu0 %v4609
      %4923 = vmatmul.bf16.gmra.mxu0 %v4019
      %v4924 = vpop.f32.mrf.mxu0
      %v4925 = vadd.f32 %v4836, %v4924
      %v4926 = vpop.f32.mrf.mxu0
      %v4927 = vadd.f32 %v4838, %v4926
      %4928 = vmatmul.bf16.gmra.mxu0 %v4028
      %v4929 = vpop.f32.mrf.mxu0
      %v4930 = vadd.f32 %v4841, %v4929
      %v4931 = vpop.f32.mrf.mxu0
      %v4932 = vadd.f32 %v4843, %v4931
      %4933 = vmatmul.bf16.gmra.mxu0 %v4037
      %v4934 = vpop.f32.mrf.mxu0
      %v4935 = vadd.f32 %v4846, %v4934
      %v4936 = vpop.f32.mrf.mxu0
      %v4937 = vadd.f32 %v4848, %v4936
      %4938 = vmatmul.bf16.gmra.mxu0 %v4046
      %v4939 = vpop.f32.mrf.mxu0
      %v4940 = vadd.f32 %v4851, %v4939
      %v4941 = vpop.f32.mrf.mxu0
      %v4942 = vadd.f32 %v4853, %v4941
      %4943 = vmatmul.bf16.gmra.mxu0 %v4055
      %v4944 = vpop.f32.mrf.mxu0
      %v4945 = vadd.f32 %v4856, %v4944
      %v4946 = vpop.f32.mrf.mxu0
      %v4947 = vadd.f32 %v4858, %v4946
      %4948 = vmatmul.bf16.gmra.mxu0 %v4064
      %v4949 = vpop.f32.mrf.mxu0
      %v4950 = vadd.f32 %v4861, %v4949
      %v4951 = vpop.f32.mrf.mxu0
      %v4952 = vadd.f32 %v4863, %v4951
      %4953 = vmatmul.bf16.gmra.mxu0 %v4073
      %v4954 = vpop.f32.mrf.mxu0
      %v4955 = vadd.f32 %v4866, %v4954
      %v4956 = vpop.f32.mrf.mxu0
      %v4957 = vadd.f32 %v4868, %v4956
      %4958 = vmatmul.bf16.gmra.mxu0 %v4082
      %v4959 = vpop.f32.mrf.mxu0
      %v4960 = vadd.f32 %v4871, %v4959
      %v4961 = vpop.f32.mrf.mxu0
      %v4962 = vadd.f32 %v4873, %v4961
      %4963 = vmatmul.bf16.gmra.mxu0 %v4091
      %v4964 = vpop.f32.mrf.mxu0
      %v4965 = vadd.f32 %v4876, %v4964
      %v4966 = vpop.f32.mrf.mxu0
      %v4967 = vadd.f32 %v4878, %v4966
      %4968 = vmatmul.bf16.gmra.mxu0 %v4100
      %v4969 = vpop.f32.mrf.mxu0
      %v4970 = vadd.f32 %v4881, %v4969
      %v4971 = vpop.f32.mrf.mxu0
      %v4972 = vadd.f32 %v4883, %v4971
      %4973 = vmatmul.bf16.gmra.mxu0 %v4109
      %v4974 = vpop.f32.mrf.mxu0
      %v4975 = vadd.f32 %v4886, %v4974
      %v4976 = vpop.f32.mrf.mxu0
      %v4977 = vadd.f32 %v4888, %v4976
      %4978 = vmatmul.bf16.gmra.mxu0 %v4118
      %v4979 = vpop.f32.mrf.mxu0
      %v4980 = vadd.f32 %v4891, %v4979
      %v4981 = vpop.f32.mrf.mxu0
      %v4982 = vadd.f32 %v4893, %v4981
      %4983 = vmatmul.bf16.gmra.mxu0 %v4127
      %v4984 = vpop.f32.mrf.mxu0
      %v4985 = vadd.f32 %v4896, %v4984
      %v4986 = vpop.f32.mrf.mxu0
      %v4987 = vadd.f32 %v4898, %v4986
      %4988 = vmatmul.bf16.gmra.mxu0 %v4136
      %v4989 = vpop.f32.mrf.mxu0
      %v4990 = vadd.f32 %v4901, %v4989
      %v4991 = vpop.f32.mrf.mxu0
      %v4992 = vadd.f32 %v4903, %v4991
      %4993 = vmatmul.bf16.gmra.mxu0 %v4145
      %v4994 = vpop.f32.mrf.mxu0
      %v4995 = vadd.f32 %v4906, %v4994
      %v4996 = vpop.f32.mrf.mxu0
      %v4997 = vadd.f32 %v4908, %v4996
      %4998 = vmatmul.bf16.gmra.mxu0 %v4154
      %v4999 = vpop.f32.mrf.mxu0
      %v5000 = vadd.f32 %v4911, %v4999
      %v5001 = vpop.f32.mrf.mxu0
      %v5002 = vadd.f32 %v4913, %v5001
      %5003 = vdwg.mxu0
      %5004 = vmatpush.bf16.msra.mxu0 %v4624
      %5005 = vmatpush.bf16.msra.mxu0 %v4623
      %5006 = vmatpush.bf16.msra.mxu0 %v4622
      %5007 = vmatpush.bf16.msra.mxu0 %v4621
      %5008 = vmatpush.bf16.msra.mxu0 %v4620
      %5009 = vmatpush.bf16.msra.mxu0 %v4619
      %5010 = vmatpush.bf16.msra.mxu0 %v4618
      %5011 = vmatpush.bf16.msra.mxu0 %v4617
      %5012 = vmatmul.bf16.gmra.mxu0 %v4020
      %v5013 = vpop.f32.mrf.mxu0
      %v5014 = vadd.f32 %v4925, %v5013
      %v5015 = vpop.f32.mrf.mxu0
      %v5016 = vadd.f32 %v4927, %v5015
      %5017 = vmatmul.bf16.gmra.mxu0 %v4029
      %v5018 = vpop.f32.mrf.mxu0
      %v5019 = vadd.f32 %v4930, %v5018
      %v5020 = vpop.f32.mrf.mxu0
      %v5021 = vadd.f32 %v4932, %v5020
      %5022 = vmatmul.bf16.gmra.mxu0 %v4038
      %v5023 = vpop.f32.mrf.mxu0
      %v5024 = vadd.f32 %v4935, %v5023
      %v5025 = vpop.f32.mrf.mxu0
      %v5026 = vadd.f32 %v4937, %v5025
      %5027 = vmatmul.bf16.gmra.mxu0 %v4047
      %v5028 = vpop.f32.mrf.mxu0
      %v5029 = vadd.f32 %v4940, %v5028
      %v5030 = vpop.f32.mrf.mxu0
      %v5031 = vadd.f32 %v4942, %v5030
      %5032 = vmatmul.bf16.gmra.mxu0 %v4056
      %v5033 = vpop.f32.mrf.mxu0
      %v5034 = vadd.f32 %v4945, %v5033
      %v5035 = vpop.f32.mrf.mxu0
      %v5036 = vadd.f32 %v4947, %v5035
      %5037 = vmatmul.bf16.gmra.mxu0 %v4065
      %v5038 = vpop.f32.mrf.mxu0
      %v5039 = vadd.f32 %v4950, %v5038
      %v5040 = vpop.f32.mrf.mxu0
      %v5041 = vadd.f32 %v4952, %v5040
      %5042 = vmatmul.bf16.gmra.mxu0 %v4074
      %v5043 = vpop.f32.mrf.mxu0
      %v5044 = vadd.f32 %v4955, %v5043
      %v5045 = vpop.f32.mrf.mxu0
      %v5046 = vadd.f32 %v4957, %v5045
      %5047 = vmatmul.bf16.gmra.mxu0 %v4083
      %v5048 = vpop.f32.mrf.mxu0
      %v5049 = vadd.f32 %v4960, %v5048
      %v5050 = vpop.f32.mrf.mxu0
      %v5051 = vadd.f32 %v4962, %v5050
      %5052 = vmatmul.bf16.gmra.mxu0 %v4092
      %v5053 = vpop.f32.mrf.mxu0
      %v5054 = vadd.f32 %v4965, %v5053
      %v5055 = vpop.f32.mrf.mxu0
      %v5056 = vadd.f32 %v4967, %v5055
      %5057 = vmatmul.bf16.gmra.mxu0 %v4101
      %v5058 = vpop.f32.mrf.mxu0
      %v5059 = vadd.f32 %v4970, %v5058
      %v5060 = vpop.f32.mrf.mxu0
      %v5061 = vadd.f32 %v4972, %v5060
      %5062 = vmatmul.bf16.gmra.mxu0 %v4110
      %v5063 = vpop.f32.mrf.mxu0
      %v5064 = vadd.f32 %v4975, %v5063
      %v5065 = vpop.f32.mrf.mxu0
      %v5066 = vadd.f32 %v4977, %v5065
      %5067 = vmatmul.bf16.gmra.mxu0 %v4119
      %v5068 = vpop.f32.mrf.mxu0
      %v5069 = vadd.f32 %v4980, %v5068
      %v5070 = vpop.f32.mrf.mxu0
      %v5071 = vadd.f32 %v4982, %v5070
      %5072 = vmatmul.bf16.gmra.mxu0 %v4128
      %v5073 = vpop.f32.mrf.mxu0
      %v5074 = vadd.f32 %v4985, %v5073
      %v5075 = vpop.f32.mrf.mxu0
      %v5076 = vadd.f32 %v4987, %v5075
      %5077 = vmatmul.bf16.gmra.mxu0 %v4137
      %v5078 = vpop.f32.mrf.mxu0
      %v5079 = vadd.f32 %v4990, %v5078
      %v5080 = vpop.f32.mrf.mxu0
      %v5081 = vadd.f32 %v4992, %v5080
      %5082 = vmatmul.bf16.gmra.mxu0 %v4146
      %v5083 = vpop.f32.mrf.mxu0
      %v5084 = vadd.f32 %v4995, %v5083
      %v5085 = vpop.f32.mrf.mxu0
      %v5086 = vadd.f32 %v4997, %v5085
      %5087 = vmatmul.bf16.gmra.mxu0 %v4155
      %v5088 = vpop.f32.mrf.mxu0
      %v5089 = vadd.f32 %v5000, %v5088
      %v5090 = vpop.f32.mrf.mxu0
      %v5091 = vadd.f32 %v5002, %v5090
      %5092 = vdwg.mxu0
      %5093 = vmatpush.bf16.msra.mxu0 %v4632
      %5094 = vmatpush.bf16.msra.mxu0 %v4631
      %5095 = vmatpush.bf16.msra.mxu0 %v4630
      %5096 = vmatpush.bf16.msra.mxu0 %v4629
      %5097 = vmatpush.bf16.msra.mxu0 %v4628
      %5098 = vmatpush.bf16.msra.mxu0 %v4627
      %5099 = vmatpush.bf16.msra.mxu0 %v4626
      %5100 = vmatpush.bf16.msra.mxu0 %v4625
      %5101 = vmatmul.bf16.gmra.mxu0 %v4021
      %v5102 = vpop.f32.mrf.mxu0
      %v5103 = vadd.f32 %v5014, %v5102
      %v5104 = vpop.f32.mrf.mxu0
      %v5105 = vadd.f32 %v5016, %v5104
      %5106 = vmatmul.bf16.gmra.mxu0 %v4030
      %v5107 = vpop.f32.mrf.mxu0
      %v5108 = vadd.f32 %v5019, %v5107
      %v5109 = vpop.f32.mrf.mxu0
      %v5110 = vadd.f32 %v5021, %v5109
      %5111 = vmatmul.bf16.gmra.mxu0 %v4039
      %v5112 = vpop.f32.mrf.mxu0
      %v5113 = vadd.f32 %v5024, %v5112
      %v5114 = vpop.f32.mrf.mxu0
      %v5115 = vadd.f32 %v5026, %v5114
      %5116 = vmatmul.bf16.gmra.mxu0 %v4048
      %v5117 = vpop.f32.mrf.mxu0
      %v5118 = vadd.f32 %v5029, %v5117
      %v5119 = vpop.f32.mrf.mxu0
      %v5120 = vadd.f32 %v5031, %v5119
      %5121 = vmatmul.bf16.gmra.mxu0 %v4057
      %v5122 = vpop.f32.mrf.mxu0
      %v5123 = vadd.f32 %v5034, %v5122
      %v5124 = vpop.f32.mrf.mxu0
      %v5125 = vadd.f32 %v5036, %v5124
      %5126 = vmatmul.bf16.gmra.mxu0 %v4066
      %v5127 = vpop.f32.mrf.mxu0
      %v5128 = vadd.f32 %v5039, %v5127
      %v5129 = vpop.f32.mrf.mxu0
      %v5130 = vadd.f32 %v5041, %v5129
      %5131 = vmatmul.bf16.gmra.mxu0 %v4075
      %v5132 = vpop.f32.mrf.mxu0
      %v5133 = vadd.f32 %v5044, %v5132
      %v5134 = vpop.f32.mrf.mxu0
      %v5135 = vadd.f32 %v5046, %v5134
      %5136 = vmatmul.bf16.gmra.mxu0 %v4084
      %v5137 = vpop.f32.mrf.mxu0
      %v5138 = vadd.f32 %v5049, %v5137
      %v5139 = vpop.f32.mrf.mxu0
      %v5140 = vadd.f32 %v5051, %v5139
      %5141 = vmatmul.bf16.gmra.mxu0 %v4093
      %v5142 = vpop.f32.mrf.mxu0
      %v5143 = vadd.f32 %v5054, %v5142
      %v5144 = vpop.f32.mrf.mxu0
      %v5145 = vadd.f32 %v5056, %v5144
      %5146 = vmatmul.bf16.gmra.mxu0 %v4102
      %v5147 = vpop.f32.mrf.mxu0
      %v5148 = vadd.f32 %v5059, %v5147
      %v5149 = vpop.f32.mrf.mxu0
      %v5150 = vadd.f32 %v5061, %v5149
      %5151 = vmatmul.bf16.gmra.mxu0 %v4111
      %v5152 = vpop.f32.mrf.mxu0
      %v5153 = vadd.f32 %v5064, %v5152
      %v5154 = vpop.f32.mrf.mxu0
      %v5155 = vadd.f32 %v5066, %v5154
      %5156 = vmatmul.bf16.gmra.mxu0 %v4120
      %v5157 = vpop.f32.mrf.mxu0
      %v5158 = vadd.f32 %v5069, %v5157
      %v5159 = vpop.f32.mrf.mxu0
      %v5160 = vadd.f32 %v5071, %v5159
      %5161 = vmatmul.bf16.gmra.mxu0 %v4129
      %v5162 = vpop.f32.mrf.mxu0
      %v5163 = vadd.f32 %v5074, %v5162
      %v5164 = vpop.f32.mrf.mxu0
      %v5165 = vadd.f32 %v5076, %v5164
      %5166 = vmatmul.bf16.gmra.mxu0 %v4138
      %v5167 = vpop.f32.mrf.mxu0
      %v5168 = vadd.f32 %v5079, %v5167
      %v5169 = vpop.f32.mrf.mxu0
      %v5170 = vadd.f32 %v5081, %v5169
      %5171 = vmatmul.bf16.gmra.mxu0 %v4147
      %v5172 = vpop.f32.mrf.mxu0
      %v5173 = vadd.f32 %v5084, %v5172
      %v5174 = vpop.f32.mrf.mxu0
      %v5175 = vadd.f32 %v5086, %v5174
      %5176 = vmatmul.bf16.gmra.mxu0 %v4156
      %v5177 = vpop.f32.mrf.mxu0
      %v5178 = vadd.f32 %v5089, %v5177
      %v5179 = vpop.f32.mrf.mxu0
      %v5180 = vadd.f32 %v5091, %v5179
      %5181 = vdwg.mxu0
      %5182 = vmatpush.bf16.msra.mxu0 %v4640
      %5183 = vmatpush.bf16.msra.mxu0 %v4639
      %5184 = vmatpush.bf16.msra.mxu0 %v4638
      %5185 = vmatpush.bf16.msra.mxu0 %v4637
      %5186 = vmatpush.bf16.msra.mxu0 %v4636
      %5187 = vmatpush.bf16.msra.mxu0 %v4635
      %5188 = vmatpush.bf16.msra.mxu0 %v4634
      %5189 = vmatpush.bf16.msra.mxu0 %v4633
      %5190 = vmatmul.bf16.gmra.mxu0 %v4022
      %v5191 = vpop.f32.mrf.mxu0
      %v5192 = vadd.f32 %v5103, %v5191
      %v5193 = vpop.f32.mrf.mxu0
      %v5194 = vadd.f32 %v5105, %v5193
      %5195 = vmatmul.bf16.gmra.mxu0 %v4031
      %v5196 = vpop.f32.mrf.mxu0
      %v5197 = vadd.f32 %v5108, %v5196
      %v5198 = vpop.f32.mrf.mxu0
      %v5199 = vadd.f32 %v5110, %v5198
      %5200 = vmatmul.bf16.gmra.mxu0 %v4040
      %v5201 = vpop.f32.mrf.mxu0
      %v5202 = vadd.f32 %v5113, %v5201
      %v5203 = vpop.f32.mrf.mxu0
      %v5204 = vadd.f32 %v5115, %v5203
      %5205 = vmatmul.bf16.gmra.mxu0 %v4049
      %v5206 = vpop.f32.mrf.mxu0
      %v5207 = vadd.f32 %v5118, %v5206
      %v5208 = vpop.f32.mrf.mxu0
      %v5209 = vadd.f32 %v5120, %v5208
      %5210 = vmatmul.bf16.gmra.mxu0 %v4058
      %v5211 = vpop.f32.mrf.mxu0
      %v5212 = vadd.f32 %v5123, %v5211
      %v5213 = vpop.f32.mrf.mxu0
      %v5214 = vadd.f32 %v5125, %v5213
      %5215 = vmatmul.bf16.gmra.mxu0 %v4067
      %v5216 = vpop.f32.mrf.mxu0
      %v5217 = vadd.f32 %v5128, %v5216
      %v5218 = vpop.f32.mrf.mxu0
      %v5219 = vadd.f32 %v5130, %v5218
      %5220 = vmatmul.bf16.gmra.mxu0 %v4076
      %v5221 = vpop.f32.mrf.mxu0
      %v5222 = vadd.f32 %v5133, %v5221
      %v5223 = vpop.f32.mrf.mxu0
      %v5224 = vadd.f32 %v5135, %v5223
      %5225 = vmatmul.bf16.gmra.mxu0 %v4085
      %v5226 = vpop.f32.mrf.mxu0
      %v5227 = vadd.f32 %v5138, %v5226
      %v5228 = vpop.f32.mrf.mxu0
      %v5229 = vadd.f32 %v5140, %v5228
      %5230 = vmatmul.bf16.gmra.mxu0 %v4094
      %v5231 = vpop.f32.mrf.mxu0
      %v5232 = vadd.f32 %v5143, %v5231
      %v5233 = vpop.f32.mrf.mxu0
      %v5234 = vadd.f32 %v5145, %v5233
      %5235 = vmatmul.bf16.gmra.mxu0 %v4103
      %v5236 = vpop.f32.mrf.mxu0
      %v5237 = vadd.f32 %v5148, %v5236
      %v5238 = vpop.f32.mrf.mxu0
      %v5239 = vadd.f32 %v5150, %v5238
      %5240 = vmatmul.bf16.gmra.mxu0 %v4112
      %v5241 = vpop.f32.mrf.mxu0
      %v5242 = vadd.f32 %v5153, %v5241
      %v5243 = vpop.f32.mrf.mxu0
      %v5244 = vadd.f32 %v5155, %v5243
      %5245 = vmatmul.bf16.gmra.mxu0 %v4121
      %v5246 = vpop.f32.mrf.mxu0
      %v5247 = vadd.f32 %v5158, %v5246
      %v5248 = vpop.f32.mrf.mxu0
      %v5249 = vadd.f32 %v5160, %v5248
      %5250 = vmatmul.bf16.gmra.mxu0 %v4130
      %v5251 = vpop.f32.mrf.mxu0
      %v5252 = vadd.f32 %v5163, %v5251
      %v5253 = vpop.f32.mrf.mxu0
      %v5254 = vadd.f32 %v5165, %v5253
      %5255 = vmatmul.bf16.gmra.mxu0 %v4139
      %v5256 = vpop.f32.mrf.mxu0
      %v5257 = vadd.f32 %v5168, %v5256
      %v5258 = vpop.f32.mrf.mxu0
      %v5259 = vadd.f32 %v5170, %v5258
      %5260 = vmatmul.bf16.gmra.mxu0 %v4148
      %v5261 = vpop.f32.mrf.mxu0
      %v5262 = vadd.f32 %v5173, %v5261
      %v5263 = vpop.f32.mrf.mxu0
      %v5264 = vadd.f32 %v5175, %v5263
      %5265 = vmatmul.bf16.gmra.mxu0 %v4157
      %v5266 = vpop.f32.mrf.mxu0
      %v5267 = vadd.f32 %v5178, %v5266
      %v5268 = vpop.f32.mrf.mxu0
      %v5269 = vadd.f32 %v5180, %v5268
      %5270 = vdwg.mxu0
      %5271 = vmatpush.bf16.msra.mxu0 %v4648
      %5272 = vmatpush.bf16.msra.mxu0 %v4647
      %5273 = vmatpush.bf16.msra.mxu0 %v4646
      %5274 = vmatpush.bf16.msra.mxu0 %v4645
      %5275 = vmatpush.bf16.msra.mxu0 %v4644
      %5276 = vmatpush.bf16.msra.mxu0 %v4643
      %5277 = vmatpush.bf16.msra.mxu0 %v4642
      %5278 = vmatpush.bf16.msra.mxu0 %v4641
      %5279 = vmatmul.bf16.gmra.mxu0 %v4023
      %v5280 = vpop.f32.mrf.mxu0
      %v5281 = vadd.f32 %v5192, %v5280
      %v5282 = vpop.f32.mrf.mxu0
      %v5283 = vadd.f32 %v5194, %v5282
      %5284 = vmatmul.bf16.gmra.mxu0 %v4032
      %v5285 = vpop.f32.mrf.mxu0
      %v5286 = vadd.f32 %v5197, %v5285
      %v5287 = vpop.f32.mrf.mxu0
      %v5288 = vadd.f32 %v5199, %v5287
      %5289 = vmatmul.bf16.gmra.mxu0 %v4041
      %v5290 = vpop.f32.mrf.mxu0
      %v5291 = vadd.f32 %v5202, %v5290
      %v5292 = vpop.f32.mrf.mxu0
      %v5293 = vadd.f32 %v5204, %v5292
      %5294 = vmatmul.bf16.gmra.mxu0 %v4050
      %v5295 = vpop.f32.mrf.mxu0
      %v5296 = vadd.f32 %v5207, %v5295
      %v5297 = vpop.f32.mrf.mxu0
      %v5298 = vadd.f32 %v5209, %v5297
      %5299 = vmatmul.bf16.gmra.mxu0 %v4059
      %v5300 = vpop.f32.mrf.mxu0
      %v5301 = vadd.f32 %v5212, %v5300
      %v5302 = vpop.f32.mrf.mxu0
      %v5303 = vadd.f32 %v5214, %v5302
      %5304 = vmatmul.bf16.gmra.mxu0 %v4068
      %v5305 = vpop.f32.mrf.mxu0
      %v5306 = vadd.f32 %v5217, %v5305
      %v5307 = vpop.f32.mrf.mxu0
      %v5308 = vadd.f32 %v5219, %v5307
      %5309 = vmatmul.bf16.gmra.mxu0 %v4077
      %v5310 = vpop.f32.mrf.mxu0
      %v5311 = vadd.f32 %v5222, %v5310
      %v5312 = vpop.f32.mrf.mxu0
      %v5313 = vadd.f32 %v5224, %v5312
      %5314 = vmatmul.bf16.gmra.mxu0 %v4086
      %v5315 = vpop.f32.mrf.mxu0
      %v5316 = vadd.f32 %v5227, %v5315
      %v5317 = vpop.f32.mrf.mxu0
      %v5318 = vadd.f32 %v5229, %v5317
      %5319 = vmatmul.bf16.gmra.mxu0 %v4095
      %v5320 = vpop.f32.mrf.mxu0
      %v5321 = vadd.f32 %v5232, %v5320
      %v5322 = vpop.f32.mrf.mxu0
      %v5323 = vadd.f32 %v5234, %v5322
      %5324 = vmatmul.bf16.gmra.mxu0 %v4104
      %v5325 = vpop.f32.mrf.mxu0
      %v5326 = vadd.f32 %v5237, %v5325
      %v5327 = vpop.f32.mrf.mxu0
      %v5328 = vadd.f32 %v5239, %v5327
      %5329 = vmatmul.bf16.gmra.mxu0 %v4113
      %v5330 = vpop.f32.mrf.mxu0
      %v5331 = vadd.f32 %v5242, %v5330
      %v5332 = vpop.f32.mrf.mxu0
      %v5333 = vadd.f32 %v5244, %v5332
      %5334 = vmatmul.bf16.gmra.mxu0 %v4122
      %v5335 = vpop.f32.mrf.mxu0
      %v5336 = vadd.f32 %v5247, %v5335
      %v5337 = vpop.f32.mrf.mxu0
      %v5338 = vadd.f32 %v5249, %v5337
      %5339 = vmatmul.bf16.gmra.mxu0 %v4131
      %v5340 = vpop.f32.mrf.mxu0
      %v5341 = vadd.f32 %v5252, %v5340
      %v5342 = vpop.f32.mrf.mxu0
      %v5343 = vadd.f32 %v5254, %v5342
      %5344 = vmatmul.bf16.gmra.mxu0 %v4140
      %v5345 = vpop.f32.mrf.mxu0
      %v5346 = vadd.f32 %v5257, %v5345
      %v5347 = vpop.f32.mrf.mxu0
      %v5348 = vadd.f32 %v5259, %v5347
      %5349 = vmatmul.bf16.gmra.mxu0 %v4149
      %v5350 = vpop.f32.mrf.mxu0
      %v5351 = vadd.f32 %v5262, %v5350
      %v5352 = vpop.f32.mrf.mxu0
      %v5353 = vadd.f32 %v5264, %v5352
      %5354 = vmatmul.bf16.gmra.mxu0 %v4158
      %v5355 = vpop.f32.mrf.mxu0
      %v5356 = vadd.f32 %v5267, %v5355
      %v5357 = vpop.f32.mrf.mxu0
      %v5358 = vadd.f32 %v5269, %v5357
      %5359 = vdwg.mxu0
      %5360 = vmatpush.bf16.msra.mxu0 %v4656
      %5361 = vmatpush.bf16.msra.mxu0 %v4655
      %5362 = vmatpush.bf16.msra.mxu0 %v4654
      %5363 = vmatpush.bf16.msra.mxu0 %v4653
      %5364 = vmatpush.bf16.msra.mxu0 %v4652
      %5365 = vmatpush.bf16.msra.mxu0 %v4651
      %5366 = vmatpush.bf16.msra.mxu0 %v4650
      %5367 = vmatpush.bf16.msra.mxu0 %v4649
      %5368 = vmatmul.bf16.gmra.mxu0 %v4024
      %v5369 = vpop.f32.mrf.mxu0
      %v5370 = vadd.f32 %v5281, %v5369
      %v5371 = vpop.f32.mrf.mxu0
      %v5372 = vadd.f32 %v5283, %v5371
      %5373 = vmatmul.bf16.gmra.mxu0 %v4033
      %v5374 = vpop.f32.mrf.mxu0
      %v5375 = vadd.f32 %v5286, %v5374
      %v5376 = vpop.f32.mrf.mxu0
      %v5377 = vadd.f32 %v5288, %v5376
      %5378 = vmatmul.bf16.gmra.mxu0 %v4042
      %v5379 = vpop.f32.mrf.mxu0
      %v5380 = vadd.f32 %v5291, %v5379
      %v5381 = vpop.f32.mrf.mxu0
      %v5382 = vadd.f32 %v5293, %v5381
      %5383 = vmatmul.bf16.gmra.mxu0 %v4051
      %v5384 = vpop.f32.mrf.mxu0
      %v5385 = vadd.f32 %v5296, %v5384
      %v5386 = vpop.f32.mrf.mxu0
      %v5387 = vadd.f32 %v5298, %v5386
      %5388 = vmatmul.bf16.gmra.mxu0 %v4060
      %v5389 = vpop.f32.mrf.mxu0
      %v5390 = vadd.f32 %v5301, %v5389
      %v5391 = vpop.f32.mrf.mxu0
      %v5392 = vadd.f32 %v5303, %v5391
      %5393 = vmatmul.bf16.gmra.mxu0 %v4069
      %v5394 = vpop.f32.mrf.mxu0
      %v5395 = vadd.f32 %v5306, %v5394
      %v5396 = vpop.f32.mrf.mxu0
      %v5397 = vadd.f32 %v5308, %v5396
      %5398 = vmatmul.bf16.gmra.mxu0 %v4078
      %v5399 = vpop.f32.mrf.mxu0
      %v5400 = vadd.f32 %v5311, %v5399
      %v5401 = vpop.f32.mrf.mxu0
      %v5402 = vadd.f32 %v5313, %v5401
      %5403 = vmatmul.bf16.gmra.mxu0 %v4087
      %v5404 = vpop.f32.mrf.mxu0
      %v5405 = vadd.f32 %v5316, %v5404
      %v5406 = vpop.f32.mrf.mxu0
      %v5407 = vadd.f32 %v5318, %v5406
      %5408 = vmatmul.bf16.gmra.mxu0 %v4096
      %v5409 = vpop.f32.mrf.mxu0
      %v5410 = vadd.f32 %v5321, %v5409
      %v5411 = vpop.f32.mrf.mxu0
      %v5412 = vadd.f32 %v5323, %v5411
      %5413 = vmatmul.bf16.gmra.mxu0 %v4105
      %v5414 = vpop.f32.mrf.mxu0
      %v5415 = vadd.f32 %v5326, %v5414
      %v5416 = vpop.f32.mrf.mxu0
      %v5417 = vadd.f32 %v5328, %v5416
      %5418 = vmatmul.bf16.gmra.mxu0 %v4114
      %v5419 = vpop.f32.mrf.mxu0
      %v5420 = vadd.f32 %v5331, %v5419
      %v5421 = vpop.f32.mrf.mxu0
      %v5422 = vadd.f32 %v5333, %v5421
      %5423 = vmatmul.bf16.gmra.mxu0 %v4123
      %v5424 = vpop.f32.mrf.mxu0
      %v5425 = vadd.f32 %v5336, %v5424
      %v5426 = vpop.f32.mrf.mxu0
      %v5427 = vadd.f32 %v5338, %v5426
      %5428 = vmatmul.bf16.gmra.mxu0 %v4132
      %v5429 = vpop.f32.mrf.mxu0
      %v5430 = vadd.f32 %v5341, %v5429
      %v5431 = vpop.f32.mrf.mxu0
      %v5432 = vadd.f32 %v5343, %v5431
      %5433 = vmatmul.bf16.gmra.mxu0 %v4141
      %v5434 = vpop.f32.mrf.mxu0
      %v5435 = vadd.f32 %v5346, %v5434
      %v5436 = vpop.f32.mrf.mxu0
      %v5437 = vadd.f32 %v5348, %v5436
      %5438 = vmatmul.bf16.gmra.mxu0 %v4150
      %v5439 = vpop.f32.mrf.mxu0
      %v5440 = vadd.f32 %v5351, %v5439
      %v5441 = vpop.f32.mrf.mxu0
      %v5442 = vadd.f32 %v5353, %v5441
      %5443 = vmatmul.bf16.gmra.mxu0 %v4159
      %v5444 = vpop.f32.mrf.mxu0
      %v5445 = vadd.f32 %v5356, %v5444
      %v5446 = vpop.f32.mrf.mxu0
      %v5447 = vadd.f32 %v5358, %v5446
      %5448 = vdwg.mxu0
      %5449 = vmatpush.bf16.msra.mxu0 %v4664
      %5450 = vmatpush.bf16.msra.mxu0 %v4663
      %5451 = vmatpush.bf16.msra.mxu0 %v4662
      %5452 = vmatpush.bf16.msra.mxu0 %v4661
      %5453 = vmatpush.bf16.msra.mxu0 %v4660
      %5454 = vmatpush.bf16.msra.mxu0 %v4659
      %5455 = vmatpush.bf16.msra.mxu0 %v4658
      %5456 = vmatpush.bf16.msra.mxu0 %v4657
      %5457 = vmatmul.bf16.gmra.mxu0 %v4025
      %v5458 = vpop.f32.mrf.mxu0
      %v5459 = vadd.f32 %v5370, %v5458
      %v5460 = vpop.f32.mrf.mxu0
      %v5461 = vadd.f32 %v5372, %v5460
      %5462 = vmatmul.bf16.gmra.mxu0 %v4034
      %v5463 = vpop.f32.mrf.mxu0
      %v5464 = vadd.f32 %v5375, %v5463
      %v5465 = vpop.f32.mrf.mxu0
      %v5466 = vadd.f32 %v5377, %v5465
      %5467 = vmatmul.bf16.gmra.mxu0 %v4043
      %v5468 = vpop.f32.mrf.mxu0
      %v5469 = vadd.f32 %v5380, %v5468
      %v5470 = vpop.f32.mrf.mxu0
      %v5471 = vadd.f32 %v5382, %v5470
      %5472 = vmatmul.bf16.gmra.mxu0 %v4052
      %v5473 = vpop.f32.mrf.mxu0
      %v5474 = vadd.f32 %v5385, %v5473
      %v5475 = vpop.f32.mrf.mxu0
      %v5476 = vadd.f32 %v5387, %v5475
      %5477 = vmatmul.bf16.gmra.mxu0 %v4061
      %v5478 = vpop.f32.mrf.mxu0
      %v5479 = vadd.f32 %v5390, %v5478
      %v5480 = vpop.f32.mrf.mxu0
      %v5481 = vadd.f32 %v5392, %v5480
      %5482 = vmatmul.bf16.gmra.mxu0 %v4070
      %v5483 = vpop.f32.mrf.mxu0
      %v5484 = vadd.f32 %v5395, %v5483
      %v5485 = vpop.f32.mrf.mxu0
      %v5486 = vadd.f32 %v5397, %v5485
      %5487 = vmatmul.bf16.gmra.mxu0 %v4079
      %v5488 = vpop.f32.mrf.mxu0
      %v5489 = vadd.f32 %v5400, %v5488
      %v5490 = vpop.f32.mrf.mxu0
      %v5491 = vadd.f32 %v5402, %v5490
      %5492 = vmatmul.bf16.gmra.mxu0 %v4088
      %v5493 = vpop.f32.mrf.mxu0
      %v5494 = vadd.f32 %v5405, %v5493
      %v5495 = vpop.f32.mrf.mxu0
      %v5496 = vadd.f32 %v5407, %v5495
      %5497 = vmatmul.bf16.gmra.mxu0 %v4097
      %v5498 = vpop.f32.mrf.mxu0
      %v5499 = vadd.f32 %v5410, %v5498
      %v5500 = vpop.f32.mrf.mxu0
      %v5501 = vadd.f32 %v5412, %v5500
      %5502 = vmatmul.bf16.gmra.mxu0 %v4106
      %v5503 = vpop.f32.mrf.mxu0
      %v5504 = vadd.f32 %v5415, %v5503
      %v5505 = vpop.f32.mrf.mxu0
      %v5506 = vadd.f32 %v5417, %v5505
      %5507 = vmatmul.bf16.gmra.mxu0 %v4115
      %v5508 = vpop.f32.mrf.mxu0
      %v5509 = vadd.f32 %v5420, %v5508
      %v5510 = vpop.f32.mrf.mxu0
      %v5511 = vadd.f32 %v5422, %v5510
      %5512 = vmatmul.bf16.gmra.mxu0 %v4124
      %v5513 = vpop.f32.mrf.mxu0
      %v5514 = vadd.f32 %v5425, %v5513
      %v5515 = vpop.f32.mrf.mxu0
      %v5516 = vadd.f32 %v5427, %v5515
      %5517 = vmatmul.bf16.gmra.mxu0 %v4133
      %v5518 = vpop.f32.mrf.mxu0
      %v5519 = vadd.f32 %v5430, %v5518
      %v5520 = vpop.f32.mrf.mxu0
      %v5521 = vadd.f32 %v5432, %v5520
      %5522 = vmatmul.bf16.gmra.mxu0 %v4142
      %v5523 = vpop.f32.mrf.mxu0
      %v5524 = vadd.f32 %v5435, %v5523
      %v5525 = vpop.f32.mrf.mxu0
      %v5526 = vadd.f32 %v5437, %v5525
      %5527 = vmatmul.bf16.gmra.mxu0 %v4151
      %v5528 = vpop.f32.mrf.mxu0
      %v5529 = vadd.f32 %v5440, %v5528
      %v5530 = vpop.f32.mrf.mxu0
      %v5531 = vadd.f32 %v5442, %v5530
      %5532 = vmatmul.bf16.gmra.mxu0 %v4160
      %v5533 = vpop.f32.mrf.mxu0
      %v5534 = vadd.f32 %v5445, %v5533
      %v5535 = vpop.f32.mrf.mxu0
      %v5536 = vadd.f32 %v5447, %v5535
      %5537 = vdwg.mxu0
      %vm5538 = vcmp.gt.f32.partialorder %v5459, 0.0
      %vm5539 = vcmp.gt.f32.partialorder %v5461, 0.0
      %vm5540 = vcmp.gt.f32.partialorder %v5464, 0.0
      %vm5541 = vcmp.gt.f32.partialorder %v5466, 0.0
      %vm5542 = vcmp.gt.f32.partialorder %v5469, 0.0
      %vm5543 = vcmp.gt.f32.partialorder %v5471, 0.0
      %vm5544 = vcmp.gt.f32.partialorder %v5474, 0.0
      %vm5545 = vcmp.gt.f32.partialorder %v5476, 0.0
      %vm5546 = vcmp.gt.f32.partialorder %v5479, 0.0
      %vm5547 = vcmp.gt.f32.partialorder %v5481, 0.0
      %vm5548 = vcmp.gt.f32.partialorder %v5484, 0.0
      %vm5549 = vcmp.gt.f32.partialorder %v5486, 0.0
      %vm5550 = vcmp.gt.f32.partialorder %v5489, 0.0
      %vm5551 = vcmp.gt.f32.partialorder %v5491, 0.0
      %vm5552 = vcmp.gt.f32.partialorder %v5494, 0.0
      %vm5553 = vcmp.gt.f32.partialorder %v5496, 0.0
      %vm5554 = vcmp.gt.f32.partialorder %v5499, 0.0
      %vm5555 = vcmp.gt.f32.partialorder %v5501, 0.0
      %vm5556 = vcmp.gt.f32.partialorder %v5504, 0.0
      %vm5557 = vcmp.gt.f32.partialorder %v5506, 0.0
      %vm5558 = vcmp.gt.f32.partialorder %v5509, 0.0
      %vm5559 = vcmp.gt.f32.partialorder %v5511, 0.0
      %vm5560 = vcmp.gt.f32.partialorder %v5514, 0.0
      %vm5561 = vcmp.gt.f32.partialorder %v5516, 0.0
      %vm5562 = vcmp.gt.f32.partialorder %v5519, 0.0
      %vm5563 = vcmp.gt.f32.partialorder %v5521, 0.0
      %vm5564 = vcmp.gt.f32.partialorder %v5524, 0.0
      %vm5565 = vcmp.gt.f32.partialorder %v5526, 0.0
      %vm5566 = vcmp.gt.f32.partialorder %v5529, 0.0
      %vm5567 = vcmp.gt.f32.partialorder %v5531, 0.0
      %vm5568 = vcmp.gt.f32.partialorder %v5534, 0.0
      %vm5569 = vcmp.gt.f32.partialorder %v5536, 0.0
      %v5570 = vmul.f32 %v5459, 0.01
      %v5571 = vmul.f32 %v5461, 0.01
      %v5572 = vmul.f32 %v5464, 0.01
      %v5573 = vmul.f32 %v5466, 0.01
      %v5574 = vmul.f32 %v5469, 0.01
      %v5575 = vmul.f32 %v5471, 0.01
      %v5576 = vmul.f32 %v5474, 0.01
      %v5577 = vmul.f32 %v5476, 0.01
      %v5578 = vmul.f32 %v5479, 0.01
      %v5579 = vmul.f32 %v5481, 0.01
      %v5580 = vmul.f32 %v5484, 0.01
      %v5581 = vmul.f32 %v5486, 0.01
      %v5582 = vmul.f32 %v5489, 0.01
      %v5583 = vmul.f32 %v5491, 0.01
      %v5584 = vmul.f32 %v5494, 0.01
      %v5585 = vmul.f32 %v5496, 0.01
      %v5586 = vmul.f32 %v5499, 0.01
      %v5587 = vmul.f32 %v5501, 0.01
      %v5588 = vmul.f32 %v5504, 0.01
      %v5589 = vmul.f32 %v5506, 0.01
      %v5590 = vmul.f32 %v5509, 0.01
      %v5591 = vmul.f32 %v5511, 0.01
      %v5592 = vmul.f32 %v5514, 0.01
      %v5593 = vmul.f32 %v5516, 0.01
      %v5594 = vmul.f32 %v5519, 0.01
      %v5595 = vmul.f32 %v5521, 0.01
      %v5596 = vmul.f32 %v5524, 0.01
      %v5597 = vmul.f32 %v5526, 0.01
      %v5598 = vmul.f32 %v5529, 0.01
      %v5599 = vmul.f32 %v5531, 0.01
      %v5600 = vmul.f32 %v5534, 0.01
      %v5601 = vmul.f32 %v5536, 0.01
      %v5602 = vsel %vm5538, %v5459, %v5570
      %v5603 = vsel %vm5539, %v5461, %v5571
      %v5604 = vsel %vm5540, %v5464, %v5572
      %v5605 = vsel %vm5541, %v5466, %v5573
      %v5606 = vsel %vm5542, %v5469, %v5574
      %v5607 = vsel %vm5543, %v5471, %v5575
      %v5608 = vsel %vm5544, %v5474, %v5576
      %v5609 = vsel %vm5545, %v5476, %v5577
      %v5610 = vsel %vm5546, %v5479, %v5578
      %v5611 = vsel %vm5547, %v5481, %v5579
      %v5612 = vsel %vm5548, %v5484, %v5580
      %v5613 = vsel %vm5549, %v5486, %v5581
      %v5614 = vsel %vm5550, %v5489, %v5582
      %v5615 = vsel %vm5551, %v5491, %v5583
      %v5616 = vsel %vm5552, %v5494, %v5584
      %v5617 = vsel %vm5553, %v5496, %v5585
      %v5618 = vsel %vm5554, %v5499, %v5586
      %v5619 = vsel %vm5555, %v5501, %v5587
      %v5620 = vsel %vm5556, %v5504, %v5588
      %v5621 = vsel %vm5557, %v5506, %v5589
      %v5622 = vsel %vm5558, %v5509, %v5590
      %v5623 = vsel %vm5559, %v5511, %v5591
      %v5624 = vsel %vm5560, %v5514, %v5592
      %v5625 = vsel %vm5561, %v5516, %v5593
      %v5626 = vsel %vm5562, %v5519, %v5594
      %v5627 = vsel %vm5563, %v5521, %v5595
      %v5628 = vsel %vm5564, %v5524, %v5596
      %v5629 = vsel %vm5565, %v5526, %v5597
      %v5630 = vsel %vm5566, %v5529, %v5598
      %v5631 = vsel %vm5567, %v5531, %v5599
      %v5632 = vsel %vm5568, %v5534, %v5600
      %v5633 = vsel %vm5569, %v5536, %v5601
      %v5634 = vld [vmem:[%s3] sm:$0x1]
      %v5636 = vperm.slane %v5634, 0
      %v5638 = vmul.f32 %v5602, %v5636
      %v5639 = vmul.f32 %v5603, %v5636
      %v5640 = vmul.f32 %v5604, %v5636
      %v5641 = vmul.f32 %v5605, %v5636
      %v5642 = vmul.f32 %v5606, %v5636
      %v5643 = vmul.f32 %v5607, %v5636
      %v5644 = vmul.f32 %v5608, %v5636
      %v5645 = vmul.f32 %v5609, %v5636
      %v5646 = vmul.f32 %v5610, %v5636
      %v5647 = vmul.f32 %v5611, %v5636
      %v5648 = vmul.f32 %v5612, %v5636
      %v5649 = vmul.f32 %v5613, %v5636
      %v5650 = vmul.f32 %v5614, %v5636
      %v5651 = vmul.f32 %v5615, %v5636
      %v5652 = vmul.f32 %v5616, %v5636
      %v5653 = vmul.f32 %v5617, %v5636
      %v5654 = vmul.f32 %v5618, %v5636
      %v5655 = vmul.f32 %v5619, %v5636
      %v5656 = vmul.f32 %v5620, %v5636
      %v5657 = vmul.f32 %v5621, %v5636
      %v5658 = vmul.f32 %v5622, %v5636
      %v5659 = vmul.f32 %v5623, %v5636
      %v5660 = vmul.f32 %v5624, %v5636
      %v5661 = vmul.f32 %v5625, %v5636
      %v5662 = vmul.f32 %v5626, %v5636
      %v5663 = vmul.f32 %v5627, %v5636
      %v5664 = vmul.f32 %v5628, %v5636
      %v5665 = vmul.f32 %v5629, %v5636
      %v5666 = vmul.f32 %v5630, %v5636
      %v5667 = vmul.f32 %v5631, %v5636
      %v5668 = vmul.f32 %v5632, %v5636
      %v5669 = vmul.f32 %v5633, %v5636
      %v5670 = vld [vmem:[%s4] sm:$0x1]
      %v5672 = vperm.slane %v5670, 0
      %v5674 = vadd.f32 %v5638, %v5672
      %v5675 = vadd.f32 %v5639, %v5672
      %v5676 = vadd.f32 %v5640, %v5672
      %v5677 = vadd.f32 %v5641, %v5672
      %v5678 = vadd.f32 %v5642, %v5672
      %v5679 = vadd.f32 %v5643, %v5672
      %v5680 = vadd.f32 %v5644, %v5672
      %v5681 = vadd.f32 %v5645, %v5672
      %v5682 = vadd.f32 %v5646, %v5672
      %v5683 = vadd.f32 %v5647, %v5672
      %v5684 = vadd.f32 %v5648, %v5672
      %v5685 = vadd.f32 %v5649, %v5672
      %v5686 = vadd.f32 %v5650, %v5672
      %v5687 = vadd.f32 %v5651, %v5672
      %v5688 = vadd.f32 %v5652, %v5672
      %v5689 = vadd.f32 %v5653, %v5672
      %v5690 = vadd.f32 %v5654, %v5672
      %v5691 = vadd.f32 %v5655, %v5672
      %v5692 = vadd.f32 %v5656, %v5672
      %v5693 = vadd.f32 %v5657, %v5672
      %v5694 = vadd.f32 %v5658, %v5672
      %v5695 = vadd.f32 %v5659, %v5672
      %v5696 = vadd.f32 %v5660, %v5672
      %v5697 = vadd.f32 %v5661, %v5672
      %v5698 = vadd.f32 %v5662, %v5672
      %v5699 = vadd.f32 %v5663, %v5672
      %v5700 = vadd.f32 %v5664, %v5672
      %v5701 = vadd.f32 %v5665, %v5672
      %v5702 = vadd.f32 %v5666, %v5672
      %v5703 = vadd.f32 %v5667, %v5672
      %v5704 = vadd.f32 %v5668, %v5672
      %v5705 = vadd.f32 %v5669, %v5672
      %v5706 = vpack.c.bf16 %v5674, %v5674
      %v5707 = vpack.c.bf16 %v5675, %v5675
      %v5708 = vpack.c.bf16 %v5676, %v5676
      %v5709 = vpack.c.bf16 %v5677, %v5677
      %v5710 = vpack.c.bf16 %v5678, %v5678
      %v5711 = vpack.c.bf16 %v5679, %v5679
      %v5712 = vpack.c.bf16 %v5680, %v5680
      %v5713 = vpack.c.bf16 %v5681, %v5681
      %v5714 = vpack.c.bf16 %v5682, %v5682
      %v5715 = vpack.c.bf16 %v5683, %v5683
      %v5716 = vpack.c.bf16 %v5684, %v5684
      %v5717 = vpack.c.bf16 %v5685, %v5685
      %v5718 = vpack.c.bf16 %v5686, %v5686
      %v5719 = vpack.c.bf16 %v5687, %v5687
      %v5720 = vpack.c.bf16 %v5688, %v5688
      %v5721 = vpack.c.bf16 %v5689, %v5689
      %v5722 = vpack.c.bf16 %v5690, %v5690
      %v5723 = vpack.c.bf16 %v5691, %v5691
      %v5724 = vpack.c.bf16 %v5692, %v5692
      %v5725 = vpack.c.bf16 %v5693, %v5693
      %v5726 = vpack.c.bf16 %v5694, %v5694
      %v5727 = vpack.c.bf16 %v5695, %v5695
      %v5728 = vpack.c.bf16 %v5696, %v5696
      %v5729 = vpack.c.bf16 %v5697, %v5697
      %v5730 = vpack.c.bf16 %v5698, %v5698
      %v5731 = vpack.c.bf16 %v5699, %v5699
      %v5732 = vpack.c.bf16 %v5700, %v5700
      %v5733 = vpack.c.bf16 %v5701, %v5701
      %v5734 = vpack.c.bf16 %v5702, %v5702
      %v5735 = vpack.c.bf16 %v5703, %v5703
      %v5736 = vpack.c.bf16 %v5704, %v5704
      %v5737 = vpack.c.bf16 %v5705, %v5705
      %v5739 = vshrl.u32 %v5706, 16
      %v5741 = vrot.slane %v5739, 7
      %v5742 = vshll.u32 %v5706, 16
      %v5744 = vor.u32 %v5741, %v5742
      %v5745 = vrot.slane %v5741, 4
      %v5747 = vshrl.u32 %v5707, 16
      %v5749 = vrot.slane %v5747, 7
      %v5750 = vshll.u32 %v5707, 16
      %v5752 = vor.u32 %v5749, %v5750
      %v5753 = vsel %vm318, %v5745, %v5752
      %v5754 = vrot.slane %v5749, 4
      %v5756 = vshrl.u32 %v5708, 16
      %v5758 = vrot.slane %v5756, 7
      %v5759 = vshll.u32 %v5708, 16
      %v5761 = vor.u32 %v5758, %v5759
      %v5762 = vrot.slane %v5758, 4
      %v5764 = vshrl.u32 %v5709, 16
      %v5766 = vrot.slane %v5764, 7
      %v5767 = vshll.u32 %v5709, 16
      %v5769 = vor.u32 %v5766, %v5767
      %v5770 = vsel %vm318, %v5762, %v5769
      %v5771 = vrot.slane %v5766, 4
      %v5773 = vshrl.u32 %v5710, 16
      %v5775 = vrot.slane %v5773, 7
      %v5776 = vshll.u32 %v5710, 16
      %v5778 = vor.u32 %v5775, %v5776
      %v5779 = vrot.slane %v5775, 4
      %v5781 = vshrl.u32 %v5711, 16
      %v5783 = vrot.slane %v5781, 7
      %v5784 = vshll.u32 %v5711, 16
      %v5786 = vor.u32 %v5783, %v5784
      %v5787 = vsel %vm318, %v5779, %v5786
      %v5788 = vrot.slane %v5783, 4
      %v5790 = vshrl.u32 %v5712, 16
      %v5792 = vrot.slane %v5790, 7
      %v5793 = vshll.u32 %v5712, 16
      %v5795 = vor.u32 %v5792, %v5793
      %v5796 = vrot.slane %v5792, 4
      %v5798 = vshrl.u32 %v5713, 16
      %v5800 = vrot.slane %v5798, 7
      %v5801 = vshll.u32 %v5713, 16
      %v5803 = vor.u32 %v5800, %v5801
      %v5804 = vsel %vm318, %v5796, %v5803
      %v5805 = vrot.slane %v5800, 4
      %v5807 = vshrl.u32 %v5714, 16
      %v5809 = vrot.slane %v5807, 7
      %v5810 = vshll.u32 %v5714, 16
      %v5812 = vor.u32 %v5809, %v5810
      %v5813 = vrot.slane %v5809, 4
      %v5815 = vshrl.u32 %v5715, 16
      %v5817 = vrot.slane %v5815, 7
      %v5818 = vshll.u32 %v5715, 16
      %v5820 = vor.u32 %v5817, %v5818
      %v5821 = vsel %vm318, %v5813, %v5820
      %v5822 = vrot.slane %v5817, 4
      %v5824 = vshrl.u32 %v5716, 16
      %v5826 = vrot.slane %v5824, 7
      %v5827 = vshll.u32 %v5716, 16
      %v5829 = vor.u32 %v5826, %v5827
      %v5830 = vrot.slane %v5826, 4
      %v5832 = vshrl.u32 %v5717, 16
      %v5834 = vrot.slane %v5832, 7
      %v5835 = vshll.u32 %v5717, 16
      %v5837 = vor.u32 %v5834, %v5835
      %v5838 = vsel %vm318, %v5830, %v5837
      %v5839 = vrot.slane %v5834, 4
      %v5841 = vshrl.u32 %v5718, 16
      %v5843 = vrot.slane %v5841, 7
      %v5844 = vshll.u32 %v5718, 16
      %v5846 = vor.u32 %v5843, %v5844
      %v5847 = vrot.slane %v5843, 4
      %v5849 = vshrl.u32 %v5719, 16
      %v5851 = vrot.slane %v5849, 7
      %v5852 = vshll.u32 %v5719, 16
      %v5854 = vor.u32 %v5851, %v5852
      %v5855 = vsel %vm318, %v5847, %v5854
      %v5856 = vrot.slane %v5851, 4
      %v5858 = vshrl.u32 %v5720, 16
      %v5860 = vrot.slane %v5858, 7
      %v5861 = vshll.u32 %v5720, 16
      %v5863 = vor.u32 %v5860, %v5861
      %v5864 = vrot.slane %v5860, 4
      %v5866 = vshrl.u32 %v5721, 16
      %v5868 = vrot.slane %v5866, 7
      %v5869 = vshll.u32 %v5721, 16
      %v5871 = vor.u32 %v5868, %v5869
      %v5872 = vsel %vm318, %v5864, %v5871
      %v5873 = vrot.slane %v5868, 4
      %v5875 = vshrl.u32 %v5722, 16
      %v5877 = vrot.slane %v5875, 7
      %v5878 = vshll.u32 %v5722, 16
      %v5880 = vor.u32 %v5877, %v5878
      %v5881 = vrot.slane %v5877, 4
      %v5883 = vshrl.u32 %v5723, 16
      %v5885 = vrot.slane %v5883, 7
      %v5886 = vshll.u32 %v5723, 16
      %v5888 = vor.u32 %v5885, %v5886
      %v5889 = vsel %vm318, %v5881, %v5888
      %v5890 = vrot.slane %v5885, 4
      %v5892 = vshrl.u32 %v5724, 16
      %v5894 = vrot.slane %v5892, 7
      %v5895 = vshll.u32 %v5724, 16
      %v5897 = vor.u32 %v5894, %v5895
      %v5898 = vrot.slane %v5894, 4
      %v5900 = vshrl.u32 %v5725, 16
      %v5902 = vrot.slane %v5900, 7
      %v5903 = vshll.u32 %v5725, 16
      %v5905 = vor.u32 %v5902, %v5903
      %v5906 = vsel %vm318, %v5898, %v5905
      %v5907 = vrot.slane %v5902, 4
      %v5909 = vshrl.u32 %v5726, 16
      %v5911 = vrot.slane %v5909, 7
      %v5912 = vshll.u32 %v5726, 16
      %v5914 = vor.u32 %v5911, %v5912
      %v5915 = vrot.slane %v5911, 4
      %v5917 = vshrl.u32 %v5727, 16
      %v5919 = vrot.slane %v5917, 7
      %v5920 = vshll.u32 %v5727, 16
      %v5922 = vor.u32 %v5919, %v5920
      %v5923 = vsel %vm318, %v5915, %v5922
      %v5924 = vrot.slane %v5919, 4
      %v5926 = vshrl.u32 %v5728, 16
      %v5928 = vrot.slane %v5926, 7
      %v5929 = vshll.u32 %v5728, 16
      %v5931 = vor.u32 %v5928, %v5929
      %v5932 = vrot.slane %v5928, 4
      %v5934 = vshrl.u32 %v5729, 16
      %v5936 = vrot.slane %v5934, 7
      %v5937 = vshll.u32 %v5729, 16
      %v5939 = vor.u32 %v5936, %v5937
      %v5940 = vsel %vm318, %v5932, %v5939
      %v5941 = vrot.slane %v5936, 4
      %v5943 = vshrl.u32 %v5730, 16
      %v5945 = vrot.slane %v5943, 7
      %v5946 = vshll.u32 %v5730, 16
      %v5948 = vor.u32 %v5945, %v5946
      %v5949 = vrot.slane %v5945, 4
      %v5951 = vshrl.u32 %v5731, 16
      %v5953 = vrot.slane %v5951, 7
      %v5954 = vshll.u32 %v5731, 16
      %v5956 = vor.u32 %v5953, %v5954
      %v5957 = vsel %vm318, %v5949, %v5956
      %v5958 = vrot.slane %v5953, 4
      %v5960 = vshrl.u32 %v5732, 16
      %v5962 = vrot.slane %v5960, 7
      %v5963 = vshll.u32 %v5732, 16
      %v5965 = vor.u32 %v5962, %v5963
      %v5966 = vrot.slane %v5962, 4
      %v5968 = vshrl.u32 %v5733, 16
      %v5970 = vrot.slane %v5968, 7
      %v5971 = vshll.u32 %v5733, 16
      %v5973 = vor.u32 %v5970, %v5971
      %v5974 = vsel %vm318, %v5966, %v5973
      %v5975 = vrot.slane %v5970, 4
      %v5977 = vshrl.u32 %v5734, 16
      %v5979 = vrot.slane %v5977, 7
      %v5980 = vshll.u32 %v5734, 16
      %v5982 = vor.u32 %v5979, %v5980
      %v5983 = vrot.slane %v5979, 4
      %v5985 = vshrl.u32 %v5735, 16
      %v5987 = vrot.slane %v5985, 7
      %v5988 = vshll.u32 %v5735, 16
      %v5990 = vor.u32 %v5987, %v5988
      %v5991 = vsel %vm318, %v5983, %v5990
      %v5992 = vrot.slane %v5987, 4
      %v5994 = vshrl.u32 %v5736, 16
      %v5996 = vrot.slane %v5994, 7
      %v5997 = vshll.u32 %v5736, 16
      %v5999 = vor.u32 %v5996, %v5997
      %v6000 = vrot.slane %v5996, 4
      %v6002 = vshrl.u32 %v5737, 16
      %v6004 = vrot.slane %v6002, 7
      %v6005 = vshll.u32 %v5737, 16
      %v6007 = vor.u32 %v6004, %v6005
      %v6008 = vsel %vm318, %v6000, %v6007
      %v6009 = vrot.slane %v6004, 4
      %vm6058 = vcmask 1043456
      %vm6059 = vmand %vm6058, %vm641
      %v6060 = vld [vmem:[%s639] sm:$0xf]
      %v6061 = vsel %vm6059, %v5744, %v6060
      %6062 = vst [vmem:[%s639] sm:$0xf] %v6061
      %6063 = vst [vmem:[%s639 + $0x4] sm:$0xf] %v5753
      %vm6064 = vcmask 1040384
      %vm6065 = vmand %vm6064, %vm316
      %v6066 = vld [vmem:[%s639 + $0x8] sm:$0x1]
      %v6067 = vsel %vm6065, %v5754, %v6066
      %6068 = vst [vmem:[%s639 + $0x8] sm:$0x1] %v6067
      %v6069 = vld [vmem:[%s639 + $0xc] sm:$0xf]
      %v6070 = vsel %vm6059, %v5761, %v6069
      %6071 = vst [vmem:[%s639 + $0xc] sm:$0xf] %v6070
      %6072 = vst [vmem:[%s639 + $0x10] sm:$0xf] %v5770
      %v6073 = vld [vmem:[%s639 + $0x14] sm:$0x1]
      %v6074 = vsel %vm6065, %v5771, %v6073
      %6075 = vst [vmem:[%s639 + $0x14] sm:$0x1] %v6074
      %v6076 = vld [vmem:[%s639 + $0x18] sm:$0xf]
      %v6077 = vsel %vm6059, %v5778, %v6076
      %6078 = vst [vmem:[%s639 + $0x18] sm:$0xf] %v6077
      %6079 = vst [vmem:[%s639 + $0x1c] sm:$0xf] %v5787
      %v6080 = vld [vmem:[%s639 + $0x20] sm:$0x1]
      %v6081 = vsel %vm6065, %v5788, %v6080
      %6082 = vst [vmem:[%s639 + $0x20] sm:$0x1] %v6081
      %v6083 = vld [vmem:[%s639 + $0x24] sm:$0xf]
      %v6084 = vsel %vm6059, %v5795, %v6083
      %6085 = vst [vmem:[%s639 + $0x24] sm:$0xf] %v6084
      %6086 = vst [vmem:[%s639 + $0x28] sm:$0xf] %v5804
      %v6087 = vld [vmem:[%s639 + $0x2c] sm:$0x1]
      %v6088 = vsel %vm6065, %v5805, %v6087
      %6089 = vst [vmem:[%s639 + $0x2c] sm:$0x1] %v6088
      %v6090 = vld [vmem:[%s639 + $0x30] sm:$0xf]
      %v6091 = vsel %vm6059, %v5812, %v6090
      %6092 = vst [vmem:[%s639 + $0x30] sm:$0xf] %v6091
      %6093 = vst [vmem:[%s639 + $0x34] sm:$0xf] %v5821
      %v6094 = vld [vmem:[%s639 + $0x38] sm:$0x1]
      %v6095 = vsel %vm6065, %v5822, %v6094
      %6096 = vst [vmem:[%s639 + $0x38] sm:$0x1] %v6095
      %v6097 = vld [vmem:[%s639 + $0x3c] sm:$0xf]
      %v6098 = vsel %vm6059, %v5829, %v6097
      %6099 = vst [vmem:[%s639 + $0x3c] sm:$0xf] %v6098
      %6100 = vst [vmem:[%s639 + $0x40] sm:$0xf] %v5838
      %v6101 = vld [vmem:[%s639 + $0x44] sm:$0x1]
      %v6102 = vsel %vm6065, %v5839, %v6101
      %6103 = vst [vmem:[%s639 + $0x44] sm:$0x1] %v6102
      %v6104 = vld [vmem:[%s639 + $0x48] sm:$0xf]
      %v6105 = vsel %vm6059, %v5846, %v6104
      %6106 = vst [vmem:[%s639 + $0x48] sm:$0xf] %v6105
      %6107 = vst [vmem:[%s639 + $0x4c] sm:$0xf] %v5855
      %v6108 = vld [vmem:[%s639 + $0x50] sm:$0x1]
      %v6109 = vsel %vm6065, %v5856, %v6108
      %6110 = vst [vmem:[%s639 + $0x50] sm:$0x1] %v6109
      %v6111 = vld [vmem:[%s639 + $0x54] sm:$0xf]
      %v6112 = vsel %vm6059, %v5863, %v6111
      %6113 = vst [vmem:[%s639 + $0x54] sm:$0xf] %v6112
      %6114 = vst [vmem:[%s639 + $0x58] sm:$0xf] %v5872
      %v6115 = vld [vmem:[%s639 + $0x5c] sm:$0x1]
      %v6116 = vsel %vm6065, %v5873, %v6115
      %6117 = vst [vmem:[%s639 + $0x5c] sm:$0x1] %v6116
      %v6118 = vld [vmem:[%s639 + $0x60] sm:$0xf]
      %v6119 = vsel %vm6059, %v5880, %v6118
      %6120 = vst [vmem:[%s639 + $0x60] sm:$0xf] %v6119
      %6121 = vst [vmem:[%s639 + $0x64] sm:$0xf] %v5889
      %v6122 = vld [vmem:[%s639 + $0x68] sm:$0x1]
      %v6123 = vsel %vm6065, %v5890, %v6122
      %6124 = vst [vmem:[%s639 + $0x68] sm:$0x1] %v6123
      %v6125 = vld [vmem:[%s639 + $0x6c] sm:$0xf]
      %v6126 = vsel %vm6059, %v5897, %v6125
      %6127 = vst [vmem:[%s639 + $0x6c] sm:$0xf] %v6126
      %6128 = vst [vmem:[%s639 + $0x70] sm:$0xf] %v5906
      %v6129 = vld [vmem:[%s639 + $0x74] sm:$0x1]
      %v6130 = vsel %vm6065, %v5907, %v6129
      %6131 = vst [vmem:[%s639 + $0x74] sm:$0x1] %v6130
      %v6132 = vld [vmem:[%s639 + $0x78] sm:$0xf]
      %v6133 = vsel %vm6059, %v5914, %v6132
      %6134 = vst [vmem:[%s639 + $0x78] sm:$0xf] %v6133
      %6135 = vst [vmem:[%s639 + $0x7c] sm:$0xf] %v5923
      %v6136 = vld [vmem:[%s639 + $0x80] sm:$0x1]
      %v6137 = vsel %vm6065, %v5924, %v6136
      %6138 = vst [vmem:[%s639 + $0x80] sm:$0x1] %v6137
      %v6139 = vld [vmem:[%s639 + $0x84] sm:$0xf]
      %v6140 = vsel %vm6059, %v5931, %v6139
      %6141 = vst [vmem:[%s639 + $0x84] sm:$0xf] %v6140
      %6142 = vst [vmem:[%s639 + $0x88] sm:$0xf] %v5940
      %v6143 = vld [vmem:[%s639 + $0x8c] sm:$0x1]
      %v6144 = vsel %vm6065, %v5941, %v6143
      %6145 = vst [vmem:[%s639 + $0x8c] sm:$0x1] %v6144
      %v6146 = vld [vmem:[%s639 + $0x90] sm:$0xf]
      %v6147 = vsel %vm6059, %v5948, %v6146
      %6148 = vst [vmem:[%s639 + $0x90] sm:$0xf] %v6147
      %6149 = vst [vmem:[%s639 + $0x94] sm:$0xf] %v5957
      %v6150 = vld [vmem:[%s639 + $0x98] sm:$0x1]
      %v6151 = vsel %vm6065, %v5958, %v6150
      %6152 = vst [vmem:[%s639 + $0x98] sm:$0x1] %v6151
      %v6153 = vld [vmem:[%s639 + $0x9c] sm:$0xf]
      %v6154 = vsel %vm6059, %v5965, %v6153
      %6155 = vst [vmem:[%s639 + $0x9c] sm:$0xf] %v6154
      %6156 = vst [vmem:[%s639 + $0xa0] sm:$0xf] %v5974
      %v6157 = vld [vmem:[%s639 + $0xa4] sm:$0x1]
      %v6158 = vsel %vm6065, %v5975, %v6157
      %6159 = vst [vmem:[%s639 + $0xa4] sm:$0x1] %v6158
      %v6160 = vld [vmem:[%s639 + $0xa8] sm:$0xf]
      %v6161 = vsel %vm6059, %v5982, %v6160
      %6162 = vst [vmem:[%s639 + $0xa8] sm:$0xf] %v6161
      %6163 = vst [vmem:[%s639 + $0xac] sm:$0xf] %v5991
      %v6164 = vld [vmem:[%s639 + $0xb0] sm:$0x1]
      %v6165 = vsel %vm6065, %v5992, %v6164
      %6166 = vst [vmem:[%s639 + $0xb0] sm:$0x1] %v6165
      %v6167 = vld [vmem:[%s639 + $0xb4] sm:$0xf]
      %v6168 = vsel %vm6059, %v5999, %v6167
      %6169 = vst [vmem:[%s639 + $0xb4] sm:$0xf] %v6168
      %6170 = vst [vmem:[%s639 + $0xb8] sm:$0xf] %v6008
      %v6171 = vld [vmem:[%s639 + $0xbc] sm:$0x1]
      %v6172 = vsel %vm6065, %v6009, %v6171
      %6173 = vst [vmem:[%s639 + $0xbc] sm:$0x1] %v6172
      %v6174 = vld [vmem:[#allocation2] sm:$0xf]
      %v6175 = vld [vmem:[#allocation2 + $0x4] sm:$0xf]
      %v6176 = vld [vmem:[#allocation2 + $0xc] sm:$0xf]
      %v6177 = vld [vmem:[#allocation2 + $0x10] sm:$0xf]
      %v6178 = vld [vmem:[#allocation2 + $0x18] sm:$0xf]
      %v6179 = vld [vmem:[#allocation2 + $0x1c] sm:$0xf]
      %v6180 = vld [vmem:[#allocation2 + $0x24] sm:$0xf]
      %v6181 = vld [vmem:[#allocation2 + $0x28] sm:$0xf]
      %v6182 = vld [vmem:[#allocation2 + $0x30] sm:$0xf]
      %v6183 = vld [vmem:[#allocation2 + $0x34] sm:$0xf]
      %v6184 = vld [vmem:[#allocation2 + $0x3c] sm:$0xf]
      %v6185 = vld [vmem:[#allocation2 + $0x40] sm:$0xf]
      %v6186 = vld [vmem:[#allocation2 + $0x48] sm:$0xf]
      %v6187 = vld [vmem:[#allocation2 + $0x4c] sm:$0xf]
      %v6188 = vld [vmem:[#allocation2 + $0x54] sm:$0xf]
      %v6189 = vld [vmem:[#allocation2 + $0x58] sm:$0xf]
      %v6190 = vld [vmem:[#allocation2 + $0x60] sm:$0xf]
      %v6191 = vld [vmem:[#allocation2 + $0x64] sm:$0xf]
      %v6192 = vld [vmem:[#allocation2 + $0x6c] sm:$0xf]
      %v6193 = vld [vmem:[#allocation2 + $0x70] sm:$0xf]
      %v6194 = vld [vmem:[#allocation2 + $0x78] sm:$0xf]
      %v6195 = vld [vmem:[#allocation2 + $0x7c] sm:$0xf]
      %v6196 = vld [vmem:[#allocation2 + $0x84] sm:$0xf]
      %v6197 = vld [vmem:[#allocation2 + $0x88] sm:$0xf]
      %v6198 = vld [vmem:[#allocation2 + $0x90] sm:$0xf]
      %v6199 = vld [vmem:[#allocation2 + $0x94] sm:$0xf]
      %v6200 = vld [vmem:[#allocation2 + $0x9c] sm:$0xf]
      %v6201 = vld [vmem:[#allocation2 + $0xa0] sm:$0xf]
      %v6202 = vld [vmem:[#allocation2 + $0xa8] sm:$0xf]
      %v6203 = vld [vmem:[#allocation2 + $0xac] sm:$0xf]
      %v6204 = vld [vmem:[#allocation2 + $0xb4] sm:$0xf]
      %v6205 = vld [vmem:[#allocation2 + $0xb8] sm:$0xf]
      %6206 = vst [vmem:[#allocation3] sm:$0xf] %v6174
      %6207 = vst [vmem:[#allocation3 + $0x24] sm:$0xf] %v6175
      %6208 = vst [vmem:[#allocation3 + $0x48] sm:$0xf] %v6176
      %6209 = vst [vmem:[#allocation3 + $0x6c] sm:$0xf] %v6177
      %6210 = vst [vmem:[#allocation3 + $0x90] sm:$0xf] %v6178
      %6211 = vst [vmem:[#allocation3 + $0xb4] sm:$0xf] %v6179
      %6212 = vst [vmem:[#allocation3 + $0xd8] sm:$0xf] %v6180
      %6213 = vst [vmem:[#allocation3 + $0xfc] sm:$0xf] %v6181
      %6214 = vst [vmem:[#allocation3 + $0x120] sm:$0xf] %v6182
      %6215 = vst [vmem:[#allocation3 + $0x144] sm:$0xf] %v6183
      %6216 = vst [vmem:[#allocation3 + $0x168] sm:$0xf] %v6184
      %6217 = vst [vmem:[#allocation3 + $0x18c] sm:$0xf] %v6185
      %6218 = vst [vmem:[#allocation3 + $0x1b0] sm:$0xf] %v6186
      %6219 = vst [vmem:[#allocation3 + $0x1d4] sm:$0xf] %v6187
      %6220 = vst [vmem:[#allocation3 + $0x1f8] sm:$0xf] %v6188
      %6221 = vst [vmem:[#allocation3 + $0x21c] sm:$0xf] %v6189
      %6222 = vst [vmem:[#allocation3 + $0x240] sm:$0xf] %v6190
      %6223 = vst [vmem:[#allocation3 + $0x264] sm:$0xf] %v6191
      %6224 = vst [vmem:[#allocation3 + $0x288] sm:$0xf] %v6192
      %6225 = vst [vmem:[#allocation3 + $0x2ac] sm:$0xf] %v6193
      %6226 = vst [vmem:[#allocation3 + $0x2d0] sm:$0xf] %v6194
      %6227 = vst [vmem:[#allocation3 + $0x2f4] sm:$0xf] %v6195
      %6228 = vst [vmem:[#allocation3 + $0x318] sm:$0xf] %v6196
      %6229 = vst [vmem:[#allocation3 + $0x33c] sm:$0xf] %v6197
      %6230 = vst [vmem:[#allocation3 + $0x360] sm:$0xf] %v6198
      %6231 = vst [vmem:[#allocation3 + $0x384] sm:$0xf] %v6199
      %6232 = vst [vmem:[#allocation3 + $0x3a8] sm:$0xf] %v6200
      %6233 = vst [vmem:[#allocation3 + $0x3cc] sm:$0xf] %v6201
      %6234 = vst [vmem:[#allocation3 + $0x3f0] sm:$0xf] %v6202
      %6235 = vst [vmem:[#allocation3 + $0x414] sm:$0xf] %v6203
      %6236 = vst [vmem:[#allocation3 + $0x438] sm:$0xf] %v6204
      %6237 = vst [vmem:[#allocation3 + $0x45c] sm:$0xf] %v6205
      %v6238 = vld [vmem:[#allocation2] sm:$0xf]
      %v6239 = vld [vmem:[#allocation2 + $0x4] sm:$0xf]
      %v6240 = vld [vmem:[#allocation2 + $0x8] sm:$0x1]
      %v6241 = vld [vmem:[#allocation2 + $0xc] sm:$0xf]
      %v6242 = vld [vmem:[#allocation2 + $0x10] sm:$0xf]
      %v6243 = vld [vmem:[#allocation2 + $0x14] sm:$0x1]
      %v6244 = vld [vmem:[#allocation2 + $0x18] sm:$0xf]
      %v6245 = vld [vmem:[#allocation2 + $0x1c] sm:$0xf]
      %v6246 = vld [vmem:[#allocation2 + $0x20] sm:$0x1]
      %v6247 = vld [vmem:[#allocation2 + $0x24] sm:$0xf]
      %v6248 = vld [vmem:[#allocation2 + $0x28] sm:$0xf]
      %v6249 = vld [vmem:[#allocation2 + $0x2c] sm:$0x1]
      %v6250 = vld [vmem:[#allocation2 + $0x30] sm:$0xf]
      %v6251 = vld [vmem:[#allocation2 + $0x34] sm:$0xf]
      %v6252 = vld [vmem:[#allocation2 + $0x38] sm:$0x1]
      %v6253 = vld [vmem:[#allocation2 + $0x3c] sm:$0xf]
      %v6254 = vld [vmem:[#allocation2 + $0x40] sm:$0xf]
      %v6255 = vld [vmem:[#allocation2 + $0x44] sm:$0x1]
      %v6256 = vld [vmem:[#allocation2 + $0x48] sm:$0xf]
      %v6257 = vld [vmem:[#allocation2 + $0x4c] sm:$0xf]
      %v6258 = vld [vmem:[#allocation2 + $0x50] sm:$0x1]
      %v6259 = vld [vmem:[#allocation2 + $0x54] sm:$0xf]
      %v6260 = vld [vmem:[#allocation2 + $0x58] sm:$0xf]
      %v6261 = vld [vmem:[#allocation2 + $0x5c] sm:$0x1]
      %v6262 = vld [vmem:[#allocation2 + $0x60] sm:$0xf]
      %v6263 = vld [vmem:[#allocation2 + $0x64] sm:$0xf]
      %v6264 = vld [vmem:[#allocation2 + $0x68] sm:$0x1]
      %v6265 = vld [vmem:[#allocation2 + $0x6c] sm:$0xf]
      %v6266 = vld [vmem:[#allocation2 + $0x70] sm:$0xf]
      %v6267 = vld [vmem:[#allocation2 + $0x74] sm:$0x1]
      %v6268 = vld [vmem:[#allocation2 + $0x78] sm:$0xf]
      %v6269 = vld [vmem:[#allocation2 + $0x7c] sm:$0xf]
      %v6270 = vld [vmem:[#allocation2 + $0x80] sm:$0x1]
      %v6271 = vld [vmem:[#allocation2 + $0x84] sm:$0xf]
      %v6272 = vld [vmem:[#allocation2 + $0x88] sm:$0xf]
      %v6273 = vld [vmem:[#allocation2 + $0x8c] sm:$0x1]
      %v6274 = vld [vmem:[#allocation2 + $0x90] sm:$0xf]
      %v6275 = vld [vmem:[#allocation2 + $0x94] sm:$0xf]
      %v6276 = vld [vmem:[#allocation2 + $0x98] sm:$0x1]
      %v6277 = vld [vmem:[#allocation2 + $0x9c] sm:$0xf]
      %v6278 = vld [vmem:[#allocation2 + $0xa0] sm:$0xf]
      %v6279 = vld [vmem:[#allocation2 + $0xa4] sm:$0x1]
      %v6280 = vld [vmem:[#allocation2 + $0xa8] sm:$0xf]
      %v6281 = vld [vmem:[#allocation2 + $0xac] sm:$0xf]
      %v6282 = vld [vmem:[#allocation2 + $0xb0] sm:$0x1]
      %v6283 = vld [vmem:[#allocation2 + $0xb4] sm:$0xf]
      %v6284 = vld [vmem:[#allocation2 + $0xb8] sm:$0xf]
      %v6285 = vld [vmem:[#allocation2 + $0xbc] sm:$0x1]
      %v6287 = vshrl.u32 %v6238, 16
      %v6289 = vrot.slane %v6287, 4
      %v6290 = vshll.u32 %v6238, 16
      %v6292 = vrot.slane %v6290, 5
      %v6293 = vor.u32 %v6289, %v6292
      %v6294 = vrot.slane %v6293, 4
      %v6296 = vshll.u32 %v6239, 16
      %v6298 = vrot.slane %v6296, 5
      %v6299 = vsel %vm872, %v6294, %v6298
      %v6300 = vshrl.u32 %v6239, 16
      %v6302 = vrot.slane %v6300, 4
      %v6303 = vor.u32 %v6302, %v6298
      %v6304 = vrot.slane %v6303, 4
      %v6306 = vshll.u32 %v6240, 16
      %v6308 = vrot.slane %v6306, 5
      %v6309 = vsel %vm872, %v6304, %v6308
      %v6311 = vshrl.u32 %v6241, 16
      %v6313 = vrot.slane %v6311, 4
      %v6314 = vshll.u32 %v6241, 16
      %v6316 = vrot.slane %v6314, 5
      %v6317 = vor.u32 %v6313, %v6316
      %v6318 = vrot.slane %v6317, 4
      %v6320 = vshll.u32 %v6242, 16
      %v6322 = vrot.slane %v6320, 5
      %v6323 = vsel %vm872, %v6318, %v6322
      %v6324 = vshrl.u32 %v6242, 16
      %v6326 = vrot.slane %v6324, 4
      %v6327 = vor.u32 %v6326, %v6322
      %v6328 = vrot.slane %v6327, 4
      %v6330 = vshll.u32 %v6243, 16
      %v6332 = vrot.slane %v6330, 5
      %v6333 = vsel %vm872, %v6328, %v6332
      %v6335 = vshrl.u32 %v6244, 16
      %v6337 = vrot.slane %v6335, 4
      %v6338 = vshll.u32 %v6244, 16
      %v6340 = vrot.slane %v6338, 5
      %v6341 = vor.u32 %v6337, %v6340
      %v6342 = vrot.slane %v6341, 4
      %v6344 = vshll.u32 %v6245, 16
      %v6346 = vrot.slane %v6344, 5
      %v6347 = vsel %vm872, %v6342, %v6346
      %v6348 = vshrl.u32 %v6245, 16
      %v6350 = vrot.slane %v6348, 4
      %v6351 = vor.u32 %v6350, %v6346
      %v6352 = vrot.slane %v6351, 4
      %v6354 = vshll.u32 %v6246, 16
      %v6356 = vrot.slane %v6354, 5
      %v6357 = vsel %vm872, %v6352, %v6356
      %v6359 = vshrl.u32 %v6247, 16
      %v6361 = vrot.slane %v6359, 4
      %v6362 = vshll.u32 %v6247, 16
      %v6364 = vrot.slane %v6362, 5
      %v6365 = vor.u32 %v6361, %v6364
      %v6366 = vrot.slane %v6365, 4
      %v6368 = vshll.u32 %v6248, 16
      %v6370 = vrot.slane %v6368, 5
      %v6371 = vsel %vm872, %v6366, %v6370
      %v6372 = vshrl.u32 %v6248, 16
      %v6374 = vrot.slane %v6372, 4
      %v6375 = vor.u32 %v6374, %v6370
      %v6376 = vrot.slane %v6375, 4
      %v6378 = vshll.u32 %v6249, 16
      %v6380 = vrot.slane %v6378, 5
      %v6381 = vsel %vm872, %v6376, %v6380
      %v6383 = vshrl.u32 %v6250, 16
      %v6385 = vrot.slane %v6383, 4
      %v6386 = vshll.u32 %v6250, 16
      %v6388 = vrot.slane %v6386, 5
      %v6389 = vor.u32 %v6385, %v6388
      %v6390 = vrot.slane %v6389, 4
      %v6392 = vshll.u32 %v6251, 16
      %v6394 = vrot.slane %v6392, 5
      %v6395 = vsel %vm872, %v6390, %v6394
      %v6396 = vshrl.u32 %v6251, 16
      %v6398 = vrot.slane %v6396, 4
      %v6399 = vor.u32 %v6398, %v6394
      %v6400 = vrot.slane %v6399, 4
      %v6402 = vshll.u32 %v6252, 16
      %v6404 = vrot.slane %v6402, 5
      %v6405 = vsel %vm872, %v6400, %v6404
      %v6407 = vshrl.u32 %v6253, 16
      %v6409 = vrot.slane %v6407, 4
      %v6410 = vshll.u32 %v6253, 16
      %v6412 = vrot.slane %v6410, 5
      %v6413 = vor.u32 %v6409, %v6412
      %v6414 = vrot.slane %v6413, 4
      %v6416 = vshll.u32 %v6254, 16
      %v6418 = vrot.slane %v6416, 5
      %v6419 = vsel %vm872, %v6414, %v6418
      %v6420 = vshrl.u32 %v6254, 16
      %v6422 = vrot.slane %v6420, 4
      %v6423 = vor.u32 %v6422, %v6418
      %v6424 = vrot.slane %v6423, 4
      %v6426 = vshll.u32 %v6255, 16
      %v6428 = vrot.slane %v6426, 5
      %v6429 = vsel %vm872, %v6424, %v6428
      %v6431 = vshrl.u32 %v6256, 16
      %v6433 = vrot.slane %v6431, 4
      %v6434 = vshll.u32 %v6256, 16
      %v6436 = vrot.slane %v6434, 5
      %v6437 = vor.u32 %v6433, %v6436
      %v6438 = vrot.slane %v6437, 4
      %v6440 = vshll.u32 %v6257, 16
      %v6442 = vrot.slane %v6440, 5
      %v6443 = vsel %vm872, %v6438, %v6442
      %v6444 = vshrl.u32 %v6257, 16
      %v6446 = vrot.slane %v6444, 4
      %v6447 = vor.u32 %v6446, %v6442
      %v6448 = vrot.slane %v6447, 4
      %v6450 = vshll.u32 %v6258, 16
      %v6452 = vrot.slane %v6450, 5
      %v6453 = vsel %vm872, %v6448, %v6452
      %v6455 = vshrl.u32 %v6259, 16
      %v6457 = vrot.slane %v6455, 4
      %v6458 = vshll.u32 %v6259, 16
      %v6460 = vrot.slane %v6458, 5
      %v6461 = vor.u32 %v6457, %v6460
      %v6462 = vrot.slane %v6461, 4
      %v6464 = vshll.u32 %v6260, 16
      %v6466 = vrot.slane %v6464, 5
      %v6467 = vsel %vm872, %v6462, %v6466
      %v6468 = vshrl.u32 %v6260, 16
      %v6470 = vrot.slane %v6468, 4
      %v6471 = vor.u32 %v6470, %v6466
      %v6472 = vrot.slane %v6471, 4
      %v6474 = vshll.u32 %v6261, 16
      %v6476 = vrot.slane %v6474, 5
      %v6477 = vsel %vm872, %v6472, %v6476
      %v6479 = vshrl.u32 %v6262, 16
      %v6481 = vrot.slane %v6479, 4
      %v6482 = vshll.u32 %v6262, 16
      %v6484 = vrot.slane %v6482, 5
      %v6485 = vor.u32 %v6481, %v6484
      %v6486 = vrot.slane %v6485, 4
      %v6488 = vshll.u32 %v6263, 16
      %v6490 = vrot.slane %v6488, 5
      %v6491 = vsel %vm872, %v6486, %v6490
      %v6492 = vshrl.u32 %v6263, 16
      %v6494 = vrot.slane %v6492, 4
      %v6495 = vor.u32 %v6494, %v6490
      %v6496 = vrot.slane %v6495, 4
      %v6498 = vshll.u32 %v6264, 16
      %v6500 = vrot.slane %v6498, 5
      %v6501 = vsel %vm872, %v6496, %v6500
      %v6503 = vshrl.u32 %v6265, 16
      %v6505 = vrot.slane %v6503, 4
      %v6506 = vshll.u32 %v6265, 16
      %v6508 = vrot.slane %v6506, 5
      %v6509 = vor.u32 %v6505, %v6508
      %v6510 = vrot.slane %v6509, 4
      %v6512 = vshll.u32 %v6266, 16
      %v6514 = vrot.slane %v6512, 5
      %v6515 = vsel %vm872, %v6510, %v6514
      %v6516 = vshrl.u32 %v6266, 16
      %v6518 = vrot.slane %v6516, 4
      %v6519 = vor.u32 %v6518, %v6514
      %v6520 = vrot.slane %v6519, 4
      %v6522 = vshll.u32 %v6267, 16
      %v6524 = vrot.slane %v6522, 5
      %v6525 = vsel %vm872, %v6520, %v6524
      %v6527 = vshrl.u32 %v6268, 16
      %v6529 = vrot.slane %v6527, 4
      %v6530 = vshll.u32 %v6268, 16
      %v6532 = vrot.slane %v6530, 5
      %v6533 = vor.u32 %v6529, %v6532
      %v6534 = vrot.slane %v6533, 4
      %v6536 = vshll.u32 %v6269, 16
      %v6538 = vrot.slane %v6536, 5
      %v6539 = vsel %vm872, %v6534, %v6538
      %v6540 = vshrl.u32 %v6269, 16
      %v6542 = vrot.slane %v6540, 4
      %v6543 = vor.u32 %v6542, %v6538
      %v6544 = vrot.slane %v6543, 4
      %v6546 = vshll.u32 %v6270, 16
      %v6548 = vrot.slane %v6546, 5
      %v6549 = vsel %vm872, %v6544, %v6548
      %v6551 = vshrl.u32 %v6271, 16
      %v6553 = vrot.slane %v6551, 4
      %v6554 = vshll.u32 %v6271, 16
      %v6556 = vrot.slane %v6554, 5
      %v6557 = vor.u32 %v6553, %v6556
      %v6558 = vrot.slane %v6557, 4
      %v6560 = vshll.u32 %v6272, 16
      %v6562 = vrot.slane %v6560, 5
      %v6563 = vsel %vm872, %v6558, %v6562
      %v6564 = vshrl.u32 %v6272, 16
      %v6566 = vrot.slane %v6564, 4
      %v6567 = vor.u32 %v6566, %v6562
      %v6568 = vrot.slane %v6567, 4
      %v6570 = vshll.u32 %v6273, 16
      %v6572 = vrot.slane %v6570, 5
      %v6573 = vsel %vm872, %v6568, %v6572
      %v6575 = vshrl.u32 %v6274, 16
      %v6577 = vrot.slane %v6575, 4
      %v6578 = vshll.u32 %v6274, 16
      %v6580 = vrot.slane %v6578, 5
      %v6581 = vor.u32 %v6577, %v6580
      %v6582 = vrot.slane %v6581, 4
      %v6584 = vshll.u32 %v6275, 16
      %v6586 = vrot.slane %v6584, 5
      %v6587 = vsel %vm872, %v6582, %v6586
      %v6588 = vshrl.u32 %v6275, 16
      %v6590 = vrot.slane %v6588, 4
      %v6591 = vor.u32 %v6590, %v6586
      %v6592 = vrot.slane %v6591, 4
      %v6594 = vshll.u32 %v6276, 16
      %v6596 = vrot.slane %v6594, 5
      %v6597 = vsel %vm872, %v6592, %v6596
      %v6599 = vshrl.u32 %v6277, 16
      %v6601 = vrot.slane %v6599, 4
      %v6602 = vshll.u32 %v6277, 16
      %v6604 = vrot.slane %v6602, 5
      %v6605 = vor.u32 %v6601, %v6604
      %v6606 = vrot.slane %v6605, 4
      %v6608 = vshll.u32 %v6278, 16
      %v6610 = vrot.slane %v6608, 5
      %v6611 = vsel %vm872, %v6606, %v6610
      %v6612 = vshrl.u32 %v6278, 16
      %v6614 = vrot.slane %v6612, 4
      %v6615 = vor.u32 %v6614, %v6610
      %v6616 = vrot.slane %v6615, 4
      %v6618 = vshll.u32 %v6279, 16
      %v6620 = vrot.slane %v6618, 5
      %v6621 = vsel %vm872, %v6616, %v6620
      %v6623 = vshrl.u32 %v6280, 16
      %v6625 = vrot.slane %v6623, 4
      %v6626 = vshll.u32 %v6280, 16
      %v6628 = vrot.slane %v6626, 5
      %v6629 = vor.u32 %v6625, %v6628
      %v6630 = vrot.slane %v6629, 4
      %v6632 = vshll.u32 %v6281, 16
      %v6634 = vrot.slane %v6632, 5
      %v6635 = vsel %vm872, %v6630, %v6634
      %v6636 = vshrl.u32 %v6281, 16
      %v6638 = vrot.slane %v6636, 4
      %v6639 = vor.u32 %v6638, %v6634
      %v6640 = vrot.slane %v6639, 4
      %v6642 = vshll.u32 %v6282, 16
      %v6644 = vrot.slane %v6642, 5
      %v6645 = vsel %vm872, %v6640, %v6644
      %v6647 = vshrl.u32 %v6283, 16
      %v6649 = vrot.slane %v6647, 4
      %v6650 = vshll.u32 %v6283, 16
      %v6652 = vrot.slane %v6650, 5
      %v6653 = vor.u32 %v6649, %v6652
      %v6654 = vrot.slane %v6653, 4
      %v6656 = vshll.u32 %v6284, 16
      %v6658 = vrot.slane %v6656, 5
      %v6659 = vsel %vm872, %v6654, %v6658
      %v6660 = vshrl.u32 %v6284, 16
      %v6662 = vrot.slane %v6660, 4
      %v6663 = vor.u32 %v6662, %v6658
      %v6664 = vrot.slane %v6663, 4
      %v6666 = vshll.u32 %v6285, 16
      %v6668 = vrot.slane %v6666, 5
      %v6669 = vsel %vm872, %v6664, %v6668
      %6702 = vst [vmem:[#allocation3 + $0x4] sm:$0xf] %v6299
      %6703 = vst [vmem:[#allocation3 + $0x28] sm:$0xf] %v6309
      %6704 = vst [vmem:[#allocation3 + $0x4c] sm:$0xf] %v6323
      %6705 = vst [vmem:[#allocation3 + $0x70] sm:$0xf] %v6333
      %6706 = vst [vmem:[#allocation3 + $0x94] sm:$0xf] %v6347
      %6707 = vst [vmem:[#allocation3 + $0xb8] sm:$0xf] %v6357
      %6708 = vst [vmem:[#allocation3 + $0xdc] sm:$0xf] %v6371
      %6709 = vst [vmem:[#allocation3 + $0x100] sm:$0xf] %v6381
      %6710 = vst [vmem:[#allocation3 + $0x124] sm:$0xf] %v6395
      %6711 = vst [vmem:[#allocation3 + $0x148] sm:$0xf] %v6405
      %6712 = vst [vmem:[#allocation3 + $0x16c] sm:$0xf] %v6419
      %6713 = vst [vmem:[#allocation3 + $0x190] sm:$0xf] %v6429
      %6714 = vst [vmem:[#allocation3 + $0x1b4] sm:$0xf] %v6443
      %6715 = vst [vmem:[#allocation3 + $0x1d8] sm:$0xf] %v6453
      %6716 = vst [vmem:[#allocation3 + $0x1fc] sm:$0xf] %v6467
      %6717 = vst [vmem:[#allocation3 + $0x220] sm:$0xf] %v6477
      %6718 = vst [vmem:[#allocation3 + $0x244] sm:$0xf] %v6491
      %6719 = vst [vmem:[#allocation3 + $0x268] sm:$0xf] %v6501
      %6720 = vst [vmem:[#allocation3 + $0x28c] sm:$0xf] %v6515
      %6721 = vst [vmem:[#allocation3 + $0x2b0] sm:$0xf] %v6525
      %6722 = vst [vmem:[#allocation3 + $0x2d4] sm:$0xf] %v6539
      %6723 = vst [vmem:[#allocation3 + $0x2f8] sm:$0xf] %v6549
      %6724 = vst [vmem:[#allocation3 + $0x31c] sm:$0xf] %v6563
      %6725 = vst [vmem:[#allocation3 + $0x340] sm:$0xf] %v6573
      %6726 = vst [vmem:[#allocation3 + $0x364] sm:$0xf] %v6587
      %6727 = vst [vmem:[#allocation3 + $0x388] sm:$0xf] %v6597
      %6728 = vst [vmem:[#allocation3 + $0x3ac] sm:$0xf] %v6611
      %6729 = vst [vmem:[#allocation3 + $0x3d0] sm:$0xf] %v6621
      %6730 = vst [vmem:[#allocation3 + $0x3f4] sm:$0xf] %v6635
      %6731 = vst [vmem:[#allocation3 + $0x418] sm:$0xf] %v6645
      %6732 = vst [vmem:[#allocation3 + $0x43c] sm:$0xf] %v6659
      %6733 = vst [vmem:[#allocation3 + $0x460] sm:$0xf] %v6669
      %v6734 = vld [vmem:[#allocation2] sm:$0xe]
      %v6735 = vld [vmem:[#allocation2 + $0x4] sm:$0xf]
      %v6736 = vld [vmem:[#allocation2 + $0x8] sm:$0x1]
      %v6737 = vld [vmem:[#allocation2 + $0xc] sm:$0xe]
      %v6738 = vld [vmem:[#allocation2 + $0x10] sm:$0xf]
      %v6739 = vld [vmem:[#allocation2 + $0x14] sm:$0x1]
      %v6740 = vld [vmem:[#allocation2 + $0x18] sm:$0xe]
      %v6741 = vld [vmem:[#allocation2 + $0x1c] sm:$0xf]
      %v6742 = vld [vmem:[#allocation2 + $0x20] sm:$0x1]
      %v6743 = vld [vmem:[#allocation2 + $0x24] sm:$0xe]
      %v6744 = vld [vmem:[#allocation2 + $0x28] sm:$0xf]
      %v6745 = vld [vmem:[#allocation2 + $0x2c] sm:$0x1]
      %v6746 = vld [vmem:[#allocation2 + $0x30] sm:$0xe]
      %v6747 = vld [vmem:[#allocation2 + $0x34] sm:$0xf]
      %v6748 = vld [vmem:[#allocation2 + $0x38] sm:$0x1]
      %v6749 = vld [vmem:[#allocation2 + $0x3c] sm:$0xe]
      %v6750 = vld [vmem:[#allocation2 + $0x40] sm:$0xf]
      %v6751 = vld [vmem:[#allocation2 + $0x44] sm:$0x1]
      %v6752 = vld [vmem:[#allocation2 + $0x48] sm:$0xe]
      %v6753 = vld [vmem:[#allocation2 + $0x4c] sm:$0xf]
      %v6754 = vld [vmem:[#allocation2 + $0x50] sm:$0x1]
      %v6755 = vld [vmem:[#allocation2 + $0x54] sm:$0xe]
      %v6756 = vld [vmem:[#allocation2 + $0x58] sm:$0xf]
      %v6757 = vld [vmem:[#allocation2 + $0x5c] sm:$0x1]
      %v6758 = vld [vmem:[#allocation2 + $0x60] sm:$0xe]
      %v6759 = vld [vmem:[#allocation2 + $0x64] sm:$0xf]
      %v6760 = vld [vmem:[#allocation2 + $0x68] sm:$0x1]
      %v6761 = vld [vmem:[#allocation2 + $0x6c] sm:$0xe]
      %v6762 = vld [vmem:[#allocation2 + $0x70] sm:$0xf]
      %v6763 = vld [vmem:[#allocation2 + $0x74] sm:$0x1]
      %v6764 = vld [vmem:[#allocation2 + $0x78] sm:$0xe]
      %v6765 = vld [vmem:[#allocation2 + $0x7c] sm:$0xf]
      %v6766 = vld [vmem:[#allocation2 + $0x80] sm:$0x1]
      %v6767 = vld [vmem:[#allocation2 + $0x84] sm:$0xe]
      %v6768 = vld [vmem:[#allocation2 + $0x88] sm:$0xf]
      %v6769 = vld [vmem:[#allocation2 + $0x8c] sm:$0x1]
      %v6770 = vld [vmem:[#allocation2 + $0x90] sm:$0xe]
      %v6771 = vld [vmem:[#allocation2 + $0x94] sm:$0xf]
      %v6772 = vld [vmem:[#allocation2 + $0x98] sm:$0x1]
      %v6773 = vld [vmem:[#allocation2 + $0x9c] sm:$0xe]
      %v6774 = vld [vmem:[#allocation2 + $0xa0] sm:$0xf]
      %v6775 = vld [vmem:[#allocation2 + $0xa4] sm:$0x1]
      %v6776 = vld [vmem:[#allocation2 + $0xa8] sm:$0xe]
      %v6777 = vld [vmem:[#allocation2 + $0xac] sm:$0xf]
      %v6778 = vld [vmem:[#allocation2 + $0xb0] sm:$0x1]
      %v6779 = vld [vmem:[#allocation2 + $0xb4] sm:$0xe]
      %v6780 = vld [vmem:[#allocation2 + $0xb8] sm:$0xf]
      %v6781 = vld [vmem:[#allocation2 + $0xbc] sm:$0x1]
      %v6830 = vrot.slane %v6734, 5
      %v6831 = vrot.slane %v6830, 4
      %v6832 = vrot.slane %v6735, 5
      %v6833 = vsel %vm1419, %v6831, %v6832
      %v6834 = vrot.slane %v6832, 4
      %v6835 = vrot.slane %v6736, 5
      %v6836 = vsel %vm1419, %v6834, %v6835
      %v6837 = vrot.slane %v6737, 5
      %v6838 = vrot.slane %v6837, 4
      %v6839 = vrot.slane %v6738, 5
      %v6840 = vsel %vm1419, %v6838, %v6839
      %v6841 = vrot.slane %v6839, 4
      %v6842 = vrot.slane %v6739, 5
      %v6843 = vsel %vm1419, %v6841, %v6842
      %v6844 = vrot.slane %v6740, 5
      %v6845 = vrot.slane %v6844, 4
      %v6846 = vrot.slane %v6741, 5
      %v6847 = vsel %vm1419, %v6845, %v6846
      %v6848 = vrot.slane %v6846, 4
      %v6849 = vrot.slane %v6742, 5
      %v6850 = vsel %vm1419, %v6848, %v6849
      %v6851 = vrot.slane %v6743, 5
      %v6852 = vrot.slane %v6851, 4
      %v6853 = vrot.slane %v6744, 5
      %v6854 = vsel %vm1419, %v6852, %v6853
      %v6855 = vrot.slane %v6853, 4
      %v6856 = vrot.slane %v6745, 5
      %v6857 = vsel %vm1419, %v6855, %v6856
      %v6858 = vrot.slane %v6746, 5
      %v6859 = vrot.slane %v6858, 4
      %v6860 = vrot.slane %v6747, 5
      %v6861 = vsel %vm1419, %v6859, %v6860
      %v6862 = vrot.slane %v6860, 4
      %v6863 = vrot.slane %v6748, 5
      %v6864 = vsel %vm1419, %v6862, %v6863
      %v6865 = vrot.slane %v6749, 5
      %v6866 = vrot.slane %v6865, 4
      %v6867 = vrot.slane %v6750, 5
      %v6868 = vsel %vm1419, %v6866, %v6867
      %v6869 = vrot.slane %v6867, 4
      %v6870 = vrot.slane %v6751, 5
      %v6871 = vsel %vm1419, %v6869, %v6870
      %v6872 = vrot.slane %v6752, 5
      %v6873 = vrot.slane %v6872, 4
      %v6874 = vrot.slane %v6753, 5
      %v6875 = vsel %vm1419, %v6873, %v6874
      %v6876 = vrot.slane %v6874, 4
      %v6877 = vrot.slane %v6754, 5
      %v6878 = vsel %vm1419, %v6876, %v6877
      %v6879 = vrot.slane %v6755, 5
      %v6880 = vrot.slane %v6879, 4
      %v6881 = vrot.slane %v6756, 5
      %v6882 = vsel %vm1419, %v6880, %v6881
      %v6883 = vrot.slane %v6881, 4
      %v6884 = vrot.slane %v6757, 5
      %v6885 = vsel %vm1419, %v6883, %v6884
      %v6886 = vrot.slane %v6758, 5
      %v6887 = vrot.slane %v6886, 4
      %v6888 = vrot.slane %v6759, 5
      %v6889 = vsel %vm1419, %v6887, %v6888
      %v6890 = vrot.slane %v6888, 4
      %v6891 = vrot.slane %v6760, 5
      %v6892 = vsel %vm1419, %v6890, %v6891
      %v6893 = vrot.slane %v6761, 5
      %v6894 = vrot.slane %v6893, 4
      %v6895 = vrot.slane %v6762, 5
      %v6896 = vsel %vm1419, %v6894, %v6895
      %v6897 = vrot.slane %v6895, 4
      %v6898 = vrot.slane %v6763, 5
      %v6899 = vsel %vm1419, %v6897, %v6898
      %v6900 = vrot.slane %v6764, 5
      %v6901 = vrot.slane %v6900, 4
      %v6902 = vrot.slane %v6765, 5
      %v6903 = vsel %vm1419, %v6901, %v6902
      %v6904 = vrot.slane %v6902, 4
      %v6905 = vrot.slane %v6766, 5
      %v6906 = vsel %vm1419, %v6904, %v6905
      %v6907 = vrot.slane %v6767, 5
      %v6908 = vrot.slane %v6907, 4
      %v6909 = vrot.slane %v6768, 5
      %v6910 = vsel %vm1419, %v6908, %v6909
      %v6911 = vrot.slane %v6909, 4
      %v6912 = vrot.slane %v6769, 5
      %v6913 = vsel %vm1419, %v6911, %v6912
      %v6914 = vrot.slane %v6770, 5
      %v6915 = vrot.slane %v6914, 4
      %v6916 = vrot.slane %v6771, 5
      %v6917 = vsel %vm1419, %v6915, %v6916
      %v6918 = vrot.slane %v6916, 4
      %v6919 = vrot.slane %v6772, 5
      %v6920 = vsel %vm1419, %v6918, %v6919
      %v6921 = vrot.slane %v6773, 5
      %v6922 = vrot.slane %v6921, 4
      %v6923 = vrot.slane %v6774, 5
      %v6924 = vsel %vm1419, %v6922, %v6923
      %v6925 = vrot.slane %v6923, 4
      %v6926 = vrot.slane %v6775, 5
      %v6927 = vsel %vm1419, %v6925, %v6926
      %v6928 = vrot.slane %v6776, 5
      %v6929 = vrot.slane %v6928, 4
      %v6930 = vrot.slane %v6777, 5
      %v6931 = vsel %vm1419, %v6929, %v6930
      %v6932 = vrot.slane %v6930, 4
      %v6933 = vrot.slane %v6778, 5
      %v6934 = vsel %vm1419, %v6932, %v6933
      %v6935 = vrot.slane %v6779, 5
      %v6936 = vrot.slane %v6935, 4
      %v6937 = vrot.slane %v6780, 5
      %v6938 = vsel %vm1419, %v6936, %v6937
      %v6939 = vrot.slane %v6937, 4
      %v6940 = vrot.slane %v6781, 5
      %v6941 = vsel %vm1419, %v6939, %v6940
      %6974 = vst [vmem:[#allocation3 + $0x8] sm:$0xf] %v6833
      %6975 = vst [vmem:[#allocation3 + $0x2c] sm:$0xf] %v6836
      %6976 = vst [vmem:[#allocation3 + $0x50] sm:$0xf] %v6840
      %6977 = vst [vmem:[#allocation3 + $0x74] sm:$0xf] %v6843
      %6978 = vst [vmem:[#allocation3 + $0x98] sm:$0xf] %v6847
      %6979 = vst [vmem:[#allocation3 + $0xbc] sm:$0xf] %v6850
      %6980 = vst [vmem:[#allocation3 + $0xe0] sm:$0xf] %v6854
      %6981 = vst [vmem:[#allocation3 + $0x104] sm:$0xf] %v6857
      %6982 = vst [vmem:[#allocation3 + $0x128] sm:$0xf] %v6861
      %6983 = vst [vmem:[#allocation3 + $0x14c] sm:$0xf] %v6864
      %6984 = vst [vmem:[#allocation3 + $0x170] sm:$0xf] %v6868
      %6985 = vst [vmem:[#allocation3 + $0x194] sm:$0xf] %v6871
      %6986 = vst [vmem:[#allocation3 + $0x1b8] sm:$0xf] %v6875
      %6987 = vst [vmem:[#allocation3 + $0x1dc] sm:$0xf] %v6878
      %6988 = vst [vmem:[#allocation3 + $0x200] sm:$0xf] %v6882
      %6989 = vst [vmem:[#allocation3 + $0x224] sm:$0xf] %v6885
      %6990 = vst [vmem:[#allocation3 + $0x248] sm:$0xf] %v6889
      %6991 = vst [vmem:[#allocation3 + $0x26c] sm:$0xf] %v6892
      %6992 = vst [vmem:[#allocation3 + $0x290] sm:$0xf] %v6896
      %6993 = vst [vmem:[#allocation3 + $0x2b4] sm:$0xf] %v6899
      %6994 = vst [vmem:[#allocation3 + $0x2d8] sm:$0xf] %v6903
      %6995 = vst [vmem:[#allocation3 + $0x2fc] sm:$0xf] %v6906
      %6996 = vst [vmem:[#allocation3 + $0x320] sm:$0xf] %v6910
      %6997 = vst [vmem:[#allocation3 + $0x344] sm:$0xf] %v6913
      %6998 = vst [vmem:[#allocation3 + $0x368] sm:$0xf] %v6917
      %6999 = vst [vmem:[#allocation3 + $0x38c] sm:$0xf] %v6920
      %7000 = vst [vmem:[#allocation3 + $0x3b0] sm:$0xf] %v6924
      %7001 = vst [vmem:[#allocation3 + $0x3d4] sm:$0xf] %v6927
      %7002 = vst [vmem:[#allocation3 + $0x3f8] sm:$0xf] %v6931
      %7003 = vst [vmem:[#allocation3 + $0x41c] sm:$0xf] %v6934
      %7004 = vst [vmem:[#allocation3 + $0x440] sm:$0xf] %v6938
      %7005 = vst [vmem:[#allocation3 + $0x464] sm:$0xf] %v6941
      %v7006 = vld [vmem:[%s639] sm:$0xf]
      %v7007 = vld [vmem:[%s639 + $0x4] sm:$0xf]
      %v7008 = vld [vmem:[%s639 + $0xc] sm:$0xf]
      %v7009 = vld [vmem:[%s639 + $0x10] sm:$0xf]
      %v7010 = vld [vmem:[%s639 + $0x18] sm:$0xf]
      %v7011 = vld [vmem:[%s639 + $0x1c] sm:$0xf]
      %v7012 = vld [vmem:[%s639 + $0x24] sm:$0xf]
      %v7013 = vld [vmem:[%s639 + $0x28] sm:$0xf]
      %v7014 = vld [vmem:[%s639 + $0x30] sm:$0xf]
      %v7015 = vld [vmem:[%s639 + $0x34] sm:$0xf]
      %v7016 = vld [vmem:[%s639 + $0x3c] sm:$0xf]
      %v7017 = vld [vmem:[%s639 + $0x40] sm:$0xf]
      %v7018 = vld [vmem:[%s639 + $0x48] sm:$0xf]
      %v7019 = vld [vmem:[%s639 + $0x4c] sm:$0xf]
      %v7020 = vld [vmem:[%s639 + $0x54] sm:$0xf]
      %v7021 = vld [vmem:[%s639 + $0x58] sm:$0xf]
      %v7022 = vld [vmem:[%s639 + $0x60] sm:$0xf]
      %v7023 = vld [vmem:[%s639 + $0x64] sm:$0xf]
      %v7024 = vld [vmem:[%s639 + $0x6c] sm:$0xf]
      %v7025 = vld [vmem:[%s639 + $0x70] sm:$0xf]
      %v7026 = vld [vmem:[%s639 + $0x78] sm:$0xf]
      %v7027 = vld [vmem:[%s639 + $0x7c] sm:$0xf]
      %v7028 = vld [vmem:[%s639 + $0x84] sm:$0xf]
      %v7029 = vld [vmem:[%s639 + $0x88] sm:$0xf]
      %v7030 = vld [vmem:[%s639 + $0x90] sm:$0xf]
      %v7031 = vld [vmem:[%s639 + $0x94] sm:$0xf]
      %v7032 = vld [vmem:[%s639 + $0x9c] sm:$0xf]
      %v7033 = vld [vmem:[%s639 + $0xa0] sm:$0xf]
      %v7034 = vld [vmem:[%s639 + $0xa8] sm:$0xf]
      %v7035 = vld [vmem:[%s639 + $0xac] sm:$0xf]
      %v7036 = vld [vmem:[%s639 + $0xb4] sm:$0xf]
      %v7037 = vld [vmem:[%s639 + $0xb8] sm:$0xf]
      %7038 = vst [vmem:[#allocation3 + $0xc] sm:$0xf] %v7006
      %7039 = vst [vmem:[#allocation3 + $0x30] sm:$0xf] %v7007
      %7040 = vst [vmem:[#allocation3 + $0x54] sm:$0xf] %v7008
      %7041 = vst [vmem:[#allocation3 + $0x78] sm:$0xf] %v7009
      %7042 = vst [vmem:[#allocation3 + $0x9c] sm:$0xf] %v7010
      %7043 = vst [vmem:[#allocation3 + $0xc0] sm:$0xf] %v7011
      %7044 = vst [vmem:[#allocation3 + $0xe4] sm:$0xf] %v7012
      %7045 = vst [vmem:[#allocation3 + $0x108] sm:$0xf] %v7013
      %7046 = vst [vmem:[#allocation3 + $0x12c] sm:$0xf] %v7014
      %7047 = vst [vmem:[#allocation3 + $0x150] sm:$0xf] %v7015
      %7048 = vst [vmem:[#allocation3 + $0x174] sm:$0xf] %v7016
      %7049 = vst [vmem:[#allocation3 + $0x198] sm:$0xf] %v7017
      %7050 = vst [vmem:[#allocation3 + $0x1bc] sm:$0xf] %v7018
      %7051 = vst [vmem:[#allocation3 + $0x1e0] sm:$0xf] %v7019
      %7052 = vst [vmem:[#allocation3 + $0x204] sm:$0xf] %v7020
      %7053 = vst [vmem:[#allocation3 + $0x228] sm:$0xf] %v7021
      %7054 = vst [vmem:[#allocation3 + $0x24c] sm:$0xf] %v7022
      %7055 = vst [vmem:[#allocation3 + $0x270] sm:$0xf] %v7023
      %7056 = vst [vmem:[#allocation3 + $0x294] sm:$0xf] %v7024
      %7057 = vst [vmem:[#allocation3 + $0x2b8] sm:$0xf] %v7025
      %7058 = vst [vmem:[#allocation3 + $0x2dc] sm:$0xf] %v7026
      %7059 = vst [vmem:[#allocation3 + $0x300] sm:$0xf] %v7027
      %7060 = vst [vmem:[#allocation3 + $0x324] sm:$0xf] %v7028
      %7061 = vst [vmem:[#allocation3 + $0x348] sm:$0xf] %v7029
      %7062 = vst [vmem:[#allocation3 + $0x36c] sm:$0xf] %v7030
      %7063 = vst [vmem:[#allocation3 + $0x390] sm:$0xf] %v7031
      %7064 = vst [vmem:[#allocation3 + $0x3b4] sm:$0xf] %v7032
      %7065 = vst [vmem:[#allocation3 + $0x3d8] sm:$0xf] %v7033
      %7066 = vst [vmem:[#allocation3 + $0x3fc] sm:$0xf] %v7034
      %7067 = vst [vmem:[#allocation3 + $0x420] sm:$0xf] %v7035
      %7068 = vst [vmem:[#allocation3 + $0x444] sm:$0xf] %v7036
      %7069 = vst [vmem:[#allocation3 + $0x468] sm:$0xf] %v7037
      %v7070 = vld [vmem:[%s639] sm:$0xf]
      %v7071 = vld [vmem:[%s639 + $0x4] sm:$0xf]
      %v7072 = vld [vmem:[%s639 + $0x8] sm:$0x1]
      %v7073 = vld [vmem:[%s639 + $0xc] sm:$0xf]
      %v7074 = vld [vmem:[%s639 + $0x10] sm:$0xf]
      %v7075 = vld [vmem:[%s639 + $0x14] sm:$0x1]
      %v7076 = vld [vmem:[%s639 + $0x18] sm:$0xf]
      %v7077 = vld [vmem:[%s639 + $0x1c] sm:$0xf]
      %v7078 = vld [vmem:[%s639 + $0x20] sm:$0x1]
      %v7079 = vld [vmem:[%s639 + $0x24] sm:$0xf]
      %v7080 = vld [vmem:[%s639 + $0x28] sm:$0xf]
      %v7081 = vld [vmem:[%s639 + $0x2c] sm:$0x1]
      %v7082 = vld [vmem:[%s639 + $0x30] sm:$0xf]
      %v7083 = vld [vmem:[%s639 + $0x34] sm:$0xf]
      %v7084 = vld [vmem:[%s639 + $0x38] sm:$0x1]
      %v7085 = vld [vmem:[%s639 + $0x3c] sm:$0xf]
      %v7086 = vld [vmem:[%s639 + $0x40] sm:$0xf]
      %v7087 = vld [vmem:[%s639 + $0x44] sm:$0x1]
      %v7088 = vld [vmem:[%s639 + $0x48] sm:$0xf]
      %v7089 = vld [vmem:[%s639 + $0x4c] sm:$0xf]
      %v7090 = vld [vmem:[%s639 + $0x50] sm:$0x1]
      %v7091 = vld [vmem:[%s639 + $0x54] sm:$0xf]
      %v7092 = vld [vmem:[%s639 + $0x58] sm:$0xf]
      %v7093 = vld [vmem:[%s639 + $0x5c] sm:$0x1]
      %v7094 = vld [vmem:[%s639 + $0x60] sm:$0xf]
      %v7095 = vld [vmem:[%s639 + $0x64] sm:$0xf]
      %v7096 = vld [vmem:[%s639 + $0x68] sm:$0x1]
      %v7097 = vld [vmem:[%s639 + $0x6c] sm:$0xf]
      %v7098 = vld [vmem:[%s639 + $0x70] sm:$0xf]
      %v7099 = vld [vmem:[%s639 + $0x74] sm:$0x1]
      %v7100 = vld [vmem:[%s639 + $0x78] sm:$0xf]
      %v7101 = vld [vmem:[%s639 + $0x7c] sm:$0xf]
      %v7102 = vld [vmem:[%s639 + $0x80] sm:$0x1]
      %v7103 = vld [vmem:[%s639 + $0x84] sm:$0xf]
      %v7104 = vld [vmem:[%s639 + $0x88] sm:$0xf]
      %v7105 = vld [vmem:[%s639 + $0x8c] sm:$0x1]
      %v7106 = vld [vmem:[%s639 + $0x90] sm:$0xf]
      %v7107 = vld [vmem:[%s639 + $0x94] sm:$0xf]
      %v7108 = vld [vmem:[%s639 + $0x98] sm:$0x1]
      %v7109 = vld [vmem:[%s639 + $0x9c] sm:$0xf]
      %v7110 = vld [vmem:[%s639 + $0xa0] sm:$0xf]
      %v7111 = vld [vmem:[%s639 + $0xa4] sm:$0x1]
      %v7112 = vld [vmem:[%s639 + $0xa8] sm:$0xf]
      %v7113 = vld [vmem:[%s639 + $0xac] sm:$0xf]
      %v7114 = vld [vmem:[%s639 + $0xb0] sm:$0x1]
      %v7115 = vld [vmem:[%s639 + $0xb4] sm:$0xf]
      %v7116 = vld [vmem:[%s639 + $0xb8] sm:$0xf]
      %v7117 = vld [vmem:[%s639 + $0xbc] sm:$0x1]
      %v7119 = vshrl.u32 %v7070, 16
      %v7121 = vrot.slane %v7119, 4
      %v7122 = vshll.u32 %v7070, 16
      %v7124 = vrot.slane %v7122, 5
      %v7125 = vor.u32 %v7121, %v7124
      %v7126 = vrot.slane %v7125, 4
      %v7128 = vshll.u32 %v7071, 16
      %v7130 = vrot.slane %v7128, 5
      %v7131 = vsel %vm872, %v7126, %v7130
      %v7132 = vshrl.u32 %v7071, 16
      %v7134 = vrot.slane %v7132, 4
      %v7135 = vor.u32 %v7134, %v7130
      %v7136 = vrot.slane %v7135, 4
      %v7138 = vshll.u32 %v7072, 16
      %v7140 = vrot.slane %v7138, 5
      %v7141 = vsel %vm872, %v7136, %v7140
      %v7143 = vshrl.u32 %v7073, 16
      %v7145 = vrot.slane %v7143, 4
      %v7146 = vshll.u32 %v7073, 16
      %v7148 = vrot.slane %v7146, 5
      %v7149 = vor.u32 %v7145, %v7148
      %v7150 = vrot.slane %v7149, 4
      %v7152 = vshll.u32 %v7074, 16
      %v7154 = vrot.slane %v7152, 5
      %v7155 = vsel %vm872, %v7150, %v7154
      %v7156 = vshrl.u32 %v7074, 16
      %v7158 = vrot.slane %v7156, 4
      %v7159 = vor.u32 %v7158, %v7154
      %v7160 = vrot.slane %v7159, 4
      %v7162 = vshll.u32 %v7075, 16
      %v7164 = vrot.slane %v7162, 5
      %v7165 = vsel %vm872, %v7160, %v7164
      %v7167 = vshrl.u32 %v7076, 16
      %v7169 = vrot.slane %v7167, 4
      %v7170 = vshll.u32 %v7076, 16
      %v7172 = vrot.slane %v7170, 5
      %v7173 = vor.u32 %v7169, %v7172
      %v7174 = vrot.slane %v7173, 4
      %v7176 = vshll.u32 %v7077, 16
      %v7178 = vrot.slane %v7176, 5
      %v7179 = vsel %vm872, %v7174, %v7178
      %v7180 = vshrl.u32 %v7077, 16
      %v7182 = vrot.slane %v7180, 4
      %v7183 = vor.u32 %v7182, %v7178
      %v7184 = vrot.slane %v7183, 4
      %v7186 = vshll.u32 %v7078, 16
      %v7188 = vrot.slane %v7186, 5
      %v7189 = vsel %vm872, %v7184, %v7188
      %v7191 = vshrl.u32 %v7079, 16
      %v7193 = vrot.slane %v7191, 4
      %v7194 = vshll.u32 %v7079, 16
      %v7196 = vrot.slane %v7194, 5
      %v7197 = vor.u32 %v7193, %v7196
      %v7198 = vrot.slane %v7197, 4
      %v7200 = vshll.u32 %v7080, 16
      %v7202 = vrot.slane %v7200, 5
      %v7203 = vsel %vm872, %v7198, %v7202
      %v7204 = vshrl.u32 %v7080, 16
      %v7206 = vrot.slane %v7204, 4
      %v7207 = vor.u32 %v7206, %v7202
      %v7208 = vrot.slane %v7207, 4
      %v7210 = vshll.u32 %v7081, 16
      %v7212 = vrot.slane %v7210, 5
      %v7213 = vsel %vm872, %v7208, %v7212
      %v7215 = vshrl.u32 %v7082, 16
      %v7217 = vrot.slane %v7215, 4
      %v7218 = vshll.u32 %v7082, 16
      %v7220 = vrot.slane %v7218, 5
      %v7221 = vor.u32 %v7217, %v7220
      %v7222 = vrot.slane %v7221, 4
      %v7224 = vshll.u32 %v7083, 16
      %v7226 = vrot.slane %v7224, 5
      %v7227 = vsel %vm872, %v7222, %v7226
      %v7228 = vshrl.u32 %v7083, 16
      %v7230 = vrot.slane %v7228, 4
      %v7231 = vor.u32 %v7230, %v7226
      %v7232 = vrot.slane %v7231, 4
      %v7234 = vshll.u32 %v7084, 16
      %v7236 = vrot.slane %v7234, 5
      %v7237 = vsel %vm872, %v7232, %v7236
      %v7239 = vshrl.u32 %v7085, 16
      %v7241 = vrot.slane %v7239, 4
      %v7242 = vshll.u32 %v7085, 16
      %v7244 = vrot.slane %v7242, 5
      %v7245 = vor.u32 %v7241, %v7244
      %v7246 = vrot.slane %v7245, 4
      %v7248 = vshll.u32 %v7086, 16
      %v7250 = vrot.slane %v7248, 5
      %v7251 = vsel %vm872, %v7246, %v7250
      %v7252 = vshrl.u32 %v7086, 16
      %v7254 = vrot.slane %v7252, 4
      %v7255 = vor.u32 %v7254, %v7250
      %v7256 = vrot.slane %v7255, 4
      %v7258 = vshll.u32 %v7087, 16
      %v7260 = vrot.slane %v7258, 5
      %v7261 = vsel %vm872, %v7256, %v7260
      %v7263 = vshrl.u32 %v7088, 16
      %v7265 = vrot.slane %v7263, 4
      %v7266 = vshll.u32 %v7088, 16
      %v7268 = vrot.slane %v7266, 5
      %v7269 = vor.u32 %v7265, %v7268
      %v7270 = vrot.slane %v7269, 4
      %v7272 = vshll.u32 %v7089, 16
      %v7274 = vrot.slane %v7272, 5
      %v7275 = vsel %vm872, %v7270, %v7274
      %v7276 = vshrl.u32 %v7089, 16
      %v7278 = vrot.slane %v7276, 4
      %v7279 = vor.u32 %v7278, %v7274
      %v7280 = vrot.slane %v7279, 4
      %v7282 = vshll.u32 %v7090, 16
      %v7284 = vrot.slane %v7282, 5
      %v7285 = vsel %vm872, %v7280, %v7284
      %v7287 = vshrl.u32 %v7091, 16
      %v7289 = vrot.slane %v7287, 4
      %v7290 = vshll.u32 %v7091, 16
      %v7292 = vrot.slane %v7290, 5
      %v7293 = vor.u32 %v7289, %v7292
      %v7294 = vrot.slane %v7293, 4
      %v7296 = vshll.u32 %v7092, 16
      %v7298 = vrot.slane %v7296, 5
      %v7299 = vsel %vm872, %v7294, %v7298
      %v7300 = vshrl.u32 %v7092, 16
      %v7302 = vrot.slane %v7300, 4
      %v7303 = vor.u32 %v7302, %v7298
      %v7304 = vrot.slane %v7303, 4
      %v7306 = vshll.u32 %v7093, 16
      %v7308 = vrot.slane %v7306, 5
      %v7309 = vsel %vm872, %v7304, %v7308
      %v7311 = vshrl.u32 %v7094, 16
      %v7313 = vrot.slane %v7311, 4
      %v7314 = vshll.u32 %v7094, 16
      %v7316 = vrot.slane %v7314, 5
      %v7317 = vor.u32 %v7313, %v7316
      %v7318 = vrot.slane %v7317, 4
      %v7320 = vshll.u32 %v7095, 16
      %v7322 = vrot.slane %v7320, 5
      %v7323 = vsel %vm872, %v7318, %v7322
      %v7324 = vshrl.u32 %v7095, 16
      %v7326 = vrot.slane %v7324, 4
      %v7327 = vor.u32 %v7326, %v7322
      %v7328 = vrot.slane %v7327, 4
      %v7330 = vshll.u32 %v7096, 16
      %v7332 = vrot.slane %v7330, 5
      %v7333 = vsel %vm872, %v7328, %v7332
      %v7335 = vshrl.u32 %v7097, 16
      %v7337 = vrot.slane %v7335, 4
      %v7338 = vshll.u32 %v7097, 16
      %v7340 = vrot.slane %v7338, 5
      %v7341 = vor.u32 %v7337, %v7340
      %v7342 = vrot.slane %v7341, 4
      %v7344 = vshll.u32 %v7098, 16
      %v7346 = vrot.slane %v7344, 5
      %v7347 = vsel %vm872, %v7342, %v7346
      %v7348 = vshrl.u32 %v7098, 16
      %v7350 = vrot.slane %v7348, 4
      %v7351 = vor.u32 %v7350, %v7346
      %v7352 = vrot.slane %v7351, 4
      %v7354 = vshll.u32 %v7099, 16
      %v7356 = vrot.slane %v7354, 5
      %v7357 = vsel %vm872, %v7352, %v7356
      %v7359 = vshrl.u32 %v7100, 16
      %v7361 = vrot.slane %v7359, 4
      %v7362 = vshll.u32 %v7100, 16
      %v7364 = vrot.slane %v7362, 5
      %v7365 = vor.u32 %v7361, %v7364
      %v7366 = vrot.slane %v7365, 4
      %v7368 = vshll.u32 %v7101, 16
      %v7370 = vrot.slane %v7368, 5
      %v7371 = vsel %vm872, %v7366, %v7370
      %v7372 = vshrl.u32 %v7101, 16
      %v7374 = vrot.slane %v7372, 4
      %v7375 = vor.u32 %v7374, %v7370
      %v7376 = vrot.slane %v7375, 4
      %v7378 = vshll.u32 %v7102, 16
      %v7380 = vrot.slane %v7378, 5
      %v7381 = vsel %vm872, %v7376, %v7380
      %v7383 = vshrl.u32 %v7103, 16
      %v7385 = vrot.slane %v7383, 4
      %v7386 = vshll.u32 %v7103, 16
      %v7388 = vrot.slane %v7386, 5
      %v7389 = vor.u32 %v7385, %v7388
      %v7390 = vrot.slane %v7389, 4
      %v7392 = vshll.u32 %v7104, 16
      %v7394 = vrot.slane %v7392, 5
      %v7395 = vsel %vm872, %v7390, %v7394
      %v7396 = vshrl.u32 %v7104, 16
      %v7398 = vrot.slane %v7396, 4
      %v7399 = vor.u32 %v7398, %v7394
      %v7400 = vrot.slane %v7399, 4
      %v7402 = vshll.u32 %v7105, 16
      %v7404 = vrot.slane %v7402, 5
      %v7405 = vsel %vm872, %v7400, %v7404
      %v7407 = vshrl.u32 %v7106, 16
      %v7409 = vrot.slane %v7407, 4
      %v7410 = vshll.u32 %v7106, 16
      %v7412 = vrot.slane %v7410, 5
      %v7413 = vor.u32 %v7409, %v7412
      %v7414 = vrot.slane %v7413, 4
      %v7416 = vshll.u32 %v7107, 16
      %v7418 = vrot.slane %v7416, 5
      %v7419 = vsel %vm872, %v7414, %v7418
      %v7420 = vshrl.u32 %v7107, 16
      %v7422 = vrot.slane %v7420, 4
      %v7423 = vor.u32 %v7422, %v7418
      %v7424 = vrot.slane %v7423, 4
      %v7426 = vshll.u32 %v7108, 16
      %v7428 = vrot.slane %v7426, 5
      %v7429 = vsel %vm872, %v7424, %v7428
      %v7431 = vshrl.u32 %v7109, 16
      %v7433 = vrot.slane %v7431, 4
      %v7434 = vshll.u32 %v7109, 16
      %v7436 = vrot.slane %v7434, 5
      %v7437 = vor.u32 %v7433, %v7436
      %v7438 = vrot.slane %v7437, 4
      %v7440 = vshll.u32 %v7110, 16
      %v7442 = vrot.slane %v7440, 5
      %v7443 = vsel %vm872, %v7438, %v7442
      %v7444 = vshrl.u32 %v7110, 16
      %v7446 = vrot.slane %v7444, 4
      %v7447 = vor.u32 %v7446, %v7442
      %v7448 = vrot.slane %v7447, 4
      %v7450 = vshll.u32 %v7111, 16
      %v7452 = vrot.slane %v7450, 5
      %v7453 = vsel %vm872, %v7448, %v7452
      %v7455 = vshrl.u32 %v7112, 16
      %v7457 = vrot.slane %v7455, 4
      %v7458 = vshll.u32 %v7112, 16
      %v7460 = vrot.slane %v7458, 5
      %v7461 = vor.u32 %v7457, %v7460
      %v7462 = vrot.slane %v7461, 4
      %v7464 = vshll.u32 %v7113, 16
      %v7466 = vrot.slane %v7464, 5
      %v7467 = vsel %vm872, %v7462, %v7466
      %v7468 = vshrl.u32 %v7113, 16
      %v7470 = vrot.slane %v7468, 4
      %v7471 = vor.u32 %v7470, %v7466
      %v7472 = vrot.slane %v7471, 4
      %v7474 = vshll.u32 %v7114, 16
      %v7476 = vrot.slane %v7474, 5
      %v7477 = vsel %vm872, %v7472, %v7476
      %v7479 = vshrl.u32 %v7115, 16
      %v7481 = vrot.slane %v7479, 4
      %v7482 = vshll.u32 %v7115, 16
      %v7484 = vrot.slane %v7482, 5
      %v7485 = vor.u32 %v7481, %v7484
      %v7486 = vrot.slane %v7485, 4
      %v7488 = vshll.u32 %v7116, 16
      %v7490 = vrot.slane %v7488, 5
      %v7491 = vsel %vm872, %v7486, %v7490
      %v7492 = vshrl.u32 %v7116, 16
      %v7494 = vrot.slane %v7492, 4
      %v7495 = vor.u32 %v7494, %v7490
      %v7496 = vrot.slane %v7495, 4
      %v7498 = vshll.u32 %v7117, 16
      %v7500 = vrot.slane %v7498, 5
      %v7501 = vsel %vm872, %v7496, %v7500
      %7534 = vst [vmem:[#allocation3 + $0x10] sm:$0xf] %v7131
      %7535 = vst [vmem:[#allocation3 + $0x34] sm:$0xf] %v7141
      %7536 = vst [vmem:[#allocation3 + $0x58] sm:$0xf] %v7155
      %7537 = vst [vmem:[#allocation3 + $0x7c] sm:$0xf] %v7165
      %7538 = vst [vmem:[#allocation3 + $0xa0] sm:$0xf] %v7179
      %7539 = vst [vmem:[#allocation3 + $0xc4] sm:$0xf] %v7189
      %7540 = vst [vmem:[#allocation3 + $0xe8] sm:$0xf] %v7203
      %7541 = vst [vmem:[#allocation3 + $0x10c] sm:$0xf] %v7213
      %7542 = vst [vmem:[#allocation3 + $0x130] sm:$0xf] %v7227
      %7543 = vst [vmem:[#allocation3 + $0x154] sm:$0xf] %v7237
      %7544 = vst [vmem:[#allocation3 + $0x178] sm:$0xf] %v7251
      %7545 = vst [vmem:[#allocation3 + $0x19c] sm:$0xf] %v7261
      %7546 = vst [vmem:[#allocation3 + $0x1c0] sm:$0xf] %v7275
      %7547 = vst [vmem:[#allocation3 + $0x1e4] sm:$0xf] %v7285
      %7548 = vst [vmem:[#allocation3 + $0x208] sm:$0xf] %v7299
      %7549 = vst [vmem:[#allocation3 + $0x22c] sm:$0xf] %v7309
      %7550 = vst [vmem:[#allocation3 + $0x250] sm:$0xf] %v7323
      %7551 = vst [vmem:[#allocation3 + $0x274] sm:$0xf] %v7333
      %7552 = vst [vmem:[#allocation3 + $0x298] sm:$0xf] %v7347
      %7553 = vst [vmem:[#allocation3 + $0x2bc] sm:$0xf] %v7357
      %7554 = vst [vmem:[#allocation3 + $0x2e0] sm:$0xf] %v7371
      %7555 = vst [vmem:[#allocation3 + $0x304] sm:$0xf] %v7381
      %7556 = vst [vmem:[#allocation3 + $0x328] sm:$0xf] %v7395
      %7557 = vst [vmem:[#allocation3 + $0x34c] sm:$0xf] %v7405
      %7558 = vst [vmem:[#allocation3 + $0x370] sm:$0xf] %v7419
      %7559 = vst [vmem:[#allocation3 + $0x394] sm:$0xf] %v7429
      %7560 = vst [vmem:[#allocation3 + $0x3b8] sm:$0xf] %v7443
      %7561 = vst [vmem:[#allocation3 + $0x3dc] sm:$0xf] %v7453
      %7562 = vst [vmem:[#allocation3 + $0x400] sm:$0xf] %v7467
      %7563 = vst [vmem:[#allocation3 + $0x424] sm:$0xf] %v7477
      %7564 = vst [vmem:[#allocation3 + $0x448] sm:$0xf] %v7491
      %7565 = vst [vmem:[#allocation3 + $0x46c] sm:$0xf] %v7501
      %v7566 = vld [vmem:[%s639] sm:$0xe]
      %v7567 = vld [vmem:[%s639 + $0x4] sm:$0xf]
      %v7568 = vld [vmem:[%s639 + $0x8] sm:$0x1]
      %v7569 = vld [vmem:[%s639 + $0xc] sm:$0xe]
      %v7570 = vld [vmem:[%s639 + $0x10] sm:$0xf]
      %v7571 = vld [vmem:[%s639 + $0x14] sm:$0x1]
      %v7572 = vld [vmem:[%s639 + $0x18] sm:$0xe]
      %v7573 = vld [vmem:[%s639 + $0x1c] sm:$0xf]
      %v7574 = vld [vmem:[%s639 + $0x20] sm:$0x1]
      %v7575 = vld [vmem:[%s639 + $0x24] sm:$0xe]
      %v7576 = vld [vmem:[%s639 + $0x28] sm:$0xf]
      %v7577 = vld [vmem:[%s639 + $0x2c] sm:$0x1]
      %v7578 = vld [vmem:[%s639 + $0x30] sm:$0xe]
      %v7579 = vld [vmem:[%s639 + $0x34] sm:$0xf]
      %v7580 = vld [vmem:[%s639 + $0x38] sm:$0x1]
      %v7581 = vld [vmem:[%s639 + $0x3c] sm:$0xe]
      %v7582 = vld [vmem:[%s639 + $0x40] sm:$0xf]
      %v7583 = vld [vmem:[%s639 + $0x44] sm:$0x1]
      %v7584 = vld [vmem:[%s639 + $0x48] sm:$0xe]
      %v7585 = vld [vmem:[%s639 + $0x4c] sm:$0xf]
      %v7586 = vld [vmem:[%s639 + $0x50] sm:$0x1]
      %v7587 = vld [vmem:[%s639 + $0x54] sm:$0xe]
      %v7588 = vld [vmem:[%s639 + $0x58] sm:$0xf]
      %v7589 = vld [vmem:[%s639 + $0x5c] sm:$0x1]
      %v7590 = vld [vmem:[%s639 + $0x60] sm:$0xe]
      %v7591 = vld [vmem:[%s639 + $0x64] sm:$0xf]
      %v7592 = vld [vmem:[%s639 + $0x68] sm:$0x1]
      %v7593 = vld [vmem:[%s639 + $0x6c] sm:$0xe]
      %v7594 = vld [vmem:[%s639 + $0x70] sm:$0xf]
      %v7595 = vld [vmem:[%s639 + $0x74] sm:$0x1]
      %v7596 = vld [vmem:[%s639 + $0x78] sm:$0xe]
      %v7597 = vld [vmem:[%s639 + $0x7c] sm:$0xf]
      %v7598 = vld [vmem:[%s639 + $0x80] sm:$0x1]
      %v7599 = vld [vmem:[%s639 + $0x84] sm:$0xe]
      %v7600 = vld [vmem:[%s639 + $0x88] sm:$0xf]
      %v7601 = vld [vmem:[%s639 + $0x8c] sm:$0x1]
      %v7602 = vld [vmem:[%s639 + $0x90] sm:$0xe]
      %v7603 = vld [vmem:[%s639 + $0x94] sm:$0xf]
      %v7604 = vld [vmem:[%s639 + $0x98] sm:$0x1]
      %v7605 = vld [vmem:[%s639 + $0x9c] sm:$0xe]
      %v7606 = vld [vmem:[%s639 + $0xa0] sm:$0xf]
      %v7607 = vld [vmem:[%s639 + $0xa4] sm:$0x1]
      %v7608 = vld [vmem:[%s639 + $0xa8] sm:$0xe]
      %v7609 = vld [vmem:[%s639 + $0xac] sm:$0xf]
      %v7610 = vld [vmem:[%s639 + $0xb0] sm:$0x1]
      %v7611 = vld [vmem:[%s639 + $0xb4] sm:$0xe]
      %v7612 = vld [vmem:[%s639 + $0xb8] sm:$0xf]
      %v7613 = vld [vmem:[%s639 + $0xbc] sm:$0x1]
      %v7662 = vrot.slane %v7566, 5
      %v7663 = vrot.slane %v7662, 4
      %v7664 = vrot.slane %v7567, 5
      %v7665 = vsel %vm1419, %v7663, %v7664
      %v7666 = vrot.slane %v7664, 4
      %v7667 = vrot.slane %v7568, 5
      %v7668 = vsel %vm1419, %v7666, %v7667
      %v7669 = vrot.slane %v7569, 5
      %v7670 = vrot.slane %v7669, 4
      %v7671 = vrot.slane %v7570, 5
      %v7672 = vsel %vm1419, %v7670, %v7671
      %v7673 = vrot.slane %v7671, 4
      %v7674 = vrot.slane %v7571, 5
      %v7675 = vsel %vm1419, %v7673, %v7674
      %v7676 = vrot.slane %v7572, 5
      %v7677 = vrot.slane %v7676, 4
      %v7678 = vrot.slane %v7573, 5
      %v7679 = vsel %vm1419, %v7677, %v7678
      %v7680 = vrot.slane %v7678, 4
      %v7681 = vrot.slane %v7574, 5
      %v7682 = vsel %vm1419, %v7680, %v7681
      %v7683 = vrot.slane %v7575, 5
      %v7684 = vrot.slane %v7683, 4
      %v7685 = vrot.slane %v7576, 5
      %v7686 = vsel %vm1419, %v7684, %v7685
      %v7687 = vrot.slane %v7685, 4
      %v7688 = vrot.slane %v7577, 5
      %v7689 = vsel %vm1419, %v7687, %v7688
      %v7690 = vrot.slane %v7578, 5
      %v7691 = vrot.slane %v7690, 4
      %v7692 = vrot.slane %v7579, 5
      %v7693 = vsel %vm1419, %v7691, %v7692
      %v7694 = vrot.slane %v7692, 4
      %v7695 = vrot.slane %v7580, 5
      %v7696 = vsel %vm1419, %v7694, %v7695
      %v7697 = vrot.slane %v7581, 5
      %v7698 = vrot.slane %v7697, 4
      %v7699 = vrot.slane %v7582, 5
      %v7700 = vsel %vm1419, %v7698, %v7699
      %v7701 = vrot.slane %v7699, 4
      %v7702 = vrot.slane %v7583, 5
      %v7703 = vsel %vm1419, %v7701, %v7702
      %v7704 = vrot.slane %v7584, 5
      %v7705 = vrot.slane %v7704, 4
      %v7706 = vrot.slane %v7585, 5
      %v7707 = vsel %vm1419, %v7705, %v7706
      %v7708 = vrot.slane %v7706, 4
      %v7709 = vrot.slane %v7586, 5
      %v7710 = vsel %vm1419, %v7708, %v7709
      %v7711 = vrot.slane %v7587, 5
      %v7712 = vrot.slane %v7711, 4
      %v7713 = vrot.slane %v7588, 5
      %v7714 = vsel %vm1419, %v7712, %v7713
      %v7715 = vrot.slane %v7713, 4
      %v7716 = vrot.slane %v7589, 5
      %v7717 = vsel %vm1419, %v7715, %v7716
      %v7718 = vrot.slane %v7590, 5
      %v7719 = vrot.slane %v7718, 4
      %v7720 = vrot.slane %v7591, 5
      %v7721 = vsel %vm1419, %v7719, %v7720
      %v7722 = vrot.slane %v7720, 4
      %v7723 = vrot.slane %v7592, 5
      %v7724 = vsel %vm1419, %v7722, %v7723
      %v7725 = vrot.slane %v7593, 5
      %v7726 = vrot.slane %v7725, 4
      %v7727 = vrot.slane %v7594, 5
      %v7728 = vsel %vm1419, %v7726, %v7727
      %v7729 = vrot.slane %v7727, 4
      %v7730 = vrot.slane %v7595, 5
      %v7731 = vsel %vm1419, %v7729, %v7730
      %v7732 = vrot.slane %v7596, 5
      %v7733 = vrot.slane %v7732, 4
      %v7734 = vrot.slane %v7597, 5
      %v7735 = vsel %vm1419, %v7733, %v7734
      %v7736 = vrot.slane %v7734, 4
      %v7737 = vrot.slane %v7598, 5
      %v7738 = vsel %vm1419, %v7736, %v7737
      %v7739 = vrot.slane %v7599, 5
      %v7740 = vrot.slane %v7739, 4
      %v7741 = vrot.slane %v7600, 5
      %v7742 = vsel %vm1419, %v7740, %v7741
      %v7743 = vrot.slane %v7741, 4
      %v7744 = vrot.slane %v7601, 5
      %v7745 = vsel %vm1419, %v7743, %v7744
      %v7746 = vrot.slane %v7602, 5
      %v7747 = vrot.slane %v7746, 4
      %v7748 = vrot.slane %v7603, 5
      %v7749 = vsel %vm1419, %v7747, %v7748
      %v7750 = vrot.slane %v7748, 4
      %v7751 = vrot.slane %v7604, 5
      %v7752 = vsel %vm1419, %v7750, %v7751
      %v7753 = vrot.slane %v7605, 5
      %v7754 = vrot.slane %v7753, 4
      %v7755 = vrot.slane %v7606, 5
      %v7756 = vsel %vm1419, %v7754, %v7755
      %v7757 = vrot.slane %v7755, 4
      %v7758 = vrot.slane %v7607, 5
      %v7759 = vsel %vm1419, %v7757, %v7758
      %v7760 = vrot.slane %v7608, 5
      %v7761 = vrot.slane %v7760, 4
      %v7762 = vrot.slane %v7609, 5
      %v7763 = vsel %vm1419, %v7761, %v7762
      %v7764 = vrot.slane %v7762, 4
      %v7765 = vrot.slane %v7610, 5
      %v7766 = vsel %vm1419, %v7764, %v7765
      %v7767 = vrot.slane %v7611, 5
      %v7768 = vrot.slane %v7767, 4
      %v7769 = vrot.slane %v7612, 5
      %v7770 = vsel %vm1419, %v7768, %v7769
      %v7771 = vrot.slane %v7769, 4
      %v7772 = vrot.slane %v7613, 5
      %v7773 = vsel %vm1419, %v7771, %v7772
      %7806 = vst [vmem:[#allocation3 + $0x14] sm:$0xf] %v7665
      %7807 = vst [vmem:[#allocation3 + $0x38] sm:$0xf] %v7668
      %7808 = vst [vmem:[#allocation3 + $0x5c] sm:$0xf] %v7672
      %7809 = vst [vmem:[#allocation3 + $0x80] sm:$0xf] %v7675
      %7810 = vst [vmem:[#allocation3 + $0xa4] sm:$0xf] %v7679
      %7811 = vst [vmem:[#allocation3 + $0xc8] sm:$0xf] %v7682
      %7812 = vst [vmem:[#allocation3 + $0xec] sm:$0xf] %v7686
      %7813 = vst [vmem:[#allocation3 + $0x110] sm:$0xf] %v7689
      %7814 = vst [vmem:[#allocation3 + $0x134] sm:$0xf] %v7693
      %7815 = vst [vmem:[#allocation3 + $0x158] sm:$0xf] %v7696
      %7816 = vst [vmem:[#allocation3 + $0x17c] sm:$0xf] %v7700
      %7817 = vst [vmem:[#allocation3 + $0x1a0] sm:$0xf] %v7703
      %7818 = vst [vmem:[#allocation3 + $0x1c4] sm:$0xf] %v7707
      %7819 = vst [vmem:[#allocation3 + $0x1e8] sm:$0xf] %v7710
      %7820 = vst [vmem:[#allocation3 + $0x20c] sm:$0xf] %v7714
      %7821 = vst [vmem:[#allocation3 + $0x230] sm:$0xf] %v7717
      %7822 = vst [vmem:[#allocation3 + $0x254] sm:$0xf] %v7721
      %7823 = vst [vmem:[#allocation3 + $0x278] sm:$0xf] %v7724
      %7824 = vst [vmem:[#allocation3 + $0x29c] sm:$0xf] %v7728
      %7825 = vst [vmem:[#allocation3 + $0x2c0] sm:$0xf] %v7731
      %7826 = vst [vmem:[#allocation3 + $0x2e4] sm:$0xf] %v7735
      %7827 = vst [vmem:[#allocation3 + $0x308] sm:$0xf] %v7738
      %7828 = vst [vmem:[#allocation3 + $0x32c] sm:$0xf] %v7742
      %7829 = vst [vmem:[#allocation3 + $0x350] sm:$0xf] %v7745
      %7830 = vst [vmem:[#allocation3 + $0x374] sm:$0xf] %v7749
      %7831 = vst [vmem:[#allocation3 + $0x398] sm:$0xf] %v7752
      %7832 = vst [vmem:[#allocation3 + $0x3bc] sm:$0xf] %v7756
      %7833 = vst [vmem:[#allocation3 + $0x3e0] sm:$0xf] %v7759
      %7834 = vst [vmem:[#allocation3 + $0x404] sm:$0xf] %v7763
      %7835 = vst [vmem:[#allocation3 + $0x428] sm:$0xf] %v7766
      %7836 = vst [vmem:[#allocation3 + $0x44c] sm:$0xf] %v7770
      %7837 = vst [vmem:[#allocation3 + $0x470] sm:$0xf] %v7773
      %v7838 = vld [vmem:[%s2428] sm:$0xf]
      %v7839 = vld [vmem:[%s2428 + $0x4] sm:$0xf]
      %v7840 = vld [vmem:[%s2428 + $0xc] sm:$0xf]
      %v7841 = vld [vmem:[%s2428 + $0x10] sm:$0xf]
      %v7842 = vld [vmem:[%s2428 + $0x18] sm:$0xf]
      %v7843 = vld [vmem:[%s2428 + $0x1c] sm:$0xf]
      %v7844 = vld [vmem:[%s2428 + $0x24] sm:$0xf]
      %v7845 = vld [vmem:[%s2428 + $0x28] sm:$0xf]
      %v7846 = vld [vmem:[%s2428 + $0x30] sm:$0xf]
      %v7847 = vld [vmem:[%s2428 + $0x34] sm:$0xf]
      %v7848 = vld [vmem:[%s2428 + $0x3c] sm:$0xf]
      %v7849 = vld [vmem:[%s2428 + $0x40] sm:$0xf]
      %v7850 = vld [vmem:[%s2428 + $0x48] sm:$0xf]
      %v7851 = vld [vmem:[%s2428 + $0x4c] sm:$0xf]
      %v7852 = vld [vmem:[%s2428 + $0x54] sm:$0xf]
      %v7853 = vld [vmem:[%s2428 + $0x58] sm:$0xf]
      %v7854 = vld [vmem:[%s2428 + $0x60] sm:$0xf]
      %v7855 = vld [vmem:[%s2428 + $0x64] sm:$0xf]
      %v7856 = vld [vmem:[%s2428 + $0x6c] sm:$0xf]
      %v7857 = vld [vmem:[%s2428 + $0x70] sm:$0xf]
      %v7858 = vld [vmem:[%s2428 + $0x78] sm:$0xf]
      %v7859 = vld [vmem:[%s2428 + $0x7c] sm:$0xf]
      %v7860 = vld [vmem:[%s2428 + $0x84] sm:$0xf]
      %v7861 = vld [vmem:[%s2428 + $0x88] sm:$0xf]
      %v7862 = vld [vmem:[%s2428 + $0x90] sm:$0xf]
      %v7863 = vld [vmem:[%s2428 + $0x94] sm:$0xf]
      %v7864 = vld [vmem:[%s2428 + $0x9c] sm:$0xf]
      %v7865 = vld [vmem:[%s2428 + $0xa0] sm:$0xf]
      %v7866 = vld [vmem:[%s2428 + $0xa8] sm:$0xf]
      %v7867 = vld [vmem:[%s2428 + $0xac] sm:$0xf]
      %v7868 = vld [vmem:[%s2428 + $0xb4] sm:$0xf]
      %v7869 = vld [vmem:[%s2428 + $0xb8] sm:$0xf]
      %7870 = vst [vmem:[#allocation3 + $0x18] sm:$0xf] %v7838
      %7871 = vst [vmem:[#allocation3 + $0x3c] sm:$0xf] %v7839
      %7872 = vst [vmem:[#allocation3 + $0x60] sm:$0xf] %v7840
      %7873 = vst [vmem:[#allocation3 + $0x84] sm:$0xf] %v7841
      %7874 = vst [vmem:[#allocation3 + $0xa8] sm:$0xf] %v7842
      %7875 = vst [vmem:[#allocation3 + $0xcc] sm:$0xf] %v7843
      %7876 = vst [vmem:[#allocation3 + $0xf0] sm:$0xf] %v7844
      %7877 = vst [vmem:[#allocation3 + $0x114] sm:$0xf] %v7845
      %7878 = vst [vmem:[#allocation3 + $0x138] sm:$0xf] %v7846
      %7879 = vst [vmem:[#allocation3 + $0x15c] sm:$0xf] %v7847
      %7880 = vst [vmem:[#allocation3 + $0x180] sm:$0xf] %v7848
      %7881 = vst [vmem:[#allocation3 + $0x1a4] sm:$0xf] %v7849
      %7882 = vst [vmem:[#allocation3 + $0x1c8] sm:$0xf] %v7850
      %7883 = vst [vmem:[#allocation3 + $0x1ec] sm:$0xf] %v7851
      %7884 = vst [vmem:[#allocation3 + $0x210] sm:$0xf] %v7852
      %7885 = vst [vmem:[#allocation3 + $0x234] sm:$0xf] %v7853
      %7886 = vst [vmem:[#allocation3 + $0x258] sm:$0xf] %v7854
      %7887 = vst [vmem:[#allocation3 + $0x27c] sm:$0xf] %v7855
      %7888 = vst [vmem:[#allocation3 + $0x2a0] sm:$0xf] %v7856
      %7889 = vst [vmem:[#allocation3 + $0x2c4] sm:$0xf] %v7857
      %7890 = vst [vmem:[#allocation3 + $0x2e8] sm:$0xf] %v7858
      %7891 = vst [vmem:[#allocation3 + $0x30c] sm:$0xf] %v7859
      %7892 = vst [vmem:[#allocation3 + $0x330] sm:$0xf] %v7860
      %7893 = vst [vmem:[#allocation3 + $0x354] sm:$0xf] %v7861
      %7894 = vst [vmem:[#allocation3 + $0x378] sm:$0xf] %v7862
      %7895 = vst [vmem:[#allocation3 + $0x39c] sm:$0xf] %v7863
      %7896 = vst [vmem:[#allocation3 + $0x3c0] sm:$0xf] %v7864
      %7897 = vst [vmem:[#allocation3 + $0x3e4] sm:$0xf] %v7865
      %7898 = vst [vmem:[#allocation3 + $0x408] sm:$0xf] %v7866
      %7899 = vst [vmem:[#allocation3 + $0x42c] sm:$0xf] %v7867
      %7900 = vst [vmem:[#allocation3 + $0x450] sm:$0xf] %v7868
      %7901 = vst [vmem:[#allocation3 + $0x474] sm:$0xf] %v7869
      %v7902 = vld [vmem:[%s2428] sm:$0xf]
      %v7903 = vld [vmem:[%s2428 + $0x4] sm:$0xf]
      %v7904 = vld [vmem:[%s2428 + $0x8] sm:$0x1]
      %v7905 = vld [vmem:[%s2428 + $0xc] sm:$0xf]
      %v7906 = vld [vmem:[%s2428 + $0x10] sm:$0xf]
      %v7907 = vld [vmem:[%s2428 + $0x14] sm:$0x1]
      %v7908 = vld [vmem:[%s2428 + $0x18] sm:$0xf]
      %v7909 = vld [vmem:[%s2428 + $0x1c] sm:$0xf]
      %v7910 = vld [vmem:[%s2428 + $0x20] sm:$0x1]
      %v7911 = vld [vmem:[%s2428 + $0x24] sm:$0xf]
      %v7912 = vld [vmem:[%s2428 + $0x28] sm:$0xf]
      %v7913 = vld [vmem:[%s2428 + $0x2c] sm:$0x1]
      %v7914 = vld [vmem:[%s2428 + $0x30] sm:$0xf]
      %v7915 = vld [vmem:[%s2428 + $0x34] sm:$0xf]
      %v7916 = vld [vmem:[%s2428 + $0x38] sm:$0x1]
      %v7917 = vld [vmem:[%s2428 + $0x3c] sm:$0xf]
      %v7918 = vld [vmem:[%s2428 + $0x40] sm:$0xf]
      %v7919 = vld [vmem:[%s2428 + $0x44] sm:$0x1]
      %v7920 = vld [vmem:[%s2428 + $0x48] sm:$0xf]
      %v7921 = vld [vmem:[%s2428 + $0x4c] sm:$0xf]
      %v7922 = vld [vmem:[%s2428 + $0x50] sm:$0x1]
      %v7923 = vld [vmem:[%s2428 + $0x54] sm:$0xf]
      %v7924 = vld [vmem:[%s2428 + $0x58] sm:$0xf]
      %v7925 = vld [vmem:[%s2428 + $0x5c] sm:$0x1]
      %v7926 = vld [vmem:[%s2428 + $0x60] sm:$0xf]
      %v7927 = vld [vmem:[%s2428 + $0x64] sm:$0xf]
      %v7928 = vld [vmem:[%s2428 + $0x68] sm:$0x1]
      %v7929 = vld [vmem:[%s2428 + $0x6c] sm:$0xf]
      %v7930 = vld [vmem:[%s2428 + $0x70] sm:$0xf]
      %v7931 = vld [vmem:[%s2428 + $0x74] sm:$0x1]
      %v7932 = vld [vmem:[%s2428 + $0x78] sm:$0xf]
      %v7933 = vld [vmem:[%s2428 + $0x7c] sm:$0xf]
      %v7934 = vld [vmem:[%s2428 + $0x80] sm:$0x1]
      %v7935 = vld [vmem:[%s2428 + $0x84] sm:$0xf]
      %v7936 = vld [vmem:[%s2428 + $0x88] sm:$0xf]
      %v7937 = vld [vmem:[%s2428 + $0x8c] sm:$0x1]
      %v7938 = vld [vmem:[%s2428 + $0x90] sm:$0xf]
      %v7939 = vld [vmem:[%s2428 + $0x94] sm:$0xf]
      %v7940 = vld [vmem:[%s2428 + $0x98] sm:$0x1]
      %v7941 = vld [vmem:[%s2428 + $0x9c] sm:$0xf]
      %v7942 = vld [vmem:[%s2428 + $0xa0] sm:$0xf]
      %v7943 = vld [vmem:[%s2428 + $0xa4] sm:$0x1]
      %v7944 = vld [vmem:[%s2428 + $0xa8] sm:$0xf]
      %v7945 = vld [vmem:[%s2428 + $0xac] sm:$0xf]
      %v7946 = vld [vmem:[%s2428 + $0xb0] sm:$0x1]
      %v7947 = vld [vmem:[%s2428 + $0xb4] sm:$0xf]
      %v7948 = vld [vmem:[%s2428 + $0xb8] sm:$0xf]
      %v7949 = vld [vmem:[%s2428 + $0xbc] sm:$0x1]
      %v7951 = vshrl.u32 %v7902, 16
      %v7953 = vrot.slane %v7951, 4
      %v7954 = vshll.u32 %v7902, 16
      %v7956 = vrot.slane %v7954, 5
      %v7957 = vor.u32 %v7953, %v7956
      %v7958 = vrot.slane %v7957, 4
      %v7960 = vshll.u32 %v7903, 16
      %v7962 = vrot.slane %v7960, 5
      %v7963 = vsel %vm872, %v7958, %v7962
      %v7964 = vshrl.u32 %v7903, 16
      %v7966 = vrot.slane %v7964, 4
      %v7967 = vor.u32 %v7966, %v7962
      %v7968 = vrot.slane %v7967, 4
      %v7970 = vshll.u32 %v7904, 16
      %v7972 = vrot.slane %v7970, 5
      %v7973 = vsel %vm872, %v7968, %v7972
      %v7975 = vshrl.u32 %v7905, 16
      %v7977 = vrot.slane %v7975, 4
      %v7978 = vshll.u32 %v7905, 16
      %v7980 = vrot.slane %v7978, 5
      %v7981 = vor.u32 %v7977, %v7980
      %v7982 = vrot.slane %v7981, 4
      %v7984 = vshll.u32 %v7906, 16
      %v7986 = vrot.slane %v7984, 5
      %v7987 = vsel %vm872, %v7982, %v7986
      %v7988 = vshrl.u32 %v7906, 16
      %v7990 = vrot.slane %v7988, 4
      %v7991 = vor.u32 %v7990, %v7986
      %v7992 = vrot.slane %v7991, 4
      %v7994 = vshll.u32 %v7907, 16
      %v7996 = vrot.slane %v7994, 5
      %v7997 = vsel %vm872, %v7992, %v7996
      %v7999 = vshrl.u32 %v7908, 16
      %v8001 = vrot.slane %v7999, 4
      %v8002 = vshll.u32 %v7908, 16
      %v8004 = vrot.slane %v8002, 5
      %v8005 = vor.u32 %v8001, %v8004
      %v8006 = vrot.slane %v8005, 4
      %v8008 = vshll.u32 %v7909, 16
      %v8010 = vrot.slane %v8008, 5
      %v8011 = vsel %vm872, %v8006, %v8010
      %v8012 = vshrl.u32 %v7909, 16
      %v8014 = vrot.slane %v8012, 4
      %v8015 = vor.u32 %v8014, %v8010
      %v8016 = vrot.slane %v8015, 4
      %v8018 = vshll.u32 %v7910, 16
      %v8020 = vrot.slane %v8018, 5
      %v8021 = vsel %vm872, %v8016, %v8020
      %v8023 = vshrl.u32 %v7911, 16
      %v8025 = vrot.slane %v8023, 4
      %v8026 = vshll.u32 %v7911, 16
      %v8028 = vrot.slane %v8026, 5
      %v8029 = vor.u32 %v8025, %v8028
      %v8030 = vrot.slane %v8029, 4
      %v8032 = vshll.u32 %v7912, 16
      %v8034 = vrot.slane %v8032, 5
      %v8035 = vsel %vm872, %v8030, %v8034
      %v8036 = vshrl.u32 %v7912, 16
      %v8038 = vrot.slane %v8036, 4
      %v8039 = vor.u32 %v8038, %v8034
      %v8040 = vrot.slane %v8039, 4
      %v8042 = vshll.u32 %v7913, 16
      %v8044 = vrot.slane %v8042, 5
      %v8045 = vsel %vm872, %v8040, %v8044
      %v8047 = vshrl.u32 %v7914, 16
      %v8049 = vrot.slane %v8047, 4
      %v8050 = vshll.u32 %v7914, 16
      %v8052 = vrot.slane %v8050, 5
      %v8053 = vor.u32 %v8049, %v8052
      %v8054 = vrot.slane %v8053, 4
      %v8056 = vshll.u32 %v7915, 16
      %v8058 = vrot.slane %v8056, 5
      %v8059 = vsel %vm872, %v8054, %v8058
      %v8060 = vshrl.u32 %v7915, 16
      %v8062 = vrot.slane %v8060, 4
      %v8063 = vor.u32 %v8062, %v8058
      %v8064 = vrot.slane %v8063, 4
      %v8066 = vshll.u32 %v7916, 16
      %v8068 = vrot.slane %v8066, 5
      %v8069 = vsel %vm872, %v8064, %v8068
      %v8071 = vshrl.u32 %v7917, 16
      %v8073 = vrot.slane %v8071, 4
      %v8074 = vshll.u32 %v7917, 16
      %v8076 = vrot.slane %v8074, 5
      %v8077 = vor.u32 %v8073, %v8076
      %v8078 = vrot.slane %v8077, 4
      %v8080 = vshll.u32 %v7918, 16
      %v8082 = vrot.slane %v8080, 5
      %v8083 = vsel %vm872, %v8078, %v8082
      %v8084 = vshrl.u32 %v7918, 16
      %v8086 = vrot.slane %v8084, 4
      %v8087 = vor.u32 %v8086, %v8082
      %v8088 = vrot.slane %v8087, 4
      %v8090 = vshll.u32 %v7919, 16
      %v8092 = vrot.slane %v8090, 5
      %v8093 = vsel %vm872, %v8088, %v8092
      %v8095 = vshrl.u32 %v7920, 16
      %v8097 = vrot.slane %v8095, 4
      %v8098 = vshll.u32 %v7920, 16
      %v8100 = vrot.slane %v8098, 5
      %v8101 = vor.u32 %v8097, %v8100
      %v8102 = vrot.slane %v8101, 4
      %v8104 = vshll.u32 %v7921, 16
      %v8106 = vrot.slane %v8104, 5
      %v8107 = vsel %vm872, %v8102, %v8106
      %v8108 = vshrl.u32 %v7921, 16
      %v8110 = vrot.slane %v8108, 4
      %v8111 = vor.u32 %v8110, %v8106
      %v8112 = vrot.slane %v8111, 4
      %v8114 = vshll.u32 %v7922, 16
      %v8116 = vrot.slane %v8114, 5
      %v8117 = vsel %vm872, %v8112, %v8116
      %v8119 = vshrl.u32 %v7923, 16
      %v8121 = vrot.slane %v8119, 4
      %v8122 = vshll.u32 %v7923, 16
      %v8124 = vrot.slane %v8122, 5
      %v8125 = vor.u32 %v8121, %v8124
      %v8126 = vrot.slane %v8125, 4
      %v8128 = vshll.u32 %v7924, 16
      %v8130 = vrot.slane %v8128, 5
      %v8131 = vsel %vm872, %v8126, %v8130
      %v8132 = vshrl.u32 %v7924, 16
      %v8134 = vrot.slane %v8132, 4
      %v8135 = vor.u32 %v8134, %v8130
      %v8136 = vrot.slane %v8135, 4
      %v8138 = vshll.u32 %v7925, 16
      %v8140 = vrot.slane %v8138, 5
      %v8141 = vsel %vm872, %v8136, %v8140
      %v8143 = vshrl.u32 %v7926, 16
      %v8145 = vrot.slane %v8143, 4
      %v8146 = vshll.u32 %v7926, 16
      %v8148 = vrot.slane %v8146, 5
      %v8149 = vor.u32 %v8145, %v8148
      %v8150 = vrot.slane %v8149, 4
      %v8152 = vshll.u32 %v7927, 16
      %v8154 = vrot.slane %v8152, 5
      %v8155 = vsel %vm872, %v8150, %v8154
      %v8156 = vshrl.u32 %v7927, 16
      %v8158 = vrot.slane %v8156, 4
      %v8159 = vor.u32 %v8158, %v8154
      %v8160 = vrot.slane %v8159, 4
      %v8162 = vshll.u32 %v7928, 16
      %v8164 = vrot.slane %v8162, 5
      %v8165 = vsel %vm872, %v8160, %v8164
      %v8167 = vshrl.u32 %v7929, 16
      %v8169 = vrot.slane %v8167, 4
      %v8170 = vshll.u32 %v7929, 16
      %v8172 = vrot.slane %v8170, 5
      %v8173 = vor.u32 %v8169, %v8172
      %v8174 = vrot.slane %v8173, 4
      %v8176 = vshll.u32 %v7930, 16
      %v8178 = vrot.slane %v8176, 5
      %v8179 = vsel %vm872, %v8174, %v8178
      %v8180 = vshrl.u32 %v7930, 16
      %v8182 = vrot.slane %v8180, 4
      %v8183 = vor.u32 %v8182, %v8178
      %v8184 = vrot.slane %v8183, 4
      %v8186 = vshll.u32 %v7931, 16
      %v8188 = vrot.slane %v8186, 5
      %v8189 = vsel %vm872, %v8184, %v8188
      %v8191 = vshrl.u32 %v7932, 16
      %v8193 = vrot.slane %v8191, 4
      %v8194 = vshll.u32 %v7932, 16
      %v8196 = vrot.slane %v8194, 5
      %v8197 = vor.u32 %v8193, %v8196
      %v8198 = vrot.slane %v8197, 4
      %v8200 = vshll.u32 %v7933, 16
      %v8202 = vrot.slane %v8200, 5
      %v8203 = vsel %vm872, %v8198, %v8202
      %v8204 = vshrl.u32 %v7933, 16
      %v8206 = vrot.slane %v8204, 4
      %v8207 = vor.u32 %v8206, %v8202
      %v8208 = vrot.slane %v8207, 4
      %v8210 = vshll.u32 %v7934, 16
      %v8212 = vrot.slane %v8210, 5
      %v8213 = vsel %vm872, %v8208, %v8212
      %v8215 = vshrl.u32 %v7935, 16
      %v8217 = vrot.slane %v8215, 4
      %v8218 = vshll.u32 %v7935, 16
      %v8220 = vrot.slane %v8218, 5
      %v8221 = vor.u32 %v8217, %v8220
      %v8222 = vrot.slane %v8221, 4
      %v8224 = vshll.u32 %v7936, 16
      %v8226 = vrot.slane %v8224, 5
      %v8227 = vsel %vm872, %v8222, %v8226
      %v8228 = vshrl.u32 %v7936, 16
      %v8230 = vrot.slane %v8228, 4
      %v8231 = vor.u32 %v8230, %v8226
      %v8232 = vrot.slane %v8231, 4
      %v8234 = vshll.u32 %v7937, 16
      %v8236 = vrot.slane %v8234, 5
      %v8237 = vsel %vm872, %v8232, %v8236
      %v8239 = vshrl.u32 %v7938, 16
      %v8241 = vrot.slane %v8239, 4
      %v8242 = vshll.u32 %v7938, 16
      %v8244 = vrot.slane %v8242, 5
      %v8245 = vor.u32 %v8241, %v8244
      %v8246 = vrot.slane %v8245, 4
      %v8248 = vshll.u32 %v7939, 16
      %v8250 = vrot.slane %v8248, 5
      %v8251 = vsel %vm872, %v8246, %v8250
      %v8252 = vshrl.u32 %v7939, 16
      %v8254 = vrot.slane %v8252, 4
      %v8255 = vor.u32 %v8254, %v8250
      %v8256 = vrot.slane %v8255, 4
      %v8258 = vshll.u32 %v7940, 16
      %v8260 = vrot.slane %v8258, 5
      %v8261 = vsel %vm872, %v8256, %v8260
      %v8263 = vshrl.u32 %v7941, 16
      %v8265 = vrot.slane %v8263, 4
      %v8266 = vshll.u32 %v7941, 16
      %v8268 = vrot.slane %v8266, 5
      %v8269 = vor.u32 %v8265, %v8268
      %v8270 = vrot.slane %v8269, 4
      %v8272 = vshll.u32 %v7942, 16
      %v8274 = vrot.slane %v8272, 5
      %v8275 = vsel %vm872, %v8270, %v8274
      %v8276 = vshrl.u32 %v7942, 16
      %v8278 = vrot.slane %v8276, 4
      %v8279 = vor.u32 %v8278, %v8274
      %v8280 = vrot.slane %v8279, 4
      %v8282 = vshll.u32 %v7943, 16
      %v8284 = vrot.slane %v8282, 5
      %v8285 = vsel %vm872, %v8280, %v8284
      %v8287 = vshrl.u32 %v7944, 16
      %v8289 = vrot.slane %v8287, 4
      %v8290 = vshll.u32 %v7944, 16
      %v8292 = vrot.slane %v8290, 5
      %v8293 = vor.u32 %v8289, %v8292
      %v8294 = vrot.slane %v8293, 4
      %v8296 = vshll.u32 %v7945, 16
      %v8298 = vrot.slane %v8296, 5
      %v8299 = vsel %vm872, %v8294, %v8298
      %v8300 = vshrl.u32 %v7945, 16
      %v8302 = vrot.slane %v8300, 4
      %v8303 = vor.u32 %v8302, %v8298
      %v8304 = vrot.slane %v8303, 4
      %v8306 = vshll.u32 %v7946, 16
      %v8308 = vrot.slane %v8306, 5
      %v8309 = vsel %vm872, %v8304, %v8308
      %v8311 = vshrl.u32 %v7947, 16
      %v8313 = vrot.slane %v8311, 4
      %v8314 = vshll.u32 %v7947, 16
      %v8316 = vrot.slane %v8314, 5
      %v8317 = vor.u32 %v8313, %v8316
      %v8318 = vrot.slane %v8317, 4
      %v8320 = vshll.u32 %v7948, 16
      %v8322 = vrot.slane %v8320, 5
      %v8323 = vsel %vm872, %v8318, %v8322
      %v8324 = vshrl.u32 %v7948, 16
      %v8326 = vrot.slane %v8324, 4
      %v8327 = vor.u32 %v8326, %v8322
      %v8328 = vrot.slane %v8327, 4
      %v8330 = vshll.u32 %v7949, 16
      %v8332 = vrot.slane %v8330, 5
      %v8333 = vsel %vm872, %v8328, %v8332
      %8366 = vst [vmem:[#allocation3 + $0x1c] sm:$0xf] %v7963
      %8367 = vst [vmem:[#allocation3 + $0x40] sm:$0xf] %v7973
      %8368 = vst [vmem:[#allocation3 + $0x64] sm:$0xf] %v7987
      %8369 = vst [vmem:[#allocation3 + $0x88] sm:$0xf] %v7997
      %8370 = vst [vmem:[#allocation3 + $0xac] sm:$0xf] %v8011
      %8371 = vst [vmem:[#allocation3 + $0xd0] sm:$0xf] %v8021
      %8372 = vst [vmem:[#allocation3 + $0xf4] sm:$0xf] %v8035
      %8373 = vst [vmem:[#allocation3 + $0x118] sm:$0xf] %v8045
      %8374 = vst [vmem:[#allocation3 + $0x13c] sm:$0xf] %v8059
      %8375 = vst [vmem:[#allocation3 + $0x160] sm:$0xf] %v8069
      %8376 = vst [vmem:[#allocation3 + $0x184] sm:$0xf] %v8083
      %8377 = vst [vmem:[#allocation3 + $0x1a8] sm:$0xf] %v8093
      %8378 = vst [vmem:[#allocation3 + $0x1cc] sm:$0xf] %v8107
      %8379 = vst [vmem:[#allocation3 + $0x1f0] sm:$0xf] %v8117
      %8380 = vst [vmem:[#allocation3 + $0x214] sm:$0xf] %v8131
      %8381 = vst [vmem:[#allocation3 + $0x238] sm:$0xf] %v8141
      %8382 = vst [vmem:[#allocation3 + $0x25c] sm:$0xf] %v8155
      %8383 = vst [vmem:[#allocation3 + $0x280] sm:$0xf] %v8165
      %8384 = vst [vmem:[#allocation3 + $0x2a4] sm:$0xf] %v8179
      %8385 = vst [vmem:[#allocation3 + $0x2c8] sm:$0xf] %v8189
      %8386 = vst [vmem:[#allocation3 + $0x2ec] sm:$0xf] %v8203
      %8387 = vst [vmem:[#allocation3 + $0x310] sm:$0xf] %v8213
      %8388 = vst [vmem:[#allocation3 + $0x334] sm:$0xf] %v8227
      %8389 = vst [vmem:[#allocation3 + $0x358] sm:$0xf] %v8237
      %8390 = vst [vmem:[#allocation3 + $0x37c] sm:$0xf] %v8251
      %8391 = vst [vmem:[#allocation3 + $0x3a0] sm:$0xf] %v8261
      %8392 = vst [vmem:[#allocation3 + $0x3c4] sm:$0xf] %v8275
      %8393 = vst [vmem:[#allocation3 + $0x3e8] sm:$0xf] %v8285
      %8394 = vst [vmem:[#allocation3 + $0x40c] sm:$0xf] %v8299
      %8395 = vst [vmem:[#allocation3 + $0x430] sm:$0xf] %v8309
      %8396 = vst [vmem:[#allocation3 + $0x454] sm:$0xf] %v8323
      %8397 = vst [vmem:[#allocation3 + $0x478] sm:$0xf] %v8333
      %v8398 = vld [vmem:[%s2428] sm:$0xe]
      %v8399 = vld [vmem:[%s2428 + $0x4] sm:$0xf]
      %v8400 = vld [vmem:[%s2428 + $0x8] sm:$0x1]
      %v8401 = vld [vmem:[%s2428 + $0xc] sm:$0xe]
      %v8402 = vld [vmem:[%s2428 + $0x10] sm:$0xf]
      %v8403 = vld [vmem:[%s2428 + $0x14] sm:$0x1]
      %v8404 = vld [vmem:[%s2428 + $0x18] sm:$0xe]
      %v8405 = vld [vmem:[%s2428 + $0x1c] sm:$0xf]
      %v8406 = vld [vmem:[%s2428 + $0x20] sm:$0x1]
      %v8407 = vld [vmem:[%s2428 + $0x24] sm:$0xe]
      %v8408 = vld [vmem:[%s2428 + $0x28] sm:$0xf]
      %v8409 = vld [vmem:[%s2428 + $0x2c] sm:$0x1]
      %v8410 = vld [vmem:[%s2428 + $0x30] sm:$0xe]
      %v8411 = vld [vmem:[%s2428 + $0x34] sm:$0xf]
      %v8412 = vld [vmem:[%s2428 + $0x38] sm:$0x1]
      %v8413 = vld [vmem:[%s2428 + $0x3c] sm:$0xe]
      %v8414 = vld [vmem:[%s2428 + $0x40] sm:$0xf]
      %v8415 = vld [vmem:[%s2428 + $0x44] sm:$0x1]
      %v8416 = vld [vmem:[%s2428 + $0x48] sm:$0xe]
      %v8417 = vld [vmem:[%s2428 + $0x4c] sm:$0xf]
      %v8418 = vld [vmem:[%s2428 + $0x50] sm:$0x1]
      %v8419 = vld [vmem:[%s2428 + $0x54] sm:$0xe]
      %v8420 = vld [vmem:[%s2428 + $0x58] sm:$0xf]
      %v8421 = vld [vmem:[%s2428 + $0x5c] sm:$0x1]
      %v8422 = vld [vmem:[%s2428 + $0x60] sm:$0xe]
      %v8423 = vld [vmem:[%s2428 + $0x64] sm:$0xf]
      %v8424 = vld [vmem:[%s2428 + $0x68] sm:$0x1]
      %v8425 = vld [vmem:[%s2428 + $0x6c] sm:$0xe]
      %v8426 = vld [vmem:[%s2428 + $0x70] sm:$0xf]
      %v8427 = vld [vmem:[%s2428 + $0x74] sm:$0x1]
      %v8428 = vld [vmem:[%s2428 + $0x78] sm:$0xe]
      %v8429 = vld [vmem:[%s2428 + $0x7c] sm:$0xf]
      %v8430 = vld [vmem:[%s2428 + $0x80] sm:$0x1]
      %v8431 = vld [vmem:[%s2428 + $0x84] sm:$0xe]
      %v8432 = vld [vmem:[%s2428 + $0x88] sm:$0xf]
      %v8433 = vld [vmem:[%s2428 + $0x8c] sm:$0x1]
      %v8434 = vld [vmem:[%s2428 + $0x90] sm:$0xe]
      %v8435 = vld [vmem:[%s2428 + $0x94] sm:$0xf]
      %v8436 = vld [vmem:[%s2428 + $0x98] sm:$0x1]
      %v8437 = vld [vmem:[%s2428 + $0x9c] sm:$0xe]
      %v8438 = vld [vmem:[%s2428 + $0xa0] sm:$0xf]
      %v8439 = vld [vmem:[%s2428 + $0xa4] sm:$0x1]
      %v8440 = vld [vmem:[%s2428 + $0xa8] sm:$0xe]
      %v8441 = vld [vmem:[%s2428 + $0xac] sm:$0xf]
      %v8442 = vld [vmem:[%s2428 + $0xb0] sm:$0x1]
      %v8443 = vld [vmem:[%s2428 + $0xb4] sm:$0xe]
      %v8444 = vld [vmem:[%s2428 + $0xb8] sm:$0xf]
      %v8445 = vld [vmem:[%s2428 + $0xbc] sm:$0x1]
      %v8494 = vrot.slane %v8398, 5
      %v8495 = vrot.slane %v8494, 4
      %v8496 = vrot.slane %v8399, 5
      %v8497 = vsel %vm1419, %v8495, %v8496
      %v8498 = vrot.slane %v8496, 4
      %v8499 = vrot.slane %v8400, 5
      %v8500 = vsel %vm1419, %v8498, %v8499
      %v8501 = vrot.slane %v8401, 5
      %v8502 = vrot.slane %v8501, 4
      %v8503 = vrot.slane %v8402, 5
      %v8504 = vsel %vm1419, %v8502, %v8503
      %v8505 = vrot.slane %v8503, 4
      %v8506 = vrot.slane %v8403, 5
      %v8507 = vsel %vm1419, %v8505, %v8506
      %v8508 = vrot.slane %v8404, 5
      %v8509 = vrot.slane %v8508, 4
      %v8510 = vrot.slane %v8405, 5
      %v8511 = vsel %vm1419, %v8509, %v8510
      %v8512 = vrot.slane %v8510, 4
      %v8513 = vrot.slane %v8406, 5
      %v8514 = vsel %vm1419, %v8512, %v8513
      %v8515 = vrot.slane %v8407, 5
      %v8516 = vrot.slane %v8515, 4
      %v8517 = vrot.slane %v8408, 5
      %v8518 = vsel %vm1419, %v8516, %v8517
      %v8519 = vrot.slane %v8517, 4
      %v8520 = vrot.slane %v8409, 5
      %v8521 = vsel %vm1419, %v8519, %v8520
      %v8522 = vrot.slane %v8410, 5
      %v8523 = vrot.slane %v8522, 4
      %v8524 = vrot.slane %v8411, 5
      %v8525 = vsel %vm1419, %v8523, %v8524
      %v8526 = vrot.slane %v8524, 4
      %v8527 = vrot.slane %v8412, 5
      %v8528 = vsel %vm1419, %v8526, %v8527
      %v8529 = vrot.slane %v8413, 5
      %v8530 = vrot.slane %v8529, 4
      %v8531 = vrot.slane %v8414, 5
      %v8532 = vsel %vm1419, %v8530, %v8531
      %v8533 = vrot.slane %v8531, 4
      %v8534 = vrot.slane %v8415, 5
      %v8535 = vsel %vm1419, %v8533, %v8534
      %v8536 = vrot.slane %v8416, 5
      %v8537 = vrot.slane %v8536, 4
      %v8538 = vrot.slane %v8417, 5
      %v8539 = vsel %vm1419, %v8537, %v8538
      %v8540 = vrot.slane %v8538, 4
      %v8541 = vrot.slane %v8418, 5
      %v8542 = vsel %vm1419, %v8540, %v8541
      %v8543 = vrot.slane %v8419, 5
      %v8544 = vrot.slane %v8543, 4
      %v8545 = vrot.slane %v8420, 5
      %v8546 = vsel %vm1419, %v8544, %v8545
      %v8547 = vrot.slane %v8545, 4
      %v8548 = vrot.slane %v8421, 5
      %v8549 = vsel %vm1419, %v8547, %v8548
      %v8550 = vrot.slane %v8422, 5
      %v8551 = vrot.slane %v8550, 4
      %v8552 = vrot.slane %v8423, 5
      %v8553 = vsel %vm1419, %v8551, %v8552
      %v8554 = vrot.slane %v8552, 4
      %v8555 = vrot.slane %v8424, 5
      %v8556 = vsel %vm1419, %v8554, %v8555
      %v8557 = vrot.slane %v8425, 5
      %v8558 = vrot.slane %v8557, 4
      %v8559 = vrot.slane %v8426, 5
      %v8560 = vsel %vm1419, %v8558, %v8559
      %v8561 = vrot.slane %v8559, 4
      %v8562 = vrot.slane %v8427, 5
      %v8563 = vsel %vm1419, %v8561, %v8562
      %v8564 = vrot.slane %v8428, 5
      %v8565 = vrot.slane %v8564, 4
      %v8566 = vrot.slane %v8429, 5
      %v8567 = vsel %vm1419, %v8565, %v8566
      %v8568 = vrot.slane %v8566, 4
      %v8569 = vrot.slane %v8430, 5
      %v8570 = vsel %vm1419, %v8568, %v8569
      %v8571 = vrot.slane %v8431, 5
      %v8572 = vrot.slane %v8571, 4
      %v8573 = vrot.slane %v8432, 5
      %v8574 = vsel %vm1419, %v8572, %v8573
      %v8575 = vrot.slane %v8573, 4
      %v8576 = vrot.slane %v8433, 5
      %v8577 = vsel %vm1419, %v8575, %v8576
      %v8578 = vrot.slane %v8434, 5
      %v8579 = vrot.slane %v8578, 4
      %v8580 = vrot.slane %v8435, 5
      %v8581 = vsel %vm1419, %v8579, %v8580
      %v8582 = vrot.slane %v8580, 4
      %v8583 = vrot.slane %v8436, 5
      %v8584 = vsel %vm1419, %v8582, %v8583
      %v8585 = vrot.slane %v8437, 5
      %v8586 = vrot.slane %v8585, 4
      %v8587 = vrot.slane %v8438, 5
      %v8588 = vsel %vm1419, %v8586, %v8587
      %v8589 = vrot.slane %v8587, 4
      %v8590 = vrot.slane %v8439, 5
      %v8591 = vsel %vm1419, %v8589, %v8590
      %v8592 = vrot.slane %v8440, 5
      %v8593 = vrot.slane %v8592, 4
      %v8594 = vrot.slane %v8441, 5
      %v8595 = vsel %vm1419, %v8593, %v8594
      %v8596 = vrot.slane %v8594, 4
      %v8597 = vrot.slane %v8442, 5
      %v8598 = vsel %vm1419, %v8596, %v8597
      %v8599 = vrot.slane %v8443, 5
      %v8600 = vrot.slane %v8599, 4
      %v8601 = vrot.slane %v8444, 5
      %v8602 = vsel %vm1419, %v8600, %v8601
      %v8603 = vrot.slane %v8601, 4
      %v8604 = vrot.slane %v8445, 5
      %v8605 = vsel %vm1419, %v8603, %v8604
      %8638 = vst [vmem:[#allocation3 + $0x20] sm:$0xf] %v8497
      %8639 = vst [vmem:[#allocation3 + $0x44] sm:$0xf] %v8500
      %8640 = vst [vmem:[#allocation3 + $0x68] sm:$0xf] %v8504
      %8641 = vst [vmem:[#allocation3 + $0x8c] sm:$0xf] %v8507
      %8642 = vst [vmem:[#allocation3 + $0xb0] sm:$0xf] %v8511
      %8643 = vst [vmem:[#allocation3 + $0xd4] sm:$0xf] %v8514
      %8644 = vst [vmem:[#allocation3 + $0xf8] sm:$0xf] %v8518
      %8645 = vst [vmem:[#allocation3 + $0x11c] sm:$0xf] %v8521
      %8646 = vst [vmem:[#allocation3 + $0x140] sm:$0xf] %v8525
      %8647 = vst [vmem:[#allocation3 + $0x164] sm:$0xf] %v8528
      %8648 = vst [vmem:[#allocation3 + $0x188] sm:$0xf] %v8532
      %8649 = vst [vmem:[#allocation3 + $0x1ac] sm:$0xf] %v8535
      %8650 = vst [vmem:[#allocation3 + $0x1d0] sm:$0xf] %v8539
      %8651 = vst [vmem:[#allocation3 + $0x1f4] sm:$0xf] %v8542
      %8652 = vst [vmem:[#allocation3 + $0x218] sm:$0xf] %v8546
      %8653 = vst [vmem:[#allocation3 + $0x23c] sm:$0xf] %v8549
      %8654 = vst [vmem:[#allocation3 + $0x260] sm:$0xf] %v8553
      %8655 = vst [vmem:[#allocation3 + $0x284] sm:$0xf] %v8556
      %8656 = vst [vmem:[#allocation3 + $0x2a8] sm:$0xf] %v8560
      %8657 = vst [vmem:[#allocation3 + $0x2cc] sm:$0xf] %v8563
      %8658 = vst [vmem:[#allocation3 + $0x2f0] sm:$0xf] %v8567
      %8659 = vst [vmem:[#allocation3 + $0x314] sm:$0xf] %v8570
      %8660 = vst [vmem:[#allocation3 + $0x338] sm:$0xf] %v8574
      %8661 = vst [vmem:[#allocation3 + $0x35c] sm:$0xf] %v8577
      %8662 = vst [vmem:[#allocation3 + $0x380] sm:$0xf] %v8581
      %8663 = vst [vmem:[#allocation3 + $0x3a4] sm:$0xf] %v8584
      %8664 = vst [vmem:[#allocation3 + $0x3c8] sm:$0xf] %v8588
      %8665 = vst [vmem:[#allocation3 + $0x3ec] sm:$0xf] %v8591
      %8666 = vst [vmem:[#allocation3 + $0x410] sm:$0xf] %v8595
      %8667 = vst [vmem:[#allocation3 + $0x434] sm:$0xf] %v8598
      %8668 = vst [vmem:[#allocation3 + $0x458] sm:$0xf] %v8602
      %8669 = vst [vmem:[#allocation3 + $0x47c] sm:$0xf] %v8605
      %v8670 = vld [vmem:[#allocation3] sm:$0xff]
      %v8671 = vld [vmem:[#allocation3 + $0x8] sm:$0xff]
      %v8672 = vld [vmem:[#allocation3 + $0x10] sm:$0xff]
      %v8673 = vld [vmem:[#allocation3 + $0x18] sm:$0xff]
      %v8674 = vld [vmem:[#allocation3 + $0x20] sm:$0xf]
      %v8675 = vld [vmem:[#allocation3 + $0x24] sm:$0xff]
      %v8676 = vld [vmem:[#allocation3 + $0x2c] sm:$0xff]
      %v8677 = vld [vmem:[#allocation3 + $0x34] sm:$0xff]
      %v8678 = vld [vmem:[#allocation3 + $0x3c] sm:$0xff]
      %v8679 = vld [vmem:[#allocation3 + $0x44] sm:$0xf]
      %v8680 = vld [vmem:[#allocation3 + $0x48] sm:$0xff]
      %v8681 = vld [vmem:[#allocation3 + $0x50] sm:$0xff]
      %v8682 = vld [vmem:[#allocation3 + $0x58] sm:$0xff]
      %v8683 = vld [vmem:[#allocation3 + $0x60] sm:$0xff]
      %v8684 = vld [vmem:[#allocation3 + $0x68] sm:$0xf]
      %v8685 = vld [vmem:[#allocation3 + $0x6c] sm:$0xff]
      %v8686 = vld [vmem:[#allocation3 + $0x74] sm:$0xff]
      %v8687 = vld [vmem:[#allocation3 + $0x7c] sm:$0xff]
      %v8688 = vld [vmem:[#allocation3 + $0x84] sm:$0xff]
      %v8689 = vld [vmem:[#allocation3 + $0x8c] sm:$0xf]
      %v8690 = vld [vmem:[#allocation3 + $0x90] sm:$0xff]
      %v8691 = vld [vmem:[#allocation3 + $0x98] sm:$0xff]
      %v8692 = vld [vmem:[#allocation3 + $0xa0] sm:$0xff]
      %v8693 = vld [vmem:[#allocation3 + $0xa8] sm:$0xff]
      %v8694 = vld [vmem:[#allocation3 + $0xb0] sm:$0xf]
      %v8695 = vld [vmem:[#allocation3 + $0xb4] sm:$0xff]
      %v8696 = vld [vmem:[#allocation3 + $0xbc] sm:$0xff]
      %v8697 = vld [vmem:[#allocation3 + $0xc4] sm:$0xff]
      %v8698 = vld [vmem:[#allocation3 + $0xcc] sm:$0xff]
      %v8699 = vld [vmem:[#allocation3 + $0xd4] sm:$0xf]
      %v8700 = vld [vmem:[#allocation3 + $0xd8] sm:$0xff]
      %v8701 = vld [vmem:[#allocation3 + $0xe0] sm:$0xff]
      %v8702 = vld [vmem:[#allocation3 + $0xe8] sm:$0xff]
      %v8703 = vld [vmem:[#allocation3 + $0xf0] sm:$0xff]
      %v8704 = vld [vmem:[#allocation3 + $0xf8] sm:$0xf]
      %v8705 = vld [vmem:[#allocation3 + $0xfc] sm:$0xff]
      %v8706 = vld [vmem:[#allocation3 + $0x104] sm:$0xff]
      %v8707 = vld [vmem:[#allocation3 + $0x10c] sm:$0xff]
      %v8708 = vld [vmem:[#allocation3 + $0x114] sm:$0xff]
      %v8709 = vld [vmem:[#allocation3 + $0x11c] sm:$0xf]
      %v8710 = vld [vmem:[#allocation3 + $0x120] sm:$0xff]
      %v8711 = vld [vmem:[#allocation3 + $0x128] sm:$0xff]
      %v8712 = vld [vmem:[#allocation3 + $0x130] sm:$0xff]
      %v8713 = vld [vmem:[#allocation3 + $0x138] sm:$0xff]
      %v8714 = vld [vmem:[#allocation3 + $0x140] sm:$0xf]
      %v8715 = vld [vmem:[#allocation3 + $0x144] sm:$0xff]
      %v8716 = vld [vmem:[#allocation3 + $0x14c] sm:$0xff]
      %v8717 = vld [vmem:[#allocation3 + $0x154] sm:$0xff]
      %v8718 = vld [vmem:[#allocation3 + $0x15c] sm:$0xff]
      %v8719 = vld [vmem:[#allocation3 + $0x164] sm:$0xf]
      %v8720 = vld [vmem:[#allocation3 + $0x168] sm:$0xff]
      %v8721 = vld [vmem:[#allocation3 + $0x170] sm:$0xff]
      %v8722 = vld [vmem:[#allocation3 + $0x178] sm:$0xff]
      %v8723 = vld [vmem:[#allocation3 + $0x180] sm:$0xff]
      %v8724 = vld [vmem:[#allocation3 + $0x188] sm:$0xf]
      %v8725 = vld [vmem:[#allocation3 + $0x18c] sm:$0xff]
      %v8726 = vld [vmem:[#allocation3 + $0x194] sm:$0xff]
      %v8727 = vld [vmem:[#allocation3 + $0x19c] sm:$0xff]
      %v8728 = vld [vmem:[#allocation3 + $0x1a4] sm:$0xff]
      %v8729 = vld [vmem:[#allocation3 + $0x1ac] sm:$0xf]
      %v8730 = vld [vmem:[#allocation3 + $0x1b0] sm:$0xff]
      %v8731 = vld [vmem:[#allocation3 + $0x1b8] sm:$0xff]
      %v8732 = vld [vmem:[#allocation3 + $0x1c0] sm:$0xff]
      %v8733 = vld [vmem:[#allocation3 + $0x1c8] sm:$0xff]
      %v8734 = vld [vmem:[#allocation3 + $0x1d0] sm:$0xf]
      %v8735 = vld [vmem:[#allocation3 + $0x1d4] sm:$0xff]
      %v8736 = vld [vmem:[#allocation3 + $0x1dc] sm:$0xff]
      %v8737 = vld [vmem:[#allocation3 + $0x1e4] sm:$0xff]
      %v8738 = vld [vmem:[#allocation3 + $0x1ec] sm:$0xff]
      %v8739 = vld [vmem:[#allocation3 + $0x1f4] sm:$0xf]
      %v8740 = vld [vmem:[#allocation3 + $0x1f8] sm:$0xff]
      %v8741 = vld [vmem:[#allocation3 + $0x200] sm:$0xff]
      %v8742 = vld [vmem:[#allocation3 + $0x208] sm:$0xff]
      %v8743 = vld [vmem:[#allocation3 + $0x210] sm:$0xff]
      %v8744 = vld [vmem:[#allocation3 + $0x218] sm:$0xf]
      %v8745 = vld [vmem:[#allocation3 + $0x21c] sm:$0xff]
      %v8746 = vld [vmem:[#allocation3 + $0x224] sm:$0xff]
      %v8747 = vld [vmem:[#allocation3 + $0x22c] sm:$0xff]
      %v8748 = vld [vmem:[#allocation3 + $0x234] sm:$0xff]
      %v8749 = vld [vmem:[#allocation3 + $0x23c] sm:$0xf]
      %v8750 = vld [vmem:[#allocation3 + $0x240] sm:$0xff]
      %v8751 = vld [vmem:[#allocation3 + $0x248] sm:$0xff]
      %v8752 = vld [vmem:[#allocation3 + $0x250] sm:$0xff]
      %v8753 = vld [vmem:[#allocation3 + $0x258] sm:$0xff]
      %v8754 = vld [vmem:[#allocation3 + $0x260] sm:$0xf]
      %v8755 = vld [vmem:[#allocation3 + $0x264] sm:$0xff]
      %v8756 = vld [vmem:[#allocation3 + $0x26c] sm:$0xff]
      %v8757 = vld [vmem:[#allocation3 + $0x274] sm:$0xff]
      %v8758 = vld [vmem:[#allocation3 + $0x27c] sm:$0xff]
      %v8759 = vld [vmem:[#allocation3 + $0x284] sm:$0xf]
      %v8760 = vld [vmem:[#allocation3 + $0x288] sm:$0xff]
      %v8761 = vld [vmem:[#allocation3 + $0x290] sm:$0xff]
      %v8762 = vld [vmem:[#allocation3 + $0x298] sm:$0xff]
      %v8763 = vld [vmem:[#allocation3 + $0x2a0] sm:$0xff]
      %v8764 = vld [vmem:[#allocation3 + $0x2a8] sm:$0xf]
      %v8765 = vld [vmem:[#allocation3 + $0x2ac] sm:$0xff]
      %v8766 = vld [vmem:[#allocation3 + $0x2b4] sm:$0xff]
      %v8767 = vld [vmem:[#allocation3 + $0x2bc] sm:$0xff]
      %v8768 = vld [vmem:[#allocation3 + $0x2c4] sm:$0xff]
      %v8769 = vld [vmem:[#allocation3 + $0x2cc] sm:$0xf]
      %v8770 = vld [vmem:[#allocation3 + $0x2d0] sm:$0xff]
      %v8771 = vld [vmem:[#allocation3 + $0x2d8] sm:$0xff]
      %v8772 = vld [vmem:[#allocation3 + $0x2e0] sm:$0xff]
      %v8773 = vld [vmem:[#allocation3 + $0x2e8] sm:$0xff]
      %v8774 = vld [vmem:[#allocation3 + $0x2f0] sm:$0xf]
      %v8775 = vld [vmem:[#allocation3 + $0x2f4] sm:$0xff]
      %v8776 = vld [vmem:[#allocation3 + $0x2fc] sm:$0xff]
      %v8777 = vld [vmem:[#allocation3 + $0x304] sm:$0xff]
      %v8778 = vld [vmem:[#allocation3 + $0x30c] sm:$0xff]
      %v8779 = vld [vmem:[#allocation3 + $0x314] sm:$0xf]
      %v8780 = vld [vmem:[#allocation3 + $0x318] sm:$0xff]
      %v8781 = vld [vmem:[#allocation3 + $0x320] sm:$0xff]
      %v8782 = vld [vmem:[#allocation3 + $0x328] sm:$0xff]
      %v8783 = vld [vmem:[#allocation3 + $0x330] sm:$0xff]
      %v8784 = vld [vmem:[#allocation3 + $0x338] sm:$0xf]
      %v8785 = vld [vmem:[#allocation3 + $0x33c] sm:$0xff]
      %v8786 = vld [vmem:[#allocation3 + $0x344] sm:$0xff]
      %v8787 = vld [vmem:[#allocation3 + $0x34c] sm:$0xff]
      %v8788 = vld [vmem:[#allocation3 + $0x354] sm:$0xff]
      %v8789 = vld [vmem:[#allocation3 + $0x35c] sm:$0xf]
      %v8790 = vld [vmem:[#allocation3 + $0x360] sm:$0xff]
      %v8791 = vld [vmem:[#allocation3 + $0x368] sm:$0xff]
      %v8792 = vld [vmem:[#allocation3 + $0x370] sm:$0xff]
      %v8793 = vld [vmem:[#allocation3 + $0x378] sm:$0xff]
      %v8794 = vld [vmem:[#allocation3 + $0x380] sm:$0xf]
      %v8795 = vld [vmem:[#allocation3 + $0x384] sm:$0xff]
      %v8796 = vld [vmem:[#allocation3 + $0x38c] sm:$0xff]
      %v8797 = vld [vmem:[#allocation3 + $0x394] sm:$0xff]
      %v8798 = vld [vmem:[#allocation3 + $0x39c] sm:$0xff]
      %v8799 = vld [vmem:[#allocation3 + $0x3a4] sm:$0xf]
      %v8800 = vld [vmem:[#allocation3 + $0x3a8] sm:$0xff]
      %v8801 = vld [vmem:[#allocation3 + $0x3b0] sm:$0xff]
      %v8802 = vld [vmem:[#allocation3 + $0x3b8] sm:$0xff]
      %v8803 = vld [vmem:[#allocation3 + $0x3c0] sm:$0xff]
      %v8804 = vld [vmem:[#allocation3 + $0x3c8] sm:$0xf]
      %v8805 = vld [vmem:[#allocation3 + $0x3cc] sm:$0xff]
      %v8806 = vld [vmem:[#allocation3 + $0x3d4] sm:$0xff]
      %v8807 = vld [vmem:[#allocation3 + $0x3dc] sm:$0xff]
      %v8808 = vld [vmem:[#allocation3 + $0x3e4] sm:$0xff]
      %v8809 = vld [vmem:[#allocation3 + $0x3ec] sm:$0xf]
      %v8810 = vld [vmem:[#allocation3 + $0x3f0] sm:$0xff]
      %v8811 = vld [vmem:[#allocation3 + $0x3f8] sm:$0xff]
      %v8812 = vld [vmem:[#allocation3 + $0x400] sm:$0xff]
      %v8813 = vld [vmem:[#allocation3 + $0x408] sm:$0xff]
      %v8814 = vld [vmem:[#allocation3 + $0x410] sm:$0xf]
      %v8815 = vld [vmem:[#allocation3 + $0x414] sm:$0xff]
      %v8816 = vld [vmem:[#allocation3 + $0x41c] sm:$0xff]
      %v8817 = vld [vmem:[#allocation3 + $0x424] sm:$0xff]
      %v8818 = vld [vmem:[#allocation3 + $0x42c] sm:$0xff]
      %v8819 = vld [vmem:[#allocation3 + $0x434] sm:$0xf]
      %v8820 = vld [vmem:[#allocation3 + $0x438] sm:$0xff]
      %v8821 = vld [vmem:[#allocation3 + $0x440] sm:$0xff]
      %v8822 = vld [vmem:[#allocation3 + $0x448] sm:$0xff]
      %v8823 = vld [vmem:[#allocation3 + $0x450] sm:$0xff]
      %v8824 = vld [vmem:[#allocation3 + $0x458] sm:$0xf]
      %v8825 = vld [vmem:[#allocation3 + $0x45c] sm:$0xff]
      %v8826 = vld [vmem:[#allocation3 + $0x464] sm:$0xff]
      %v8827 = vld [vmem:[#allocation3 + $0x46c] sm:$0xff]
      %v8828 = vld [vmem:[#allocation3 + $0x474] sm:$0xff]
      %v8829 = vld [vmem:[#allocation3 + $0x47c] sm:$0xf]
      %s8830 = scalar_lea.vmem %s1, 576
      %v8831 = vld [vmem:[%s8830] sm:$0xf]
      %v8832 = vld [vmem:[%s8830 + $0x4] sm:$0xf]
      %v8833 = vld [vmem:[%s8830 + $0x8] sm:$0xf]
      %v8834 = vld [vmem:[%s8830 + $0xc] sm:$0xf]
      %v8835 = vld [vmem:[%s8830 + $0x10] sm:$0xf]
      %v8836 = vld [vmem:[%s8830 + $0x14] sm:$0xf]
      %v8837 = vld [vmem:[%s8830 + $0x18] sm:$0xf]
      %v8838 = vld [vmem:[%s8830 + $0x1c] sm:$0xf]
      %v8839 = vld [vmem:[%s8830 + $0x20] sm:$0xf]
      %v8840 = vld [vmem:[%s8830 + $0x24] sm:$0xf]
      %v8841 = vld [vmem:[%s8830 + $0x28] sm:$0xf]
      %v8842 = vld [vmem:[%s8830 + $0x2c] sm:$0xf]
      %v8843 = vld [vmem:[%s8830 + $0x30] sm:$0xf]
      %v8844 = vld [vmem:[%s8830 + $0x34] sm:$0xf]
      %v8845 = vld [vmem:[%s8830 + $0x38] sm:$0xf]
      %v8846 = vld [vmem:[%s8830 + $0x3c] sm:$0xf]
      %v8847 = vld [vmem:[%s8830 + $0x40] sm:$0xf]
      %v8848 = vld [vmem:[%s8830 + $0x44] sm:$0xf]
      %v8849 = vld [vmem:[%s8830 + $0x48] sm:$0xf]
      %v8850 = vld [vmem:[%s8830 + $0x4c] sm:$0xf]
      %v8851 = vld [vmem:[%s8830 + $0x50] sm:$0xf]
      %v8852 = vld [vmem:[%s8830 + $0x54] sm:$0xf]
      %v8853 = vld [vmem:[%s8830 + $0x58] sm:$0xf]
      %v8854 = vld [vmem:[%s8830 + $0x5c] sm:$0xf]
      %v8855 = vld [vmem:[%s8830 + $0x60] sm:$0xf]
      %v8856 = vld [vmem:[%s8830 + $0x64] sm:$0xf]
      %v8857 = vld [vmem:[%s8830 + $0x68] sm:$0xf]
      %v8858 = vld [vmem:[%s8830 + $0x6c] sm:$0xf]
      %v8859 = vld [vmem:[%s8830 + $0x70] sm:$0xf]
      %v8860 = vld [vmem:[%s8830 + $0x74] sm:$0xf]
      %v8861 = vld [vmem:[%s8830 + $0x78] sm:$0xf]
      %v8862 = vld [vmem:[%s8830 + $0x7c] sm:$0xf]
      %v8863 = vld [vmem:[%s8830 + $0x80] sm:$0xf]
      %v8864 = vld [vmem:[%s8830 + $0x84] sm:$0xf]
      %v8865 = vld [vmem:[%s8830 + $0x88] sm:$0xf]
      %v8866 = vld [vmem:[%s8830 + $0x8c] sm:$0xf]
      %v8867 = vld [vmem:[%s8830 + $0x90] sm:$0xf]
      %v8868 = vld [vmem:[%s8830 + $0x94] sm:$0xf]
      %v8869 = vld [vmem:[%s8830 + $0x98] sm:$0xf]
      %v8870 = vld [vmem:[%s8830 + $0x9c] sm:$0xf]
      %v8871 = vld [vmem:[%s8830 + $0xa0] sm:$0xf]
      %v8872 = vld [vmem:[%s8830 + $0xa4] sm:$0xf]
      %v8873 = vld [vmem:[%s8830 + $0xa8] sm:$0xf]
      %v8874 = vld [vmem:[%s8830 + $0xac] sm:$0xf]
      %v8875 = vld [vmem:[%s8830 + $0xb0] sm:$0xf]
      %v8876 = vld [vmem:[%s8830 + $0xb4] sm:$0xf]
      %v8877 = vld [vmem:[%s8830 + $0xb8] sm:$0xf]
      %v8878 = vld [vmem:[%s8830 + $0xbc] sm:$0xf]
      %v8879 = vld [vmem:[%s8830 + $0xc0] sm:$0xf]
      %v8880 = vld [vmem:[%s8830 + $0xc4] sm:$0xf]
      %v8881 = vld [vmem:[%s8830 + $0xc8] sm:$0xf]
      %v8882 = vld [vmem:[%s8830 + $0xcc] sm:$0xf]
      %v8883 = vld [vmem:[%s8830 + $0xd0] sm:$0xf]
      %v8884 = vld [vmem:[%s8830 + $0xd4] sm:$0xf]
      %v8885 = vld [vmem:[%s8830 + $0xd8] sm:$0xf]
      %v8886 = vld [vmem:[%s8830 + $0xdc] sm:$0xf]
      %v8887 = vld [vmem:[%s8830 + $0xe0] sm:$0xf]
      %v8888 = vld [vmem:[%s8830 + $0xe4] sm:$0xf]
      %v8889 = vld [vmem:[%s8830 + $0xe8] sm:$0xf]
      %v8890 = vld [vmem:[%s8830 + $0xec] sm:$0xf]
      %v8891 = vld [vmem:[%s8830 + $0xf0] sm:$0xf]
      %v8892 = vld [vmem:[%s8830 + $0xf4] sm:$0xf]
      %v8893 = vld [vmem:[%s8830 + $0xf8] sm:$0xf]
      %v8894 = vld [vmem:[%s8830 + $0xfc] sm:$0xf]
      %v8895 = vld [vmem:[%s8830 + $0x100] sm:$0xf]
      %v8896 = vld [vmem:[%s8830 + $0x104] sm:$0xf]
      %v8897 = vld [vmem:[%s8830 + $0x108] sm:$0xf]
      %v8898 = vld [vmem:[%s8830 + $0x10c] sm:$0xf]
      %v8899 = vld [vmem:[%s8830 + $0x110] sm:$0xf]
      %v8900 = vld [vmem:[%s8830 + $0x114] sm:$0xf]
      %v8901 = vld [vmem:[%s8830 + $0x118] sm:$0xf]
      %v8902 = vld [vmem:[%s8830 + $0x11c] sm:$0xf]
      %v8903 = vld [vmem:[%s8830 + $0x120] sm:$0xf]
      %v8904 = vld [vmem:[%s8830 + $0x124] sm:$0xf]
      %v8905 = vld [vmem:[%s8830 + $0x128] sm:$0xf]
      %v8906 = vld [vmem:[%s8830 + $0x12c] sm:$0xf]
      %v8907 = vld [vmem:[%s8830 + $0x130] sm:$0xf]
      %v8908 = vld [vmem:[%s8830 + $0x134] sm:$0xf]
      %v8909 = vld [vmem:[%s8830 + $0x138] sm:$0xf]
      %v8910 = vld [vmem:[%s8830 + $0x13c] sm:$0xf]
      %v8911 = vld [vmem:[%s8830 + $0x140] sm:$0xf]
      %v8912 = vld [vmem:[%s8830 + $0x144] sm:$0xf]
      %v8913 = vld [vmem:[%s8830 + $0x148] sm:$0xf]
      %v8914 = vld [vmem:[%s8830 + $0x14c] sm:$0xf]
      %v8915 = vld [vmem:[%s8830 + $0x150] sm:$0xf]
      %v8916 = vld [vmem:[%s8830 + $0x154] sm:$0xf]
      %v8917 = vld [vmem:[%s8830 + $0x158] sm:$0xf]
      %v8918 = vld [vmem:[%s8830 + $0x15c] sm:$0xf]
      %v8919 = vld [vmem:[%s8830 + $0x160] sm:$0xf]
      %v8920 = vld [vmem:[%s8830 + $0x164] sm:$0xf]
      %v8921 = vld [vmem:[%s8830 + $0x168] sm:$0xf]
      %v8922 = vld [vmem:[%s8830 + $0x16c] sm:$0xf]
      %v8923 = vld [vmem:[%s8830 + $0x170] sm:$0xf]
      %v8924 = vld [vmem:[%s8830 + $0x174] sm:$0xf]
      %v8925 = vld [vmem:[%s8830 + $0x178] sm:$0xf]
      %v8926 = vld [vmem:[%s8830 + $0x17c] sm:$0xf]
      %v8927 = vld [vmem:[%s8830 + $0x180] sm:$0xf]
      %v8928 = vld [vmem:[%s8830 + $0x184] sm:$0xf]
      %v8929 = vld [vmem:[%s8830 + $0x188] sm:$0xf]
      %v8930 = vld [vmem:[%s8830 + $0x18c] sm:$0xf]
      %v8931 = vld [vmem:[%s8830 + $0x190] sm:$0xf]
      %v8932 = vld [vmem:[%s8830 + $0x194] sm:$0xf]
      %v8933 = vld [vmem:[%s8830 + $0x198] sm:$0xf]
      %v8934 = vld [vmem:[%s8830 + $0x19c] sm:$0xf]
      %v8935 = vld [vmem:[%s8830 + $0x1a0] sm:$0xf]
      %v8936 = vld [vmem:[%s8830 + $0x1a4] sm:$0xf]
      %v8937 = vld [vmem:[%s8830 + $0x1a8] sm:$0xf]
      %v8938 = vld [vmem:[%s8830 + $0x1ac] sm:$0xf]
      %v8939 = vld [vmem:[%s8830 + $0x1b0] sm:$0xf]
      %v8940 = vld [vmem:[%s8830 + $0x1b4] sm:$0xf]
      %v8941 = vld [vmem:[%s8830 + $0x1b8] sm:$0xf]
      %v8942 = vld [vmem:[%s8830 + $0x1bc] sm:$0xf]
      %v8943 = vld [vmem:[%s8830 + $0x1c0] sm:$0xf]
      %v8944 = vld [vmem:[%s8830 + $0x1c4] sm:$0xf]
      %v8945 = vld [vmem:[%s8830 + $0x1c8] sm:$0xf]
      %v8946 = vld [vmem:[%s8830 + $0x1cc] sm:$0xf]
      %v8947 = vld [vmem:[%s8830 + $0x1d0] sm:$0xf]
      %v8948 = vld [vmem:[%s8830 + $0x1d4] sm:$0xf]
      %v8949 = vld [vmem:[%s8830 + $0x1d8] sm:$0xf]
      %v8950 = vld [vmem:[%s8830 + $0x1dc] sm:$0xf]
      %v8951 = vld [vmem:[%s8830 + $0x1e0] sm:$0xf]
      %v8952 = vld [vmem:[%s8830 + $0x1e4] sm:$0xf]
      %v8953 = vld [vmem:[%s8830 + $0x1e8] sm:$0xf]
      %v8954 = vld [vmem:[%s8830 + $0x1ec] sm:$0xf]
      %v8955 = vld [vmem:[%s8830 + $0x1f0] sm:$0xf]
      %v8956 = vld [vmem:[%s8830 + $0x1f4] sm:$0xf]
      %v8957 = vld [vmem:[%s8830 + $0x1f8] sm:$0xf]
      %v8958 = vld [vmem:[%s8830 + $0x1fc] sm:$0xf]
      %v8959 = vld [vmem:[%s8830 + $0x200] sm:$0xf]
      %v8960 = vld [vmem:[%s8830 + $0x204] sm:$0xf]
      %v8961 = vld [vmem:[%s8830 + $0x208] sm:$0xf]
      %v8962 = vld [vmem:[%s8830 + $0x20c] sm:$0xf]
      %v8963 = vld [vmem:[%s8830 + $0x210] sm:$0xf]
      %v8964 = vld [vmem:[%s8830 + $0x214] sm:$0xf]
      %v8965 = vld [vmem:[%s8830 + $0x218] sm:$0xf]
      %v8966 = vld [vmem:[%s8830 + $0x21c] sm:$0xf]
      %v8967 = vld [vmem:[%s8830 + $0x220] sm:$0xf]
      %v8968 = vld [vmem:[%s8830 + $0x224] sm:$0xf]
      %v8969 = vld [vmem:[%s8830 + $0x228] sm:$0xf]
      %v8970 = vld [vmem:[%s8830 + $0x22c] sm:$0xf]
      %v8971 = vld [vmem:[%s8830 + $0x230] sm:$0xf]
      %v8972 = vld [vmem:[%s8830 + $0x234] sm:$0xf]
      %v8973 = vld [vmem:[%s8830 + $0x238] sm:$0xf]
      %v8974 = vld [vmem:[%s8830 + $0x23c] sm:$0xf]
      %s8975 = scalar_lea.vmem %s2, 1
      %v8976 = vld [vmem:[%s8975] sm:$0x1]
      %v8978 = vperm.slane %v8976, 0
      %v9140 = vunpack.c.l.b16 %v8670
      %v9141 = vunpack.c.h.b16 %v8670
      %v9142 = vunpack.c.l.b16 %v8671
      %v9143 = vunpack.c.h.b16 %v8671
      %v9144 = vunpack.c.l.b16 %v8672
      %v9145 = vunpack.c.h.b16 %v8672
      %v9146 = vunpack.c.l.b16 %v8673
      %v9147 = vunpack.c.h.b16 %v8673
      %v9148 = vunpack.c.l.b16 %v8674
      %v9149 = vunpack.c.l.b16 %v8675
      %v9150 = vunpack.c.h.b16 %v8675
      %v9151 = vunpack.c.l.b16 %v8676
      %v9152 = vunpack.c.h.b16 %v8676
      %v9153 = vunpack.c.l.b16 %v8677
      %v9154 = vunpack.c.h.b16 %v8677
      %v9155 = vunpack.c.l.b16 %v8678
      %v9156 = vunpack.c.h.b16 %v8678
      %v9157 = vunpack.c.l.b16 %v8679
      %v9158 = vunpack.c.l.b16 %v8680
      %v9159 = vunpack.c.h.b16 %v8680
      %v9160 = vunpack.c.l.b16 %v8681
      %v9161 = vunpack.c.h.b16 %v8681
      %v9162 = vunpack.c.l.b16 %v8682
      %v9163 = vunpack.c.h.b16 %v8682
      %v9164 = vunpack.c.l.b16 %v8683
      %v9165 = vunpack.c.h.b16 %v8683
      %v9166 = vunpack.c.l.b16 %v8684
      %v9167 = vunpack.c.l.b16 %v8685
      %v9168 = vunpack.c.h.b16 %v8685
      %v9169 = vunpack.c.l.b16 %v8686
      %v9170 = vunpack.c.h.b16 %v8686
      %v9171 = vunpack.c.l.b16 %v8687
      %v9172 = vunpack.c.h.b16 %v8687
      %v9173 = vunpack.c.l.b16 %v8688
      %v9174 = vunpack.c.h.b16 %v8688
      %v9175 = vunpack.c.l.b16 %v8689
      %v9176 = vunpack.c.l.b16 %v8690
      %v9177 = vunpack.c.h.b16 %v8690
      %v9178 = vunpack.c.l.b16 %v8691
      %v9179 = vunpack.c.h.b16 %v8691
      %v9180 = vunpack.c.l.b16 %v8692
      %v9181 = vunpack.c.h.b16 %v8692
      %v9182 = vunpack.c.l.b16 %v8693
      %v9183 = vunpack.c.h.b16 %v8693
      %v9184 = vunpack.c.l.b16 %v8694
      %v9185 = vunpack.c.l.b16 %v8695
      %v9186 = vunpack.c.h.b16 %v8695
      %v9187 = vunpack.c.l.b16 %v8696
      %v9188 = vunpack.c.h.b16 %v8696
      %v9189 = vunpack.c.l.b16 %v8697
      %v9190 = vunpack.c.h.b16 %v8697
      %v9191 = vunpack.c.l.b16 %v8698
      %v9192 = vunpack.c.h.b16 %v8698
      %v9193 = vunpack.c.l.b16 %v8699
      %v9194 = vunpack.c.l.b16 %v8700
      %v9195 = vunpack.c.h.b16 %v8700
      %v9196 = vunpack.c.l.b16 %v8701
      %v9197 = vunpack.c.h.b16 %v8701
      %v9198 = vunpack.c.l.b16 %v8702
      %v9199 = vunpack.c.h.b16 %v8702
      %v9200 = vunpack.c.l.b16 %v8703
      %v9201 = vunpack.c.h.b16 %v8703
      %v9202 = vunpack.c.l.b16 %v8704
      %v9203 = vunpack.c.l.b16 %v8705
      %v9204 = vunpack.c.h.b16 %v8705
      %v9205 = vunpack.c.l.b16 %v8706
      %v9206 = vunpack.c.h.b16 %v8706
      %v9207 = vunpack.c.l.b16 %v8707
      %v9208 = vunpack.c.h.b16 %v8707
      %v9209 = vunpack.c.l.b16 %v8708
      %v9210 = vunpack.c.h.b16 %v8708
      %v9211 = vunpack.c.l.b16 %v8709
      %v9212 = vunpack.c.l.b16 %v8710
      %v9213 = vunpack.c.h.b16 %v8710
      %v9214 = vunpack.c.l.b16 %v8711
      %v9215 = vunpack.c.h.b16 %v8711
      %v9216 = vunpack.c.l.b16 %v8712
      %v9217 = vunpack.c.h.b16 %v8712
      %v9218 = vunpack.c.l.b16 %v8713
      %v9219 = vunpack.c.h.b16 %v8713
      %v9220 = vunpack.c.l.b16 %v8714
      %v9221 = vunpack.c.l.b16 %v8715
      %v9222 = vunpack.c.h.b16 %v8715
      %v9223 = vunpack.c.l.b16 %v8716
      %v9224 = vunpack.c.h.b16 %v8716
      %v9225 = vunpack.c.l.b16 %v8717
      %v9226 = vunpack.c.h.b16 %v8717
      %v9227 = vunpack.c.l.b16 %v8718
      %v9228 = vunpack.c.h.b16 %v8718
      %v9229 = vunpack.c.l.b16 %v8719
      %v9230 = vunpack.c.l.b16 %v8720
      %v9231 = vunpack.c.h.b16 %v8720
      %v9232 = vunpack.c.l.b16 %v8721
      %v9233 = vunpack.c.h.b16 %v8721
      %v9234 = vunpack.c.l.b16 %v8722
      %v9235 = vunpack.c.h.b16 %v8722
      %v9236 = vunpack.c.l.b16 %v8723
      %v9237 = vunpack.c.h.b16 %v8723
      %v9238 = vunpack.c.l.b16 %v8724
      %v9239 = vunpack.c.l.b16 %v8725
      %v9240 = vunpack.c.h.b16 %v8725
      %v9241 = vunpack.c.l.b16 %v8726
      %v9242 = vunpack.c.h.b16 %v8726
      %v9243 = vunpack.c.l.b16 %v8727
      %v9244 = vunpack.c.h.b16 %v8727
      %v9245 = vunpack.c.l.b16 %v8728
      %v9246 = vunpack.c.h.b16 %v8728
      %v9247 = vunpack.c.l.b16 %v8729
      %v9248 = vunpack.c.l.b16 %v8730
      %v9249 = vunpack.c.h.b16 %v8730
      %v9250 = vunpack.c.l.b16 %v8731
      %v9251 = vunpack.c.h.b16 %v8731
      %v9252 = vunpack.c.l.b16 %v8732
      %v9253 = vunpack.c.h.b16 %v8732
      %v9254 = vunpack.c.l.b16 %v8733
      %v9255 = vunpack.c.h.b16 %v8733
      %v9256 = vunpack.c.l.b16 %v8734
      %v9257 = vunpack.c.l.b16 %v8735
      %v9258 = vunpack.c.h.b16 %v8735
      %v9259 = vunpack.c.l.b16 %v8736
      %v9260 = vunpack.c.h.b16 %v8736
      %v9261 = vunpack.c.l.b16 %v8737
      %v9262 = vunpack.c.h.b16 %v8737
      %v9263 = vunpack.c.l.b16 %v8738
      %v9264 = vunpack.c.h.b16 %v8738
      %v9265 = vunpack.c.l.b16 %v8739
      %v9266 = vunpack.c.l.b16 %v8740
      %v9267 = vunpack.c.h.b16 %v8740
      %v9268 = vunpack.c.l.b16 %v8741
      %v9269 = vunpack.c.h.b16 %v8741
      %v9270 = vunpack.c.l.b16 %v8742
      %v9271 = vunpack.c.h.b16 %v8742
      %v9272 = vunpack.c.l.b16 %v8743
      %v9273 = vunpack.c.h.b16 %v8743
      %v9274 = vunpack.c.l.b16 %v8744
      %v9275 = vunpack.c.l.b16 %v8745
      %v9276 = vunpack.c.h.b16 %v8745
      %v9277 = vunpack.c.l.b16 %v8746
      %v9278 = vunpack.c.h.b16 %v8746
      %v9279 = vunpack.c.l.b16 %v8747
      %v9280 = vunpack.c.h.b16 %v8747
      %v9281 = vunpack.c.l.b16 %v8748
      %v9282 = vunpack.c.h.b16 %v8748
      %v9283 = vunpack.c.l.b16 %v8749
      %v9284 = vunpack.c.l.b16 %v8750
      %v9285 = vunpack.c.h.b16 %v8750
      %v9286 = vunpack.c.l.b16 %v8751
      %v9287 = vunpack.c.h.b16 %v8751
      %v9288 = vunpack.c.l.b16 %v8752
      %v9289 = vunpack.c.h.b16 %v8752
      %v9290 = vunpack.c.l.b16 %v8753
      %v9291 = vunpack.c.h.b16 %v8753
      %v9292 = vunpack.c.l.b16 %v8754
      %v9293 = vunpack.c.l.b16 %v8755
      %v9294 = vunpack.c.h.b16 %v8755
      %v9295 = vunpack.c.l.b16 %v8756
      %v9296 = vunpack.c.h.b16 %v8756
      %v9297 = vunpack.c.l.b16 %v8757
      %v9298 = vunpack.c.h.b16 %v8757
      %v9299 = vunpack.c.l.b16 %v8758
      %v9300 = vunpack.c.h.b16 %v8758
      %v9301 = vunpack.c.l.b16 %v8759
      %v9302 = vunpack.c.l.b16 %v8760
      %v9303 = vunpack.c.h.b16 %v8760
      %v9304 = vunpack.c.l.b16 %v8761
      %v9305 = vunpack.c.h.b16 %v8761
      %v9306 = vunpack.c.l.b16 %v8762
      %v9307 = vunpack.c.h.b16 %v8762
      %v9308 = vunpack.c.l.b16 %v8763
      %v9309 = vunpack.c.h.b16 %v8763
      %v9310 = vunpack.c.l.b16 %v8764
      %v9311 = vunpack.c.l.b16 %v8765
      %v9312 = vunpack.c.h.b16 %v8765
      %v9313 = vunpack.c.l.b16 %v8766
      %v9314 = vunpack.c.h.b16 %v8766
      %v9315 = vunpack.c.l.b16 %v8767
      %v9316 = vunpack.c.h.b16 %v8767
      %v9317 = vunpack.c.l.b16 %v8768
      %v9318 = vunpack.c.h.b16 %v8768
      %v9319 = vunpack.c.l.b16 %v8769
      %v9320 = vunpack.c.l.b16 %v8770
      %v9321 = vunpack.c.h.b16 %v8770
      %v9322 = vunpack.c.l.b16 %v8771
      %v9323 = vunpack.c.h.b16 %v8771
      %v9324 = vunpack.c.l.b16 %v8772
      %v9325 = vunpack.c.h.b16 %v8772
      %v9326 = vunpack.c.l.b16 %v8773
      %v9327 = vunpack.c.h.b16 %v8773
      %v9328 = vunpack.c.l.b16 %v8774
      %v9329 = vunpack.c.l.b16 %v8775
      %v9330 = vunpack.c.h.b16 %v8775
      %v9331 = vunpack.c.l.b16 %v8776
      %v9332 = vunpack.c.h.b16 %v8776
      %v9333 = vunpack.c.l.b16 %v8777
      %v9334 = vunpack.c.h.b16 %v8777
      %v9335 = vunpack.c.l.b16 %v8778
      %v9336 = vunpack.c.h.b16 %v8778
      %v9337 = vunpack.c.l.b16 %v8779
      %v9338 = vunpack.c.l.b16 %v8780
      %v9339 = vunpack.c.h.b16 %v8780
      %v9340 = vunpack.c.l.b16 %v8781
      %v9341 = vunpack.c.h.b16 %v8781
      %v9342 = vunpack.c.l.b16 %v8782
      %v9343 = vunpack.c.h.b16 %v8782
      %v9344 = vunpack.c.l.b16 %v8783
      %v9345 = vunpack.c.h.b16 %v8783
      %v9346 = vunpack.c.l.b16 %v8784
      %v9347 = vunpack.c.l.b16 %v8785
      %v9348 = vunpack.c.h.b16 %v8785
      %v9349 = vunpack.c.l.b16 %v8786
      %v9350 = vunpack.c.h.b16 %v8786
      %v9351 = vunpack.c.l.b16 %v8787
      %v9352 = vunpack.c.h.b16 %v8787
      %v9353 = vunpack.c.l.b16 %v8788
      %v9354 = vunpack.c.h.b16 %v8788
      %v9355 = vunpack.c.l.b16 %v8789
      %v9356 = vunpack.c.l.b16 %v8790
      %v9357 = vunpack.c.h.b16 %v8790
      %v9358 = vunpack.c.l.b16 %v8791
      %v9359 = vunpack.c.h.b16 %v8791
      %v9360 = vunpack.c.l.b16 %v8792
      %v9361 = vunpack.c.h.b16 %v8792
      %v9362 = vunpack.c.l.b16 %v8793
      %v9363 = vunpack.c.h.b16 %v8793
      %v9364 = vunpack.c.l.b16 %v8794
      %v9365 = vunpack.c.l.b16 %v8795
      %v9366 = vunpack.c.h.b16 %v8795
      %v9367 = vunpack.c.l.b16 %v8796
      %v9368 = vunpack.c.h.b16 %v8796
      %v9369 = vunpack.c.l.b16 %v8797
      %v9370 = vunpack.c.h.b16 %v8797
      %v9371 = vunpack.c.l.b16 %v8798
      %v9372 = vunpack.c.h.b16 %v8798
      %v9373 = vunpack.c.l.b16 %v8799
      %v9374 = vunpack.c.l.b16 %v8800
      %v9375 = vunpack.c.h.b16 %v8800
      %v9376 = vunpack.c.l.b16 %v8801
      %v9377 = vunpack.c.h.b16 %v8801
      %v9378 = vunpack.c.l.b16 %v8802
      %v9379 = vunpack.c.h.b16 %v8802
      %v9380 = vunpack.c.l.b16 %v8803
      %v9381 = vunpack.c.h.b16 %v8803
      %v9382 = vunpack.c.l.b16 %v8804
      %v9383 = vunpack.c.l.b16 %v8805
      %v9384 = vunpack.c.h.b16 %v8805
      %v9385 = vunpack.c.l.b16 %v8806
      %v9386 = vunpack.c.h.b16 %v8806
      %v9387 = vunpack.c.l.b16 %v8807
      %v9388 = vunpack.c.h.b16 %v8807
      %v9389 = vunpack.c.l.b16 %v8808
      %v9390 = vunpack.c.h.b16 %v8808
      %v9391 = vunpack.c.l.b16 %v8809
      %v9392 = vunpack.c.l.b16 %v8810
      %v9393 = vunpack.c.h.b16 %v8810
      %v9394 = vunpack.c.l.b16 %v8811
      %v9395 = vunpack.c.h.b16 %v8811
      %v9396 = vunpack.c.l.b16 %v8812
      %v9397 = vunpack.c.h.b16 %v8812
      %v9398 = vunpack.c.l.b16 %v8813
      %v9399 = vunpack.c.h.b16 %v8813
      %v9400 = vunpack.c.l.b16 %v8814
      %v9401 = vunpack.c.l.b16 %v8815
      %v9402 = vunpack.c.h.b16 %v8815
      %v9403 = vunpack.c.l.b16 %v8816
      %v9404 = vunpack.c.h.b16 %v8816
      %v9405 = vunpack.c.l.b16 %v8817
      %v9406 = vunpack.c.h.b16 %v8817
      %v9407 = vunpack.c.l.b16 %v8818
      %v9408 = vunpack.c.h.b16 %v8818
      %v9409 = vunpack.c.l.b16 %v8819
      %v9410 = vunpack.c.l.b16 %v8820
      %v9411 = vunpack.c.h.b16 %v8820
      %v9412 = vunpack.c.l.b16 %v8821
      %v9413 = vunpack.c.h.b16 %v8821
      %v9414 = vunpack.c.l.b16 %v8822
      %v9415 = vunpack.c.h.b16 %v8822
      %v9416 = vunpack.c.l.b16 %v8823
      %v9417 = vunpack.c.h.b16 %v8823
      %v9418 = vunpack.c.l.b16 %v8824
      %v9419 = vunpack.c.l.b16 %v8825
      %v9420 = vunpack.c.h.b16 %v8825
      %v9421 = vunpack.c.l.b16 %v8826
      %v9422 = vunpack.c.h.b16 %v8826
      %v9423 = vunpack.c.l.b16 %v8827
      %v9424 = vunpack.c.h.b16 %v8827
      %v9425 = vunpack.c.l.b16 %v8828
      %v9426 = vunpack.c.h.b16 %v8828
      %v9427 = vunpack.c.l.b16 %v8829
      %v9428 = vpack.c.b16 %v9149, %v9140
      %v9429 = vpack.c.b16 %v9150, %v9141
      %v9430 = vpack.c.b16 %v9151, %v9142
      %v9431 = vpack.c.b16 %v9152, %v9143
      %v9432 = vpack.c.b16 %v9153, %v9144
      %v9433 = vpack.c.b16 %v9154, %v9145
      %v9434 = vpack.c.b16 %v9155, %v9146
      %v9435 = vpack.c.b16 %v9156, %v9147
      %v9436 = vpack.c.b16 %v9157, %v9148
      %v9437 = vpack.c.b16 %v9167, %v9158
      %v9438 = vpack.c.b16 %v9168, %v9159
      %v9439 = vpack.c.b16 %v9169, %v9160
      %v9440 = vpack.c.b16 %v9170, %v9161
      %v9441 = vpack.c.b16 %v9171, %v9162
      %v9442 = vpack.c.b16 %v9172, %v9163
      %v9443 = vpack.c.b16 %v9173, %v9164
      %v9444 = vpack.c.b16 %v9174, %v9165
      %v9445 = vpack.c.b16 %v9175, %v9166
      %v9446 = vpack.c.b16 %v9185, %v9176
      %v9447 = vpack.c.b16 %v9186, %v9177
      %v9448 = vpack.c.b16 %v9187, %v9178
      %v9449 = vpack.c.b16 %v9188, %v9179
      %v9450 = vpack.c.b16 %v9189, %v9180
      %v9451 = vpack.c.b16 %v9190, %v9181
      %v9452 = vpack.c.b16 %v9191, %v9182
      %v9453 = vpack.c.b16 %v9192, %v9183
      %v9454 = vpack.c.b16 %v9193, %v9184
      %v9455 = vpack.c.b16 %v9203, %v9194
      %v9456 = vpack.c.b16 %v9204, %v9195
      %v9457 = vpack.c.b16 %v9205, %v9196
      %v9458 = vpack.c.b16 %v9206, %v9197
      %v9459 = vpack.c.b16 %v9207, %v9198
      %v9460 = vpack.c.b16 %v9208, %v9199
      %v9461 = vpack.c.b16 %v9209, %v9200
      %v9462 = vpack.c.b16 %v9210, %v9201
      %v9463 = vpack.c.b16 %v9211, %v9202
      %v9464 = vpack.c.b16 %v9221, %v9212
      %v9465 = vpack.c.b16 %v9222, %v9213
      %v9466 = vpack.c.b16 %v9223, %v9214
      %v9467 = vpack.c.b16 %v9224, %v9215
      %v9468 = vpack.c.b16 %v9225, %v9216
      %v9469 = vpack.c.b16 %v9226, %v9217
      %v9470 = vpack.c.b16 %v9227, %v9218
      %v9471 = vpack.c.b16 %v9228, %v9219
      %v9472 = vpack.c.b16 %v9229, %v9220
      %v9473 = vpack.c.b16 %v9239, %v9230
      %v9474 = vpack.c.b16 %v9240, %v9231
      %v9475 = vpack.c.b16 %v9241, %v9232
      %v9476 = vpack.c.b16 %v9242, %v9233
      %v9477 = vpack.c.b16 %v9243, %v9234
      %v9478 = vpack.c.b16 %v9244, %v9235
      %v9479 = vpack.c.b16 %v9245, %v9236
      %v9480 = vpack.c.b16 %v9246, %v9237
      %v9481 = vpack.c.b16 %v9247, %v9238
      %v9482 = vpack.c.b16 %v9257, %v9248
      %v9483 = vpack.c.b16 %v9258, %v9249
      %v9484 = vpack.c.b16 %v9259, %v9250
      %v9485 = vpack.c.b16 %v9260, %v9251
      %v9486 = vpack.c.b16 %v9261, %v9252
      %v9487 = vpack.c.b16 %v9262, %v9253
      %v9488 = vpack.c.b16 %v9263, %v9254
      %v9489 = vpack.c.b16 %v9264, %v9255
      %v9490 = vpack.c.b16 %v9265, %v9256
      %v9491 = vpack.c.b16 %v9275, %v9266
      %v9492 = vpack.c.b16 %v9276, %v9267
      %v9493 = vpack.c.b16 %v9277, %v9268
      %v9494 = vpack.c.b16 %v9278, %v9269
      %v9495 = vpack.c.b16 %v9279, %v9270
      %v9496 = vpack.c.b16 %v9280, %v9271
      %v9497 = vpack.c.b16 %v9281, %v9272
      %v9498 = vpack.c.b16 %v9282, %v9273
      %v9499 = vpack.c.b16 %v9283, %v9274
      %v9500 = vpack.c.b16 %v9293, %v9284
      %v9501 = vpack.c.b16 %v9294, %v9285
      %v9502 = vpack.c.b16 %v9295, %v9286
      %v9503 = vpack.c.b16 %v9296, %v9287
      %v9504 = vpack.c.b16 %v9297, %v9288
      %v9505 = vpack.c.b16 %v9298, %v9289
      %v9506 = vpack.c.b16 %v9299, %v9290
      %v9507 = vpack.c.b16 %v9300, %v9291
      %v9508 = vpack.c.b16 %v9301, %v9292
      %v9509 = vpack.c.b16 %v9311, %v9302
      %v9510 = vpack.c.b16 %v9312, %v9303
      %v9511 = vpack.c.b16 %v9313, %v9304
      %v9512 = vpack.c.b16 %v9314, %v9305
      %v9513 = vpack.c.b16 %v9315, %v9306
      %v9514 = vpack.c.b16 %v9316, %v9307
      %v9515 = vpack.c.b16 %v9317, %v9308
      %v9516 = vpack.c.b16 %v9318, %v9309
      %v9517 = vpack.c.b16 %v9319, %v9310
      %v9518 = vpack.c.b16 %v9329, %v9320
      %v9519 = vpack.c.b16 %v9330, %v9321
      %v9520 = vpack.c.b16 %v9331, %v9322
      %v9521 = vpack.c.b16 %v9332, %v9323
      %v9522 = vpack.c.b16 %v9333, %v9324
      %v9523 = vpack.c.b16 %v9334, %v9325
      %v9524 = vpack.c.b16 %v9335, %v9326
      %v9525 = vpack.c.b16 %v9336, %v9327
      %v9526 = vpack.c.b16 %v9337, %v9328
      %v9527 = vpack.c.b16 %v9347, %v9338
      %v9528 = vpack.c.b16 %v9348, %v9339
      %v9529 = vpack.c.b16 %v9349, %v9340
      %v9530 = vpack.c.b16 %v9350, %v9341
      %v9531 = vpack.c.b16 %v9351, %v9342
      %v9532 = vpack.c.b16 %v9352, %v9343
      %v9533 = vpack.c.b16 %v9353, %v9344
      %v9534 = vpack.c.b16 %v9354, %v9345
      %v9535 = vpack.c.b16 %v9355, %v9346
      %v9536 = vpack.c.b16 %v9365, %v9356
      %v9537 = vpack.c.b16 %v9366, %v9357
      %v9538 = vpack.c.b16 %v9367, %v9358
      %v9539 = vpack.c.b16 %v9368, %v9359
      %v9540 = vpack.c.b16 %v9369, %v9360
      %v9541 = vpack.c.b16 %v9370, %v9361
      %v9542 = vpack.c.b16 %v9371, %v9362
      %v9543 = vpack.c.b16 %v9372, %v9363
      %v9544 = vpack.c.b16 %v9373, %v9364
      %v9545 = vpack.c.b16 %v9383, %v9374
      %v9546 = vpack.c.b16 %v9384, %v9375
      %v9547 = vpack.c.b16 %v9385, %v9376
      %v9548 = vpack.c.b16 %v9386, %v9377
      %v9549 = vpack.c.b16 %v9387, %v9378
      %v9550 = vpack.c.b16 %v9388, %v9379
      %v9551 = vpack.c.b16 %v9389, %v9380
      %v9552 = vpack.c.b16 %v9390, %v9381
      %v9553 = vpack.c.b16 %v9391, %v9382
      %v9554 = vpack.c.b16 %v9401, %v9392
      %v9555 = vpack.c.b16 %v9402, %v9393
      %v9556 = vpack.c.b16 %v9403, %v9394
      %v9557 = vpack.c.b16 %v9404, %v9395
      %v9558 = vpack.c.b16 %v9405, %v9396
      %v9559 = vpack.c.b16 %v9406, %v9397
      %v9560 = vpack.c.b16 %v9407, %v9398
      %v9561 = vpack.c.b16 %v9408, %v9399
      %v9562 = vpack.c.b16 %v9409, %v9400
      %v9563 = vpack.c.b16 %v9419, %v9410
      %v9564 = vpack.c.b16 %v9420, %v9411
      %v9565 = vpack.c.b16 %v9421, %v9412
      %v9566 = vpack.c.b16 %v9422, %v9413
      %v9567 = vpack.c.b16 %v9423, %v9414
      %v9568 = vpack.c.b16 %v9424, %v9415
      %v9569 = vpack.c.b16 %v9425, %v9416
      %v9570 = vpack.c.b16 %v9426, %v9417
      %v9571 = vpack.c.b16 %v9427, %v9418
      %v9860 = vunpack.c.l.b16 %v8831
      %v9861 = vunpack.c.l.b16 %v8832
      %v9862 = vunpack.c.l.b16 %v8833
      %v9863 = vunpack.c.l.b16 %v8834
      %v9864 = vunpack.c.l.b16 %v8835
      %v9865 = vunpack.c.l.b16 %v8836
      %v9866 = vunpack.c.l.b16 %v8837
      %v9867 = vunpack.c.l.b16 %v8838
      %v9868 = vunpack.c.l.b16 %v8839
      %v9869 = vunpack.c.l.b16 %v8840
      %v9870 = vunpack.c.l.b16 %v8841
      %v9871 = vunpack.c.l.b16 %v8842
      %v9872 = vunpack.c.l.b16 %v8843
      %v9873 = vunpack.c.l.b16 %v8844
      %v9874 = vunpack.c.l.b16 %v8845
      %v9875 = vunpack.c.l.b16 %v8846
      %v9876 = vunpack.c.l.b16 %v8847
      %v9877 = vunpack.c.l.b16 %v8848
      %v9878 = vunpack.c.l.b16 %v8849
      %v9879 = vunpack.c.l.b16 %v8850
      %v9880 = vunpack.c.l.b16 %v8851
      %v9881 = vunpack.c.l.b16 %v8852
      %v9882 = vunpack.c.l.b16 %v8853
      %v9883 = vunpack.c.l.b16 %v8854
      %v9884 = vunpack.c.l.b16 %v8855
      %v9885 = vunpack.c.l.b16 %v8856
      %v9886 = vunpack.c.l.b16 %v8857
      %v9887 = vunpack.c.l.b16 %v8858
      %v9888 = vunpack.c.l.b16 %v8859
      %v9889 = vunpack.c.l.b16 %v8860
      %v9890 = vunpack.c.l.b16 %v8861
      %v9891 = vunpack.c.l.b16 %v8862
      %v9892 = vunpack.c.l.b16 %v8863
      %v9893 = vunpack.c.l.b16 %v8864
      %v9894 = vunpack.c.l.b16 %v8865
      %v9895 = vunpack.c.l.b16 %v8866
      %v9896 = vunpack.c.l.b16 %v8867
      %v9897 = vunpack.c.l.b16 %v8868
      %v9898 = vunpack.c.l.b16 %v8869
      %v9899 = vunpack.c.l.b16 %v8870
      %v9900 = vunpack.c.l.b16 %v8871
      %v9901 = vunpack.c.l.b16 %v8872
      %v9902 = vunpack.c.l.b16 %v8873
      %v9903 = vunpack.c.l.b16 %v8874
      %v9904 = vunpack.c.l.b16 %v8875
      %v9905 = vunpack.c.l.b16 %v8876
      %v9906 = vunpack.c.l.b16 %v8877
      %v9907 = vunpack.c.l.b16 %v8878
      %v9908 = vunpack.c.l.b16 %v8879
      %v9909 = vunpack.c.l.b16 %v8880
      %v9910 = vunpack.c.l.b16 %v8881
      %v9911 = vunpack.c.l.b16 %v8882
      %v9912 = vunpack.c.l.b16 %v8883
      %v9913 = vunpack.c.l.b16 %v8884
      %v9914 = vunpack.c.l.b16 %v8885
      %v9915 = vunpack.c.l.b16 %v8886
      %v9916 = vunpack.c.l.b16 %v8887
      %v9917 = vunpack.c.l.b16 %v8888
      %v9918 = vunpack.c.l.b16 %v8889
      %v9919 = vunpack.c.l.b16 %v8890
      %v9920 = vunpack.c.l.b16 %v8891
      %v9921 = vunpack.c.l.b16 %v8892
      %v9922 = vunpack.c.l.b16 %v8893
      %v9923 = vunpack.c.l.b16 %v8894
      %v9924 = vunpack.c.l.b16 %v8895
      %v9925 = vunpack.c.l.b16 %v8896
      %v9926 = vunpack.c.l.b16 %v8897
      %v9927 = vunpack.c.l.b16 %v8898
      %v9928 = vunpack.c.l.b16 %v8899
      %v9929 = vunpack.c.l.b16 %v8900
      %v9930 = vunpack.c.l.b16 %v8901
      %v9931 = vunpack.c.l.b16 %v8902
      %v9932 = vunpack.c.l.b16 %v8903
      %v9933 = vunpack.c.l.b16 %v8904
      %v9934 = vunpack.c.l.b16 %v8905
      %v9935 = vunpack.c.l.b16 %v8906
      %v9936 = vunpack.c.l.b16 %v8907
      %v9937 = vunpack.c.l.b16 %v8908
      %v9938 = vunpack.c.l.b16 %v8909
      %v9939 = vunpack.c.l.b16 %v8910
      %v9940 = vunpack.c.l.b16 %v8911
      %v9941 = vunpack.c.l.b16 %v8912
      %v9942 = vunpack.c.l.b16 %v8913
      %v9943 = vunpack.c.l.b16 %v8914
      %v9944 = vunpack.c.l.b16 %v8915
      %v9945 = vunpack.c.l.b16 %v8916
      %v9946 = vunpack.c.l.b16 %v8917
      %v9947 = vunpack.c.l.b16 %v8918
      %v9948 = vunpack.c.l.b16 %v8919
      %v9949 = vunpack.c.l.b16 %v8920
      %v9950 = vunpack.c.l.b16 %v8921
      %v9951 = vunpack.c.l.b16 %v8922
      %v9952 = vunpack.c.l.b16 %v8923
      %v9953 = vunpack.c.l.b16 %v8924
      %v9954 = vunpack.c.l.b16 %v8925
      %v9955 = vunpack.c.l.b16 %v8926
      %v9956 = vunpack.c.l.b16 %v8927
      %v9957 = vunpack.c.l.b16 %v8928
      %v9958 = vunpack.c.l.b16 %v8929
      %v9959 = vunpack.c.l.b16 %v8930
      %v9960 = vunpack.c.l.b16 %v8931
      %v9961 = vunpack.c.l.b16 %v8932
      %v9962 = vunpack.c.l.b16 %v8933
      %v9963 = vunpack.c.l.b16 %v8934
      %v9964 = vunpack.c.l.b16 %v8935
      %v9965 = vunpack.c.l.b16 %v8936
      %v9966 = vunpack.c.l.b16 %v8937
      %v9967 = vunpack.c.l.b16 %v8938
      %v9968 = vunpack.c.l.b16 %v8939
      %v9969 = vunpack.c.l.b16 %v8940
      %v9970 = vunpack.c.l.b16 %v8941
      %v9971 = vunpack.c.l.b16 %v8942
      %v9972 = vunpack.c.l.b16 %v8943
      %v9973 = vunpack.c.l.b16 %v8944
      %v9974 = vunpack.c.l.b16 %v8945
      %v9975 = vunpack.c.l.b16 %v8946
      %v9976 = vunpack.c.l.b16 %v8947
      %v9977 = vunpack.c.l.b16 %v8948
      %v9978 = vunpack.c.l.b16 %v8949
      %v9979 = vunpack.c.l.b16 %v8950
      %v9980 = vunpack.c.l.b16 %v8951
      %v9981 = vunpack.c.l.b16 %v8952
      %v9982 = vunpack.c.l.b16 %v8953
      %v9983 = vunpack.c.l.b16 %v8954
      %v9984 = vunpack.c.l.b16 %v8955
      %v9985 = vunpack.c.l.b16 %v8956
      %v9986 = vunpack.c.l.b16 %v8957
      %v9987 = vunpack.c.l.b16 %v8958
      %v9988 = vunpack.c.l.b16 %v8959
      %v9989 = vunpack.c.l.b16 %v8960
      %v9990 = vunpack.c.l.b16 %v8961
      %v9991 = vunpack.c.l.b16 %v8962
      %v9992 = vunpack.c.l.b16 %v8963
      %v9993 = vunpack.c.l.b16 %v8964
      %v9994 = vunpack.c.l.b16 %v8965
      %v9995 = vunpack.c.l.b16 %v8966
      %v9996 = vunpack.c.l.b16 %v8967
      %v9997 = vunpack.c.l.b16 %v8968
      %v9998 = vunpack.c.l.b16 %v8969
      %v9999 = vunpack.c.l.b16 %v8970
      %v10000 = vunpack.c.l.b16 %v8971
      %v10001 = vunpack.c.l.b16 %v8972
      %v10002 = vunpack.c.l.b16 %v8973
      %v10003 = vunpack.c.l.b16 %v8974
      %v10004 = vpack.c.b16 %v9861, %v9860
      %v10005 = vpack.c.b16 %v9863, %v9862
      %v10006 = vpack.c.b16 %v9865, %v9864
      %v10007 = vpack.c.b16 %v9867, %v9866
      %v10008 = vpack.c.b16 %v9869, %v9868
      %v10009 = vpack.c.b16 %v9871, %v9870
      %v10010 = vpack.c.b16 %v9873, %v9872
      %v10011 = vpack.c.b16 %v9875, %v9874
      %v10012 = vpack.c.b16 %v9877, %v9876
      %v10013 = vpack.c.b16 %v9879, %v9878
      %v10014 = vpack.c.b16 %v9881, %v9880
      %v10015 = vpack.c.b16 %v9883, %v9882
      %v10016 = vpack.c.b16 %v9885, %v9884
      %v10017 = vpack.c.b16 %v9887, %v9886
      %v10018 = vpack.c.b16 %v9889, %v9888
      %v10019 = vpack.c.b16 %v9891, %v9890
      %v10020 = vpack.c.b16 %v9893, %v9892
      %v10021 = vpack.c.b16 %v9895, %v9894
      %v10022 = vpack.c.b16 %v9897, %v9896
      %v10023 = vpack.c.b16 %v9899, %v9898
      %v10024 = vpack.c.b16 %v9901, %v9900
      %v10025 = vpack.c.b16 %v9903, %v9902
      %v10026 = vpack.c.b16 %v9905, %v9904
      %v10027 = vpack.c.b16 %v9907, %v9906
      %v10028 = vpack.c.b16 %v9909, %v9908
      %v10029 = vpack.c.b16 %v9911, %v9910
      %v10030 = vpack.c.b16 %v9913, %v9912
      %v10031 = vpack.c.b16 %v9915, %v9914
      %v10032 = vpack.c.b16 %v9917, %v9916
      %v10033 = vpack.c.b16 %v9919, %v9918
      %v10034 = vpack.c.b16 %v9921, %v9920
      %v10035 = vpack.c.b16 %v9923, %v9922
      %v10036 = vpack.c.b16 %v9925, %v9924
      %v10037 = vpack.c.b16 %v9927, %v9926
      %v10038 = vpack.c.b16 %v9929, %v9928
      %v10039 = vpack.c.b16 %v9931, %v9930
      %v10040 = vpack.c.b16 %v9933, %v9932
      %v10041 = vpack.c.b16 %v9935, %v9934
      %v10042 = vpack.c.b16 %v9937, %v9936
      %v10043 = vpack.c.b16 %v9939, %v9938
      %v10044 = vpack.c.b16 %v9941, %v9940
      %v10045 = vpack.c.b16 %v9943, %v9942
      %v10046 = vpack.c.b16 %v9945, %v9944
      %v10047 = vpack.c.b16 %v9947, %v9946
      %v10048 = vpack.c.b16 %v9949, %v9948
      %v10049 = vpack.c.b16 %v9951, %v9950
      %v10050 = vpack.c.b16 %v9953, %v9952
      %v10051 = vpack.c.b16 %v9955, %v9954
      %v10052 = vpack.c.b16 %v9957, %v9956
      %v10053 = vpack.c.b16 %v9959, %v9958
      %v10054 = vpack.c.b16 %v9961, %v9960
      %v10055 = vpack.c.b16 %v9963, %v9962
      %v10056 = vpack.c.b16 %v9965, %v9964
      %v10057 = vpack.c.b16 %v9967, %v9966
      %v10058 = vpack.c.b16 %v9969, %v9968
      %v10059 = vpack.c.b16 %v9971, %v9970
      %v10060 = vpack.c.b16 %v9973, %v9972
      %v10061 = vpack.c.b16 %v9975, %v9974
      %v10062 = vpack.c.b16 %v9977, %v9976
      %v10063 = vpack.c.b16 %v9979, %v9978
      %v10064 = vpack.c.b16 %v9981, %v9980
      %v10065 = vpack.c.b16 %v9983, %v9982
      %v10066 = vpack.c.b16 %v9985, %v9984
      %v10067 = vpack.c.b16 %v9987, %v9986
      %v10068 = vpack.c.b16 %v9989, %v9988
      %v10069 = vpack.c.b16 %v9991, %v9990
      %v10070 = vpack.c.b16 %v9993, %v9992
      %v10071 = vpack.c.b16 %v9995, %v9994
      %v10072 = vpack.c.b16 %v9997, %v9996
      %v10073 = vpack.c.b16 %v9999, %v9998
      %v10074 = vpack.c.b16 %v10001, %v10000
      %v10075 = vpack.c.b16 %v10003, %v10002
      %10148 = vmatpush.bf16.msra.mxu0 %v10011
      %10149 = vmatpush.bf16.msra.mxu0 %v10010
      %10150 = vmatpush.bf16.msra.mxu0 %v10009
      %10151 = vmatpush.bf16.msra.mxu0 %v10008
      %10152 = vmatpush.bf16.msra.mxu0 %v10007
      %10153 = vmatpush.bf16.msra.mxu0 %v10006
      %10154 = vmatpush.bf16.msra.mxu0 %v10005
      %10155 = vmatpush.bf16.msra.mxu0 %v10004
      %10156 = vmatmul.bf16.gmra.mxu0 %v9428
      %v10157 = vpop.f32.mrf.mxu0
      %v10158 = vadd.f32 %v8978, %v10157
      %v10159 = vpop.f32.mrf.mxu0
      %v10160 = vadd.f32 %v8978, %v10159
      %10161 = vmatmul.bf16.gmra.mxu0 %v9437
      %v10162 = vpop.f32.mrf.mxu0
      %v10163 = vadd.f32 %v8978, %v10162
      %v10164 = vpop.f32.mrf.mxu0
      %v10165 = vadd.f32 %v8978, %v10164
      %10166 = vmatmul.bf16.gmra.mxu0 %v9446
      %v10167 = vpop.f32.mrf.mxu0
      %v10168 = vadd.f32 %v8978, %v10167
      %v10169 = vpop.f32.mrf.mxu0
      %v10170 = vadd.f32 %v8978, %v10169
      %10171 = vmatmul.bf16.gmra.mxu0 %v9455
      %v10172 = vpop.f32.mrf.mxu0
      %v10173 = vadd.f32 %v8978, %v10172
      %v10174 = vpop.f32.mrf.mxu0
      %v10175 = vadd.f32 %v8978, %v10174
      %10176 = vmatmul.bf16.gmra.mxu0 %v9464
      %v10177 = vpop.f32.mrf.mxu0
      %v10178 = vadd.f32 %v8978, %v10177
      %v10179 = vpop.f32.mrf.mxu0
      %v10180 = vadd.f32 %v8978, %v10179
      %10181 = vmatmul.bf16.gmra.mxu0 %v9473
      %v10182 = vpop.f32.mrf.mxu0
      %v10183 = vadd.f32 %v8978, %v10182
      %v10184 = vpop.f32.mrf.mxu0
      %v10185 = vadd.f32 %v8978, %v10184
      %10186 = vmatmul.bf16.gmra.mxu0 %v9482
      %v10187 = vpop.f32.mrf.mxu0
      %v10188 = vadd.f32 %v8978, %v10187
      %v10189 = vpop.f32.mrf.mxu0
      %v10190 = vadd.f32 %v8978, %v10189
      %10191 = vmatmul.bf16.gmra.mxu0 %v9491
      %v10192 = vpop.f32.mrf.mxu0
      %v10193 = vadd.f32 %v8978, %v10192
      %v10194 = vpop.f32.mrf.mxu0
      %v10195 = vadd.f32 %v8978, %v10194
      %10196 = vmatmul.bf16.gmra.mxu0 %v9500
      %v10197 = vpop.f32.mrf.mxu0
      %v10198 = vadd.f32 %v8978, %v10197
      %v10199 = vpop.f32.mrf.mxu0
      %v10200 = vadd.f32 %v8978, %v10199
      %10201 = vmatmul.bf16.gmra.mxu0 %v9509
      %v10202 = vpop.f32.mrf.mxu0
      %v10203 = vadd.f32 %v8978, %v10202
      %v10204 = vpop.f32.mrf.mxu0
      %v10205 = vadd.f32 %v8978, %v10204
      %10206 = vmatmul.bf16.gmra.mxu0 %v9518
      %v10207 = vpop.f32.mrf.mxu0
      %v10208 = vadd.f32 %v8978, %v10207
      %v10209 = vpop.f32.mrf.mxu0
      %v10210 = vadd.f32 %v8978, %v10209
      %10211 = vmatmul.bf16.gmra.mxu0 %v9527
      %v10212 = vpop.f32.mrf.mxu0
      %v10213 = vadd.f32 %v8978, %v10212
      %v10214 = vpop.f32.mrf.mxu0
      %v10215 = vadd.f32 %v8978, %v10214
      %10216 = vmatmul.bf16.gmra.mxu0 %v9536
      %v10217 = vpop.f32.mrf.mxu0
      %v10218 = vadd.f32 %v8978, %v10217
      %v10219 = vpop.f32.mrf.mxu0
      %v10220 = vadd.f32 %v8978, %v10219
      %10221 = vmatmul.bf16.gmra.mxu0 %v9545
      %v10222 = vpop.f32.mrf.mxu0
      %v10223 = vadd.f32 %v8978, %v10222
      %v10224 = vpop.f32.mrf.mxu0
      %v10225 = vadd.f32 %v8978, %v10224
      %10226 = vmatmul.bf16.gmra.mxu0 %v9554
      %v10227 = vpop.f32.mrf.mxu0
      %v10228 = vadd.f32 %v8978, %v10227
      %v10229 = vpop.f32.mrf.mxu0
      %v10230 = vadd.f32 %v8978, %v10229
      %10231 = vmatmul.bf16.gmra.mxu0 %v9563
      %v10232 = vpop.f32.mrf.mxu0
      %v10233 = vadd.f32 %v8978, %v10232
      %v10234 = vpop.f32.mrf.mxu0
      %v10235 = vadd.f32 %v8978, %v10234
      %10236 = vdwg.mxu0
      %10237 = vmatpush.bf16.msra.mxu0 %v10019
      %10238 = vmatpush.bf16.msra.mxu0 %v10018
      %10239 = vmatpush.bf16.msra.mxu0 %v10017
      %10240 = vmatpush.bf16.msra.mxu0 %v10016
      %10241 = vmatpush.bf16.msra.mxu0 %v10015
      %10242 = vmatpush.bf16.msra.mxu0 %v10014
      %10243 = vmatpush.bf16.msra.mxu0 %v10013
      %10244 = vmatpush.bf16.msra.mxu0 %v10012
      %10245 = vmatmul.bf16.gmra.mxu0 %v9429
      %v10246 = vpop.f32.mrf.mxu0
      %v10247 = vadd.f32 %v10158, %v10246
      %v10248 = vpop.f32.mrf.mxu0
      %v10249 = vadd.f32 %v10160, %v10248
      %10250 = vmatmul.bf16.gmra.mxu0 %v9438
      %v10251 = vpop.f32.mrf.mxu0
      %v10252 = vadd.f32 %v10163, %v10251
      %v10253 = vpop.f32.mrf.mxu0
      %v10254 = vadd.f32 %v10165, %v10253
      %10255 = vmatmul.bf16.gmra.mxu0 %v9447
      %v10256 = vpop.f32.mrf.mxu0
      %v10257 = vadd.f32 %v10168, %v10256
      %v10258 = vpop.f32.mrf.mxu0
      %v10259 = vadd.f32 %v10170, %v10258
      %10260 = vmatmul.bf16.gmra.mxu0 %v9456
      %v10261 = vpop.f32.mrf.mxu0
      %v10262 = vadd.f32 %v10173, %v10261
      %v10263 = vpop.f32.mrf.mxu0
      %v10264 = vadd.f32 %v10175, %v10263
      %10265 = vmatmul.bf16.gmra.mxu0 %v9465
      %v10266 = vpop.f32.mrf.mxu0
      %v10267 = vadd.f32 %v10178, %v10266
      %v10268 = vpop.f32.mrf.mxu0
      %v10269 = vadd.f32 %v10180, %v10268
      %10270 = vmatmul.bf16.gmra.mxu0 %v9474
      %v10271 = vpop.f32.mrf.mxu0
      %v10272 = vadd.f32 %v10183, %v10271
      %v10273 = vpop.f32.mrf.mxu0
      %v10274 = vadd.f32 %v10185, %v10273
      %10275 = vmatmul.bf16.gmra.mxu0 %v9483
      %v10276 = vpop.f32.mrf.mxu0
      %v10277 = vadd.f32 %v10188, %v10276
      %v10278 = vpop.f32.mrf.mxu0
      %v10279 = vadd.f32 %v10190, %v10278
      %10280 = vmatmul.bf16.gmra.mxu0 %v9492
      %v10281 = vpop.f32.mrf.mxu0
      %v10282 = vadd.f32 %v10193, %v10281
      %v10283 = vpop.f32.mrf.mxu0
      %v10284 = vadd.f32 %v10195, %v10283
      %10285 = vmatmul.bf16.gmra.mxu0 %v9501
      %v10286 = vpop.f32.mrf.mxu0
      %v10287 = vadd.f32 %v10198, %v10286
      %v10288 = vpop.f32.mrf.mxu0
      %v10289 = vadd.f32 %v10200, %v10288
      %10290 = vmatmul.bf16.gmra.mxu0 %v9510
      %v10291 = vpop.f32.mrf.mxu0
      %v10292 = vadd.f32 %v10203, %v10291
      %v10293 = vpop.f32.mrf.mxu0
      %v10294 = vadd.f32 %v10205, %v10293
      %10295 = vmatmul.bf16.gmra.mxu0 %v9519
      %v10296 = vpop.f32.mrf.mxu0
      %v10297 = vadd.f32 %v10208, %v10296
      %v10298 = vpop.f32.mrf.mxu0
      %v10299 = vadd.f32 %v10210, %v10298
      %10300 = vmatmul.bf16.gmra.mxu0 %v9528
      %v10301 = vpop.f32.mrf.mxu0
      %v10302 = vadd.f32 %v10213, %v10301
      %v10303 = vpop.f32.mrf.mxu0
      %v10304 = vadd.f32 %v10215, %v10303
      %10305 = vmatmul.bf16.gmra.mxu0 %v9537
      %v10306 = vpop.f32.mrf.mxu0
      %v10307 = vadd.f32 %v10218, %v10306
      %v10308 = vpop.f32.mrf.mxu0
      %v10309 = vadd.f32 %v10220, %v10308
      %10310 = vmatmul.bf16.gmra.mxu0 %v9546
      %v10311 = vpop.f32.mrf.mxu0
      %v10312 = vadd.f32 %v10223, %v10311
      %v10313 = vpop.f32.mrf.mxu0
      %v10314 = vadd.f32 %v10225, %v10313
      %10315 = vmatmul.bf16.gmra.mxu0 %v9555
      %v10316 = vpop.f32.mrf.mxu0
      %v10317 = vadd.f32 %v10228, %v10316
      %v10318 = vpop.f32.mrf.mxu0
      %v10319 = vadd.f32 %v10230, %v10318
      %10320 = vmatmul.bf16.gmra.mxu0 %v9564
      %v10321 = vpop.f32.mrf.mxu0
      %v10322 = vadd.f32 %v10233, %v10321
      %v10323 = vpop.f32.mrf.mxu0
      %v10324 = vadd.f32 %v10235, %v10323
      %10325 = vdwg.mxu0
      %10326 = vmatpush.bf16.msra.mxu0 %v10027
      %10327 = vmatpush.bf16.msra.mxu0 %v10026
      %10328 = vmatpush.bf16.msra.mxu0 %v10025
      %10329 = vmatpush.bf16.msra.mxu0 %v10024
      %10330 = vmatpush.bf16.msra.mxu0 %v10023
      %10331 = vmatpush.bf16.msra.mxu0 %v10022
      %10332 = vmatpush.bf16.msra.mxu0 %v10021
      %10333 = vmatpush.bf16.msra.mxu0 %v10020
      %10334 = vmatmul.bf16.gmra.mxu0 %v9430
      %v10335 = vpop.f32.mrf.mxu0
      %v10336 = vadd.f32 %v10247, %v10335
      %v10337 = vpop.f32.mrf.mxu0
      %v10338 = vadd.f32 %v10249, %v10337
      %10339 = vmatmul.bf16.gmra.mxu0 %v9439
      %v10340 = vpop.f32.mrf.mxu0
      %v10341 = vadd.f32 %v10252, %v10340
      %v10342 = vpop.f32.mrf.mxu0
      %v10343 = vadd.f32 %v10254, %v10342
      %10344 = vmatmul.bf16.gmra.mxu0 %v9448
      %v10345 = vpop.f32.mrf.mxu0
      %v10346 = vadd.f32 %v10257, %v10345
      %v10347 = vpop.f32.mrf.mxu0
      %v10348 = vadd.f32 %v10259, %v10347
      %10349 = vmatmul.bf16.gmra.mxu0 %v9457
      %v10350 = vpop.f32.mrf.mxu0
      %v10351 = vadd.f32 %v10262, %v10350
      %v10352 = vpop.f32.mrf.mxu0
      %v10353 = vadd.f32 %v10264, %v10352
      %10354 = vmatmul.bf16.gmra.mxu0 %v9466
      %v10355 = vpop.f32.mrf.mxu0
      %v10356 = vadd.f32 %v10267, %v10355
      %v10357 = vpop.f32.mrf.mxu0
      %v10358 = vadd.f32 %v10269, %v10357
      %10359 = vmatmul.bf16.gmra.mxu0 %v9475
      %v10360 = vpop.f32.mrf.mxu0
      %v10361 = vadd.f32 %v10272, %v10360
      %v10362 = vpop.f32.mrf.mxu0
      %v10363 = vadd.f32 %v10274, %v10362
      %10364 = vmatmul.bf16.gmra.mxu0 %v9484
      %v10365 = vpop.f32.mrf.mxu0
      %v10366 = vadd.f32 %v10277, %v10365
      %v10367 = vpop.f32.mrf.mxu0
      %v10368 = vadd.f32 %v10279, %v10367
      %10369 = vmatmul.bf16.gmra.mxu0 %v9493
      %v10370 = vpop.f32.mrf.mxu0
      %v10371 = vadd.f32 %v10282, %v10370
      %v10372 = vpop.f32.mrf.mxu0
      %v10373 = vadd.f32 %v10284, %v10372
      %10374 = vmatmul.bf16.gmra.mxu0 %v9502
      %v10375 = vpop.f32.mrf.mxu0
      %v10376 = vadd.f32 %v10287, %v10375
      %v10377 = vpop.f32.mrf.mxu0
      %v10378 = vadd.f32 %v10289, %v10377
      %10379 = vmatmul.bf16.gmra.mxu0 %v9511
      %v10380 = vpop.f32.mrf.mxu0
      %v10381 = vadd.f32 %v10292, %v10380
      %v10382 = vpop.f32.mrf.mxu0
      %v10383 = vadd.f32 %v10294, %v10382
      %10384 = vmatmul.bf16.gmra.mxu0 %v9520
      %v10385 = vpop.f32.mrf.mxu0
      %v10386 = vadd.f32 %v10297, %v10385
      %v10387 = vpop.f32.mrf.mxu0
      %v10388 = vadd.f32 %v10299, %v10387
      %10389 = vmatmul.bf16.gmra.mxu0 %v9529
      %v10390 = vpop.f32.mrf.mxu0
      %v10391 = vadd.f32 %v10302, %v10390
      %v10392 = vpop.f32.mrf.mxu0
      %v10393 = vadd.f32 %v10304, %v10392
      %10394 = vmatmul.bf16.gmra.mxu0 %v9538
      %v10395 = vpop.f32.mrf.mxu0
      %v10396 = vadd.f32 %v10307, %v10395
      %v10397 = vpop.f32.mrf.mxu0
      %v10398 = vadd.f32 %v10309, %v10397
      %10399 = vmatmul.bf16.gmra.mxu0 %v9547
      %v10400 = vpop.f32.mrf.mxu0
      %v10401 = vadd.f32 %v10312, %v10400
      %v10402 = vpop.f32.mrf.mxu0
      %v10403 = vadd.f32 %v10314, %v10402
      %10404 = vmatmul.bf16.gmra.mxu0 %v9556
      %v10405 = vpop.f32.mrf.mxu0
      %v10406 = vadd.f32 %v10317, %v10405
      %v10407 = vpop.f32.mrf.mxu0
      %v10408 = vadd.f32 %v10319, %v10407
      %10409 = vmatmul.bf16.gmra.mxu0 %v9565
      %v10410 = vpop.f32.mrf.mxu0
      %v10411 = vadd.f32 %v10322, %v10410
      %v10412 = vpop.f32.mrf.mxu0
      %v10413 = vadd.f32 %v10324, %v10412
      %10414 = vdwg.mxu0
      %10415 = vmatpush.bf16.msra.mxu0 %v10035
      %10416 = vmatpush.bf16.msra.mxu0 %v10034
      %10417 = vmatpush.bf16.msra.mxu0 %v10033
      %10418 = vmatpush.bf16.msra.mxu0 %v10032
      %10419 = vmatpush.bf16.msra.mxu0 %v10031
      %10420 = vmatpush.bf16.msra.mxu0 %v10030
      %10421 = vmatpush.bf16.msra.mxu0 %v10029
      %10422 = vmatpush.bf16.msra.mxu0 %v10028
      %10423 = vmatmul.bf16.gmra.mxu0 %v9431
      %v10424 = vpop.f32.mrf.mxu0
      %v10425 = vadd.f32 %v10336, %v10424
      %v10426 = vpop.f32.mrf.mxu0
      %v10427 = vadd.f32 %v10338, %v10426
      %10428 = vmatmul.bf16.gmra.mxu0 %v9440
      %v10429 = vpop.f32.mrf.mxu0
      %v10430 = vadd.f32 %v10341, %v10429
      %v10431 = vpop.f32.mrf.mxu0
      %v10432 = vadd.f32 %v10343, %v10431
      %10433 = vmatmul.bf16.gmra.mxu0 %v9449
      %v10434 = vpop.f32.mrf.mxu0
      %v10435 = vadd.f32 %v10346, %v10434
      %v10436 = vpop.f32.mrf.mxu0
      %v10437 = vadd.f32 %v10348, %v10436
      %10438 = vmatmul.bf16.gmra.mxu0 %v9458
      %v10439 = vpop.f32.mrf.mxu0
      %v10440 = vadd.f32 %v10351, %v10439
      %v10441 = vpop.f32.mrf.mxu0
      %v10442 = vadd.f32 %v10353, %v10441
      %10443 = vmatmul.bf16.gmra.mxu0 %v9467
      %v10444 = vpop.f32.mrf.mxu0
      %v10445 = vadd.f32 %v10356, %v10444
      %v10446 = vpop.f32.mrf.mxu0
      %v10447 = vadd.f32 %v10358, %v10446
      %10448 = vmatmul.bf16.gmra.mxu0 %v9476
      %v10449 = vpop.f32.mrf.mxu0
      %v10450 = vadd.f32 %v10361, %v10449
      %v10451 = vpop.f32.mrf.mxu0
      %v10452 = vadd.f32 %v10363, %v10451
      %10453 = vmatmul.bf16.gmra.mxu0 %v9485
      %v10454 = vpop.f32.mrf.mxu0
      %v10455 = vadd.f32 %v10366, %v10454
      %v10456 = vpop.f32.mrf.mxu0
      %v10457 = vadd.f32 %v10368, %v10456
      %10458 = vmatmul.bf16.gmra.mxu0 %v9494
      %v10459 = vpop.f32.mrf.mxu0
      %v10460 = vadd.f32 %v10371, %v10459
      %v10461 = vpop.f32.mrf.mxu0
      %v10462 = vadd.f32 %v10373, %v10461
      %10463 = vmatmul.bf16.gmra.mxu0 %v9503
      %v10464 = vpop.f32.mrf.mxu0
      %v10465 = vadd.f32 %v10376, %v10464
      %v10466 = vpop.f32.mrf.mxu0
      %v10467 = vadd.f32 %v10378, %v10466
      %10468 = vmatmul.bf16.gmra.mxu0 %v9512
      %v10469 = vpop.f32.mrf.mxu0
      %v10470 = vadd.f32 %v10381, %v10469
      %v10471 = vpop.f32.mrf.mxu0
      %v10472 = vadd.f32 %v10383, %v10471
      %10473 = vmatmul.bf16.gmra.mxu0 %v9521
      %v10474 = vpop.f32.mrf.mxu0
      %v10475 = vadd.f32 %v10386, %v10474
      %v10476 = vpop.f32.mrf.mxu0
      %v10477 = vadd.f32 %v10388, %v10476
      %10478 = vmatmul.bf16.gmra.mxu0 %v9530
      %v10479 = vpop.f32.mrf.mxu0
      %v10480 = vadd.f32 %v10391, %v10479
      %v10481 = vpop.f32.mrf.mxu0
      %v10482 = vadd.f32 %v10393, %v10481
      %10483 = vmatmul.bf16.gmra.mxu0 %v9539
      %v10484 = vpop.f32.mrf.mxu0
      %v10485 = vadd.f32 %v10396, %v10484
      %v10486 = vpop.f32.mrf.mxu0
      %v10487 = vadd.f32 %v10398, %v10486
      %10488 = vmatmul.bf16.gmra.mxu0 %v9548
      %v10489 = vpop.f32.mrf.mxu0
      %v10490 = vadd.f32 %v10401, %v10489
      %v10491 = vpop.f32.mrf.mxu0
      %v10492 = vadd.f32 %v10403, %v10491
      %10493 = vmatmul.bf16.gmra.mxu0 %v9557
      %v10494 = vpop.f32.mrf.mxu0
      %v10495 = vadd.f32 %v10406, %v10494
      %v10496 = vpop.f32.mrf.mxu0
      %v10497 = vadd.f32 %v10408, %v10496
      %10498 = vmatmul.bf16.gmra.mxu0 %v9566
      %v10499 = vpop.f32.mrf.mxu0
      %v10500 = vadd.f32 %v10411, %v10499
      %v10501 = vpop.f32.mrf.mxu0
      %v10502 = vadd.f32 %v10413, %v10501
      %10503 = vdwg.mxu0
      %10504 = vmatpush.bf16.msra.mxu0 %v10043
      %10505 = vmatpush.bf16.msra.mxu0 %v10042
      %10506 = vmatpush.bf16.msra.mxu0 %v10041
      %10507 = vmatpush.bf16.msra.mxu0 %v10040
      %10508 = vmatpush.bf16.msra.mxu0 %v10039
      %10509 = vmatpush.bf16.msra.mxu0 %v10038
      %10510 = vmatpush.bf16.msra.mxu0 %v10037
      %10511 = vmatpush.bf16.msra.mxu0 %v10036
      %10512 = vmatmul.bf16.gmra.mxu0 %v9432
      %v10513 = vpop.f32.mrf.mxu0
      %v10514 = vadd.f32 %v10425, %v10513
      %v10515 = vpop.f32.mrf.mxu0
      %v10516 = vadd.f32 %v10427, %v10515
      %10517 = vmatmul.bf16.gmra.mxu0 %v9441
      %v10518 = vpop.f32.mrf.mxu0
      %v10519 = vadd.f32 %v10430, %v10518
      %v10520 = vpop.f32.mrf.mxu0
      %v10521 = vadd.f32 %v10432, %v10520
      %10522 = vmatmul.bf16.gmra.mxu0 %v9450
      %v10523 = vpop.f32.mrf.mxu0
      %v10524 = vadd.f32 %v10435, %v10523
      %v10525 = vpop.f32.mrf.mxu0
      %v10526 = vadd.f32 %v10437, %v10525
      %10527 = vmatmul.bf16.gmra.mxu0 %v9459
      %v10528 = vpop.f32.mrf.mxu0
      %v10529 = vadd.f32 %v10440, %v10528
      %v10530 = vpop.f32.mrf.mxu0
      %v10531 = vadd.f32 %v10442, %v10530
      %10532 = vmatmul.bf16.gmra.mxu0 %v9468
      %v10533 = vpop.f32.mrf.mxu0
      %v10534 = vadd.f32 %v10445, %v10533
      %v10535 = vpop.f32.mrf.mxu0
      %v10536 = vadd.f32 %v10447, %v10535
      %10537 = vmatmul.bf16.gmra.mxu0 %v9477
      %v10538 = vpop.f32.mrf.mxu0
      %v10539 = vadd.f32 %v10450, %v10538
      %v10540 = vpop.f32.mrf.mxu0
      %v10541 = vadd.f32 %v10452, %v10540
      %10542 = vmatmul.bf16.gmra.mxu0 %v9486
      %v10543 = vpop.f32.mrf.mxu0
      %v10544 = vadd.f32 %v10455, %v10543
      %v10545 = vpop.f32.mrf.mxu0
      %v10546 = vadd.f32 %v10457, %v10545
      %10547 = vmatmul.bf16.gmra.mxu0 %v9495
      %v10548 = vpop.f32.mrf.mxu0
      %v10549 = vadd.f32 %v10460, %v10548
      %v10550 = vpop.f32.mrf.mxu0
      %v10551 = vadd.f32 %v10462, %v10550
      %10552 = vmatmul.bf16.gmra.mxu0 %v9504
      %v10553 = vpop.f32.mrf.mxu0
      %v10554 = vadd.f32 %v10465, %v10553
      %v10555 = vpop.f32.mrf.mxu0
      %v10556 = vadd.f32 %v10467, %v10555
      %10557 = vmatmul.bf16.gmra.mxu0 %v9513
      %v10558 = vpop.f32.mrf.mxu0
      %v10559 = vadd.f32 %v10470, %v10558
      %v10560 = vpop.f32.mrf.mxu0
      %v10561 = vadd.f32 %v10472, %v10560
      %10562 = vmatmul.bf16.gmra.mxu0 %v9522
      %v10563 = vpop.f32.mrf.mxu0
      %v10564 = vadd.f32 %v10475, %v10563
      %v10565 = vpop.f32.mrf.mxu0
      %v10566 = vadd.f32 %v10477, %v10565
      %10567 = vmatmul.bf16.gmra.mxu0 %v9531
      %v10568 = vpop.f32.mrf.mxu0
      %v10569 = vadd.f32 %v10480, %v10568
      %v10570 = vpop.f32.mrf.mxu0
      %v10571 = vadd.f32 %v10482, %v10570
      %10572 = vmatmul.bf16.gmra.mxu0 %v9540
      %v10573 = vpop.f32.mrf.mxu0
      %v10574 = vadd.f32 %v10485, %v10573
      %v10575 = vpop.f32.mrf.mxu0
      %v10576 = vadd.f32 %v10487, %v10575
      %10577 = vmatmul.bf16.gmra.mxu0 %v9549
      %v10578 = vpop.f32.mrf.mxu0
      %v10579 = vadd.f32 %v10490, %v10578
      %v10580 = vpop.f32.mrf.mxu0
      %v10581 = vadd.f32 %v10492, %v10580
      %10582 = vmatmul.bf16.gmra.mxu0 %v9558
      %v10583 = vpop.f32.mrf.mxu0
      %v10584 = vadd.f32 %v10495, %v10583
      %v10585 = vpop.f32.mrf.mxu0
      %v10586 = vadd.f32 %v10497, %v10585
      %10587 = vmatmul.bf16.gmra.mxu0 %v9567
      %v10588 = vpop.f32.mrf.mxu0
      %v10589 = vadd.f32 %v10500, %v10588
      %v10590 = vpop.f32.mrf.mxu0
      %v10591 = vadd.f32 %v10502, %v10590
      %10592 = vdwg.mxu0
      %10593 = vmatpush.bf16.msra.mxu0 %v10051
      %10594 = vmatpush.bf16.msra.mxu0 %v10050
      %10595 = vmatpush.bf16.msra.mxu0 %v10049
      %10596 = vmatpush.bf16.msra.mxu0 %v10048
      %10597 = vmatpush.bf16.msra.mxu0 %v10047
      %10598 = vmatpush.bf16.msra.mxu0 %v10046
      %10599 = vmatpush.bf16.msra.mxu0 %v10045
      %10600 = vmatpush.bf16.msra.mxu0 %v10044
      %10601 = vmatmul.bf16.gmra.mxu0 %v9433
      %v10602 = vpop.f32.mrf.mxu0
      %v10603 = vadd.f32 %v10514, %v10602
      %v10604 = vpop.f32.mrf.mxu0
      %v10605 = vadd.f32 %v10516, %v10604
      %10606 = vmatmul.bf16.gmra.mxu0 %v9442
      %v10607 = vpop.f32.mrf.mxu0
      %v10608 = vadd.f32 %v10519, %v10607
      %v10609 = vpop.f32.mrf.mxu0
      %v10610 = vadd.f32 %v10521, %v10609
      %10611 = vmatmul.bf16.gmra.mxu0 %v9451
      %v10612 = vpop.f32.mrf.mxu0
      %v10613 = vadd.f32 %v10524, %v10612
      %v10614 = vpop.f32.mrf.mxu0
      %v10615 = vadd.f32 %v10526, %v10614
      %10616 = vmatmul.bf16.gmra.mxu0 %v9460
      %v10617 = vpop.f32.mrf.mxu0
      %v10618 = vadd.f32 %v10529, %v10617
      %v10619 = vpop.f32.mrf.mxu0
      %v10620 = vadd.f32 %v10531, %v10619
      %10621 = vmatmul.bf16.gmra.mxu0 %v9469
      %v10622 = vpop.f32.mrf.mxu0
      %v10623 = vadd.f32 %v10534, %v10622
      %v10624 = vpop.f32.mrf.mxu0
      %v10625 = vadd.f32 %v10536, %v10624
      %10626 = vmatmul.bf16.gmra.mxu0 %v9478
      %v10627 = vpop.f32.mrf.mxu0
      %v10628 = vadd.f32 %v10539, %v10627
      %v10629 = vpop.f32.mrf.mxu0
      %v10630 = vadd.f32 %v10541, %v10629
      %10631 = vmatmul.bf16.gmra.mxu0 %v9487
      %v10632 = vpop.f32.mrf.mxu0
      %v10633 = vadd.f32 %v10544, %v10632
      %v10634 = vpop.f32.mrf.mxu0
      %v10635 = vadd.f32 %v10546, %v10634
      %10636 = vmatmul.bf16.gmra.mxu0 %v9496
      %v10637 = vpop.f32.mrf.mxu0
      %v10638 = vadd.f32 %v10549, %v10637
      %v10639 = vpop.f32.mrf.mxu0
      %v10640 = vadd.f32 %v10551, %v10639
      %10641 = vmatmul.bf16.gmra.mxu0 %v9505
      %v10642 = vpop.f32.mrf.mxu0
      %v10643 = vadd.f32 %v10554, %v10642
      %v10644 = vpop.f32.mrf.mxu0
      %v10645 = vadd.f32 %v10556, %v10644
      %10646 = vmatmul.bf16.gmra.mxu0 %v9514
      %v10647 = vpop.f32.mrf.mxu0
      %v10648 = vadd.f32 %v10559, %v10647
      %v10649 = vpop.f32.mrf.mxu0
      %v10650 = vadd.f32 %v10561, %v10649
      %10651 = vmatmul.bf16.gmra.mxu0 %v9523
      %v10652 = vpop.f32.mrf.mxu0
      %v10653 = vadd.f32 %v10564, %v10652
      %v10654 = vpop.f32.mrf.mxu0
      %v10655 = vadd.f32 %v10566, %v10654
      %10656 = vmatmul.bf16.gmra.mxu0 %v9532
      %v10657 = vpop.f32.mrf.mxu0
      %v10658 = vadd.f32 %v10569, %v10657
      %v10659 = vpop.f32.mrf.mxu0
      %v10660 = vadd.f32 %v10571, %v10659
      %10661 = vmatmul.bf16.gmra.mxu0 %v9541
      %v10662 = vpop.f32.mrf.mxu0
      %v10663 = vadd.f32 %v10574, %v10662
      %v10664 = vpop.f32.mrf.mxu0
      %v10665 = vadd.f32 %v10576, %v10664
      %10666 = vmatmul.bf16.gmra.mxu0 %v9550
      %v10667 = vpop.f32.mrf.mxu0
      %v10668 = vadd.f32 %v10579, %v10667
      %v10669 = vpop.f32.mrf.mxu0
      %v10670 = vadd.f32 %v10581, %v10669
      %10671 = vmatmul.bf16.gmra.mxu0 %v9559
      %v10672 = vpop.f32.mrf.mxu0
      %v10673 = vadd.f32 %v10584, %v10672
      %v10674 = vpop.f32.mrf.mxu0
      %v10675 = vadd.f32 %v10586, %v10674
      %10676 = vmatmul.bf16.gmra.mxu0 %v9568
      %v10677 = vpop.f32.mrf.mxu0
      %v10678 = vadd.f32 %v10589, %v10677
      %v10679 = vpop.f32.mrf.mxu0
      %v10680 = vadd.f32 %v10591, %v10679
      %10681 = vdwg.mxu0
      %10682 = vmatpush.bf16.msra.mxu0 %v10059
      %10683 = vmatpush.bf16.msra.mxu0 %v10058
      %10684 = vmatpush.bf16.msra.mxu0 %v10057
      %10685 = vmatpush.bf16.msra.mxu0 %v10056
      %10686 = vmatpush.bf16.msra.mxu0 %v10055
      %10687 = vmatpush.bf16.msra.mxu0 %v10054
      %10688 = vmatpush.bf16.msra.mxu0 %v10053
      %10689 = vmatpush.bf16.msra.mxu0 %v10052
      %10690 = vmatmul.bf16.gmra.mxu0 %v9434
      %v10691 = vpop.f32.mrf.mxu0
      %v10692 = vadd.f32 %v10603, %v10691
      %v10693 = vpop.f32.mrf.mxu0
      %v10694 = vadd.f32 %v10605, %v10693
      %10695 = vmatmul.bf16.gmra.mxu0 %v9443
      %v10696 = vpop.f32.mrf.mxu0
      %v10697 = vadd.f32 %v10608, %v10696
      %v10698 = vpop.f32.mrf.mxu0
      %v10699 = vadd.f32 %v10610, %v10698
      %10700 = vmatmul.bf16.gmra.mxu0 %v9452
      %v10701 = vpop.f32.mrf.mxu0
      %v10702 = vadd.f32 %v10613, %v10701
      %v10703 = vpop.f32.mrf.mxu0
      %v10704 = vadd.f32 %v10615, %v10703
      %10705 = vmatmul.bf16.gmra.mxu0 %v9461
      %v10706 = vpop.f32.mrf.mxu0
      %v10707 = vadd.f32 %v10618, %v10706
      %v10708 = vpop.f32.mrf.mxu0
      %v10709 = vadd.f32 %v10620, %v10708
      %10710 = vmatmul.bf16.gmra.mxu0 %v9470
      %v10711 = vpop.f32.mrf.mxu0
      %v10712 = vadd.f32 %v10623, %v10711
      %v10713 = vpop.f32.mrf.mxu0
      %v10714 = vadd.f32 %v10625, %v10713
      %10715 = vmatmul.bf16.gmra.mxu0 %v9479
      %v10716 = vpop.f32.mrf.mxu0
      %v10717 = vadd.f32 %v10628, %v10716
      %v10718 = vpop.f32.mrf.mxu0
      %v10719 = vadd.f32 %v10630, %v10718
      %10720 = vmatmul.bf16.gmra.mxu0 %v9488
      %v10721 = vpop.f32.mrf.mxu0
      %v10722 = vadd.f32 %v10633, %v10721
      %v10723 = vpop.f32.mrf.mxu0
      %v10724 = vadd.f32 %v10635, %v10723
      %10725 = vmatmul.bf16.gmra.mxu0 %v9497
      %v10726 = vpop.f32.mrf.mxu0
      %v10727 = vadd.f32 %v10638, %v10726
      %v10728 = vpop.f32.mrf.mxu0
      %v10729 = vadd.f32 %v10640, %v10728
      %10730 = vmatmul.bf16.gmra.mxu0 %v9506
      %v10731 = vpop.f32.mrf.mxu0
      %v10732 = vadd.f32 %v10643, %v10731
      %v10733 = vpop.f32.mrf.mxu0
      %v10734 = vadd.f32 %v10645, %v10733
      %10735 = vmatmul.bf16.gmra.mxu0 %v9515
      %v10736 = vpop.f32.mrf.mxu0
      %v10737 = vadd.f32 %v10648, %v10736
      %v10738 = vpop.f32.mrf.mxu0
      %v10739 = vadd.f32 %v10650, %v10738
      %10740 = vmatmul.bf16.gmra.mxu0 %v9524
      %v10741 = vpop.f32.mrf.mxu0
      %v10742 = vadd.f32 %v10653, %v10741
      %v10743 = vpop.f32.mrf.mxu0
      %v10744 = vadd.f32 %v10655, %v10743
      %10745 = vmatmul.bf16.gmra.mxu0 %v9533
      %v10746 = vpop.f32.mrf.mxu0
      %v10747 = vadd.f32 %v10658, %v10746
      %v10748 = vpop.f32.mrf.mxu0
      %v10749 = vadd.f32 %v10660, %v10748
      %10750 = vmatmul.bf16.gmra.mxu0 %v9542
      %v10751 = vpop.f32.mrf.mxu0
      %v10752 = vadd.f32 %v10663, %v10751
      %v10753 = vpop.f32.mrf.mxu0
      %v10754 = vadd.f32 %v10665, %v10753
      %10755 = vmatmul.bf16.gmra.mxu0 %v9551
      %v10756 = vpop.f32.mrf.mxu0
      %v10757 = vadd.f32 %v10668, %v10756
      %v10758 = vpop.f32.mrf.mxu0
      %v10759 = vadd.f32 %v10670, %v10758
      %10760 = vmatmul.bf16.gmra.mxu0 %v9560
      %v10761 = vpop.f32.mrf.mxu0
      %v10762 = vadd.f32 %v10673, %v10761
      %v10763 = vpop.f32.mrf.mxu0
      %v10764 = vadd.f32 %v10675, %v10763
      %10765 = vmatmul.bf16.gmra.mxu0 %v9569
      %v10766 = vpop.f32.mrf.mxu0
      %v10767 = vadd.f32 %v10678, %v10766
      %v10768 = vpop.f32.mrf.mxu0
      %v10769 = vadd.f32 %v10680, %v10768
      %10770 = vdwg.mxu0
      %10771 = vmatpush.bf16.msra.mxu0 %v10067
      %10772 = vmatpush.bf16.msra.mxu0 %v10066
      %10773 = vmatpush.bf16.msra.mxu0 %v10065
      %10774 = vmatpush.bf16.msra.mxu0 %v10064
      %10775 = vmatpush.bf16.msra.mxu0 %v10063
      %10776 = vmatpush.bf16.msra.mxu0 %v10062
      %10777 = vmatpush.bf16.msra.mxu0 %v10061
      %10778 = vmatpush.bf16.msra.mxu0 %v10060
      %10779 = vmatmul.bf16.gmra.mxu0 %v9435
      %v10780 = vpop.f32.mrf.mxu0
      %v10781 = vadd.f32 %v10692, %v10780
      %v10782 = vpop.f32.mrf.mxu0
      %v10783 = vadd.f32 %v10694, %v10782
      %10784 = vmatmul.bf16.gmra.mxu0 %v9444
      %v10785 = vpop.f32.mrf.mxu0
      %v10786 = vadd.f32 %v10697, %v10785
      %v10787 = vpop.f32.mrf.mxu0
      %v10788 = vadd.f32 %v10699, %v10787
      %10789 = vmatmul.bf16.gmra.mxu0 %v9453
      %v10790 = vpop.f32.mrf.mxu0
      %v10791 = vadd.f32 %v10702, %v10790
      %v10792 = vpop.f32.mrf.mxu0
      %v10793 = vadd.f32 %v10704, %v10792
      %10794 = vmatmul.bf16.gmra.mxu0 %v9462
      %v10795 = vpop.f32.mrf.mxu0
      %v10796 = vadd.f32 %v10707, %v10795
      %v10797 = vpop.f32.mrf.mxu0
      %v10798 = vadd.f32 %v10709, %v10797
      %10799 = vmatmul.bf16.gmra.mxu0 %v9471
      %v10800 = vpop.f32.mrf.mxu0
      %v10801 = vadd.f32 %v10712, %v10800
      %v10802 = vpop.f32.mrf.mxu0
      %v10803 = vadd.f32 %v10714, %v10802
      %10804 = vmatmul.bf16.gmra.mxu0 %v9480
      %v10805 = vpop.f32.mrf.mxu0
      %v10806 = vadd.f32 %v10717, %v10805
      %v10807 = vpop.f32.mrf.mxu0
      %v10808 = vadd.f32 %v10719, %v10807
      %10809 = vmatmul.bf16.gmra.mxu0 %v9489
      %v10810 = vpop.f32.mrf.mxu0
      %v10811 = vadd.f32 %v10722, %v10810
      %v10812 = vpop.f32.mrf.mxu0
      %v10813 = vadd.f32 %v10724, %v10812
      %10814 = vmatmul.bf16.gmra.mxu0 %v9498
      %v10815 = vpop.f32.mrf.mxu0
      %v10816 = vadd.f32 %v10727, %v10815
      %v10817 = vpop.f32.mrf.mxu0
      %v10818 = vadd.f32 %v10729, %v10817
      %10819 = vmatmul.bf16.gmra.mxu0 %v9507
      %v10820 = vpop.f32.mrf.mxu0
      %v10821 = vadd.f32 %v10732, %v10820
      %v10822 = vpop.f32.mrf.mxu0
      %v10823 = vadd.f32 %v10734, %v10822
      %10824 = vmatmul.bf16.gmra.mxu0 %v9516
      %v10825 = vpop.f32.mrf.mxu0
      %v10826 = vadd.f32 %v10737, %v10825
      %v10827 = vpop.f32.mrf.mxu0
      %v10828 = vadd.f32 %v10739, %v10827
      %10829 = vmatmul.bf16.gmra.mxu0 %v9525
      %v10830 = vpop.f32.mrf.mxu0
      %v10831 = vadd.f32 %v10742, %v10830
      %v10832 = vpop.f32.mrf.mxu0
      %v10833 = vadd.f32 %v10744, %v10832
      %10834 = vmatmul.bf16.gmra.mxu0 %v9534
      %v10835 = vpop.f32.mrf.mxu0
      %v10836 = vadd.f32 %v10747, %v10835
      %v10837 = vpop.f32.mrf.mxu0
      %v10838 = vadd.f32 %v10749, %v10837
      %10839 = vmatmul.bf16.gmra.mxu0 %v9543
      %v10840 = vpop.f32.mrf.mxu0
      %v10841 = vadd.f32 %v10752, %v10840
      %v10842 = vpop.f32.mrf.mxu0
      %v10843 = vadd.f32 %v10754, %v10842
      %10844 = vmatmul.bf16.gmra.mxu0 %v9552
      %v10845 = vpop.f32.mrf.mxu0
      %v10846 = vadd.f32 %v10757, %v10845
      %v10847 = vpop.f32.mrf.mxu0
      %v10848 = vadd.f32 %v10759, %v10847
      %10849 = vmatmul.bf16.gmra.mxu0 %v9561
      %v10850 = vpop.f32.mrf.mxu0
      %v10851 = vadd.f32 %v10762, %v10850
      %v10852 = vpop.f32.mrf.mxu0
      %v10853 = vadd.f32 %v10764, %v10852
      %10854 = vmatmul.bf16.gmra.mxu0 %v9570
      %v10855 = vpop.f32.mrf.mxu0
      %v10856 = vadd.f32 %v10767, %v10855
      %v10857 = vpop.f32.mrf.mxu0
      %v10858 = vadd.f32 %v10769, %v10857
      %10859 = vdwg.mxu0
      %10860 = vmatpush.bf16.msra.mxu0 %v10075
      %10861 = vmatpush.bf16.msra.mxu0 %v10074
      %10862 = vmatpush.bf16.msra.mxu0 %v10073
      %10863 = vmatpush.bf16.msra.mxu0 %v10072
      %10864 = vmatpush.bf16.msra.mxu0 %v10071
      %10865 = vmatpush.bf16.msra.mxu0 %v10070
      %10866 = vmatpush.bf16.msra.mxu0 %v10069
      %10867 = vmatpush.bf16.msra.mxu0 %v10068
      %10868 = vmatmul.bf16.gmra.mxu0 %v9436
      %v10869 = vpop.f32.mrf.mxu0
      %v10870 = vadd.f32 %v10781, %v10869
      %v10871 = vpop.f32.mrf.mxu0
      %v10872 = vadd.f32 %v10783, %v10871
      %10873 = vmatmul.bf16.gmra.mxu0 %v9445
      %v10874 = vpop.f32.mrf.mxu0
      %v10875 = vadd.f32 %v10786, %v10874
      %v10876 = vpop.f32.mrf.mxu0
      %v10877 = vadd.f32 %v10788, %v10876
      %10878 = vmatmul.bf16.gmra.mxu0 %v9454
      %v10879 = vpop.f32.mrf.mxu0
      %v10880 = vadd.f32 %v10791, %v10879
      %v10881 = vpop.f32.mrf.mxu0
      %v10882 = vadd.f32 %v10793, %v10881
      %10883 = vmatmul.bf16.gmra.mxu0 %v9463
      %v10884 = vpop.f32.mrf.mxu0
      %v10885 = vadd.f32 %v10796, %v10884
      %v10886 = vpop.f32.mrf.mxu0
      %v10887 = vadd.f32 %v10798, %v10886
      %10888 = vmatmul.bf16.gmra.mxu0 %v9472
      %v10889 = vpop.f32.mrf.mxu0
      %v10890 = vadd.f32 %v10801, %v10889
      %v10891 = vpop.f32.mrf.mxu0
      %v10892 = vadd.f32 %v10803, %v10891
      %10893 = vmatmul.bf16.gmra.mxu0 %v9481
      %v10894 = vpop.f32.mrf.mxu0
      %v10895 = vadd.f32 %v10806, %v10894
      %v10896 = vpop.f32.mrf.mxu0
      %v10897 = vadd.f32 %v10808, %v10896
      %10898 = vmatmul.bf16.gmra.mxu0 %v9490
      %v10899 = vpop.f32.mrf.mxu0
      %v10900 = vadd.f32 %v10811, %v10899
      %v10901 = vpop.f32.mrf.mxu0
      %v10902 = vadd.f32 %v10813, %v10901
      %10903 = vmatmul.bf16.gmra.mxu0 %v9499
      %v10904 = vpop.f32.mrf.mxu0
      %v10905 = vadd.f32 %v10816, %v10904
      %v10906 = vpop.f32.mrf.mxu0
      %v10907 = vadd.f32 %v10818, %v10906
      %10908 = vmatmul.bf16.gmra.mxu0 %v9508
      %v10909 = vpop.f32.mrf.mxu0
      %v10910 = vadd.f32 %v10821, %v10909
      %v10911 = vpop.f32.mrf.mxu0
      %v10912 = vadd.f32 %v10823, %v10911
      %10913 = vmatmul.bf16.gmra.mxu0 %v9517
      %v10914 = vpop.f32.mrf.mxu0
      %v10915 = vadd.f32 %v10826, %v10914
      %v10916 = vpop.f32.mrf.mxu0
      %v10917 = vadd.f32 %v10828, %v10916
      %10918 = vmatmul.bf16.gmra.mxu0 %v9526
      %v10919 = vpop.f32.mrf.mxu0
      %v10920 = vadd.f32 %v10831, %v10919
      %v10921 = vpop.f32.mrf.mxu0
      %v10922 = vadd.f32 %v10833, %v10921
      %10923 = vmatmul.bf16.gmra.mxu0 %v9535
      %v10924 = vpop.f32.mrf.mxu0
      %v10925 = vadd.f32 %v10836, %v10924
      %v10926 = vpop.f32.mrf.mxu0
      %v10927 = vadd.f32 %v10838, %v10926
      %10928 = vmatmul.bf16.gmra.mxu0 %v9544
      %v10929 = vpop.f32.mrf.mxu0
      %v10930 = vadd.f32 %v10841, %v10929
      %v10931 = vpop.f32.mrf.mxu0
      %v10932 = vadd.f32 %v10843, %v10931
      %10933 = vmatmul.bf16.gmra.mxu0 %v9553
      %v10934 = vpop.f32.mrf.mxu0
      %v10935 = vadd.f32 %v10846, %v10934
      %v10936 = vpop.f32.mrf.mxu0
      %v10937 = vadd.f32 %v10848, %v10936
      %10938 = vmatmul.bf16.gmra.mxu0 %v9562
      %v10939 = vpop.f32.mrf.mxu0
      %v10940 = vadd.f32 %v10851, %v10939
      %v10941 = vpop.f32.mrf.mxu0
      %v10942 = vadd.f32 %v10853, %v10941
      %10943 = vmatmul.bf16.gmra.mxu0 %v9571
      %v10944 = vpop.f32.mrf.mxu0
      %v10945 = vadd.f32 %v10856, %v10944
      %v10946 = vpop.f32.mrf.mxu0
      %v10947 = vadd.f32 %v10858, %v10946
      %10948 = vdwg.mxu0
      %vm10949 = vcmp.gt.f32.partialorder %v10870, 0.0
      %vm10950 = vcmp.gt.f32.partialorder %v10872, 0.0
      %vm10951 = vcmp.gt.f32.partialorder %v10875, 0.0
      %vm10952 = vcmp.gt.f32.partialorder %v10877, 0.0
      %vm10953 = vcmp.gt.f32.partialorder %v10880, 0.0
      %vm10954 = vcmp.gt.f32.partialorder %v10882, 0.0
      %vm10955 = vcmp.gt.f32.partialorder %v10885, 0.0
      %vm10956 = vcmp.gt.f32.partialorder %v10887, 0.0
      %vm10957 = vcmp.gt.f32.partialorder %v10890, 0.0
      %vm10958 = vcmp.gt.f32.partialorder %v10892, 0.0
      %vm10959 = vcmp.gt.f32.partialorder %v10895, 0.0
      %vm10960 = vcmp.gt.f32.partialorder %v10897, 0.0
      %vm10961 = vcmp.gt.f32.partialorder %v10900, 0.0
      %vm10962 = vcmp.gt.f32.partialorder %v10902, 0.0
      %vm10963 = vcmp.gt.f32.partialorder %v10905, 0.0
      %vm10964 = vcmp.gt.f32.partialorder %v10907, 0.0
      %vm10965 = vcmp.gt.f32.partialorder %v10910, 0.0
      %vm10966 = vcmp.gt.f32.partialorder %v10912, 0.0
      %vm10967 = vcmp.gt.f32.partialorder %v10915, 0.0
      %vm10968 = vcmp.gt.f32.partialorder %v10917, 0.0
      %vm10969 = vcmp.gt.f32.partialorder %v10920, 0.0
      %vm10970 = vcmp.gt.f32.partialorder %v10922, 0.0
      %vm10971 = vcmp.gt.f32.partialorder %v10925, 0.0
      %vm10972 = vcmp.gt.f32.partialorder %v10927, 0.0
      %vm10973 = vcmp.gt.f32.partialorder %v10930, 0.0
      %vm10974 = vcmp.gt.f32.partialorder %v10932, 0.0
      %vm10975 = vcmp.gt.f32.partialorder %v10935, 0.0
      %vm10976 = vcmp.gt.f32.partialorder %v10937, 0.0
      %vm10977 = vcmp.gt.f32.partialorder %v10940, 0.0
      %vm10978 = vcmp.gt.f32.partialorder %v10942, 0.0
      %vm10979 = vcmp.gt.f32.partialorder %v10945, 0.0
      %vm10980 = vcmp.gt.f32.partialorder %v10947, 0.0
      %v10981 = vmul.f32 %v10870, 0.01
      %v10982 = vmul.f32 %v10872, 0.01
      %v10983 = vmul.f32 %v10875, 0.01
      %v10984 = vmul.f32 %v10877, 0.01
      %v10985 = vmul.f32 %v10880, 0.01
      %v10986 = vmul.f32 %v10882, 0.01
      %v10987 = vmul.f32 %v10885, 0.01
      %v10988 = vmul.f32 %v10887, 0.01
      %v10989 = vmul.f32 %v10890, 0.01
      %v10990 = vmul.f32 %v10892, 0.01
      %v10991 = vmul.f32 %v10895, 0.01
      %v10992 = vmul.f32 %v10897, 0.01
      %v10993 = vmul.f32 %v10900, 0.01
      %v10994 = vmul.f32 %v10902, 0.01
      %v10995 = vmul.f32 %v10905, 0.01
      %v10996 = vmul.f32 %v10907, 0.01
      %v10997 = vmul.f32 %v10910, 0.01
      %v10998 = vmul.f32 %v10912, 0.01
      %v10999 = vmul.f32 %v10915, 0.01
      %v11000 = vmul.f32 %v10917, 0.01
      %v11001 = vmul.f32 %v10920, 0.01
      %v11002 = vmul.f32 %v10922, 0.01
      %v11003 = vmul.f32 %v10925, 0.01
      %v11004 = vmul.f32 %v10927, 0.01
      %v11005 = vmul.f32 %v10930, 0.01
      %v11006 = vmul.f32 %v10932, 0.01
      %v11007 = vmul.f32 %v10935, 0.01
      %v11008 = vmul.f32 %v10937, 0.01
      %v11009 = vmul.f32 %v10940, 0.01
      %v11010 = vmul.f32 %v10942, 0.01
      %v11011 = vmul.f32 %v10945, 0.01
      %v11012 = vmul.f32 %v10947, 0.01
      %v11013 = vsel %vm10949, %v10870, %v10981
      %v11014 = vsel %vm10950, %v10872, %v10982
      %v11015 = vsel %vm10951, %v10875, %v10983
      %v11016 = vsel %vm10952, %v10877, %v10984
      %v11017 = vsel %vm10953, %v10880, %v10985
      %v11018 = vsel %vm10954, %v10882, %v10986
      %v11019 = vsel %vm10955, %v10885, %v10987
      %v11020 = vsel %vm10956, %v10887, %v10988
      %v11021 = vsel %vm10957, %v10890, %v10989
      %v11022 = vsel %vm10958, %v10892, %v10990
      %v11023 = vsel %vm10959, %v10895, %v10991
      %v11024 = vsel %vm10960, %v10897, %v10992
      %v11025 = vsel %vm10961, %v10900, %v10993
      %v11026 = vsel %vm10962, %v10902, %v10994
      %v11027 = vsel %vm10963, %v10905, %v10995
      %v11028 = vsel %vm10964, %v10907, %v10996
      %v11029 = vsel %vm10965, %v10910, %v10997
      %v11030 = vsel %vm10966, %v10912, %v10998
      %v11031 = vsel %vm10967, %v10915, %v10999
      %v11032 = vsel %vm10968, %v10917, %v11000
      %v11033 = vsel %vm10969, %v10920, %v11001
      %v11034 = vsel %vm10970, %v10922, %v11002
      %v11035 = vsel %vm10971, %v10925, %v11003
      %v11036 = vsel %vm10972, %v10927, %v11004
      %v11037 = vsel %vm10973, %v10930, %v11005
      %v11038 = vsel %vm10974, %v10932, %v11006
      %v11039 = vsel %vm10975, %v10935, %v11007
      %v11040 = vsel %vm10976, %v10937, %v11008
      %v11041 = vsel %vm10977, %v10940, %v11009
      %v11042 = vsel %vm10978, %v10942, %v11010
      %v11043 = vsel %vm10979, %v10945, %v11011
      %v11044 = vsel %vm10980, %v10947, %v11012
      %s11045 = scalar_lea.vmem %s3, 1
      %v11046 = vld [vmem:[%s11045] sm:$0x1]
      %v11048 = vperm.slane %v11046, 0
      %v11050 = vmul.f32 %v11013, %v11048
      %v11051 = vmul.f32 %v11014, %v11048
      %v11052 = vmul.f32 %v11015, %v11048
      %v11053 = vmul.f32 %v11016, %v11048
      %v11054 = vmul.f32 %v11017, %v11048
      %v11055 = vmul.f32 %v11018, %v11048
      %v11056 = vmul.f32 %v11019, %v11048
      %v11057 = vmul.f32 %v11020, %v11048
      %v11058 = vmul.f32 %v11021, %v11048
      %v11059 = vmul.f32 %v11022, %v11048
      %v11060 = vmul.f32 %v11023, %v11048
      %v11061 = vmul.f32 %v11024, %v11048
      %v11062 = vmul.f32 %v11025, %v11048
      %v11063 = vmul.f32 %v11026, %v11048
      %v11064 = vmul.f32 %v11027, %v11048
      %v11065 = vmul.f32 %v11028, %v11048
      %v11066 = vmul.f32 %v11029, %v11048
      %v11067 = vmul.f32 %v11030, %v11048
      %v11068 = vmul.f32 %v11031, %v11048
      %v11069 = vmul.f32 %v11032, %v11048
      %v11070 = vmul.f32 %v11033, %v11048
      %v11071 = vmul.f32 %v11034, %v11048
      %v11072 = vmul.f32 %v11035, %v11048
      %v11073 = vmul.f32 %v11036, %v11048
      %v11074 = vmul.f32 %v11037, %v11048
      %v11075 = vmul.f32 %v11038, %v11048
      %v11076 = vmul.f32 %v11039, %v11048
      %v11077 = vmul.f32 %v11040, %v11048
      %v11078 = vmul.f32 %v11041, %v11048
      %v11079 = vmul.f32 %v11042, %v11048
      %v11080 = vmul.f32 %v11043, %v11048
      %v11081 = vmul.f32 %v11044, %v11048
      %s11082 = scalar_lea.vmem %s4, 1
      %v11083 = vld [vmem:[%s11082] sm:$0x1]
      %v11085 = vperm.slane %v11083, 0
      %v11087 = vadd.f32 %v11050, %v11085
      %v11088 = vadd.f32 %v11051, %v11085
      %v11089 = vadd.f32 %v11052, %v11085
      %v11090 = vadd.f32 %v11053, %v11085
      %v11091 = vadd.f32 %v11054, %v11085
      %v11092 = vadd.f32 %v11055, %v11085
      %v11093 = vadd.f32 %v11056, %v11085
      %v11094 = vadd.f32 %v11057, %v11085
      %v11095 = vadd.f32 %v11058, %v11085
      %v11096 = vadd.f32 %v11059, %v11085
      %v11097 = vadd.f32 %v11060, %v11085
      %v11098 = vadd.f32 %v11061, %v11085
      %v11099 = vadd.f32 %v11062, %v11085
      %v11100 = vadd.f32 %v11063, %v11085
      %v11101 = vadd.f32 %v11064, %v11085
      %v11102 = vadd.f32 %v11065, %v11085
      %v11103 = vadd.f32 %v11066, %v11085
      %v11104 = vadd.f32 %v11067, %v11085
      %v11105 = vadd.f32 %v11068, %v11085
      %v11106 = vadd.f32 %v11069, %v11085
      %v11107 = vadd.f32 %v11070, %v11085
      %v11108 = vadd.f32 %v11071, %v11085
      %v11109 = vadd.f32 %v11072, %v11085
      %v11110 = vadd.f32 %v11073, %v11085
      %v11111 = vadd.f32 %v11074, %v11085
      %v11112 = vadd.f32 %v11075, %v11085
      %v11113 = vadd.f32 %v11076, %v11085
      %v11114 = vadd.f32 %v11077, %v11085
      %v11115 = vadd.f32 %v11078, %v11085
      %v11116 = vadd.f32 %v11079, %v11085
      %v11117 = vadd.f32 %v11080, %v11085
      %v11118 = vadd.f32 %v11081, %v11085
      %v11119 = vpack.c.bf16 %v11087, %v11087
      %v11120 = vpack.c.bf16 %v11088, %v11088
      %v11121 = vpack.c.bf16 %v11089, %v11089
      %v11122 = vpack.c.bf16 %v11090, %v11090
      %v11123 = vpack.c.bf16 %v11091, %v11091
      %v11124 = vpack.c.bf16 %v11092, %v11092
      %v11125 = vpack.c.bf16 %v11093, %v11093
      %v11126 = vpack.c.bf16 %v11094, %v11094
      %v11127 = vpack.c.bf16 %v11095, %v11095
      %v11128 = vpack.c.bf16 %v11096, %v11096
      %v11129 = vpack.c.bf16 %v11097, %v11097
      %v11130 = vpack.c.bf16 %v11098, %v11098
      %v11131 = vpack.c.bf16 %v11099, %v11099
      %v11132 = vpack.c.bf16 %v11100, %v11100
      %v11133 = vpack.c.bf16 %v11101, %v11101
      %v11134 = vpack.c.bf16 %v11102, %v11102
      %v11135 = vpack.c.bf16 %v11103, %v11103
      %v11136 = vpack.c.bf16 %v11104, %v11104
      %v11137 = vpack.c.bf16 %v11105, %v11105
      %v11138 = vpack.c.bf16 %v11106, %v11106
      %v11139 = vpack.c.bf16 %v11107, %v11107
      %v11140 = vpack.c.bf16 %v11108, %v11108
      %v11141 = vpack.c.bf16 %v11109, %v11109
      %v11142 = vpack.c.bf16 %v11110, %v11110
      %v11143 = vpack.c.bf16 %v11111, %v11111
      %v11144 = vpack.c.bf16 %v11112, %v11112
      %v11145 = vpack.c.bf16 %v11113, %v11113
      %v11146 = vpack.c.bf16 %v11114, %v11114
      %v11147 = vpack.c.bf16 %v11115, %v11115
      %v11148 = vpack.c.bf16 %v11116, %v11116
      %v11149 = vpack.c.bf16 %v11117, %v11117
      %v11150 = vpack.c.bf16 %v11118, %v11118
      %11151 = vst [vmem:[%s224] sm:$0xf] %v11119
      %11152 = vst [vmem:[%s224 + $0x4] sm:$0xf] %v11120
      %11153 = vst [vmem:[%s224 + $0x8] sm:$0xf] %v11121
      %11154 = vst [vmem:[%s224 + $0xc] sm:$0xf] %v11122
      %11155 = vst [vmem:[%s224 + $0x10] sm:$0xf] %v11123
      %11156 = vst [vmem:[%s224 + $0x14] sm:$0xf] %v11124
      %11157 = vst [vmem:[%s224 + $0x18] sm:$0xf] %v11125
      %11158 = vst [vmem:[%s224 + $0x1c] sm:$0xf] %v11126
      %11159 = vst [vmem:[%s224 + $0x20] sm:$0xf] %v11127
      %11160 = vst [vmem:[%s224 + $0x24] sm:$0xf] %v11128
      %11161 = vst [vmem:[%s224 + $0x28] sm:$0xf] %v11129
      %11162 = vst [vmem:[%s224 + $0x2c] sm:$0xf] %v11130
      %11163 = vst [vmem:[%s224 + $0x30] sm:$0xf] %v11131
      %11164 = vst [vmem:[%s224 + $0x34] sm:$0xf] %v11132
      %11165 = vst [vmem:[%s224 + $0x38] sm:$0xf] %v11133
      %11166 = vst [vmem:[%s224 + $0x3c] sm:$0xf] %v11134
      %11167 = vst [vmem:[%s224 + $0x40] sm:$0xf] %v11135
      %11168 = vst [vmem:[%s224 + $0x44] sm:$0xf] %v11136
      %11169 = vst [vmem:[%s224 + $0x48] sm:$0xf] %v11137
      %11170 = vst [vmem:[%s224 + $0x4c] sm:$0xf] %v11138
      %11171 = vst [vmem:[%s224 + $0x50] sm:$0xf] %v11139
      %11172 = vst [vmem:[%s224 + $0x54] sm:$0xf] %v11140
      %11173 = vst [vmem:[%s224 + $0x58] sm:$0xf] %v11141
      %11174 = vst [vmem:[%s224 + $0x5c] sm:$0xf] %v11142
      %11175 = vst [vmem:[%s224 + $0x60] sm:$0xf] %v11143
      %11176 = vst [vmem:[%s224 + $0x64] sm:$0xf] %v11144
      %11177 = vst [vmem:[%s224 + $0x68] sm:$0xf] %v11145
      %11178 = vst [vmem:[%s224 + $0x6c] sm:$0xf] %v11146
      %11179 = vst [vmem:[%s224 + $0x70] sm:$0xf] %v11147
      %11180 = vst [vmem:[%s224 + $0x74] sm:$0xf] %v11148
      %11181 = vst [vmem:[%s224 + $0x78] sm:$0xf] %v11149
      %11182 = vst [vmem:[%s224 + $0x7c] sm:$0xf] %v11150
      %p11183 = scmp.lt.s32.totalorder %s16, 1
      %s11184 = scalar_select %p11183, %s16, 1
      %s11185 = smul.addr %s11184, 32
      %s11186 = smul.addr %s11185, 4
      %s11187 = scalar_lea.vmem %s5, %s11186
      // Predicated region
      $region45: #{conv_block_forward.1} parent=39 // pred_check
        %p11188 = pneg %p144
      $region46: #{conv_block_forward.1} parent=39 // pred_check_branch
        %11190 = sbr.rel (%p11188) target = $region48
      $region47: #{conv_block_forward.1} parent=39 // pred_region
        _
      $region48: #{conv_block_forward.1} parent=39 // pred_fallthru
        _
    $region40: #{conv_block_forward.1} parent=5 // pred_fallthru
      _
    %p11191 = scmp.le.s32.totalorder 2, %s11
    // Predicated region
    $region49: #{conv_block_forward.1} parent=5 // pred_check
      %p11192 = pneg %p11191
    $region50: #{conv_block_forward.1} parent=5 // pred_check_branch
      %11194 = sbr.rel (%p11192) target = $region52
    $region51: #{conv_block_forward.1} parent=5 // pred_region
      %s11195 = ssub.s32 %s11, 2
      // Predicated region
      $region53: #{conv_block_forward.1} parent=51 // pred_check
        %p11196 = pneg %p150
      $region54: #{conv_block_forward.1} parent=51 // pred_check_branch
        %11198 = sbr.rel (%p11196) target = $region56
      $region55: #{conv_block_forward.1} parent=51 // pred_region
        %p11199 = scmp.lt.s32.totalorder %s17, 1
        %s11200 = scalar_select %p11199, %s17, 1
        %s11201 = smul.addr %s11200, 32
        %s11202 = smul.addr %s11201, 4
        %s11203 = scalar_lea.vmem %s5, %s11202
      $region56: #{conv_block_forward.1} parent=51 // pred_fallthru
        _
    $region52: #{conv_block_forward.1} parent=5 // pred_fallthru
      _
  $region6: #{conv_block_forward.1} parent=0 // loop_footer
    %s15 = sadd.s32 1, %s11
  $region7: #{conv_block_forward.1} parent=0 // loop_footer_branch
    %10 = sbr.rel target = $region3
  $region8: #{conv_block_forward.1} parent=0 // loop_exit
    _

</llo_original>
